<compile_context>
chip_gen: v5e
topology: v5e:2x2
jax: 0.10.0
libtpu: 0.0.40
codegen_flags: <defaults>
</compile_context>

<pallas_src>
import functools

import jax
import jax.numpy as jnp
from jax import lax
from jax.experimental import pallas as pl
from jax.experimental.pallas import tpu as pltpu


def _mgc_kernel(x_ref, wpw_ref, gpw_ref, bpw_ref, wdw_ref, gdw_ref, bdw_ref,
                gmat_ref, mask_ref, o_ref, *, H, W, hidden, paths, k, eps):
    # x_ref:    (1, H*W, Cin)              current sample, channels-last, flattened spatial
    # wpw_ref:  (Cin, paths*hidden)        1x1 conv weight, tiled per path (x @ W)
    # gpw/bpw:  (1, paths*hidden)          GroupNorm affine of the pointwise stage (tiled)
    # wdw_ref:  (paths, k*k, paths*hidden) depthwise tap weights, packed per level (lane-padded)
    # gdw/bdw:  (paths, 1, paths*hidden)   GroupNorm affine per level (lane-padded)
    # gmat_ref: (paths*hidden, paths*hidden) block-averaging matrix (1/(HW*hidden) per group)
    # mask_ref: (k*k, H*W, 1)              boundary-validity mask per tap (0/1 float)
    # o_ref:    (1, H*W, paths*hidden)     fused Hardswish output (lane-dense store)
    HW = H * W
    pad = k // 2

    def group_norm(z, gamma, beta):
        # GroupNorm over contiguous `hidden`-wide channel groups (+ all spatial).
        ca = z.shape[-1]
        g = gmat_ref[...][:ca, :ca]                                  # block-mean matrix
        col_sum = jnp.sum(z, axis=0, keepdims=True)                  # (1, ca)  sublane reduce
        mean_c = jnp.dot(col_sum, g, preferred_element_type=jnp.float32,
                         precision=lax.Precision.HIGHEST)            # per-group mean, per channel
        cent = z - mean_c
        col_sq = jnp.sum(cent * cent, axis=0, keepdims=True)
        var_c = jnp.dot(col_sq, g, preferred_element_type=jnp.float32,
                        precision=lax.Precision.HIGHEST)             # per-group variance
        inv_c = lax.rsqrt(var_c + eps)                               # EUP slot
        # fused affine: one mul + one add per element
        return cent * (inv_c * gamma) + beta

    def dw_conv(z, wtaps):
        # depthwise k x k, stride 1, zero padding k//2, on the flat (HW, C) layout.
        # Each tap = sublane roll (XLU) * boundary mask * per-channel weight (VPU).
        acc = None
        for t in range(k * k):
            dy = t // k - pad
            dx = t % k - pad
            shift = dy * W + dx
            src = z if shift == 0 else pltpu.roll(z, (-shift) % HW, axis=0)
            term = src * wtaps[t:t + 1, :]
            if not (dy == 0 and dx == 0):
                term = term * mask_ref[t]                            # (HW, 1) lane-broadcast
            acc = term if acc is None else acc + term                # first tap inits acc
        return acc

    # pointwise 1x1 conv (no bias) as one MXU matmul, path-tiled -> lane-dense level-1 input.
    x = x_ref[0]                                                     # (HW, Cin)
    y = jnp.dot(x, wpw_ref[...], preferred_element_type=jnp.float32,
                precision=lax.Precision.HIGHEST)                     # (HW, paths*hidden)
    state = group_norm(y, gpw_ref[...], bpw_ref[...])

    # Level-batched depthwise chain: level `lvl` runs the (lvl+1)-th conv of every path
    # that is still active (paths lvl .. paths-1) as one lane-dense conv.
    finished = []
    for lvl in range(paths):
        n_active = paths - lvl
        ca = n_active * hidden
        wl = wdw_ref[lvl][:, :ca]
        gl = gdw_ref[lvl][:, :ca]
        bl = bdw_ref[lvl][:, :ca]
        z = dw_conv(state, wl)
        z = group_norm(z, gl, bl)
        finished.append(z[:, :hidden])                               # path `lvl` is done
        if n_active > 1:
            state = z[:, hidden:]                                    # remaining paths carry on

    out = finished[0] if paths == 1 else jnp.concatenate(finished, axis=-1)
    # Hardswish: x * relu6(x + 3) / 6
    out = out * jnp.clip(out + 3.0, 0.0, 6.0) * (1.0 / 6.0)
    o_ref[0] = out.astype(o_ref.dtype)                               # single lane-dense store


def multi_ghost_conv(x, params, *, paths, dw_size=3, stride=1):
    """Pallas implementation of MultiGhostConv.forward.

    x: (B, Cin, H, W) float32 (NCHW, same as the PyTorch module).
    Returns (B, paths*hidden, H, W).
    """
    assert 1 <= paths <= 4
    # TODO(synk): stride > 1 on the first depthwise conv of each path is not implemented.
    assert stride == 1, "only the module default stride=1 is supported"
    B, Cin, H, W = x.shape
    hidden = params["pw_w"].shape[0]
    k = dw_size
    pad = k // 2
    HW = H * W
    wmax = paths * hidden
    n_levels = paths

    # ---- layout plumbing (XLA side, outside the kernel) ----
    x_cl = jnp.transpose(x, (0, 2, 3, 1)).reshape(B, HW, Cin).astype(jnp.float32)

    # 1x1 conv weight tiled per path: the matmul emits the lane-dense level-1 input directly.
    # GroupNorm(1) stats over identical tiles equal the untiled stats, so tiling the affine
    # params keeps the pointwise GroupNorm exact.
    wpw = params["pw_w"].reshape(hidden, Cin).T.astype(jnp.float32)              # (Cin, hidden)
    wpw_t = jnp.tile(wpw, (1, paths))                                            # (Cin, wmax)
    gpw_t = jnp.tile(params["pw_gamma"].reshape(1, hidden).astype(jnp.float32), (1, paths))
    bpw_t = jnp.tile(params["pw_beta"].reshape(1, hidden).astype(jnp.float32), (1, paths))

    # Depthwise weights / GN affine packed per LEVEL (level lvl batches the (lvl+1)-th conv
    # of every still-active path), lane-padded to a uniform width.
    w_rows, g_rows, b_rows = [], [], []
    for lvl in range(n_levels):
        wb, gb, bb = [], [], []
        for p in range(lvl, paths):
            j = p * (p + 1) // 2 + lvl                                           # flat conv index
            wb.append(params["dw_w"][j].reshape(hidden, k * k).T.astype(jnp.float32))
            gb.append(params["dw_gamma"][j].reshape(1, hidden).astype(jnp.float32))
            bb.append(params["dw_beta"][j].reshape(1, hidden).astype(jnp.float32))
        wl = jnp.concatenate(wb, axis=1)
        gl = jnp.concatenate(gb, axis=1)
        bl = jnp.concatenate(bb, axis=1)
        padw = wmax - wl.shape[1]
        if padw:
            wl = jnp.pad(wl, ((0, 0), (0, padw)))
            gl = jnp.pad(gl, ((0, 0), (0, padw)))
            bl = jnp.pad(bl, ((0, 0), (0, padw)))
        w_rows.append(wl)
        g_rows.append(gl)
        b_rows.append(bl)
    wdw = jnp.stack(w_rows)                                                      # (n_levels, k*k, wmax)
    gdw = jnp.stack(g_rows)                                                      # (n_levels, 1, wmax)
    bdw = jnp.stack(b_rows)                                                      # (n_levels, 1, wmax)

    # Block-averaging matrix: (col_sums @ gmat)[c] = mean of the group containing channel c.
    gidx = jnp.arange(wmax) // hidden
    gmat = (gidx[:, None] == gidx[None, :]).astype(jnp.float32) / float(HW * hidden)

    # Boundary-validity masks (zero-padding semantics) for the k*k tap shifts, built once.
    ii = jnp.arange(HW, dtype=jnp.int32)
    hh, ww = ii // W, ii % W
    mrows = []
    for t in range(k * k):
        dy, dx = t // k - pad, t % k - pad
        valid = (hh + dy >= 0) & (hh + dy < H) & (ww + dx >= 0) & (ww + dx < W)
        mrows.append(valid.astype(jnp.float32).reshape(HW, 1))
    masks = jnp.stack(mrows)                                                     # (k*k, HW, 1)

    kernel = functools.partial(_mgc_kernel, H=H, W=W, hidden=hidden,
                               paths=paths, k=k, eps=1e-5)

    out = pl.pallas_call(
        kernel,
        out_shape=jax.ShapeDtypeStruct((B, HW, wmax), jnp.float32),
        grid_spec=pltpu.PrefetchScalarGridSpec(
            num_scalar_prefetch=0,
            grid=(B,),                                    # one sample per step (>=2 steps: megacore)
            in_specs=[
                pl.BlockSpec((1, HW, Cin), lambda b: (b, 0, 0)),                 # x (streamed)
                pl.BlockSpec((Cin, wmax), lambda b: (0, 0)),                     # W_pw tiled (resident)
                pl.BlockSpec((1, wmax), lambda b: (0, 0)),                       # gamma_pw
                pl.BlockSpec((1, wmax), lambda b: (0, 0)),                       # beta_pw
                pl.BlockSpec((n_levels, k * k, wmax), lambda b: (0, 0, 0)),      # W_dw per level
                pl.BlockSpec((n_levels, 1, wmax), lambda b: (0, 0, 0)),          # gamma_dw
                pl.BlockSpec((n_levels, 1, wmax), lambda b: (0, 0, 0)),          # beta_dw
                pl.BlockSpec((wmax, wmax), lambda b: (0, 0)),                    # group-mean matrix
                pl.BlockSpec((k * k, HW, 1), lambda b: (0, 0, 0)),               # tap masks
            ],
            out_specs=pl.BlockSpec((1, HW, wmax), lambda b: (b, 0, 0)),
        ),
        compiler_params=pltpu.CompilerParams(
            dimension_semantics=("parallel",),
            vmem_limit_bytes=32 * 1024 * 1024),
    )(x_cl, wpw_t, gpw_t, bpw_t, wdw, gdw, bdw, gmat, masks)

    return jnp.transpose(out.reshape(B, H, W, wmax), (0, 3, 1, 2))


def reference(x, params, *, paths, dw_size=3, stride=1, eps=1e-5):
    """Pure-JAX reference mirroring the PyTorch forward (lax.conv based)."""
    hidden = params["pw_w"].shape[0]
    k = dw_size
    dn = ("NCHW", "OIHW", "NCHW")

    def gn(z, gamma, beta):
        mean = jnp.mean(z, axis=(1, 2, 3), keepdims=True)
        var = jnp.mean((z - mean) ** 2, axis=(1, 2, 3), keepdims=True)
        zn = (z - mean) / jnp.sqrt(var + eps)
        return zn * gamma[None, :, None, None] + beta[None, :, None, None]

    y = lax.conv_general_dilated(x, params["pw_w"], (1, 1), "VALID",
                                 dimension_numbers=dn,
                                 precision=lax.Precision.HIGHEST)
    y = gn(y, params["pw_gamma"], params["pw_beta"])

    outs, j = [], 0
    for p in range(paths):
        z = y
        for i in range(p + 1):
            s = stride if i == 0 else 1
            z = lax.conv_general_dilated(z, params["dw_w"][j], (s, s),
                                         [(k // 2, k // 2)] * 2,
                                         dimension_numbers=dn,
                                         feature_group_count=hidden,
                                         precision=lax.Precision.HIGHEST)
            z = gn(z, params["dw_gamma"][j], params["dw_beta"][j])
            j += 1
        outs.append(z)
    out = jnp.concatenate(outs, axis=1)
    return out * jnp.clip(out + 3.0, 0.0, 6.0) / 6.0


if __name__ == "__main__":
    # Small shapes consistent with the module: in_features=32, out_features=128,
    # paths=2 -> hidden=64 per path (output channels = 128, lane-dense), 16x16 spatial.
    B, Cin, H, W = 2, 32, 16, 16
    paths = 2
    out_features = 128
    hidden = out_features // paths
    k = 3
    n_convs = paths * (paths + 1) // 2

    key = jax.random.PRNGKey(0)
    keys = jax.random.split(key, 3 + 3 * n_convs + 1)

    params = {
        "pw_w": 0.1 * jax.random.normal(keys[0], (hidden, Cin, 1, 1), jnp.float32),
        "pw_gamma": 1.0 + 0.1 * jax.random.normal(keys[1], (hidden,), jnp.float32),
        "pw_beta": 0.1 * jax.random.normal(keys[2], (hidden,), jnp.float32),
        "dw_w": [0.2 * jax.random.normal(keys[3 + 3 * j], (hidden, 1, k, k), jnp.float32)
                 for j in range(n_convs)],
        "dw_gamma": [1.0 + 0.1 * jax.random.normal(keys[4 + 3 * j], (hidden,), jnp.float32)
                     for j in range(n_convs)],
        "dw_beta": [0.1 * jax.random.normal(keys[5 + 3 * j], (hidden,), jnp.float32)
                    for j in range(n_convs)],
    }
    x = jax.random.normal(keys[-1], (B, Cin, H, W), jnp.float32)

    out = multi_ghost_conv(x, params, paths=paths, dw_size=k, stride=1)
    ref = reference(x, params, paths=paths, dw_size=k, stride=1)
    jax.block_until_ready((out, ref))

    assert out.shape == (B, paths * hidden, H, W)
    max_err = float(jnp.max(jnp.abs(out - ref)))
    assert jnp.allclose(out, ref, atol=5e-4, rtol=5e-4), f"max abs err {max_err}"

    print("KERNEL_OK")
</pallas_src>

<mosaic_0001>
module attributes {stable_mosaic.version = 11 : i64} {
  func.func @_mgc_kernel(%arg0: i32, %arg1: memref<1x256x32xf32, #tpu.memory_space<vmem>>, %arg2: memref<32x128xf32, #tpu.memory_space<vmem>>, %arg3: memref<1x128xf32, #tpu.memory_space<vmem>>, %arg4: memref<1x128xf32, #tpu.memory_space<vmem>>, %arg5: memref<2x9x128xf32, #tpu.memory_space<vmem>>, %arg6: memref<2x1x128xf32, #tpu.memory_space<vmem>>, %arg7: memref<2x1x128xf32, #tpu.memory_space<vmem>>, %arg8: memref<128x128xf32, #tpu.memory_space<vmem>>, %arg9: memref<9x256x1xf32, #tpu.memory_space<vmem>>, %arg10: memref<1x256x128xf32, #tpu.memory_space<vmem>>) attributes {dimension_semantics = [#tpu.dimension_semantics<parallel>], iteration_bounds = array<i64: 2>, scalar_prefetch = 0 : i64, scratch_operands = 0 : i64, tpu.core_type = #tpu.core_type<tc>, window_params = [{transform_indices = @transform_0, window_bounds = array<i64: 1, 256, 32>}, {pipeline_mode = #tpu.pipeline_mode<synchronous>, transform_indices = @transform_1, window_bounds = array<i64: 32, 128>}, {pipeline_mode = #tpu.pipeline_mode<synchronous>, transform_indices = @transform_2, window_bounds = array<i64: 1, 128>}, {pipeline_mode = #tpu.pipeline_mode<synchronous>, transform_indices = @transform_3, window_bounds = array<i64: 1, 128>}, {pipeline_mode = #tpu.pipeline_mode<synchronous>, transform_indices = @transform_4, window_bounds = array<i64: 2, 9, 128>}, {pipeline_mode = #tpu.pipeline_mode<synchronous>, transform_indices = @transform_5, window_bounds = array<i64: 2, 1, 128>}, {pipeline_mode = #tpu.pipeline_mode<synchronous>, transform_indices = @transform_6, window_bounds = array<i64: 2, 1, 128>}, {pipeline_mode = #tpu.pipeline_mode<synchronous>, transform_indices = @transform_7, window_bounds = array<i64: 128, 128>}, {pipeline_mode = #tpu.pipeline_mode<synchronous>, transform_indices = @transform_8, window_bounds = array<i64: 9, 256, 1>}, {transform_indices = @transform_9, window_bounds = array<i64: 1, 256, 128>}]} {
    %c0 = arith.constant 0 : index
    %c0_0 = arith.constant 0 : index
    %c0_1 = arith.constant 0 : index
    %0 = vector.load %arg1[%c0, %c0_0, %c0_1] : memref<1x256x32xf32, #tpu.memory_space<vmem>>, vector<1x256x32xf32>
    %1 = vector.shape_cast %0 : vector<1x256x32xf32> to vector<256x32xf32>
    %c0_2 = arith.constant 0 : index
    %c0_3 = arith.constant 0 : index
    %2 = vector.load %arg2[%c0_2, %c0_3] : memref<32x128xf32, #tpu.memory_space<vmem>>, vector<32x128xf32>
    %cst = arith.constant dense<0.000000e+00> : vector<256x128xf32>
    %3 = tpu.matmul %1, %2, %cst {dimension_numbers = #tpu.dot_dimension_numbers<[1], [0], [0], [1], [0, 0, 1, 1], [], []>, precision = #tpu.contract_precision<fp32>} : vector<256x32xf32>, vector<32x128xf32>, vector<256x128xf32> -> vector<256x128xf32>
    %c0_4 = arith.constant 0 : index
    %c0_5 = arith.constant 0 : index
    %4 = vector.load %arg3[%c0_4, %c0_5] : memref<1x128xf32, #tpu.memory_space<vmem>>, vector<1x128xf32>
    %c0_6 = arith.constant 0 : index
    %c0_7 = arith.constant 0 : index
    %5 = vector.load %arg4[%c0_6, %c0_7] : memref<1x128xf32, #tpu.memory_space<vmem>>, vector<1x128xf32>
    %c0_8 = arith.constant 0 : index
    %c0_9 = arith.constant 0 : index
    %6 = vector.load %arg8[%c0_8, %c0_9] : memref<128x128xf32, #tpu.memory_space<vmem>>, vector<128x128xf32>
    %cst_10 = arith.constant dense<0.000000e+00> : vector<128xf32>
    %7 = vector.multi_reduction <add>, %3, %cst_10 [0] : vector<256x128xf32> to vector<128xf32>
    %8 = vector.shape_cast %7 : vector<128xf32> to vector<1x128xf32>
    %cst_11 = arith.constant dense<0.000000e+00> : vector<1x128xf32>
    %9 = tpu.matmul %8, %6, %cst_11 {dimension_numbers = #tpu.dot_dimension_numbers<[1], [0], [0], [1], [0, 0, 1, 1], [], []>, precision = #tpu.contract_precision<fp32>} : vector<1x128xf32>, vector<128x128xf32>, vector<1x128xf32> -> vector<1x128xf32>
    %10 = vector.broadcast %9 : vector<1x128xf32> to vector<256x128xf32>
    %11 = arith.subf %3, %10 : vector<256x128xf32>
    %12 = arith.mulf %11, %11 : vector<256x128xf32>
    %cst_12 = arith.constant dense<0.000000e+00> : vector<128xf32>
    %13 = vector.multi_reduction <add>, %12, %cst_12 [0] : vector<256x128xf32> to vector<128xf32>
    %14 = vector.shape_cast %13 : vector<128xf32> to vector<1x128xf32>
    %cst_13 = arith.constant dense<0.000000e+00> : vector<1x128xf32>
    %15 = tpu.matmul %14, %6, %cst_13 {dimension_numbers = #tpu.dot_dimension_numbers<[1], [0], [0], [1], [0, 0, 1, 1], [], []>, precision = #tpu.contract_precision<fp32>} : vector<1x128xf32>, vector<128x128xf32>, vector<1x128xf32> -> vector<1x128xf32>
    %cst_14 = arith.constant 9.99999974E-6 : f32
    %16 = vector.broadcast %cst_14 : f32 to vector<1x128xf32>
    %17 = arith.addf %15, %16 : vector<1x128xf32>
    %18 = math.rsqrt %17 : vector<1x128xf32>
    %19 = arith.mulf %18, %4 : vector<1x128xf32>
    %20 = vector.broadcast %19 : vector<1x128xf32> to vector<256x128xf32>
    %21 = arith.mulf %11, %20 : vector<256x128xf32>
    %22 = vector.broadcast %5 : vector<1x128xf32> to vector<256x128xf32>
    %23 = arith.addf %21, %22 : vector<256x128xf32>
    %c0_15 = arith.constant 0 : index
    %c0_16 = arith.constant 0 : index
    %c0_17 = arith.constant 0 : index
    %24 = vector.load %arg5[%c0_15, %c0_16, %c0_17] : memref<2x9x128xf32, #tpu.memory_space<vmem>>, vector<1x9x128xf32>
    %25 = vector.shape_cast %24 : vector<1x9x128xf32> to vector<9x128xf32>
    %c0_18 = arith.constant 0 : index
    %c0_19 = arith.constant 0 : index
    %c0_20 = arith.constant 0 : index
    %26 = vector.load %arg6[%c0_18, %c0_19, %c0_20] : memref<2x1x128xf32, #tpu.memory_space<vmem>>, vector<1x1x128xf32>
    %27 = vector.shape_cast %26 : vector<1x1x128xf32> to vector<1x128xf32>
    %c0_21 = arith.constant 0 : index
    %c0_22 = arith.constant 0 : index
    %c0_23 = arith.constant 0 : index
    %28 = vector.load %arg7[%c0_21, %c0_22, %c0_23] : memref<2x1x128xf32, #tpu.memory_space<vmem>>, vector<1x1x128xf32>
    %29 = vector.shape_cast %28 : vector<1x1x128xf32> to vector<1x128xf32>
    %c17_i32 = arith.constant 17 : i32
    %30 = tpu.dynamic_rotate %23 by %c17_i32 dim 0 : vector<256x128xf32>, i32 -> vector<256x128xf32>
    %31 = vector.extract_strided_slice %25 {offsets = [0, 0], sizes = [1, 128], strides = [1, 1]} : vector<9x128xf32> to vector<1x128xf32>
    %32 = vector.broadcast %31 : vector<1x128xf32> to vector<256x128xf32>
    %33 = arith.mulf %30, %32 : vector<256x128xf32>
    %c0_24 = arith.constant 0 : index
    %c0_25 = arith.constant 0 : index
    %c0_26 = arith.constant 0 : index
    %34 = vector.load %arg9[%c0_24, %c0_25, %c0_26] : memref<9x256x1xf32, #tpu.memory_space<vmem>>, vector<1x256x1xf32>
    %35 = vector.shape_cast %34 : vector<1x256x1xf32> to vector<256x1xf32>
    %36 = vector.broadcast %35 : vector<256x1xf32> to vector<256x128xf32>
    %37 = arith.mulf %33, %36 : vector<256x128xf32>
    %c16_i32 = arith.constant 16 : i32
    %38 = tpu.dynamic_rotate %23 by %c16_i32 dim 0 : vector<256x128xf32>, i32 -> vector<256x128xf32>
    %39 = vector.extract_strided_slice %25 {offsets = [1, 0], sizes = [1, 128], strides = [1, 1]} : vector<9x128xf32> to vector<1x128xf32>
    %40 = vector.broadcast %39 : vector<1x128xf32> to vector<256x128xf32>
    %41 = arith.mulf %38, %40 : vector<256x128xf32>
    %c1 = arith.constant 1 : index
    %c0_27 = arith.constant 0 : index
    %c0_28 = arith.constant 0 : index
    %42 = vector.load %arg9[%c1, %c0_27, %c0_28] : memref<9x256x1xf32, #tpu.memory_space<vmem>>, vector<1x256x1xf32>
    %43 = vector.shape_cast %42 : vector<1x256x1xf32> to vector<256x1xf32>
    %44 = vector.broadcast %43 : vector<256x1xf32> to vector<256x128xf32>
    %45 = arith.mulf %41, %44 : vector<256x128xf32>
    %46 = arith.addf %37, %45 : vector<256x128xf32>
    %c15_i32 = arith.constant 15 : i32
    %47 = tpu.dynamic_rotate %23 by %c15_i32 dim 0 : vector<256x128xf32>, i32 -> vector<256x128xf32>
    %48 = vector.extract_strided_slice %25 {offsets = [2, 0], sizes = [1, 128], strides = [1, 1]} : vector<9x128xf32> to vector<1x128xf32>
    %49 = vector.broadcast %48 : vector<1x128xf32> to vector<256x128xf32>
    %50 = arith.mulf %47, %49 : vector<256x128xf32>
    %c2 = arith.constant 2 : index
    %c0_29 = arith.constant 0 : index
    %c0_30 = arith.constant 0 : index
    %51 = vector.load %arg9[%c2, %c0_29, %c0_30] : memref<9x256x1xf32, #tpu.memory_space<vmem>>, vector<1x256x1xf32>
    %52 = vector.shape_cast %51 : vector<1x256x1xf32> to vector<256x1xf32>
    %53 = vector.broadcast %52 : vector<256x1xf32> to vector<256x128xf32>
    %54 = arith.mulf %50, %53 : vector<256x128xf32>
    %55 = arith.addf %46, %54 : vector<256x128xf32>
    %c1_i32 = arith.constant 1 : i32
    %56 = tpu.dynamic_rotate %23 by %c1_i32 dim 0 : vector<256x128xf32>, i32 -> vector<256x128xf32>
    %57 = vector.extract_strided_slice %25 {offsets = [3, 0], sizes = [1, 128], strides = [1, 1]} : vector<9x128xf32> to vector<1x128xf32>
    %58 = vector.broadcast %57 : vector<1x128xf32> to vector<256x128xf32>
    %59 = arith.mulf %56, %58 : vector<256x128xf32>
    %c3 = arith.constant 3 : index
    %c0_31 = arith.constant 0 : index
    %c0_32 = arith.constant 0 : index
    %60 = vector.load %arg9[%c3, %c0_31, %c0_32] : memref<9x256x1xf32, #tpu.memory_space<vmem>>, vector<1x256x1xf32>
    %61 = vector.shape_cast %60 : vector<1x256x1xf32> to vector<256x1xf32>
    %62 = vector.broadcast %61 : vector<256x1xf32> to vector<256x128xf32>
    %63 = arith.mulf %59, %62 : vector<256x128xf32>
    %64 = arith.addf %55, %63 : vector<256x128xf32>
    %65 = vector.extract_strided_slice %25 {offsets = [4, 0], sizes = [1, 128], strides = [1, 1]} : vector<9x128xf32> to vector<1x128xf32>
    %66 = vector.broadcast %65 : vector<1x128xf32> to vector<256x128xf32>
    %67 = arith.mulf %23, %66 : vector<256x128xf32>
    %68 = arith.addf %64, %67 : vector<256x128xf32>
    %c255_i32 = arith.constant 255 : i32
    %69 = tpu.dynamic_rotate %23 by %c255_i32 dim 0 : vector<256x128xf32>, i32 -> vector<256x128xf32>
    %70 = vector.extract_strided_slice %25 {offsets = [5, 0], sizes = [1, 128], strides = [1, 1]} : vector<9x128xf32> to vector<1x128xf32>
    %71 = vector.broadcast %70 : vector<1x128xf32> to vector<256x128xf32>
    %72 = arith.mulf %69, %71 : vector<256x128xf32>
    %c5 = arith.constant 5 : index
    %c0_33 = arith.constant 0 : index
    %c0_34 = arith.constant 0 : index
    %73 = vector.load %arg9[%c5, %c0_33, %c0_34] : memref<9x256x1xf32, #tpu.memory_space<vmem>>, vector<1x256x1xf32>
    %74 = vector.shape_cast %73 : vector<1x256x1xf32> to vector<256x1xf32>
    %75 = vector.broadcast %74 : vector<256x1xf32> to vector<256x128xf32>
    %76 = arith.mulf %72, %75 : vector<256x128xf32>
    %77 = arith.addf %68, %76 : vector<256x128xf32>
    %c241_i32 = arith.constant 241 : i32
    %78 = tpu.dynamic_rotate %23 by %c241_i32 dim 0 : vector<256x128xf32>, i32 -> vector<256x128xf32>
    %79 = vector.extract_strided_slice %25 {offsets = [6, 0], sizes = [1, 128], strides = [1, 1]} : vector<9x128xf32> to vector<1x128xf32>
    %80 = vector.broadcast %79 : vector<1x128xf32> to vector<256x128xf32>
    %81 = arith.mulf %78, %80 : vector<256x128xf32>
    %c6 = arith.constant 6 : index
    %c0_35 = arith.constant 0 : index
    %c0_36 = arith.constant 0 : index
    %82 = vector.load %arg9[%c6, %c0_35, %c0_36] : memref<9x256x1xf32, #tpu.memory_space<vmem>>, vector<1x256x1xf32>
    %83 = vector.shape_cast %82 : vector<1x256x1xf32> to vector<256x1xf32>
    %84 = vector.broadcast %83 : vector<256x1xf32> to vector<256x128xf32>
    %85 = arith.mulf %81, %84 : vector<256x128xf32>
    %86 = arith.addf %77, %85 : vector<256x128xf32>
    %c240_i32 = arith.constant 240 : i32
    %87 = tpu.dynamic_rotate %23 by %c240_i32 dim 0 : vector<256x128xf32>, i32 -> vector<256x128xf32>
    %88 = vector.extract_strided_slice %25 {offsets = [7, 0], sizes = [1, 128], strides = [1, 1]} : vector<9x128xf32> to vector<1x128xf32>
    %89 = vector.broadcast %88 : vector<1x128xf32> to vector<256x128xf32>
    %90 = arith.mulf %87, %89 : vector<256x128xf32>
    %c7 = arith.constant 7 : index
    %c0_37 = arith.constant 0 : index
    %c0_38 = arith.constant 0 : index
    %91 = vector.load %arg9[%c7, %c0_37, %c0_38] : memref<9x256x1xf32, #tpu.memory_space<vmem>>, vector<1x256x1xf32>
    %92 = vector.shape_cast %91 : vector<1x256x1xf32> to vector<256x1xf32>
    %93 = vector.broadcast %92 : vector<256x1xf32> to vector<256x128xf32>
    %94 = arith.mulf %90, %93 : vector<256x128xf32>
    %95 = arith.addf %86, %94 : vector<256x128xf32>
    %c239_i32 = arith.constant 239 : i32
    %96 = tpu.dynamic_rotate %23 by %c239_i32 dim 0 : vector<256x128xf32>, i32 -> vector<256x128xf32>
    %97 = vector.extract_strided_slice %25 {offsets = [8, 0], sizes = [1, 128], strides = [1, 1]} : vector<9x128xf32> to vector<1x128xf32>
    %98 = vector.broadcast %97 : vector<1x128xf32> to vector<256x128xf32>
    %99 = arith.mulf %96, %98 : vector<256x128xf32>
    %c8 = arith.constant 8 : index
    %c0_39 = arith.constant 0 : index
    %c0_40 = arith.constant 0 : index
    %100 = vector.load %arg9[%c8, %c0_39, %c0_40] : memref<9x256x1xf32, #tpu.memory_space<vmem>>, vector<1x256x1xf32>
    %101 = vector.shape_cast %100 : vector<1x256x1xf32> to vector<256x1xf32>
    %102 = vector.broadcast %101 : vector<256x1xf32> to vector<256x128xf32>
    %103 = arith.mulf %99, %102 : vector<256x128xf32>
    %104 = arith.addf %95, %103 : vector<256x128xf32>
    %c0_41 = arith.constant 0 : index
    %c0_42 = arith.constant 0 : index
    %105 = vector.load %arg8[%c0_41, %c0_42] : memref<128x128xf32, #tpu.memory_space<vmem>>, vector<128x128xf32>
    %cst_43 = arith.constant dense<0.000000e+00> : vector<128xf32>
    %106 = vector.multi_reduction <add>, %104, %cst_43 [0] : vector<256x128xf32> to vector<128xf32>
    %107 = vector.shape_cast %106 : vector<128xf32> to vector<1x128xf32>
    %cst_44 = arith.constant dense<0.000000e+00> : vector<1x128xf32>
    %108 = tpu.matmul %107, %105, %cst_44 {dimension_numbers = #tpu.dot_dimension_numbers<[1], [0], [0], [1], [0, 0, 1, 1], [], []>, precision = #tpu.contract_precision<fp32>} : vector<1x128xf32>, vector<128x128xf32>, vector<1x128xf32> -> vector<1x128xf32>
    %109 = vector.broadcast %108 : vector<1x128xf32> to vector<256x128xf32>
    %110 = arith.subf %104, %109 : vector<256x128xf32>
    %111 = arith.mulf %110, %110 : vector<256x128xf32>
    %cst_45 = arith.constant dense<0.000000e+00> : vector<128xf32>
    %112 = vector.multi_reduction <add>, %111, %cst_45 [0] : vector<256x128xf32> to vector<128xf32>
    %113 = vector.shape_cast %112 : vector<128xf32> to vector<1x128xf32>
    %cst_46 = arith.constant dense<0.000000e+00> : vector<1x128xf32>
    %114 = tpu.matmul %113, %105, %cst_46 {dimension_numbers = #tpu.dot_dimension_numbers<[1], [0], [0], [1], [0, 0, 1, 1], [], []>, precision = #tpu.contract_precision<fp32>} : vector<1x128xf32>, vector<128x128xf32>, vector<1x128xf32> -> vector<1x128xf32>
    %cst_47 = arith.constant 9.99999974E-6 : f32
    %115 = vector.broadcast %cst_47 : f32 to vector<1x128xf32>
    %116 = arith.addf %114, %115 : vector<1x128xf32>
    %117 = math.rsqrt %116 : vector<1x128xf32>
    %118 = arith.mulf %117, %27 : vector<1x128xf32>
    %119 = vector.broadcast %118 : vector<1x128xf32> to vector<256x128xf32>
    %120 = arith.mulf %110, %119 : vector<256x128xf32>
    %121 = vector.broadcast %29 : vector<1x128xf32> to vector<256x128xf32>
    %122 = arith.addf %120, %121 : vector<256x128xf32>
    %123 = vector.extract_strided_slice %122 {offsets = [0, 0], sizes = [256, 64], strides = [1, 1]} : vector<256x128xf32> to vector<256x64xf32>
    %124 = vector.extract_strided_slice %122 {offsets = [0, 64], sizes = [256, 64], strides = [1, 1]} : vector<256x128xf32> to vector<256x64xf32>
    %c1_48 = arith.constant 1 : index
    %c0_49 = arith.constant 0 : index
    %c0_50 = arith.constant 0 : index
    %125 = vector.load %arg5[%c1_48, %c0_49, %c0_50] : memref<2x9x128xf32, #tpu.memory_space<vmem>>, vector<1x9x128xf32>
    %126 = vector.shape_cast %125 : vector<1x9x128xf32> to vector<9x128xf32>
    %127 = vector.extract_strided_slice %126 {offsets = [0, 0], sizes = [9, 64], strides = [1, 1]} : vector<9x128xf32> to vector<9x64xf32>
    %c1_51 = arith.constant 1 : index
    %c0_52 = arith.constant 0 : index
    %c0_53 = arith.constant 0 : index
    %128 = vector.load %arg6[%c1_51, %c0_52, %c0_53] : memref<2x1x128xf32, #tpu.memory_space<vmem>>, vector<1x1x128xf32>
    %129 = vector.shape_cast %128 : vector<1x1x128xf32> to vector<1x128xf32>
    %130 = vector.extract_strided_slice %129 {offsets = [0, 0], sizes = [1, 64], strides = [1, 1]} : vector<1x128xf32> to vector<1x64xf32>
    %c1_54 = arith.constant 1 : index
    %c0_55 = arith.constant 0 : index
    %c0_56 = arith.constant 0 : index
    %131 = vector.load %arg7[%c1_54, %c0_55, %c0_56] : memref<2x1x128xf32, #tpu.memory_space<vmem>>, vector<1x1x128xf32>
    %132 = vector.shape_cast %131 : vector<1x1x128xf32> to vector<1x128xf32>
    %133 = vector.extract_strided_slice %132 {offsets = [0, 0], sizes = [1, 64], strides = [1, 1]} : vector<1x128xf32> to vector<1x64xf32>
    %c17_i32_57 = arith.constant 17 : i32
    %134 = tpu.dynamic_rotate %124 by %c17_i32_57 dim 0 : vector<256x64xf32>, i32 -> vector<256x64xf32>
    %135 = vector.extract_strided_slice %127 {offsets = [0, 0], sizes = [1, 64], strides = [1, 1]} : vector<9x64xf32> to vector<1x64xf32>
    %136 = vector.broadcast %135 : vector<1x64xf32> to vector<256x64xf32>
    %137 = arith.mulf %134, %136 : vector<256x64xf32>
    %c0_58 = arith.constant 0 : index
    %c0_59 = arith.constant 0 : index
    %c0_60 = arith.constant 0 : index
    %138 = vector.load %arg9[%c0_58, %c0_59, %c0_60] : memref<9x256x1xf32, #tpu.memory_space<vmem>>, vector<1x256x1xf32>
    %139 = vector.shape_cast %138 : vector<1x256x1xf32> to vector<256x1xf32>
    %140 = vector.broadcast %139 : vector<256x1xf32> to vector<256x64xf32>
    %141 = arith.mulf %137, %140 : vector<256x64xf32>
    %c16_i32_61 = arith.constant 16 : i32
    %142 = tpu.dynamic_rotate %124 by %c16_i32_61 dim 0 : vector<256x64xf32>, i32 -> vector<256x64xf32>
    %143 = vector.extract_strided_slice %127 {offsets = [1, 0], sizes = [1, 64], strides = [1, 1]} : vector<9x64xf32> to vector<1x64xf32>
    %144 = vector.broadcast %143 : vector<1x64xf32> to vector<256x64xf32>
    %145 = arith.mulf %142, %144 : vector<256x64xf32>
    %c1_62 = arith.constant 1 : index
    %c0_63 = arith.constant 0 : index
    %c0_64 = arith.constant 0 : index
    %146 = vector.load %arg9[%c1_62, %c0_63, %c0_64] : memref<9x256x1xf32, #tpu.memory_space<vmem>>, vector<1x256x1xf32>
    %147 = vector.shape_cast %146 : vector<1x256x1xf32> to vector<256x1xf32>
    %148 = vector.broadcast %147 : vector<256x1xf32> to vector<256x64xf32>
    %149 = arith.mulf %145, %148 : vector<256x64xf32>
    %150 = arith.addf %141, %149 : vector<256x64xf32>
    %c15_i32_65 = arith.constant 15 : i32
    %151 = tpu.dynamic_rotate %124 by %c15_i32_65 dim 0 : vector<256x64xf32>, i32 -> vector<256x64xf32>
    %152 = vector.extract_strided_slice %127 {offsets = [2, 0], sizes = [1, 64], strides = [1, 1]} : vector<9x64xf32> to vector<1x64xf32>
    %153 = vector.broadcast %152 : vector<1x64xf32> to vector<256x64xf32>
    %154 = arith.mulf %151, %153 : vector<256x64xf32>
    %c2_66 = arith.constant 2 : index
    %c0_67 = arith.constant 0 : index
    %c0_68 = arith.constant 0 : index
    %155 = vector.load %arg9[%c2_66, %c0_67, %c0_68] : memref<9x256x1xf32, #tpu.memory_space<vmem>>, vector<1x256x1xf32>
    %156 = vector.shape_cast %155 : vector<1x256x1xf32> to vector<256x1xf32>
    %157 = vector.broadcast %156 : vector<256x1xf32> to vector<256x64xf32>
    %158 = arith.mulf %154, %157 : vector<256x64xf32>
    %159 = arith.addf %150, %158 : vector<256x64xf32>
    %c1_i32_69 = arith.constant 1 : i32
    %160 = tpu.dynamic_rotate %124 by %c1_i32_69 dim 0 : vector<256x64xf32>, i32 -> vector<256x64xf32>
    %161 = vector.extract_strided_slice %127 {offsets = [3, 0], sizes = [1, 64], strides = [1, 1]} : vector<9x64xf32> to vector<1x64xf32>
    %162 = vector.broadcast %161 : vector<1x64xf32> to vector<256x64xf32>
    %163 = arith.mulf %160, %162 : vector<256x64xf32>
    %c3_70 = arith.constant 3 : index
    %c0_71 = arith.constant 0 : index
    %c0_72 = arith.constant 0 : index
    %164 = vector.load %arg9[%c3_70, %c0_71, %c0_72] : memref<9x256x1xf32, #tpu.memory_space<vmem>>, vector<1x256x1xf32>
    %165 = vector.shape_cast %164 : vector<1x256x1xf32> to vector<256x1xf32>
    %166 = vector.broadcast %165 : vector<256x1xf32> to vector<256x64xf32>
    %167 = arith.mulf %163, %166 : vector<256x64xf32>
    %168 = arith.addf %159, %167 : vector<256x64xf32>
    %169 = vector.extract_strided_slice %127 {offsets = [4, 0], sizes = [1, 64], strides = [1, 1]} : vector<9x64xf32> to vector<1x64xf32>
    %170 = vector.broadcast %169 : vector<1x64xf32> to vector<256x64xf32>
    %171 = arith.mulf %124, %170 : vector<256x64xf32>
    %172 = arith.addf %168, %171 : vector<256x64xf32>
    %c255_i32_73 = arith.constant 255 : i32
    %173 = tpu.dynamic_rotate %124 by %c255_i32_73 dim 0 : vector<256x64xf32>, i32 -> vector<256x64xf32>
    %174 = vector.extract_strided_slice %127 {offsets = [5, 0], sizes = [1, 64], strides = [1, 1]} : vector<9x64xf32> to vector<1x64xf32>
    %175 = vector.broadcast %174 : vector<1x64xf32> to vector<256x64xf32>
    %176 = arith.mulf %173, %175 : vector<256x64xf32>
    %c5_74 = arith.constant 5 : index
    %c0_75 = arith.constant 0 : index
    %c0_76 = arith.constant 0 : index
    %177 = vector.load %arg9[%c5_74, %c0_75, %c0_76] : memref<9x256x1xf32, #tpu.memory_space<vmem>>, vector<1x256x1xf32>
    %178 = vector.shape_cast %177 : vector<1x256x1xf32> to vector<256x1xf32>
    %179 = vector.broadcast %178 : vector<256x1xf32> to vector<256x64xf32>
    %180 = arith.mulf %176, %179 : vector<256x64xf32>
    %181 = arith.addf %172, %180 : vector<256x64xf32>
    %c241_i32_77 = arith.constant 241 : i32
    %182 = tpu.dynamic_rotate %124 by %c241_i32_77 dim 0 : vector<256x64xf32>, i32 -> vector<256x64xf32>
    %183 = vector.extract_strided_slice %127 {offsets = [6, 0], sizes = [1, 64], strides = [1, 1]} : vector<9x64xf32> to vector<1x64xf32>
    %184 = vector.broadcast %183 : vector<1x64xf32> to vector<256x64xf32>
    %185 = arith.mulf %182, %184 : vector<256x64xf32>
    %c6_78 = arith.constant 6 : index
    %c0_79 = arith.constant 0 : index
    %c0_80 = arith.constant 0 : index
    %186 = vector.load %arg9[%c6_78, %c0_79, %c0_80] : memref<9x256x1xf32, #tpu.memory_space<vmem>>, vector<1x256x1xf32>
    %187 = vector.shape_cast %186 : vector<1x256x1xf32> to vector<256x1xf32>
    %188 = vector.broadcast %187 : vector<256x1xf32> to vector<256x64xf32>
    %189 = arith.mulf %185, %188 : vector<256x64xf32>
    %190 = arith.addf %181, %189 : vector<256x64xf32>
    %c240_i32_81 = arith.constant 240 : i32
    %191 = tpu.dynamic_rotate %124 by %c240_i32_81 dim 0 : vector<256x64xf32>, i32 -> vector<256x64xf32>
    %192 = vector.extract_strided_slice %127 {offsets = [7, 0], sizes = [1, 64], strides = [1, 1]} : vector<9x64xf32> to vector<1x64xf32>
    %193 = vector.broadcast %192 : vector<1x64xf32> to vector<256x64xf32>
    %194 = arith.mulf %191, %193 : vector<256x64xf32>
    %c7_82 = arith.constant 7 : index
    %c0_83 = arith.constant 0 : index
    %c0_84 = arith.constant 0 : index
    %195 = vector.load %arg9[%c7_82, %c0_83, %c0_84] : memref<9x256x1xf32, #tpu.memory_space<vmem>>, vector<1x256x1xf32>
    %196 = vector.shape_cast %195 : vector<1x256x1xf32> to vector<256x1xf32>
    %197 = vector.broadcast %196 : vector<256x1xf32> to vector<256x64xf32>
    %198 = arith.mulf %194, %197 : vector<256x64xf32>
    %199 = arith.addf %190, %198 : vector<256x64xf32>
    %c239_i32_85 = arith.constant 239 : i32
    %200 = tpu.dynamic_rotate %124 by %c239_i32_85 dim 0 : vector<256x64xf32>, i32 -> vector<256x64xf32>
    %201 = vector.extract_strided_slice %127 {offsets = [8, 0], sizes = [1, 64], strides = [1, 1]} : vector<9x64xf32> to vector<1x64xf32>
    %202 = vector.broadcast %201 : vector<1x64xf32> to vector<256x64xf32>
    %203 = arith.mulf %200, %202 : vector<256x64xf32>
    %c8_86 = arith.constant 8 : index
    %c0_87 = arith.constant 0 : index
    %c0_88 = arith.constant 0 : index
    %204 = vector.load %arg9[%c8_86, %c0_87, %c0_88] : memref<9x256x1xf32, #tpu.memory_space<vmem>>, vector<1x256x1xf32>
    %205 = vector.shape_cast %204 : vector<1x256x1xf32> to vector<256x1xf32>
    %206 = vector.broadcast %205 : vector<256x1xf32> to vector<256x64xf32>
    %207 = arith.mulf %203, %206 : vector<256x64xf32>
    %208 = arith.addf %199, %207 : vector<256x64xf32>
    %c0_89 = arith.constant 0 : index
    %c0_90 = arith.constant 0 : index
    %209 = vector.load %arg8[%c0_89, %c0_90] : memref<128x128xf32, #tpu.memory_space<vmem>>, vector<128x128xf32>
    %210 = vector.extract_strided_slice %209 {offsets = [0, 0], sizes = [64, 64], strides = [1, 1]} : vector<128x128xf32> to vector<64x64xf32>
    %cst_91 = arith.constant dense<0.000000e+00> : vector<64xf32>
    %211 = vector.multi_reduction <add>, %208, %cst_91 [0] : vector<256x64xf32> to vector<64xf32>
    %212 = vector.shape_cast %211 : vector<64xf32> to vector<1x64xf32>
    %cst_92 = arith.constant dense<0.000000e+00> : vector<1x64xf32>
    %213 = tpu.matmul %212, %210, %cst_92 {dimension_numbers = #tpu.dot_dimension_numbers<[1], [0], [0], [1], [0, 0, 1, 1], [], []>, precision = #tpu.contract_precision<fp32>} : vector<1x64xf32>, vector<64x64xf32>, vector<1x64xf32> -> vector<1x64xf32>
    %214 = vector.broadcast %213 : vector<1x64xf32> to vector<256x64xf32>
    %215 = arith.subf %208, %214 : vector<256x64xf32>
    %216 = arith.mulf %215, %215 : vector<256x64xf32>
    %cst_93 = arith.constant dense<0.000000e+00> : vector<64xf32>
    %217 = vector.multi_reduction <add>, %216, %cst_93 [0] : vector<256x64xf32> to vector<64xf32>
    %218 = vector.shape_cast %217 : vector<64xf32> to vector<1x64xf32>
    %cst_94 = arith.constant dense<0.000000e+00> : vector<1x64xf32>
    %219 = tpu.matmul %218, %210, %cst_94 {dimension_numbers = #tpu.dot_dimension_numbers<[1], [0], [0], [1], [0, 0, 1, 1], [], []>, precision = #tpu.contract_precision<fp32>} : vector<1x64xf32>, vector<64x64xf32>, vector<1x64xf32> -> vector<1x64xf32>
    %cst_95 = arith.constant 9.99999974E-6 : f32
    %220 = vector.broadcast %cst_95 : f32 to vector<1x64xf32>
    %221 = arith.addf %219, %220 : vector<1x64xf32>
    %222 = math.rsqrt %221 : vector<1x64xf32>
    %223 = arith.mulf %222, %130 : vector<1x64xf32>
    %224 = vector.broadcast %223 : vector<1x64xf32> to vector<256x64xf32>
    %225 = arith.mulf %215, %224 : vector<256x64xf32>
    %226 = vector.broadcast %133 : vector<1x64xf32> to vector<256x64xf32>
    %227 = arith.addf %225, %226 : vector<256x64xf32>
    %228 = tpu.concatenate %123, %227 in 1 : vector<256x64xf32>, vector<256x64xf32> -> vector<256x128xf32>
    %cst_96 = arith.constant 3.000000e+00 : f32
    %229 = vector.broadcast %cst_96 : f32 to vector<256x128xf32>
    %230 = arith.addf %228, %229 : vector<256x128xf32>
    %cst_97 = arith.constant 0.000000e+00 : f32
    %cst_98 = arith.constant 6.000000e+00 : f32
    %231 = vector.broadcast %cst_97 : f32 to vector<256x128xf32>
    %232 = arith.maximumf %231, %230 : vector<256x128xf32>
    %233 = vector.broadcast %cst_98 : f32 to vector<256x128xf32>
    %234 = arith.minimumf %233, %232 : vector<256x128xf32>
    %235 = arith.mulf %228, %234 : vector<256x128xf32>
    %cst_99 = arith.constant 0.166666672 : f32
    %236 = vector.broadcast %cst_99 : f32 to vector<256x128xf32>
    %237 = arith.mulf %235, %236 : vector<256x128xf32>
    %c0_100 = arith.constant 0 : index
    %c0_101 = arith.constant 0 : index
    %c0_102 = arith.constant 0 : index
    %238 = vector.load %arg10[%c0_100, %c0_101, %c0_102] : memref<1x256x128xf32, #tpu.memory_space<vmem>>, vector<1x256x128xf32>
    %239 = vector.shape_cast %238 : vector<1x256x128xf32> to vector<256x128xf32>
    %240 = vector.shape_cast %237 : vector<256x128xf32> to vector<1x256x128xf32>
    tpu.vector_store %arg10[%c0_100, %c0_101, %c0_102], %240 {strides = array<i32>} : memref<1x256x128xf32, #tpu.memory_space<vmem>>, vector<1x256x128xf32>,
    return
  }
  func.func @transform_0(%arg0: i32) -> (i32, i32, i32) {
    %c0_i32 = arith.constant 0 : i32
    %c0_i32_0 = arith.constant 0 : i32
    %c0_i32_1 = arith.constant 0 : i32
    return %arg0, %c0_i32, %c0_i32_0 : i32, i32, i32
  }
  func.func @transform_1(%arg0: i32) -> (i32, i32) {
    %c0_i32 = arith.constant 0 : i32
    %c0_i32_0 = arith.constant 0 : i32
    %c0_i32_1 = arith.constant 0 : i32
    return %c0_i32, %c0_i32_0 : i32, i32
  }
  func.func @transform_2(%arg0: i32) -> (i32, i32) {
    %c0_i32 = arith.constant 0 : i32
    %c0_i32_0 = arith.constant 0 : i32
    %c0_i32_1 = arith.constant 0 : i32
    return %c0_i32, %c0_i32_0 : i32, i32
  }
  func.func @transform_3(%arg0: i32) -> (i32, i32) {
    %c0_i32 = arith.constant 0 : i32
    %c0_i32_0 = arith.constant 0 : i32
    %c0_i32_1 = arith.constant 0 : i32
    return %c0_i32, %c0_i32_0 : i32, i32
  }
  func.func @transform_4(%arg0: i32) -> (i32, i32, i32) {
    %c0_i32 = arith.constant 0 : i32
    %c0_i32_0 = arith.constant 0 : i32
    %c0_i32_1 = arith.constant 0 : i32
    %c0_i32_2 = arith.constant 0 : i32
    return %c0_i32, %c0_i32_0, %c0_i32_1 : i32, i32, i32
  }
  func.func @transform_5(%arg0: i32) -> (i32, i32, i32) {
    %c0_i32 = arith.constant 0 : i32
    %c0_i32_0 = arith.constant 0 : i32
    %c0_i32_1 = arith.constant 0 : i32
    %c0_i32_2 = arith.constant 0 : i32
    return %c0_i32, %c0_i32_0, %c0_i32_1 : i32, i32, i32
  }
  func.func @transform_6(%arg0: i32) -> (i32, i32, i32) {
    %c0_i32 = arith.constant 0 : i32
    %c0_i32_0 = arith.constant 0 : i32
    %c0_i32_1 = arith.constant 0 : i32
    %c0_i32_2 = arith.constant 0 : i32
    return %c0_i32, %c0_i32_0, %c0_i32_1 : i32, i32, i32
  }
  func.func @transform_7(%arg0: i32) -> (i32, i32) {
    %c0_i32 = arith.constant 0 : i32
    %c0_i32_0 = arith.constant 0 : i32
    %c0_i32_1 = arith.constant 0 : i32
    return %c0_i32, %c0_i32_0 : i32, i32
  }
  func.func @transform_8(%arg0: i32) -> (i32, i32, i32) {
    %c0_i32 = arith.constant 0 : i32
    %c0_i32_0 = arith.constant 0 : i32
    %c0_i32_1 = arith.constant 0 : i32
    %c0_i32_2 = arith.constant 0 : i32
    return %c0_i32, %c0_i32_0, %c0_i32_1 : i32, i32, i32
  }
  func.func @transform_9(%arg0: i32) -> (i32, i32, i32) {
    %c0_i32 = arith.constant 0 : i32
    %c0_i32_0 = arith.constant 0 : i32
    %c0_i32_1 = arith.constant 0 : i32
    return %arg0, %c0_i32, %c0_i32_0 : i32, i32, i32
  }
}

</mosaic_0001>

<llo_original>
// kernel: tpu_custom_call.1
$region0: #{tpu_custom_call.1}
  #allocation0 [shape = 'u32[]', space=smem, size = 0x4, offset = 0x4, fixed_abs, tag = 'smem constant byte address 0x4 - core index']
  #allocation1 [shape = 'u32[72,128]{1,0:T(1,128)}', space=vmem, size = 0x9000, scoped, tag = 'internal scratch']
  %s0 = inlined_call_operand.vmem [shape: f32[2,256,32], index: 0, kind: input, shape index: {}]
  %s1 = inlined_call_operand.vmem [shape: f32[32,128], index: 1, kind: input, shape index: {}]
  %s2 = inlined_call_operand.vmem [shape: f32[1,128], index: 2, kind: input, shape index: {}]
  %s3 = inlined_call_operand.vmem [shape: f32[1,128], index: 3, kind: input, shape index: {}]
  %s4 = inlined_call_operand.vmem [shape: f32[2,9,128], index: 4, kind: input, shape index: {}]
  %s5 = inlined_call_operand.vmem [shape: f32[2,1,128], index: 5, kind: input, shape index: {}]
  %s6 = inlined_call_operand.vmem [shape: f32[2,1,128], index: 6, kind: input, shape index: {}]
  %s7 = inlined_call_operand.vmem [shape: f32[128,128], index: 7, kind: input, shape index: {}]
  %s8 = inlined_call_operand.vmem [shape: f32[9,256,1], index: 8, kind: input, shape index: {}]
  %s9 = inlined_call_operand.hbm [shape: f32[2,256,128], index: 9, kind: output, shape index: {}]
  %s10 = sld [smem:[#allocation0]]
  $region69: #{tpu_custom_call.1} parent=0
    _
  %s12 = ssub.s32 1, %s10
  %s13 = scalar_select 0, %s12, %s10
  $region1: #{tpu_custom_call.1} parent=0
    #allocation2 [shape = 'u8[262144]{0}', space=vmem, size = 0x40000, scoped, tag = 'output window, operand 0']
    #allocation3 [shape = 's32[2]{0}', space=sflag, size = 0x8, scoped, tag = 'scoped memory for tpu_custom_call.1']
    %14 = vsyncpa [#allocation3], 0
    %s15 = scalar_lea.sflag [#allocation3], 1
    %16 = vsyncpa %s15, 0
    loop: start=0, step=1, limit=4
    $region2: #{tpu_custom_call.1} parent=1 // loop_pre_header
      _
    $region3: #{tpu_custom_call.1} parent=1 // loop_header
      %s18 = sphi 0, %s22
      %p19 = scmp.ge.s32.totalorder %s18, 4
      %s28 = sphi 0, %s30
      %s31 = sphi 0, %s28
      %s32 = sphi 0, %s31
      %s48 = sphi 0, %s32
      %s52 = sphi 0, %s52
      %s54 = sphi 0, %s52
      %s55 = sphi 0, %s54
      %s69 = sphi 0, %s55
      %s73 = sphi 0, %s73
      %s75 = sphi 0, %s73
      %s76 = sphi 0, %s75
      %s90 = sphi 0, %s76
      %s94 = sphi 0, %s94
      %s96 = sphi 0, %s94
      %s97 = sphi 0, %s96
      %s111 = sphi 0, %s97
      %s115 = sphi 0, %s115
      %s117 = sphi 0, %s115
      %s118 = sphi 0, %s117
      %s132 = sphi 0, %s118
      %s136 = sphi 0, %s136
      %s138 = sphi 0, %s136
      %s139 = sphi 0, %s138
      %s153 = sphi 0, %s139
      %s157 = sphi 0, %s157
      %s159 = sphi 0, %s157
      %s160 = sphi 0, %s159
      %s174 = sphi 0, %s160
      %s178 = sphi 0, %s178
      %s180 = sphi 0, %s178
      %s181 = sphi 0, %s180
      %s195 = sphi 0, %s181
      %s199 = sphi 0, %s199
      %s201 = sphi 0, %s199
      %s202 = sphi 0, %s201
      %s216 = sphi 0, %s202
      %s222 = sphi 0, %s224
      %s225 = sphi 0, %s222
      %s226 = sphi 0, %s225
      %s242 = sphi 0, %s226
    $region4: #{tpu_custom_call.1} parent=1 // loop_header_branch
      %21 = sbr.rel (%p19) target = $region8
    $region5: #{tpu_custom_call.1} parent=1 // loop_body
      %s23 = ssub.s32 %s18, 1
      %s24 = ssub.s32 %s18, 2
      %s25 = sadd.s32 %s18, 1
      %s26 = ssub.s32 %s18, %s25
      %p27 = scmp.eq.s32.totalorder %s26, 0
      %s29 = sadd.s32 %s28, 1
      %s30 = scalar_select %p27, %s28, %s29
      %p33 = pneg %p27
      %p34 = scmp.eq.s32.totalorder %s18, 1
      %p35 = por %p33, %p34
      %p36 = scmp.ne.s32.totalorder %s28, %s31
      %p37 = scmp.eq.s32.totalorder %s18, 0
      %p38 = por %p36, %p37
      %p39 = scmp.ne.s32.totalorder %s28, %s31
      %p40 = scmp.eq.s32.totalorder %s23, 1
      %p41 = por %p39, %p40
      %p42 = scmp.ne.s32.totalorder %s31, %s32
      %p43 = scmp.eq.s32.totalorder %s23, 0
      %p44 = por %p42, %p43
      %p45 = scmp.ne.s32.totalorder %s31, %s32
      %p46 = scmp.eq.s32.totalorder %s24, 1
      %p47 = por %p45, %p46
      %p49 = scmp.ne.s32.totalorder %s32, %s48
      %p50 = scmp.eq.s32.totalorder %s24, 0
      %p51 = por %p49, %p50
      %s53 = sadd.s32 %s52, 1
      %p56 = scmp.eq.s32.totalorder %s18, 1
      %p57 = scmp.ne.s32.totalorder %s52, %s54
      %p58 = scmp.eq.s32.totalorder %s18, 0
      %p59 = por %p57, %p58
      %p60 = scmp.ne.s32.totalorder %s52, %s54
      %p61 = scmp.eq.s32.totalorder %s23, 1
      %p62 = por %p60, %p61
      %p63 = scmp.ne.s32.totalorder %s54, %s55
      %p64 = scmp.eq.s32.totalorder %s23, 0
      %p65 = por %p63, %p64
      %p66 = scmp.ne.s32.totalorder %s54, %s55
      %p67 = scmp.eq.s32.totalorder %s24, 1
      %p68 = por %p66, %p67
      %p70 = scmp.ne.s32.totalorder %s55, %s69
      %p71 = scmp.eq.s32.totalorder %s24, 0
      %p72 = por %p70, %p71
      %s74 = sadd.s32 %s73, 1
      %p77 = scmp.eq.s32.totalorder %s18, 1
      %p78 = scmp.ne.s32.totalorder %s73, %s75
      %p79 = scmp.eq.s32.totalorder %s18, 0
      %p80 = por %p78, %p79
      %p81 = scmp.ne.s32.totalorder %s73, %s75
      %p82 = scmp.eq.s32.totalorder %s23, 1
      %p83 = por %p81, %p82
      %p84 = scmp.ne.s32.totalorder %s75, %s76
      %p85 = scmp.eq.s32.totalorder %s23, 0
      %p86 = por %p84, %p85
      %p87 = scmp.ne.s32.totalorder %s75, %s76
      %p88 = scmp.eq.s32.totalorder %s24, 1
      %p89 = por %p87, %p88
      %p91 = scmp.ne.s32.totalorder %s76, %s90
      %p92 = scmp.eq.s32.totalorder %s24, 0
      %p93 = por %p91, %p92
      %s95 = sadd.s32 %s94, 1
      %p98 = scmp.eq.s32.totalorder %s18, 1
      %p99 = scmp.ne.s32.totalorder %s94, %s96
      %p100 = scmp.eq.s32.totalorder %s18, 0
      %p101 = por %p99, %p100
      %p102 = scmp.ne.s32.totalorder %s94, %s96
      %p103 = scmp.eq.s32.totalorder %s23, 1
      %p104 = por %p102, %p103
      %p105 = scmp.ne.s32.totalorder %s96, %s97
      %p106 = scmp.eq.s32.totalorder %s23, 0
      %p107 = por %p105, %p106
      %p108 = scmp.ne.s32.totalorder %s96, %s97
      %p109 = scmp.eq.s32.totalorder %s24, 1
      %p110 = por %p108, %p109
      %p112 = scmp.ne.s32.totalorder %s97, %s111
      %p113 = scmp.eq.s32.totalorder %s24, 0
      %p114 = por %p112, %p113
      %s116 = sadd.s32 %s115, 1
      %p119 = scmp.eq.s32.totalorder %s18, 1
      %p120 = scmp.ne.s32.totalorder %s115, %s117
      %p121 = scmp.eq.s32.totalorder %s18, 0
      %p122 = por %p120, %p121
      %p123 = scmp.ne.s32.totalorder %s115, %s117
      %p124 = scmp.eq.s32.totalorder %s23, 1
      %p125 = por %p123, %p124
      %p126 = scmp.ne.s32.totalorder %s117, %s118
      %p127 = scmp.eq.s32.totalorder %s23, 0
      %p128 = por %p126, %p127
      %p129 = scmp.ne.s32.totalorder %s117, %s118
      %p130 = scmp.eq.s32.totalorder %s24, 1
      %p131 = por %p129, %p130
      %p133 = scmp.ne.s32.totalorder %s118, %s132
      %p134 = scmp.eq.s32.totalorder %s24, 0
      %p135 = por %p133, %p134
      %s137 = sadd.s32 %s136, 1
      %p140 = scmp.eq.s32.totalorder %s18, 1
      %p141 = scmp.ne.s32.totalorder %s136, %s138
      %p142 = scmp.eq.s32.totalorder %s18, 0
      %p143 = por %p141, %p142
      %p144 = scmp.ne.s32.totalorder %s136, %s138
      %p145 = scmp.eq.s32.totalorder %s23, 1
      %p146 = por %p144, %p145
      %p147 = scmp.ne.s32.totalorder %s138, %s139
      %p148 = scmp.eq.s32.totalorder %s23, 0
      %p149 = por %p147, %p148
      %p150 = scmp.ne.s32.totalorder %s138, %s139
      %p151 = scmp.eq.s32.totalorder %s24, 1
      %p152 = por %p150, %p151
      %p154 = scmp.ne.s32.totalorder %s139, %s153
      %p155 = scmp.eq.s32.totalorder %s24, 0
      %p156 = por %p154, %p155
      %s158 = sadd.s32 %s157, 1
      %p161 = scmp.eq.s32.totalorder %s18, 1
      %p162 = scmp.ne.s32.totalorder %s157, %s159
      %p163 = scmp.eq.s32.totalorder %s18, 0
      %p164 = por %p162, %p163
      %p165 = scmp.ne.s32.totalorder %s157, %s159
      %p166 = scmp.eq.s32.totalorder %s23, 1
      %p167 = por %p165, %p166
      %p168 = scmp.ne.s32.totalorder %s159, %s160
      %p169 = scmp.eq.s32.totalorder %s23, 0
      %p170 = por %p168, %p169
      %p171 = scmp.ne.s32.totalorder %s159, %s160
      %p172 = scmp.eq.s32.totalorder %s24, 1
      %p173 = por %p171, %p172
      %p175 = scmp.ne.s32.totalorder %s160, %s174
      %p176 = scmp.eq.s32.totalorder %s24, 0
      %p177 = por %p175, %p176
      %s179 = sadd.s32 %s178, 1
      %p182 = scmp.eq.s32.totalorder %s18, 1
      %p183 = scmp.ne.s32.totalorder %s178, %s180
      %p184 = scmp.eq.s32.totalorder %s18, 0
      %p185 = por %p183, %p184
      %p186 = scmp.ne.s32.totalorder %s178, %s180
      %p187 = scmp.eq.s32.totalorder %s23, 1
      %p188 = por %p186, %p187
      %p189 = scmp.ne.s32.totalorder %s180, %s181
      %p190 = scmp.eq.s32.totalorder %s23, 0
      %p191 = por %p189, %p190
      %p192 = scmp.ne.s32.totalorder %s180, %s181
      %p193 = scmp.eq.s32.totalorder %s24, 1
      %p194 = por %p192, %p193
      %p196 = scmp.ne.s32.totalorder %s181, %s195
      %p197 = scmp.eq.s32.totalorder %s24, 0
      %p198 = por %p196, %p197
      %s200 = sadd.s32 %s199, 1
      %p203 = scmp.eq.s32.totalorder %s18, 1
      %p204 = scmp.ne.s32.totalorder %s199, %s201
      %p205 = scmp.eq.s32.totalorder %s18, 0
      %p206 = por %p204, %p205
      %p207 = scmp.ne.s32.totalorder %s199, %s201
      %p208 = scmp.eq.s32.totalorder %s23, 1
      %p209 = por %p207, %p208
      %p210 = scmp.ne.s32.totalorder %s201, %s202
      %p211 = scmp.eq.s32.totalorder %s23, 0
      %p212 = por %p210, %p211
      %p213 = scmp.ne.s32.totalorder %s201, %s202
      %p214 = scmp.eq.s32.totalorder %s24, 1
      %p215 = por %p213, %p214
      %p217 = scmp.ne.s32.totalorder %s202, %s216
      %p218 = scmp.eq.s32.totalorder %s24, 0
      %p219 = por %p217, %p218
      %s220 = ssub.s32 %s18, %s25
      %p221 = scmp.eq.s32.totalorder %s220, 0
      %s223 = sadd.s32 %s222, 1
      %s224 = scalar_select %p221, %s222, %s223
      %p227 = pneg %p221
      %p228 = scmp.eq.s32.totalorder %s18, 1
      %p229 = por %p227, %p228
      %p230 = scmp.ne.s32.totalorder %s222, %s225
      %p231 = scmp.eq.s32.totalorder %s18, 0
      %p232 = por %p230, %p231
      %p233 = scmp.ne.s32.totalorder %s222, %s225
      %p234 = scmp.eq.s32.totalorder %s23, 1
      %p235 = por %p233, %p234
      %p236 = scmp.ne.s32.totalorder %s225, %s226
      %p237 = scmp.eq.s32.totalorder %s23, 0
      %p238 = por %p236, %p237
      %p239 = scmp.ne.s32.totalorder %s225, %s226
      %p240 = scmp.eq.s32.totalorder %s24, 1
      %p241 = por %p239, %p240
      %p243 = scmp.ne.s32.totalorder %s226, %s242
      %p244 = scmp.eq.s32.totalorder %s24, 0
      %p245 = por %p243, %p244
      %p246 = scmp.le.s32.totalorder 1, %s18
      %p247 = scmp.lt.s32.totalorder %s18, 3
      %p248 = pnand %p246, %p247
      %p249 = pneg %p248
      // Predicated region
      $region9: #{tpu_custom_call.1} parent=5 // pred_check
        _
      $region10: #{tpu_custom_call.1} parent=5 // pred_check_branch
        %251 = sbr.rel (%p248) target = $region12
      $region11: #{tpu_custom_call.1} parent=5 // pred_region
        %s252 = ssub.s32 %s18, 1
        // Predicated region
        $region13: #{tpu_custom_call.1} parent=11 // pred_check
          %p253 = pneg %p65
        $region14: #{tpu_custom_call.1} parent=11 // pred_check_branch
          %255 = sbr.rel (%p253) target = $region16
        $region15: #{tpu_custom_call.1} parent=11 // pred_region
          _
        $region16: #{tpu_custom_call.1} parent=11 // pred_fallthru
          _
        // Predicated region
        $region17: #{tpu_custom_call.1} parent=11 // pred_check
          %p256 = pneg %p86
        $region18: #{tpu_custom_call.1} parent=11 // pred_check_branch
          %258 = sbr.rel (%p256) target = $region20
        $region19: #{tpu_custom_call.1} parent=11 // pred_region
          _
        $region20: #{tpu_custom_call.1} parent=11 // pred_fallthru
          _
        // Predicated region
        $region21: #{tpu_custom_call.1} parent=11 // pred_check
          %p259 = pneg %p107
        $region22: #{tpu_custom_call.1} parent=11 // pred_check_branch
          %261 = sbr.rel (%p259) target = $region24
        $region23: #{tpu_custom_call.1} parent=11 // pred_region
          _
        $region24: #{tpu_custom_call.1} parent=11 // pred_fallthru
          _
        // Predicated region
        $region25: #{tpu_custom_call.1} parent=11 // pred_check
          %p262 = pneg %p128
        $region26: #{tpu_custom_call.1} parent=11 // pred_check_branch
          %264 = sbr.rel (%p262) target = $region28
        $region27: #{tpu_custom_call.1} parent=11 // pred_region
          _
        $region28: #{tpu_custom_call.1} parent=11 // pred_fallthru
          _
        // Predicated region
        $region29: #{tpu_custom_call.1} parent=11 // pred_check
          %p265 = pneg %p149
        $region30: #{tpu_custom_call.1} parent=11 // pred_check_branch
          %267 = sbr.rel (%p265) target = $region32
        $region31: #{tpu_custom_call.1} parent=11 // pred_region
          _
        $region32: #{tpu_custom_call.1} parent=11 // pred_fallthru
          _
        // Predicated region
        $region33: #{tpu_custom_call.1} parent=11 // pred_check
          %p268 = pneg %p170
        $region34: #{tpu_custom_call.1} parent=11 // pred_check_branch
          %270 = sbr.rel (%p268) target = $region36
        $region35: #{tpu_custom_call.1} parent=11 // pred_region
          _
        $region36: #{tpu_custom_call.1} parent=11 // pred_fallthru
          _
        // Predicated region
        $region37: #{tpu_custom_call.1} parent=11 // pred_check
          %p271 = pneg %p191
        $region38: #{tpu_custom_call.1} parent=11 // pred_check_branch
          %273 = sbr.rel (%p271) target = $region40
        $region39: #{tpu_custom_call.1} parent=11 // pred_region
          _
        $region40: #{tpu_custom_call.1} parent=11 // pred_fallthru
          _
        // Predicated region
        $region41: #{tpu_custom_call.1} parent=11 // pred_check
          %p274 = pneg %p212
        $region42: #{tpu_custom_call.1} parent=11 // pred_check_branch
          %276 = sbr.rel (%p274) target = $region44
        $region43: #{tpu_custom_call.1} parent=11 // pred_region
          _
        $region44: #{tpu_custom_call.1} parent=11 // pred_fallthru
          _
      $region12: #{tpu_custom_call.1} parent=5 // pred_fallthru
        _
      %p277 = scmp.lt.s32.totalorder %s18, 2
      // Predicated region
      $region45: #{tpu_custom_call.1} parent=5 // pred_check
        %p278 = pneg %p277
      $region46: #{tpu_custom_call.1} parent=5 // pred_check_branch
        %280 = sbr.rel (%p278) target = $region48
      $region47: #{tpu_custom_call.1} parent=5 // pred_region
        // Predicated region
        $region49: #{tpu_custom_call.1} parent=47 // pred_check
          %p281 = pneg %p38
        $region50: #{tpu_custom_call.1} parent=47 // pred_check_branch
          %283 = sbr.rel (%p281) target = $region52
        $region51: #{tpu_custom_call.1} parent=47 // pred_region
          %p284 = scmp.lt.s32.totalorder %s18, 1
          %s285 = scalar_select %p284, %s18, 1
          %s286 = smul.addr %s285, 32
          %s287 = smul.addr %s286, 8
          %s288 = scalar_lea.vmem %s0, %s287
        $region52: #{tpu_custom_call.1} parent=47 // pred_fallthru
          _
      $region48: #{tpu_custom_call.1} parent=5 // pred_fallthru
        _
      %p289 = scmp.le.s32.totalorder 1, %s18
      %p290 = scmp.lt.s32.totalorder %s18, 3
      %p291 = pnand %p289, %p290
      %p292 = pneg %p291
      // Predicated region
      $region53: #{tpu_custom_call.1} parent=5 // pred_check
        _
      $region54: #{tpu_custom_call.1} parent=5 // pred_check_branch
        %294 = sbr.rel (%p291) target = $region56
      $region55: #{tpu_custom_call.1} parent=5 // pred_region
        %s295 = ssub.s32 %s18, 1
        %p296 = scmp.lt.s32.totalorder %s23, 1
        %s297 = scalar_select %p296, %s23, 1
        %s298 = smul.addr %s297, 32
        %s299 = smul.addr %s298, 8
        %s300 = scalar_lea.vmem %s0, %s299
        %p301 = pneg %p44
        %p302 = pneg %p41
        %p303 = pneg %p65
        %p304 = pneg %p62
        %p305 = pneg %p86
        %p306 = pneg %p83
        %p307 = pneg %p107
        %p308 = pneg %p104
        %p309 = pneg %p128
        %p310 = pneg %p125
        %p311 = pneg %p149
        %p312 = pneg %p146
        %p313 = pneg %p170
        %p314 = pneg %p167
        %p315 = pneg %p191
        %p316 = pneg %p188
        %p317 = pneg %p212
        %p318 = pneg %p209
        %p319 = pneg %p238
        %p320 = pneg %p235
        %s321 = sand.u32 %s225, 1
        %s322 = scalar_lea.sflag [#allocation3], %s321
        %s323 = sand.u32 %s225, 1
        %s324 = smul.addr %s323, 256
        %s325 = scalar_lea.vmem [#allocation2], %s324
        %p326 = scmp.lt.s32.totalorder %s23, 1
        %s327 = scalar_select %p326, %s23, 1
        %s328 = smul.addr %s327, 32
        %s329 = smul.addr %s328, 8
        %s330 = scalar_lea.vmem %s0, %s329
        %v331 = vld [vmem:[%s330] sm:$0xff]
        %v332 = vld [vmem:[%s330 + $0x8] sm:$0xff]
        %v333 = vld [vmem:[%s330 + $0x10] sm:$0xff]
        %v334 = vld [vmem:[%s330 + $0x18] sm:$0xff]
        %v335 = vld [vmem:[%s330 + $0x20] sm:$0xff]
        %v336 = vld [vmem:[%s330 + $0x28] sm:$0xff]
        %v337 = vld [vmem:[%s330 + $0x30] sm:$0xff]
        %v338 = vld [vmem:[%s330 + $0x38] sm:$0xff]
        %v339 = vld [vmem:[%s330 + $0x40] sm:$0xff]
        %v340 = vld [vmem:[%s330 + $0x48] sm:$0xff]
        %v341 = vld [vmem:[%s330 + $0x50] sm:$0xff]
        %v342 = vld [vmem:[%s330 + $0x58] sm:$0xff]
        %v343 = vld [vmem:[%s330 + $0x60] sm:$0xff]
        %v344 = vld [vmem:[%s330 + $0x68] sm:$0xff]
        %v345 = vld [vmem:[%s330 + $0x70] sm:$0xff]
        %v346 = vld [vmem:[%s330 + $0x78] sm:$0xff]
        %v347 = vld [vmem:[%s330 + $0x80] sm:$0xff]
        %v348 = vld [vmem:[%s330 + $0x88] sm:$0xff]
        %v349 = vld [vmem:[%s330 + $0x90] sm:$0xff]
        %v350 = vld [vmem:[%s330 + $0x98] sm:$0xff]
        %v351 = vld [vmem:[%s330 + $0xa0] sm:$0xff]
        %v352 = vld [vmem:[%s330 + $0xa8] sm:$0xff]
        %v353 = vld [vmem:[%s330 + $0xb0] sm:$0xff]
        %v354 = vld [vmem:[%s330 + $0xb8] sm:$0xff]
        %v355 = vld [vmem:[%s330 + $0xc0] sm:$0xff]
        %v356 = vld [vmem:[%s330 + $0xc8] sm:$0xff]
        %v357 = vld [vmem:[%s330 + $0xd0] sm:$0xff]
        %v358 = vld [vmem:[%s330 + $0xd8] sm:$0xff]
        %v359 = vld [vmem:[%s330 + $0xe0] sm:$0xff]
        %v360 = vld [vmem:[%s330 + $0xe8] sm:$0xff]
        %v361 = vld [vmem:[%s330 + $0xf0] sm:$0xff]
        %v362 = vld [vmem:[%s330 + $0xf8] sm:$0xff]
        %v363 = vld [vmem:[%s1] sm:$0xff]
        %v364 = vld [vmem:[%s1 + $0x8] sm:$0xff]
        %v365 = vld [vmem:[%s1 + $0x10] sm:$0xff]
        %v366 = vld [vmem:[%s1 + $0x18] sm:$0xff]
        %vm367 = vcmask 261120
        %v369 = vsel %vm367, %v331, 0
        %v372 = vsel %vm367, %v332, 0
        %v375 = vsel %vm367, %v333, 0
        %v378 = vsel %vm367, %v334, 0
        %v381 = vsel %vm367, %v335, 0
        %v384 = vsel %vm367, %v336, 0
        %v387 = vsel %vm367, %v337, 0
        %v390 = vsel %vm367, %v338, 0
        %v393 = vsel %vm367, %v339, 0
        %v396 = vsel %vm367, %v340, 0
        %v399 = vsel %vm367, %v341, 0
        %v402 = vsel %vm367, %v342, 0
        %v405 = vsel %vm367, %v343, 0
        %v408 = vsel %vm367, %v344, 0
        %v411 = vsel %vm367, %v345, 0
        %v414 = vsel %vm367, %v346, 0
        %v417 = vsel %vm367, %v347, 0
        %v420 = vsel %vm367, %v348, 0
        %v423 = vsel %vm367, %v349, 0
        %v426 = vsel %vm367, %v350, 0
        %v429 = vsel %vm367, %v351, 0
        %v432 = vsel %vm367, %v352, 0
        %v435 = vsel %vm367, %v353, 0
        %v438 = vsel %vm367, %v354, 0
        %v441 = vsel %vm367, %v355, 0
        %v444 = vsel %vm367, %v356, 0
        %v447 = vsel %vm367, %v357, 0
        %v450 = vsel %vm367, %v358, 0
        %v453 = vsel %vm367, %v359, 0
        %v456 = vsel %vm367, %v360, 0
        %v459 = vsel %vm367, %v361, 0
        %v462 = vsel %vm367, %v362, 0
        %464 = vmatpush.msra.mxu0 0.0
        %465 = vmatpush.msra.mxu0 0.0
        %466 = vmatpush.msra.mxu0 0.0
        %467 = vmatpush.msra.mxu0 0.0
        %468 = vmatpush.msra.mxu0 0.0
        %469 = vmatpush.msra.mxu0 0.0
        %470 = vmatpush.msra.mxu0 0.0
        %471 = vmatpush.msra.mxu0 0.0
        %472 = vmatpush.msra.mxu0 0.0
        %473 = vmatpush.msra.mxu0 0.0
        %474 = vmatpush.msra.mxu0 0.0
        %475 = vmatpush.msra.mxu0 0.0
        %v476 = vand.u32 %v366, 4294901760
        %477 = vmatpush.msra.mxu0 %v476
        %v478 = vand.u32 %v365, 4294901760
        %479 = vmatpush.msra.mxu0 %v478
        %v480 = vand.u32 %v364, 4294901760
        %481 = vmatpush.msra.mxu0 %v480
        %v482 = vand.u32 %v363, 4294901760
        %483 = vmatpush.msra.mxu0 %v482
        %v484 = vand.u32 %v369, 4294901760
        %v485 = vsub.f32 %v369, %v484
        %v486 = vand.u32 %v485, 4294901760
        %v487 = vsub.f32 %v485, %v486
        %v488 = vand.u32 %v487, 4294901760
        %489 = vmatmul.f32.gmra.mxu0 %v488
        %v490 = vpop.f32.mrf.mxu0
        %v491 = vadd.f32 0.0, %v490
        %v492 = vand.u32 %v372, 4294901760
        %v493 = vsub.f32 %v372, %v492
        %v494 = vand.u32 %v493, 4294901760
        %v495 = vsub.f32 %v493, %v494
        %v496 = vand.u32 %v495, 4294901760
        %497 = vmatmul.f32.gmra.mxu0 %v496
        %v498 = vpop.f32.mrf.mxu0
        %v499 = vadd.f32 0.0, %v498
        %v500 = vand.u32 %v375, 4294901760
        %v501 = vsub.f32 %v375, %v500
        %v502 = vand.u32 %v501, 4294901760
        %v503 = vsub.f32 %v501, %v502
        %v504 = vand.u32 %v503, 4294901760
        %505 = vmatmul.f32.gmra.mxu0 %v504
        %v506 = vpop.f32.mrf.mxu0
        %v507 = vadd.f32 0.0, %v506
        %v508 = vand.u32 %v378, 4294901760
        %v509 = vsub.f32 %v378, %v508
        %v510 = vand.u32 %v509, 4294901760
        %v511 = vsub.f32 %v509, %v510
        %v512 = vand.u32 %v511, 4294901760
        %513 = vmatmul.f32.gmra.mxu0 %v512
        %v514 = vpop.f32.mrf.mxu0
        %v515 = vadd.f32 0.0, %v514
        %v516 = vand.u32 %v381, 4294901760
        %v517 = vsub.f32 %v381, %v516
        %v518 = vand.u32 %v517, 4294901760
        %v519 = vsub.f32 %v517, %v518
        %v520 = vand.u32 %v519, 4294901760
        %521 = vmatmul.f32.gmra.mxu0 %v520
        %v522 = vpop.f32.mrf.mxu0
        %v523 = vadd.f32 0.0, %v522
        %v524 = vand.u32 %v384, 4294901760
        %v525 = vsub.f32 %v384, %v524
        %v526 = vand.u32 %v525, 4294901760
        %v527 = vsub.f32 %v525, %v526
        %v528 = vand.u32 %v527, 4294901760
        %529 = vmatmul.f32.gmra.mxu0 %v528
        %v530 = vpop.f32.mrf.mxu0
        %v531 = vadd.f32 0.0, %v530
        %v532 = vand.u32 %v387, 4294901760
        %v533 = vsub.f32 %v387, %v532
        %v534 = vand.u32 %v533, 4294901760
        %v535 = vsub.f32 %v533, %v534
        %v536 = vand.u32 %v535, 4294901760
        %537 = vmatmul.f32.gmra.mxu0 %v536
        %v538 = vpop.f32.mrf.mxu0
        %v539 = vadd.f32 0.0, %v538
        %v540 = vand.u32 %v390, 4294901760
        %v541 = vsub.f32 %v390, %v540
        %v542 = vand.u32 %v541, 4294901760
        %v543 = vsub.f32 %v541, %v542
        %v544 = vand.u32 %v543, 4294901760
        %545 = vmatmul.f32.gmra.mxu0 %v544
        %v546 = vpop.f32.mrf.mxu0
        %v547 = vadd.f32 0.0, %v546
        %v548 = vand.u32 %v393, 4294901760
        %v549 = vsub.f32 %v393, %v548
        %v550 = vand.u32 %v549, 4294901760
        %v551 = vsub.f32 %v549, %v550
        %v552 = vand.u32 %v551, 4294901760
        %553 = vmatmul.f32.gmra.mxu0 %v552
        %v554 = vpop.f32.mrf.mxu0
        %v555 = vadd.f32 0.0, %v554
        %v556 = vand.u32 %v396, 4294901760
        %v557 = vsub.f32 %v396, %v556
        %v558 = vand.u32 %v557, 4294901760
        %v559 = vsub.f32 %v557, %v558
        %v560 = vand.u32 %v559, 4294901760
        %561 = vmatmul.f32.gmra.mxu0 %v560
        %v562 = vpop.f32.mrf.mxu0
        %v563 = vadd.f32 0.0, %v562
        %v564 = vand.u32 %v399, 4294901760
        %v565 = vsub.f32 %v399, %v564
        %v566 = vand.u32 %v565, 4294901760
        %v567 = vsub.f32 %v565, %v566
        %v568 = vand.u32 %v567, 4294901760
        %569 = vmatmul.f32.gmra.mxu0 %v568
        %v570 = vpop.f32.mrf.mxu0
        %v571 = vadd.f32 0.0, %v570
        %v572 = vand.u32 %v402, 4294901760
        %v573 = vsub.f32 %v402, %v572
        %v574 = vand.u32 %v573, 4294901760
        %v575 = vsub.f32 %v573, %v574
        %v576 = vand.u32 %v575, 4294901760
        %577 = vmatmul.f32.gmra.mxu0 %v576
        %v578 = vpop.f32.mrf.mxu0
        %v579 = vadd.f32 0.0, %v578
        %v580 = vand.u32 %v405, 4294901760
        %v581 = vsub.f32 %v405, %v580
        %v582 = vand.u32 %v581, 4294901760
        %v583 = vsub.f32 %v581, %v582
        %v584 = vand.u32 %v583, 4294901760
        %585 = vmatmul.f32.gmra.mxu0 %v584
        %v586 = vpop.f32.mrf.mxu0
        %v587 = vadd.f32 0.0, %v586
        %v588 = vand.u32 %v408, 4294901760
        %v589 = vsub.f32 %v408, %v588
        %v590 = vand.u32 %v589, 4294901760
        %v591 = vsub.f32 %v589, %v590
        %v592 = vand.u32 %v591, 4294901760
        %593 = vmatmul.f32.gmra.mxu0 %v592
        %v594 = vpop.f32.mrf.mxu0
        %v595 = vadd.f32 0.0, %v594
        %v596 = vand.u32 %v411, 4294901760
        %v597 = vsub.f32 %v411, %v596
        %v598 = vand.u32 %v597, 4294901760
        %v599 = vsub.f32 %v597, %v598
        %v600 = vand.u32 %v599, 4294901760
        %601 = vmatmul.f32.gmra.mxu0 %v600
        %v602 = vpop.f32.mrf.mxu0
        %v603 = vadd.f32 0.0, %v602
        %v604 = vand.u32 %v414, 4294901760
        %v605 = vsub.f32 %v414, %v604
        %v606 = vand.u32 %v605, 4294901760
        %v607 = vsub.f32 %v605, %v606
        %v608 = vand.u32 %v607, 4294901760
        %609 = vmatmul.f32.gmra.mxu0 %v608
        %v610 = vpop.f32.mrf.mxu0
        %v611 = vadd.f32 0.0, %v610
        %v612 = vand.u32 %v417, 4294901760
        %v613 = vsub.f32 %v417, %v612
        %v614 = vand.u32 %v613, 4294901760
        %v615 = vsub.f32 %v613, %v614
        %v616 = vand.u32 %v615, 4294901760
        %617 = vmatmul.f32.gmra.mxu0 %v616
        %v618 = vpop.f32.mrf.mxu0
        %v619 = vadd.f32 0.0, %v618
        %v620 = vand.u32 %v420, 4294901760
        %v621 = vsub.f32 %v420, %v620
        %v622 = vand.u32 %v621, 4294901760
        %v623 = vsub.f32 %v621, %v622
        %v624 = vand.u32 %v623, 4294901760
        %625 = vmatmul.f32.gmra.mxu0 %v624
        %v626 = vpop.f32.mrf.mxu0
        %v627 = vadd.f32 0.0, %v626
        %v628 = vand.u32 %v423, 4294901760
        %v629 = vsub.f32 %v423, %v628
        %v630 = vand.u32 %v629, 4294901760
        %v631 = vsub.f32 %v629, %v630
        %v632 = vand.u32 %v631, 4294901760
        %633 = vmatmul.f32.gmra.mxu0 %v632
        %v634 = vpop.f32.mrf.mxu0
        %v635 = vadd.f32 0.0, %v634
        %v636 = vand.u32 %v426, 4294901760
        %v637 = vsub.f32 %v426, %v636
        %v638 = vand.u32 %v637, 4294901760
        %v639 = vsub.f32 %v637, %v638
        %v640 = vand.u32 %v639, 4294901760
        %641 = vmatmul.f32.gmra.mxu0 %v640
        %v642 = vpop.f32.mrf.mxu0
        %v643 = vadd.f32 0.0, %v642
        %v644 = vand.u32 %v429, 4294901760
        %v645 = vsub.f32 %v429, %v644
        %v646 = vand.u32 %v645, 4294901760
        %v647 = vsub.f32 %v645, %v646
        %v648 = vand.u32 %v647, 4294901760
        %649 = vmatmul.f32.gmra.mxu0 %v648
        %v650 = vpop.f32.mrf.mxu0
        %v651 = vadd.f32 0.0, %v650
        %v652 = vand.u32 %v432, 4294901760
        %v653 = vsub.f32 %v432, %v652
        %v654 = vand.u32 %v653, 4294901760
        %v655 = vsub.f32 %v653, %v654
        %v656 = vand.u32 %v655, 4294901760
        %657 = vmatmul.f32.gmra.mxu0 %v656
        %v658 = vpop.f32.mrf.mxu0
        %v659 = vadd.f32 0.0, %v658
        %v660 = vand.u32 %v435, 4294901760
        %v661 = vsub.f32 %v435, %v660
        %v662 = vand.u32 %v661, 4294901760
        %v663 = vsub.f32 %v661, %v662
        %v664 = vand.u32 %v663, 4294901760
        %665 = vmatmul.f32.gmra.mxu0 %v664
        %v666 = vpop.f32.mrf.mxu0
        %v667 = vadd.f32 0.0, %v666
        %v668 = vand.u32 %v438, 4294901760
        %v669 = vsub.f32 %v438, %v668
        %v670 = vand.u32 %v669, 4294901760
        %v671 = vsub.f32 %v669, %v670
        %v672 = vand.u32 %v671, 4294901760
        %673 = vmatmul.f32.gmra.mxu0 %v672
        %v674 = vpop.f32.mrf.mxu0
        %v675 = vadd.f32 0.0, %v674
        %v676 = vand.u32 %v441, 4294901760
        %v677 = vsub.f32 %v441, %v676
        %v678 = vand.u32 %v677, 4294901760
        %v679 = vsub.f32 %v677, %v678
        %v680 = vand.u32 %v679, 4294901760
        %681 = vmatmul.f32.gmra.mxu0 %v680
        %v682 = vpop.f32.mrf.mxu0
        %v683 = vadd.f32 0.0, %v682
        %v684 = vand.u32 %v444, 4294901760
        %v685 = vsub.f32 %v444, %v684
        %v686 = vand.u32 %v685, 4294901760
        %v687 = vsub.f32 %v685, %v686
        %v688 = vand.u32 %v687, 4294901760
        %689 = vmatmul.f32.gmra.mxu0 %v688
        %v690 = vpop.f32.mrf.mxu0
        %v691 = vadd.f32 0.0, %v690
        %v692 = vand.u32 %v447, 4294901760
        %v693 = vsub.f32 %v447, %v692
        %v694 = vand.u32 %v693, 4294901760
        %v695 = vsub.f32 %v693, %v694
        %v696 = vand.u32 %v695, 4294901760
        %697 = vmatmul.f32.gmra.mxu0 %v696
        %v698 = vpop.f32.mrf.mxu0
        %v699 = vadd.f32 0.0, %v698
        %v700 = vand.u32 %v450, 4294901760
        %v701 = vsub.f32 %v450, %v700
        %v702 = vand.u32 %v701, 4294901760
        %v703 = vsub.f32 %v701, %v702
        %v704 = vand.u32 %v703, 4294901760
        %705 = vmatmul.f32.gmra.mxu0 %v704
        %v706 = vpop.f32.mrf.mxu0
        %v707 = vadd.f32 0.0, %v706
        %v708 = vand.u32 %v453, 4294901760
        %v709 = vsub.f32 %v453, %v708
        %v710 = vand.u32 %v709, 4294901760
        %v711 = vsub.f32 %v709, %v710
        %v712 = vand.u32 %v711, 4294901760
        %713 = vmatmul.f32.gmra.mxu0 %v712
        %v714 = vpop.f32.mrf.mxu0
        %v715 = vadd.f32 0.0, %v714
        %v716 = vand.u32 %v456, 4294901760
        %v717 = vsub.f32 %v456, %v716
        %v718 = vand.u32 %v717, 4294901760
        %v719 = vsub.f32 %v717, %v718
        %v720 = vand.u32 %v719, 4294901760
        %721 = vmatmul.f32.gmra.mxu0 %v720
        %v722 = vpop.f32.mrf.mxu0
        %v723 = vadd.f32 0.0, %v722
        %v724 = vand.u32 %v459, 4294901760
        %v725 = vsub.f32 %v459, %v724
        %v726 = vand.u32 %v725, 4294901760
        %v727 = vsub.f32 %v725, %v726
        %v728 = vand.u32 %v727, 4294901760
        %729 = vmatmul.f32.gmra.mxu0 %v728
        %v730 = vpop.f32.mrf.mxu0
        %v731 = vadd.f32 0.0, %v730
        %v732 = vand.u32 %v462, 4294901760
        %v733 = vsub.f32 %v462, %v732
        %v734 = vand.u32 %v733, 4294901760
        %v735 = vsub.f32 %v733, %v734
        %v736 = vand.u32 %v735, 4294901760
        %737 = vmatmul.f32.gmra.mxu0 %v736
        %v738 = vpop.f32.mrf.mxu0
        %v739 = vadd.f32 0.0, %v738
        %740 = vdwg.mxu0
        %741 = vmatpush.msra.mxu0 0.0
        %742 = vmatpush.msra.mxu0 0.0
        %743 = vmatpush.msra.mxu0 0.0
        %744 = vmatpush.msra.mxu0 0.0
        %745 = vmatpush.msra.mxu0 0.0
        %746 = vmatpush.msra.mxu0 0.0
        %747 = vmatpush.msra.mxu0 0.0
        %748 = vmatpush.msra.mxu0 0.0
        %749 = vmatpush.msra.mxu0 0.0
        %750 = vmatpush.msra.mxu0 0.0
        %751 = vmatpush.msra.mxu0 0.0
        %752 = vmatpush.msra.mxu0 0.0
        %v753 = vand.u32 %v366, 4294901760
        %v754 = vsub.f32 %v366, %v753
        %v755 = vand.u32 %v754, 4294901760
        %v756 = vsub.f32 %v754, %v755
        %v757 = vand.u32 %v756, 4294901760
        %758 = vmatpush.msra.mxu0 %v757
        %v759 = vand.u32 %v365, 4294901760
        %v760 = vsub.f32 %v365, %v759
        %v761 = vand.u32 %v760, 4294901760
        %v762 = vsub.f32 %v760, %v761
        %v763 = vand.u32 %v762, 4294901760
        %764 = vmatpush.msra.mxu0 %v763
        %v765 = vand.u32 %v364, 4294901760
        %v766 = vsub.f32 %v364, %v765
        %v767 = vand.u32 %v766, 4294901760
        %v768 = vsub.f32 %v766, %v767
        %v769 = vand.u32 %v768, 4294901760
        %770 = vmatpush.msra.mxu0 %v769
        %v771 = vand.u32 %v363, 4294901760
        %v772 = vsub.f32 %v363, %v771
        %v773 = vand.u32 %v772, 4294901760
        %v774 = vsub.f32 %v772, %v773
        %v775 = vand.u32 %v774, 4294901760
        %776 = vmatpush.msra.mxu0 %v775
        %v777 = vand.u32 %v369, 4294901760
        %778 = vmatmul.f32.gmra.mxu0 %v777
        %v779 = vpop.f32.mrf.mxu0
        %v780 = vadd.f32 %v491, %v779
        %v781 = vand.u32 %v372, 4294901760
        %782 = vmatmul.f32.gmra.mxu0 %v781
        %v783 = vpop.f32.mrf.mxu0
        %v784 = vadd.f32 %v499, %v783
        %v785 = vand.u32 %v375, 4294901760
        %786 = vmatmul.f32.gmra.mxu0 %v785
        %v787 = vpop.f32.mrf.mxu0
        %v788 = vadd.f32 %v507, %v787
        %v789 = vand.u32 %v378, 4294901760
        %790 = vmatmul.f32.gmra.mxu0 %v789
        %v791 = vpop.f32.mrf.mxu0
        %v792 = vadd.f32 %v515, %v791
        %v793 = vand.u32 %v381, 4294901760
        %794 = vmatmul.f32.gmra.mxu0 %v793
        %v795 = vpop.f32.mrf.mxu0
        %v796 = vadd.f32 %v523, %v795
        %v797 = vand.u32 %v384, 4294901760
        %798 = vmatmul.f32.gmra.mxu0 %v797
        %v799 = vpop.f32.mrf.mxu0
        %v800 = vadd.f32 %v531, %v799
        %v801 = vand.u32 %v387, 4294901760
        %802 = vmatmul.f32.gmra.mxu0 %v801
        %v803 = vpop.f32.mrf.mxu0
        %v804 = vadd.f32 %v539, %v803
        %v805 = vand.u32 %v390, 4294901760
        %806 = vmatmul.f32.gmra.mxu0 %v805
        %v807 = vpop.f32.mrf.mxu0
        %v808 = vadd.f32 %v547, %v807
        %v809 = vand.u32 %v393, 4294901760
        %810 = vmatmul.f32.gmra.mxu0 %v809
        %v811 = vpop.f32.mrf.mxu0
        %v812 = vadd.f32 %v555, %v811
        %v813 = vand.u32 %v396, 4294901760
        %814 = vmatmul.f32.gmra.mxu0 %v813
        %v815 = vpop.f32.mrf.mxu0
        %v816 = vadd.f32 %v563, %v815
        %v817 = vand.u32 %v399, 4294901760
        %818 = vmatmul.f32.gmra.mxu0 %v817
        %v819 = vpop.f32.mrf.mxu0
        %v820 = vadd.f32 %v571, %v819
        %v821 = vand.u32 %v402, 4294901760
        %822 = vmatmul.f32.gmra.mxu0 %v821
        %v823 = vpop.f32.mrf.mxu0
        %v824 = vadd.f32 %v579, %v823
        %v825 = vand.u32 %v405, 4294901760
        %826 = vmatmul.f32.gmra.mxu0 %v825
        %v827 = vpop.f32.mrf.mxu0
        %v828 = vadd.f32 %v587, %v827
        %v829 = vand.u32 %v408, 4294901760
        %830 = vmatmul.f32.gmra.mxu0 %v829
        %v831 = vpop.f32.mrf.mxu0
        %v832 = vadd.f32 %v595, %v831
        %v833 = vand.u32 %v411, 4294901760
        %834 = vmatmul.f32.gmra.mxu0 %v833
        %v835 = vpop.f32.mrf.mxu0
        %v836 = vadd.f32 %v603, %v835
        %v837 = vand.u32 %v414, 4294901760
        %838 = vmatmul.f32.gmra.mxu0 %v837
        %v839 = vpop.f32.mrf.mxu0
        %v840 = vadd.f32 %v611, %v839
        %v841 = vand.u32 %v417, 4294901760
        %842 = vmatmul.f32.gmra.mxu0 %v841
        %v843 = vpop.f32.mrf.mxu0
        %v844 = vadd.f32 %v619, %v843
        %v845 = vand.u32 %v420, 4294901760
        %846 = vmatmul.f32.gmra.mxu0 %v845
        %v847 = vpop.f32.mrf.mxu0
        %v848 = vadd.f32 %v627, %v847
        %v849 = vand.u32 %v423, 4294901760
        %850 = vmatmul.f32.gmra.mxu0 %v849
        %v851 = vpop.f32.mrf.mxu0
        %v852 = vadd.f32 %v635, %v851
        %v853 = vand.u32 %v426, 4294901760
        %854 = vmatmul.f32.gmra.mxu0 %v853
        %v855 = vpop.f32.mrf.mxu0
        %v856 = vadd.f32 %v643, %v855
        %v857 = vand.u32 %v429, 4294901760
        %858 = vmatmul.f32.gmra.mxu0 %v857
        %v859 = vpop.f32.mrf.mxu0
        %v860 = vadd.f32 %v651, %v859
        %v861 = vand.u32 %v432, 4294901760
        %862 = vmatmul.f32.gmra.mxu0 %v861
        %v863 = vpop.f32.mrf.mxu0
        %v864 = vadd.f32 %v659, %v863
        %v865 = vand.u32 %v435, 4294901760
        %866 = vmatmul.f32.gmra.mxu0 %v865
        %v867 = vpop.f32.mrf.mxu0
        %v868 = vadd.f32 %v667, %v867
        %v869 = vand.u32 %v438, 4294901760
        %870 = vmatmul.f32.gmra.mxu0 %v869
        %v871 = vpop.f32.mrf.mxu0
        %v872 = vadd.f32 %v675, %v871
        %v873 = vand.u32 %v441, 4294901760
        %874 = vmatmul.f32.gmra.mxu0 %v873
        %v875 = vpop.f32.mrf.mxu0
        %v876 = vadd.f32 %v683, %v875
        %v877 = vand.u32 %v444, 4294901760
        %878 = vmatmul.f32.gmra.mxu0 %v877
        %v879 = vpop.f32.mrf.mxu0
        %v880 = vadd.f32 %v691, %v879
        %v881 = vand.u32 %v447, 4294901760
        %882 = vmatmul.f32.gmra.mxu0 %v881
        %v883 = vpop.f32.mrf.mxu0
        %v884 = vadd.f32 %v699, %v883
        %v885 = vand.u32 %v450, 4294901760
        %886 = vmatmul.f32.gmra.mxu0 %v885
        %v887 = vpop.f32.mrf.mxu0
        %v888 = vadd.f32 %v707, %v887
        %v889 = vand.u32 %v453, 4294901760
        %890 = vmatmul.f32.gmra.mxu0 %v889
        %v891 = vpop.f32.mrf.mxu0
        %v892 = vadd.f32 %v715, %v891
        %v893 = vand.u32 %v456, 4294901760
        %894 = vmatmul.f32.gmra.mxu0 %v893
        %v895 = vpop.f32.mrf.mxu0
        %v896 = vadd.f32 %v723, %v895
        %v897 = vand.u32 %v459, 4294901760
        %898 = vmatmul.f32.gmra.mxu0 %v897
        %v899 = vpop.f32.mrf.mxu0
        %v900 = vadd.f32 %v731, %v899
        %v901 = vand.u32 %v462, 4294901760
        %902 = vmatmul.f32.gmra.mxu0 %v901
        %v903 = vpop.f32.mrf.mxu0
        %v904 = vadd.f32 %v739, %v903
        %905 = vdwg.mxu0
        %906 = vmatpush.msra.mxu0 0.0
        %907 = vmatpush.msra.mxu0 0.0
        %908 = vmatpush.msra.mxu0 0.0
        %909 = vmatpush.msra.mxu0 0.0
        %910 = vmatpush.msra.mxu0 0.0
        %911 = vmatpush.msra.mxu0 0.0
        %912 = vmatpush.msra.mxu0 0.0
        %913 = vmatpush.msra.mxu0 0.0
        %914 = vmatpush.msra.mxu0 0.0
        %915 = vmatpush.msra.mxu0 0.0
        %916 = vmatpush.msra.mxu0 0.0
        %917 = vmatpush.msra.mxu0 0.0
        %v918 = vand.u32 %v366, 4294901760
        %v919 = vsub.f32 %v366, %v918
        %920 = vmatpush.msra.mxu0 %v919
        %v921 = vand.u32 %v365, 4294901760
        %v922 = vsub.f32 %v365, %v921
        %923 = vmatpush.msra.mxu0 %v922
        %v924 = vand.u32 %v364, 4294901760
        %v925 = vsub.f32 %v364, %v924
        %926 = vmatpush.msra.mxu0 %v925
        %v927 = vand.u32 %v363, 4294901760
        %v928 = vsub.f32 %v363, %v927
        %929 = vmatpush.msra.mxu0 %v928
        %v930 = vand.u32 %v369, 4294901760
        %v931 = vsub.f32 %v369, %v930
        %932 = vmatmul.f32.gmra.mxu0 %v931
        %v933 = vpop.f32.mrf.mxu0
        %v934 = vadd.f32 %v780, %v933
        %v935 = vand.u32 %v372, 4294901760
        %v936 = vsub.f32 %v372, %v935
        %937 = vmatmul.f32.gmra.mxu0 %v936
        %v938 = vpop.f32.mrf.mxu0
        %v939 = vadd.f32 %v784, %v938
        %v940 = vand.u32 %v375, 4294901760
        %v941 = vsub.f32 %v375, %v940
        %942 = vmatmul.f32.gmra.mxu0 %v941
        %v943 = vpop.f32.mrf.mxu0
        %v944 = vadd.f32 %v788, %v943
        %v945 = vand.u32 %v378, 4294901760
        %v946 = vsub.f32 %v378, %v945
        %947 = vmatmul.f32.gmra.mxu0 %v946
        %v948 = vpop.f32.mrf.mxu0
        %v949 = vadd.f32 %v792, %v948
        %v950 = vand.u32 %v381, 4294901760
        %v951 = vsub.f32 %v381, %v950
        %952 = vmatmul.f32.gmra.mxu0 %v951
        %v953 = vpop.f32.mrf.mxu0
        %v954 = vadd.f32 %v796, %v953
        %v955 = vand.u32 %v384, 4294901760
        %v956 = vsub.f32 %v384, %v955
        %957 = vmatmul.f32.gmra.mxu0 %v956
        %v958 = vpop.f32.mrf.mxu0
        %v959 = vadd.f32 %v800, %v958
        %v960 = vand.u32 %v387, 4294901760
        %v961 = vsub.f32 %v387, %v960
        %962 = vmatmul.f32.gmra.mxu0 %v961
        %v963 = vpop.f32.mrf.mxu0
        %v964 = vadd.f32 %v804, %v963
        %v965 = vand.u32 %v390, 4294901760
        %v966 = vsub.f32 %v390, %v965
        %967 = vmatmul.f32.gmra.mxu0 %v966
        %v968 = vpop.f32.mrf.mxu0
        %v969 = vadd.f32 %v808, %v968
        %v970 = vand.u32 %v393, 4294901760
        %v971 = vsub.f32 %v393, %v970
        %972 = vmatmul.f32.gmra.mxu0 %v971
        %v973 = vpop.f32.mrf.mxu0
        %v974 = vadd.f32 %v812, %v973
        %v975 = vand.u32 %v396, 4294901760
        %v976 = vsub.f32 %v396, %v975
        %977 = vmatmul.f32.gmra.mxu0 %v976
        %v978 = vpop.f32.mrf.mxu0
        %v979 = vadd.f32 %v816, %v978
        %v980 = vand.u32 %v399, 4294901760
        %v981 = vsub.f32 %v399, %v980
        %982 = vmatmul.f32.gmra.mxu0 %v981
        %v983 = vpop.f32.mrf.mxu0
        %v984 = vadd.f32 %v820, %v983
        %v985 = vand.u32 %v402, 4294901760
        %v986 = vsub.f32 %v402, %v985
        %987 = vmatmul.f32.gmra.mxu0 %v986
        %v988 = vpop.f32.mrf.mxu0
        %v989 = vadd.f32 %v824, %v988
        %v990 = vand.u32 %v405, 4294901760
        %v991 = vsub.f32 %v405, %v990
        %992 = vmatmul.f32.gmra.mxu0 %v991
        %v993 = vpop.f32.mrf.mxu0
        %v994 = vadd.f32 %v828, %v993
        %v995 = vand.u32 %v408, 4294901760
        %v996 = vsub.f32 %v408, %v995
        %997 = vmatmul.f32.gmra.mxu0 %v996
        %v998 = vpop.f32.mrf.mxu0
        %v999 = vadd.f32 %v832, %v998
        %v1000 = vand.u32 %v411, 4294901760
        %v1001 = vsub.f32 %v411, %v1000
        %1002 = vmatmul.f32.gmra.mxu0 %v1001
        %v1003 = vpop.f32.mrf.mxu0
        %v1004 = vadd.f32 %v836, %v1003
        %v1005 = vand.u32 %v414, 4294901760
        %v1006 = vsub.f32 %v414, %v1005
        %1007 = vmatmul.f32.gmra.mxu0 %v1006
        %v1008 = vpop.f32.mrf.mxu0
        %v1009 = vadd.f32 %v840, %v1008
        %v1010 = vand.u32 %v417, 4294901760
        %v1011 = vsub.f32 %v417, %v1010
        %1012 = vmatmul.f32.gmra.mxu0 %v1011
        %v1013 = vpop.f32.mrf.mxu0
        %v1014 = vadd.f32 %v844, %v1013
        %v1015 = vand.u32 %v420, 4294901760
        %v1016 = vsub.f32 %v420, %v1015
        %1017 = vmatmul.f32.gmra.mxu0 %v1016
        %v1018 = vpop.f32.mrf.mxu0
        %v1019 = vadd.f32 %v848, %v1018
        %v1020 = vand.u32 %v423, 4294901760
        %v1021 = vsub.f32 %v423, %v1020
        %1022 = vmatmul.f32.gmra.mxu0 %v1021
        %v1023 = vpop.f32.mrf.mxu0
        %v1024 = vadd.f32 %v852, %v1023
        %v1025 = vand.u32 %v426, 4294901760
        %v1026 = vsub.f32 %v426, %v1025
        %1027 = vmatmul.f32.gmra.mxu0 %v1026
        %v1028 = vpop.f32.mrf.mxu0
        %v1029 = vadd.f32 %v856, %v1028
        %v1030 = vand.u32 %v429, 4294901760
        %v1031 = vsub.f32 %v429, %v1030
        %1032 = vmatmul.f32.gmra.mxu0 %v1031
        %v1033 = vpop.f32.mrf.mxu0
        %v1034 = vadd.f32 %v860, %v1033
        %v1035 = vand.u32 %v432, 4294901760
        %v1036 = vsub.f32 %v432, %v1035
        %1037 = vmatmul.f32.gmra.mxu0 %v1036
        %v1038 = vpop.f32.mrf.mxu0
        %v1039 = vadd.f32 %v864, %v1038
        %v1040 = vand.u32 %v435, 4294901760
        %v1041 = vsub.f32 %v435, %v1040
        %1042 = vmatmul.f32.gmra.mxu0 %v1041
        %v1043 = vpop.f32.mrf.mxu0
        %v1044 = vadd.f32 %v868, %v1043
        %v1045 = vand.u32 %v438, 4294901760
        %v1046 = vsub.f32 %v438, %v1045
        %1047 = vmatmul.f32.gmra.mxu0 %v1046
        %v1048 = vpop.f32.mrf.mxu0
        %v1049 = vadd.f32 %v872, %v1048
        %v1050 = vand.u32 %v441, 4294901760
        %v1051 = vsub.f32 %v441, %v1050
        %1052 = vmatmul.f32.gmra.mxu0 %v1051
        %v1053 = vpop.f32.mrf.mxu0
        %v1054 = vadd.f32 %v876, %v1053
        %v1055 = vand.u32 %v444, 4294901760
        %v1056 = vsub.f32 %v444, %v1055
        %1057 = vmatmul.f32.gmra.mxu0 %v1056
        %v1058 = vpop.f32.mrf.mxu0
        %v1059 = vadd.f32 %v880, %v1058
        %v1060 = vand.u32 %v447, 4294901760
        %v1061 = vsub.f32 %v447, %v1060
        %1062 = vmatmul.f32.gmra.mxu0 %v1061
        %v1063 = vpop.f32.mrf.mxu0
        %v1064 = vadd.f32 %v884, %v1063
        %v1065 = vand.u32 %v450, 4294901760
        %v1066 = vsub.f32 %v450, %v1065
        %1067 = vmatmul.f32.gmra.mxu0 %v1066
        %v1068 = vpop.f32.mrf.mxu0
        %v1069 = vadd.f32 %v888, %v1068
        %v1070 = vand.u32 %v453, 4294901760
        %v1071 = vsub.f32 %v453, %v1070
        %1072 = vmatmul.f32.gmra.mxu0 %v1071
        %v1073 = vpop.f32.mrf.mxu0
        %v1074 = vadd.f32 %v892, %v1073
        %v1075 = vand.u32 %v456, 4294901760
        %v1076 = vsub.f32 %v456, %v1075
        %1077 = vmatmul.f32.gmra.mxu0 %v1076
        %v1078 = vpop.f32.mrf.mxu0
        %v1079 = vadd.f32 %v896, %v1078
        %v1080 = vand.u32 %v459, 4294901760
        %v1081 = vsub.f32 %v459, %v1080
        %1082 = vmatmul.f32.gmra.mxu0 %v1081
        %v1083 = vpop.f32.mrf.mxu0
        %v1084 = vadd.f32 %v900, %v1083
        %v1085 = vand.u32 %v462, 4294901760
        %v1086 = vsub.f32 %v462, %v1085
        %1087 = vmatmul.f32.gmra.mxu0 %v1086
        %v1088 = vpop.f32.mrf.mxu0
        %v1089 = vadd.f32 %v904, %v1088
        %1090 = vdwg.mxu0
        %1091 = vmatpush.msra.mxu0 0.0
        %1092 = vmatpush.msra.mxu0 0.0
        %1093 = vmatpush.msra.mxu0 0.0
        %1094 = vmatpush.msra.mxu0 0.0
        %1095 = vmatpush.msra.mxu0 0.0
        %1096 = vmatpush.msra.mxu0 0.0
        %1097 = vmatpush.msra.mxu0 0.0
        %1098 = vmatpush.msra.mxu0 0.0
        %1099 = vmatpush.msra.mxu0 0.0
        %1100 = vmatpush.msra.mxu0 0.0
        %1101 = vmatpush.msra.mxu0 0.0
        %1102 = vmatpush.msra.mxu0 0.0
        %v1103 = vand.u32 %v366, 4294901760
        %1104 = vmatpush.msra.mxu0 %v1103
        %v1105 = vand.u32 %v365, 4294901760
        %1106 = vmatpush.msra.mxu0 %v1105
        %v1107 = vand.u32 %v364, 4294901760
        %1108 = vmatpush.msra.mxu0 %v1107
        %v1109 = vand.u32 %v363, 4294901760
        %1110 = vmatpush.msra.mxu0 %v1109
        %v1111 = vand.u32 %v369, 4294901760
        %v1112 = vsub.f32 %v369, %v1111
        %v1113 = vand.u32 %v1112, 4294901760
        %1114 = vmatmul.f32.gmra.mxu0 %v1113
        %v1115 = vpop.f32.mrf.mxu0
        %v1116 = vadd.f32 %v934, %v1115
        %v1117 = vand.u32 %v372, 4294901760
        %v1118 = vsub.f32 %v372, %v1117
        %v1119 = vand.u32 %v1118, 4294901760
        %1120 = vmatmul.f32.gmra.mxu0 %v1119
        %v1121 = vpop.f32.mrf.mxu0
        %v1122 = vadd.f32 %v939, %v1121
        %v1123 = vand.u32 %v375, 4294901760
        %v1124 = vsub.f32 %v375, %v1123
        %v1125 = vand.u32 %v1124, 4294901760
        %1126 = vmatmul.f32.gmra.mxu0 %v1125
        %v1127 = vpop.f32.mrf.mxu0
        %v1128 = vadd.f32 %v944, %v1127
        %v1129 = vand.u32 %v378, 4294901760
        %v1130 = vsub.f32 %v378, %v1129
        %v1131 = vand.u32 %v1130, 4294901760
        %1132 = vmatmul.f32.gmra.mxu0 %v1131
        %v1133 = vpop.f32.mrf.mxu0
        %v1134 = vadd.f32 %v949, %v1133
        %v1135 = vand.u32 %v381, 4294901760
        %v1136 = vsub.f32 %v381, %v1135
        %v1137 = vand.u32 %v1136, 4294901760
        %1138 = vmatmul.f32.gmra.mxu0 %v1137
        %v1139 = vpop.f32.mrf.mxu0
        %v1140 = vadd.f32 %v954, %v1139
        %v1141 = vand.u32 %v384, 4294901760
        %v1142 = vsub.f32 %v384, %v1141
        %v1143 = vand.u32 %v1142, 4294901760
        %1144 = vmatmul.f32.gmra.mxu0 %v1143
        %v1145 = vpop.f32.mrf.mxu0
        %v1146 = vadd.f32 %v959, %v1145
        %v1147 = vand.u32 %v387, 4294901760
        %v1148 = vsub.f32 %v387, %v1147
        %v1149 = vand.u32 %v1148, 4294901760
        %1150 = vmatmul.f32.gmra.mxu0 %v1149
        %v1151 = vpop.f32.mrf.mxu0
        %v1152 = vadd.f32 %v964, %v1151
        %v1153 = vand.u32 %v390, 4294901760
        %v1154 = vsub.f32 %v390, %v1153
        %v1155 = vand.u32 %v1154, 4294901760
        %1156 = vmatmul.f32.gmra.mxu0 %v1155
        %v1157 = vpop.f32.mrf.mxu0
        %v1158 = vadd.f32 %v969, %v1157
        %v1159 = vand.u32 %v393, 4294901760
        %v1160 = vsub.f32 %v393, %v1159
        %v1161 = vand.u32 %v1160, 4294901760
        %1162 = vmatmul.f32.gmra.mxu0 %v1161
        %v1163 = vpop.f32.mrf.mxu0
        %v1164 = vadd.f32 %v974, %v1163
        %v1165 = vand.u32 %v396, 4294901760
        %v1166 = vsub.f32 %v396, %v1165
        %v1167 = vand.u32 %v1166, 4294901760
        %1168 = vmatmul.f32.gmra.mxu0 %v1167
        %v1169 = vpop.f32.mrf.mxu0
        %v1170 = vadd.f32 %v979, %v1169
        %v1171 = vand.u32 %v399, 4294901760
        %v1172 = vsub.f32 %v399, %v1171
        %v1173 = vand.u32 %v1172, 4294901760
        %1174 = vmatmul.f32.gmra.mxu0 %v1173
        %v1175 = vpop.f32.mrf.mxu0
        %v1176 = vadd.f32 %v984, %v1175
        %v1177 = vand.u32 %v402, 4294901760
        %v1178 = vsub.f32 %v402, %v1177
        %v1179 = vand.u32 %v1178, 4294901760
        %1180 = vmatmul.f32.gmra.mxu0 %v1179
        %v1181 = vpop.f32.mrf.mxu0
        %v1182 = vadd.f32 %v989, %v1181
        %v1183 = vand.u32 %v405, 4294901760
        %v1184 = vsub.f32 %v405, %v1183
        %v1185 = vand.u32 %v1184, 4294901760
        %1186 = vmatmul.f32.gmra.mxu0 %v1185
        %v1187 = vpop.f32.mrf.mxu0
        %v1188 = vadd.f32 %v994, %v1187
        %v1189 = vand.u32 %v408, 4294901760
        %v1190 = vsub.f32 %v408, %v1189
        %v1191 = vand.u32 %v1190, 4294901760
        %1192 = vmatmul.f32.gmra.mxu0 %v1191
        %v1193 = vpop.f32.mrf.mxu0
        %v1194 = vadd.f32 %v999, %v1193
        %v1195 = vand.u32 %v411, 4294901760
        %v1196 = vsub.f32 %v411, %v1195
        %v1197 = vand.u32 %v1196, 4294901760
        %1198 = vmatmul.f32.gmra.mxu0 %v1197
        %v1199 = vpop.f32.mrf.mxu0
        %v1200 = vadd.f32 %v1004, %v1199
        %v1201 = vand.u32 %v414, 4294901760
        %v1202 = vsub.f32 %v414, %v1201
        %v1203 = vand.u32 %v1202, 4294901760
        %1204 = vmatmul.f32.gmra.mxu0 %v1203
        %v1205 = vpop.f32.mrf.mxu0
        %v1206 = vadd.f32 %v1009, %v1205
        %v1207 = vand.u32 %v417, 4294901760
        %v1208 = vsub.f32 %v417, %v1207
        %v1209 = vand.u32 %v1208, 4294901760
        %1210 = vmatmul.f32.gmra.mxu0 %v1209
        %v1211 = vpop.f32.mrf.mxu0
        %v1212 = vadd.f32 %v1014, %v1211
        %v1213 = vand.u32 %v420, 4294901760
        %v1214 = vsub.f32 %v420, %v1213
        %v1215 = vand.u32 %v1214, 4294901760
        %1216 = vmatmul.f32.gmra.mxu0 %v1215
        %v1217 = vpop.f32.mrf.mxu0
        %v1218 = vadd.f32 %v1019, %v1217
        %v1219 = vand.u32 %v423, 4294901760
        %v1220 = vsub.f32 %v423, %v1219
        %v1221 = vand.u32 %v1220, 4294901760
        %1222 = vmatmul.f32.gmra.mxu0 %v1221
        %v1223 = vpop.f32.mrf.mxu0
        %v1224 = vadd.f32 %v1024, %v1223
        %v1225 = vand.u32 %v426, 4294901760
        %v1226 = vsub.f32 %v426, %v1225
        %v1227 = vand.u32 %v1226, 4294901760
        %1228 = vmatmul.f32.gmra.mxu0 %v1227
        %v1229 = vpop.f32.mrf.mxu0
        %v1230 = vadd.f32 %v1029, %v1229
        %v1231 = vand.u32 %v429, 4294901760
        %v1232 = vsub.f32 %v429, %v1231
        %v1233 = vand.u32 %v1232, 4294901760
        %1234 = vmatmul.f32.gmra.mxu0 %v1233
        %v1235 = vpop.f32.mrf.mxu0
        %v1236 = vadd.f32 %v1034, %v1235
        %v1237 = vand.u32 %v432, 4294901760
        %v1238 = vsub.f32 %v432, %v1237
        %v1239 = vand.u32 %v1238, 4294901760
        %1240 = vmatmul.f32.gmra.mxu0 %v1239
        %v1241 = vpop.f32.mrf.mxu0
        %v1242 = vadd.f32 %v1039, %v1241
        %v1243 = vand.u32 %v435, 4294901760
        %v1244 = vsub.f32 %v435, %v1243
        %v1245 = vand.u32 %v1244, 4294901760
        %1246 = vmatmul.f32.gmra.mxu0 %v1245
        %v1247 = vpop.f32.mrf.mxu0
        %v1248 = vadd.f32 %v1044, %v1247
        %v1249 = vand.u32 %v438, 4294901760
        %v1250 = vsub.f32 %v438, %v1249
        %v1251 = vand.u32 %v1250, 4294901760
        %1252 = vmatmul.f32.gmra.mxu0 %v1251
        %v1253 = vpop.f32.mrf.mxu0
        %v1254 = vadd.f32 %v1049, %v1253
        %v1255 = vand.u32 %v441, 4294901760
        %v1256 = vsub.f32 %v441, %v1255
        %v1257 = vand.u32 %v1256, 4294901760
        %1258 = vmatmul.f32.gmra.mxu0 %v1257
        %v1259 = vpop.f32.mrf.mxu0
        %v1260 = vadd.f32 %v1054, %v1259
        %v1261 = vand.u32 %v444, 4294901760
        %v1262 = vsub.f32 %v444, %v1261
        %v1263 = vand.u32 %v1262, 4294901760
        %1264 = vmatmul.f32.gmra.mxu0 %v1263
        %v1265 = vpop.f32.mrf.mxu0
        %v1266 = vadd.f32 %v1059, %v1265
        %v1267 = vand.u32 %v447, 4294901760
        %v1268 = vsub.f32 %v447, %v1267
        %v1269 = vand.u32 %v1268, 4294901760
        %1270 = vmatmul.f32.gmra.mxu0 %v1269
        %v1271 = vpop.f32.mrf.mxu0
        %v1272 = vadd.f32 %v1064, %v1271
        %v1273 = vand.u32 %v450, 4294901760
        %v1274 = vsub.f32 %v450, %v1273
        %v1275 = vand.u32 %v1274, 4294901760
        %1276 = vmatmul.f32.gmra.mxu0 %v1275
        %v1277 = vpop.f32.mrf.mxu0
        %v1278 = vadd.f32 %v1069, %v1277
        %v1279 = vand.u32 %v453, 4294901760
        %v1280 = vsub.f32 %v453, %v1279
        %v1281 = vand.u32 %v1280, 4294901760
        %1282 = vmatmul.f32.gmra.mxu0 %v1281
        %v1283 = vpop.f32.mrf.mxu0
        %v1284 = vadd.f32 %v1074, %v1283
        %v1285 = vand.u32 %v456, 4294901760
        %v1286 = vsub.f32 %v456, %v1285
        %v1287 = vand.u32 %v1286, 4294901760
        %1288 = vmatmul.f32.gmra.mxu0 %v1287
        %v1289 = vpop.f32.mrf.mxu0
        %v1290 = vadd.f32 %v1079, %v1289
        %v1291 = vand.u32 %v459, 4294901760
        %v1292 = vsub.f32 %v459, %v1291
        %v1293 = vand.u32 %v1292, 4294901760
        %1294 = vmatmul.f32.gmra.mxu0 %v1293
        %v1295 = vpop.f32.mrf.mxu0
        %v1296 = vadd.f32 %v1084, %v1295
        %v1297 = vand.u32 %v462, 4294901760
        %v1298 = vsub.f32 %v462, %v1297
        %v1299 = vand.u32 %v1298, 4294901760
        %1300 = vmatmul.f32.gmra.mxu0 %v1299
        %v1301 = vpop.f32.mrf.mxu0
        %v1302 = vadd.f32 %v1089, %v1301
        %1303 = vdwg.mxu0
        %1304 = vmatpush.msra.mxu0 0.0
        %1305 = vmatpush.msra.mxu0 0.0
        %1306 = vmatpush.msra.mxu0 0.0
        %1307 = vmatpush.msra.mxu0 0.0
        %1308 = vmatpush.msra.mxu0 0.0
        %1309 = vmatpush.msra.mxu0 0.0
        %1310 = vmatpush.msra.mxu0 0.0
        %1311 = vmatpush.msra.mxu0 0.0
        %1312 = vmatpush.msra.mxu0 0.0
        %1313 = vmatpush.msra.mxu0 0.0
        %1314 = vmatpush.msra.mxu0 0.0
        %1315 = vmatpush.msra.mxu0 0.0
        %v1316 = vand.u32 %v366, 4294901760
        %v1317 = vsub.f32 %v366, %v1316
        %v1318 = vand.u32 %v1317, 4294901760
        %1319 = vmatpush.msra.mxu0 %v1318
        %v1320 = vand.u32 %v365, 4294901760
        %v1321 = vsub.f32 %v365, %v1320
        %v1322 = vand.u32 %v1321, 4294901760
        %1323 = vmatpush.msra.mxu0 %v1322
        %v1324 = vand.u32 %v364, 4294901760
        %v1325 = vsub.f32 %v364, %v1324
        %v1326 = vand.u32 %v1325, 4294901760
        %1327 = vmatpush.msra.mxu0 %v1326
        %v1328 = vand.u32 %v363, 4294901760
        %v1329 = vsub.f32 %v363, %v1328
        %v1330 = vand.u32 %v1329, 4294901760
        %1331 = vmatpush.msra.mxu0 %v1330
        %v1332 = vand.u32 %v369, 4294901760
        %1333 = vmatmul.f32.gmra.mxu0 %v1332
        %v1334 = vpop.f32.mrf.mxu0
        %v1335 = vadd.f32 %v1116, %v1334
        %v1336 = vand.u32 %v372, 4294901760
        %1337 = vmatmul.f32.gmra.mxu0 %v1336
        %v1338 = vpop.f32.mrf.mxu0
        %v1339 = vadd.f32 %v1122, %v1338
        %v1340 = vand.u32 %v375, 4294901760
        %1341 = vmatmul.f32.gmra.mxu0 %v1340
        %v1342 = vpop.f32.mrf.mxu0
        %v1343 = vadd.f32 %v1128, %v1342
        %v1344 = vand.u32 %v378, 4294901760
        %1345 = vmatmul.f32.gmra.mxu0 %v1344
        %v1346 = vpop.f32.mrf.mxu0
        %v1347 = vadd.f32 %v1134, %v1346
        %v1348 = vand.u32 %v381, 4294901760
        %1349 = vmatmul.f32.gmra.mxu0 %v1348
        %v1350 = vpop.f32.mrf.mxu0
        %v1351 = vadd.f32 %v1140, %v1350
        %v1352 = vand.u32 %v384, 4294901760
        %1353 = vmatmul.f32.gmra.mxu0 %v1352
        %v1354 = vpop.f32.mrf.mxu0
        %v1355 = vadd.f32 %v1146, %v1354
        %v1356 = vand.u32 %v387, 4294901760
        %1357 = vmatmul.f32.gmra.mxu0 %v1356
        %v1358 = vpop.f32.mrf.mxu0
        %v1359 = vadd.f32 %v1152, %v1358
        %v1360 = vand.u32 %v390, 4294901760
        %1361 = vmatmul.f32.gmra.mxu0 %v1360
        %v1362 = vpop.f32.mrf.mxu0
        %v1363 = vadd.f32 %v1158, %v1362
        %v1364 = vand.u32 %v393, 4294901760
        %1365 = vmatmul.f32.gmra.mxu0 %v1364
        %v1366 = vpop.f32.mrf.mxu0
        %v1367 = vadd.f32 %v1164, %v1366
        %v1368 = vand.u32 %v396, 4294901760
        %1369 = vmatmul.f32.gmra.mxu0 %v1368
        %v1370 = vpop.f32.mrf.mxu0
        %v1371 = vadd.f32 %v1170, %v1370
        %v1372 = vand.u32 %v399, 4294901760
        %1373 = vmatmul.f32.gmra.mxu0 %v1372
        %v1374 = vpop.f32.mrf.mxu0
        %v1375 = vadd.f32 %v1176, %v1374
        %v1376 = vand.u32 %v402, 4294901760
        %1377 = vmatmul.f32.gmra.mxu0 %v1376
        %v1378 = vpop.f32.mrf.mxu0
        %v1379 = vadd.f32 %v1182, %v1378
        %v1380 = vand.u32 %v405, 4294901760
        %1381 = vmatmul.f32.gmra.mxu0 %v1380
        %v1382 = vpop.f32.mrf.mxu0
        %v1383 = vadd.f32 %v1188, %v1382
        %v1384 = vand.u32 %v408, 4294901760
        %1385 = vmatmul.f32.gmra.mxu0 %v1384
        %v1386 = vpop.f32.mrf.mxu0
        %v1387 = vadd.f32 %v1194, %v1386
        %v1388 = vand.u32 %v411, 4294901760
        %1389 = vmatmul.f32.gmra.mxu0 %v1388
        %v1390 = vpop.f32.mrf.mxu0
        %v1391 = vadd.f32 %v1200, %v1390
        %v1392 = vand.u32 %v414, 4294901760
        %1393 = vmatmul.f32.gmra.mxu0 %v1392
        %v1394 = vpop.f32.mrf.mxu0
        %v1395 = vadd.f32 %v1206, %v1394
        %v1396 = vand.u32 %v417, 4294901760
        %1397 = vmatmul.f32.gmra.mxu0 %v1396
        %v1398 = vpop.f32.mrf.mxu0
        %v1399 = vadd.f32 %v1212, %v1398
        %v1400 = vand.u32 %v420, 4294901760
        %1401 = vmatmul.f32.gmra.mxu0 %v1400
        %v1402 = vpop.f32.mrf.mxu0
        %v1403 = vadd.f32 %v1218, %v1402
        %v1404 = vand.u32 %v423, 4294901760
        %1405 = vmatmul.f32.gmra.mxu0 %v1404
        %v1406 = vpop.f32.mrf.mxu0
        %v1407 = vadd.f32 %v1224, %v1406
        %v1408 = vand.u32 %v426, 4294901760
        %1409 = vmatmul.f32.gmra.mxu0 %v1408
        %v1410 = vpop.f32.mrf.mxu0
        %v1411 = vadd.f32 %v1230, %v1410
        %v1412 = vand.u32 %v429, 4294901760
        %1413 = vmatmul.f32.gmra.mxu0 %v1412
        %v1414 = vpop.f32.mrf.mxu0
        %v1415 = vadd.f32 %v1236, %v1414
        %v1416 = vand.u32 %v432, 4294901760
        %1417 = vmatmul.f32.gmra.mxu0 %v1416
        %v1418 = vpop.f32.mrf.mxu0
        %v1419 = vadd.f32 %v1242, %v1418
        %v1420 = vand.u32 %v435, 4294901760
        %1421 = vmatmul.f32.gmra.mxu0 %v1420
        %v1422 = vpop.f32.mrf.mxu0
        %v1423 = vadd.f32 %v1248, %v1422
        %v1424 = vand.u32 %v438, 4294901760
        %1425 = vmatmul.f32.gmra.mxu0 %v1424
        %v1426 = vpop.f32.mrf.mxu0
        %v1427 = vadd.f32 %v1254, %v1426
        %v1428 = vand.u32 %v441, 4294901760
        %1429 = vmatmul.f32.gmra.mxu0 %v1428
        %v1430 = vpop.f32.mrf.mxu0
        %v1431 = vadd.f32 %v1260, %v1430
        %v1432 = vand.u32 %v444, 4294901760
        %1433 = vmatmul.f32.gmra.mxu0 %v1432
        %v1434 = vpop.f32.mrf.mxu0
        %v1435 = vadd.f32 %v1266, %v1434
        %v1436 = vand.u32 %v447, 4294901760
        %1437 = vmatmul.f32.gmra.mxu0 %v1436
        %v1438 = vpop.f32.mrf.mxu0
        %v1439 = vadd.f32 %v1272, %v1438
        %v1440 = vand.u32 %v450, 4294901760
        %1441 = vmatmul.f32.gmra.mxu0 %v1440
        %v1442 = vpop.f32.mrf.mxu0
        %v1443 = vadd.f32 %v1278, %v1442
        %v1444 = vand.u32 %v453, 4294901760
        %1445 = vmatmul.f32.gmra.mxu0 %v1444
        %v1446 = vpop.f32.mrf.mxu0
        %v1447 = vadd.f32 %v1284, %v1446
        %v1448 = vand.u32 %v456, 4294901760
        %1449 = vmatmul.f32.gmra.mxu0 %v1448
        %v1450 = vpop.f32.mrf.mxu0
        %v1451 = vadd.f32 %v1290, %v1450
        %v1452 = vand.u32 %v459, 4294901760
        %1453 = vmatmul.f32.gmra.mxu0 %v1452
        %v1454 = vpop.f32.mrf.mxu0
        %v1455 = vadd.f32 %v1296, %v1454
        %v1456 = vand.u32 %v462, 4294901760
        %1457 = vmatmul.f32.gmra.mxu0 %v1456
        %v1458 = vpop.f32.mrf.mxu0
        %v1459 = vadd.f32 %v1302, %v1458
        %1460 = vdwg.mxu0
        %1461 = vmatpush.msra.mxu0 0.0
        %1462 = vmatpush.msra.mxu0 0.0
        %1463 = vmatpush.msra.mxu0 0.0
        %1464 = vmatpush.msra.mxu0 0.0
        %1465 = vmatpush.msra.mxu0 0.0
        %1466 = vmatpush.msra.mxu0 0.0
        %1467 = vmatpush.msra.mxu0 0.0
        %1468 = vmatpush.msra.mxu0 0.0
        %1469 = vmatpush.msra.mxu0 0.0
        %1470 = vmatpush.msra.mxu0 0.0
        %1471 = vmatpush.msra.mxu0 0.0
        %1472 = vmatpush.msra.mxu0 0.0
        %v1473 = vand.u32 %v366, 4294901760
        %1474 = vmatpush.msra.mxu0 %v1473
        %v1475 = vand.u32 %v365, 4294901760
        %1476 = vmatpush.msra.mxu0 %v1475
        %v1477 = vand.u32 %v364, 4294901760
        %1478 = vmatpush.msra.mxu0 %v1477
        %v1479 = vand.u32 %v363, 4294901760
        %1480 = vmatpush.msra.mxu0 %v1479
        %v1481 = vand.u32 %v369, 4294901760
        %1482 = vmatmul.f32.gmra.mxu0 %v1481
        %v1483 = vpop.f32.mrf.mxu0
        %v1484 = vadd.f32 %v1335, %v1483
        %v1485 = vand.u32 %v372, 4294901760
        %1486 = vmatmul.f32.gmra.mxu0 %v1485
        %v1487 = vpop.f32.mrf.mxu0
        %v1488 = vadd.f32 %v1339, %v1487
        %v1489 = vand.u32 %v375, 4294901760
        %1490 = vmatmul.f32.gmra.mxu0 %v1489
        %v1491 = vpop.f32.mrf.mxu0
        %v1492 = vadd.f32 %v1343, %v1491
        %v1493 = vand.u32 %v378, 4294901760
        %1494 = vmatmul.f32.gmra.mxu0 %v1493
        %v1495 = vpop.f32.mrf.mxu0
        %v1496 = vadd.f32 %v1347, %v1495
        %v1497 = vand.u32 %v381, 4294901760
        %1498 = vmatmul.f32.gmra.mxu0 %v1497
        %v1499 = vpop.f32.mrf.mxu0
        %v1500 = vadd.f32 %v1351, %v1499
        %v1501 = vand.u32 %v384, 4294901760
        %1502 = vmatmul.f32.gmra.mxu0 %v1501
        %v1503 = vpop.f32.mrf.mxu0
        %v1504 = vadd.f32 %v1355, %v1503
        %v1505 = vand.u32 %v387, 4294901760
        %1506 = vmatmul.f32.gmra.mxu0 %v1505
        %v1507 = vpop.f32.mrf.mxu0
        %v1508 = vadd.f32 %v1359, %v1507
        %v1509 = vand.u32 %v390, 4294901760
        %1510 = vmatmul.f32.gmra.mxu0 %v1509
        %v1511 = vpop.f32.mrf.mxu0
        %v1512 = vadd.f32 %v1363, %v1511
        %v1513 = vand.u32 %v393, 4294901760
        %1514 = vmatmul.f32.gmra.mxu0 %v1513
        %v1515 = vpop.f32.mrf.mxu0
        %v1516 = vadd.f32 %v1367, %v1515
        %v1517 = vand.u32 %v396, 4294901760
        %1518 = vmatmul.f32.gmra.mxu0 %v1517
        %v1519 = vpop.f32.mrf.mxu0
        %v1520 = vadd.f32 %v1371, %v1519
        %v1521 = vand.u32 %v399, 4294901760
        %1522 = vmatmul.f32.gmra.mxu0 %v1521
        %v1523 = vpop.f32.mrf.mxu0
        %v1524 = vadd.f32 %v1375, %v1523
        %v1525 = vand.u32 %v402, 4294901760
        %1526 = vmatmul.f32.gmra.mxu0 %v1525
        %v1527 = vpop.f32.mrf.mxu0
        %v1528 = vadd.f32 %v1379, %v1527
        %v1529 = vand.u32 %v405, 4294901760
        %1530 = vmatmul.f32.gmra.mxu0 %v1529
        %v1531 = vpop.f32.mrf.mxu0
        %v1532 = vadd.f32 %v1383, %v1531
        %v1533 = vand.u32 %v408, 4294901760
        %1534 = vmatmul.f32.gmra.mxu0 %v1533
        %v1535 = vpop.f32.mrf.mxu0
        %v1536 = vadd.f32 %v1387, %v1535
        %v1537 = vand.u32 %v411, 4294901760
        %1538 = vmatmul.f32.gmra.mxu0 %v1537
        %v1539 = vpop.f32.mrf.mxu0
        %v1540 = vadd.f32 %v1391, %v1539
        %v1541 = vand.u32 %v414, 4294901760
        %1542 = vmatmul.f32.gmra.mxu0 %v1541
        %v1543 = vpop.f32.mrf.mxu0
        %v1544 = vadd.f32 %v1395, %v1543
        %v1545 = vand.u32 %v417, 4294901760
        %1546 = vmatmul.f32.gmra.mxu0 %v1545
        %v1547 = vpop.f32.mrf.mxu0
        %v1548 = vadd.f32 %v1399, %v1547
        %v1549 = vand.u32 %v420, 4294901760
        %1550 = vmatmul.f32.gmra.mxu0 %v1549
        %v1551 = vpop.f32.mrf.mxu0
        %v1552 = vadd.f32 %v1403, %v1551
        %v1553 = vand.u32 %v423, 4294901760
        %1554 = vmatmul.f32.gmra.mxu0 %v1553
        %v1555 = vpop.f32.mrf.mxu0
        %v1556 = vadd.f32 %v1407, %v1555
        %v1557 = vand.u32 %v426, 4294901760
        %1558 = vmatmul.f32.gmra.mxu0 %v1557
        %v1559 = vpop.f32.mrf.mxu0
        %v1560 = vadd.f32 %v1411, %v1559
        %v1561 = vand.u32 %v429, 4294901760
        %1562 = vmatmul.f32.gmra.mxu0 %v1561
        %v1563 = vpop.f32.mrf.mxu0
        %v1564 = vadd.f32 %v1415, %v1563
        %v1565 = vand.u32 %v432, 4294901760
        %1566 = vmatmul.f32.gmra.mxu0 %v1565
        %v1567 = vpop.f32.mrf.mxu0
        %v1568 = vadd.f32 %v1419, %v1567
        %v1569 = vand.u32 %v435, 4294901760
        %1570 = vmatmul.f32.gmra.mxu0 %v1569
        %v1571 = vpop.f32.mrf.mxu0
        %v1572 = vadd.f32 %v1423, %v1571
        %v1573 = vand.u32 %v438, 4294901760
        %1574 = vmatmul.f32.gmra.mxu0 %v1573
        %v1575 = vpop.f32.mrf.mxu0
        %v1576 = vadd.f32 %v1427, %v1575
        %v1577 = vand.u32 %v441, 4294901760
        %1578 = vmatmul.f32.gmra.mxu0 %v1577
        %v1579 = vpop.f32.mrf.mxu0
        %v1580 = vadd.f32 %v1431, %v1579
        %v1581 = vand.u32 %v444, 4294901760
        %1582 = vmatmul.f32.gmra.mxu0 %v1581
        %v1583 = vpop.f32.mrf.mxu0
        %v1584 = vadd.f32 %v1435, %v1583
        %v1585 = vand.u32 %v447, 4294901760
        %1586 = vmatmul.f32.gmra.mxu0 %v1585
        %v1587 = vpop.f32.mrf.mxu0
        %v1588 = vadd.f32 %v1439, %v1587
        %v1589 = vand.u32 %v450, 4294901760
        %1590 = vmatmul.f32.gmra.mxu0 %v1589
        %v1591 = vpop.f32.mrf.mxu0
        %v1592 = vadd.f32 %v1443, %v1591
        %v1593 = vand.u32 %v453, 4294901760
        %1594 = vmatmul.f32.gmra.mxu0 %v1593
        %v1595 = vpop.f32.mrf.mxu0
        %v1596 = vadd.f32 %v1447, %v1595
        %v1597 = vand.u32 %v456, 4294901760
        %1598 = vmatmul.f32.gmra.mxu0 %v1597
        %v1599 = vpop.f32.mrf.mxu0
        %v1600 = vadd.f32 %v1451, %v1599
        %v1601 = vand.u32 %v459, 4294901760
        %1602 = vmatmul.f32.gmra.mxu0 %v1601
        %v1603 = vpop.f32.mrf.mxu0
        %v1604 = vadd.f32 %v1455, %v1603
        %v1605 = vand.u32 %v462, 4294901760
        %1606 = vmatmul.f32.gmra.mxu0 %v1605
        %v1607 = vpop.f32.mrf.mxu0
        %v1608 = vadd.f32 %v1459, %v1607
        %1609 = vdwg.mxu0
        %v1610 = vld [vmem:[%s2] sm:$0x1]
        %v1611 = vld [vmem:[%s3] sm:$0x1]
        %v1612 = vld [vmem:[%s7] sm:$0xff]
        %v1613 = vld [vmem:[%s7 + $0x8] sm:$0xff]
        %v1614 = vld [vmem:[%s7 + $0x10] sm:$0xff]
        %v1615 = vld [vmem:[%s7 + $0x18] sm:$0xff]
        %v1616 = vld [vmem:[%s7 + $0x20] sm:$0xff]
        %v1617 = vld [vmem:[%s7 + $0x28] sm:$0xff]
        %v1618 = vld [vmem:[%s7 + $0x30] sm:$0xff]
        %v1619 = vld [vmem:[%s7 + $0x38] sm:$0xff]
        %v1620 = vld [vmem:[%s7 + $0x40] sm:$0xff]
        %v1621 = vld [vmem:[%s7 + $0x48] sm:$0xff]
        %v1622 = vld [vmem:[%s7 + $0x50] sm:$0xff]
        %v1623 = vld [vmem:[%s7 + $0x58] sm:$0xff]
        %v1624 = vld [vmem:[%s7 + $0x60] sm:$0xff]
        %v1625 = vld [vmem:[%s7 + $0x68] sm:$0xff]
        %v1626 = vld [vmem:[%s7 + $0x70] sm:$0xff]
        %v1627 = vld [vmem:[%s7 + $0x78] sm:$0xff]
        %v1628 = vadd.f32 %v1484, %v1488
        %v1629 = vadd.f32 %v1628, %v1492
        %v1630 = vadd.f32 %v1629, %v1496
        %v1631 = vadd.f32 %v1630, %v1500
        %v1632 = vadd.f32 %v1631, %v1504
        %v1633 = vadd.f32 %v1632, %v1508
        %v1634 = vadd.f32 %v1633, %v1512
        %v1635 = vadd.f32 %v1634, %v1516
        %v1636 = vadd.f32 %v1635, %v1520
        %v1637 = vadd.f32 %v1636, %v1524
        %v1638 = vadd.f32 %v1637, %v1528
        %v1639 = vadd.f32 %v1638, %v1532
        %v1640 = vadd.f32 %v1639, %v1536
        %v1641 = vadd.f32 %v1640, %v1540
        %v1642 = vadd.f32 %v1641, %v1544
        %v1643 = vadd.f32 %v1642, %v1548
        %v1644 = vadd.f32 %v1643, %v1552
        %v1645 = vadd.f32 %v1644, %v1556
        %v1646 = vadd.f32 %v1645, %v1560
        %v1647 = vadd.f32 %v1646, %v1564
        %v1648 = vadd.f32 %v1647, %v1568
        %v1649 = vadd.f32 %v1648, %v1572
        %v1650 = vadd.f32 %v1649, %v1576
        %v1651 = vadd.f32 %v1650, %v1580
        %v1652 = vadd.f32 %v1651, %v1584
        %v1653 = vadd.f32 %v1652, %v1588
        %v1654 = vadd.f32 %v1653, %v1592
        %v1655 = vadd.f32 %v1654, %v1596
        %v1656 = vadd.f32 %v1655, %v1600
        %v1657 = vadd.f32 %v1656, %v1604
        %v1658 = vadd.f32 %v1657, %v1608
        %v1659 = vrot.slane %v1658, 4
        %v1660 = vadd.f32 %v1658, %v1659
        %v1661 = vrot.slane %v1660, 2
        %v1662 = vadd.f32 %v1660, %v1661
        %v1663 = vrot.slane %v1662, 1
        %v1664 = vadd.f32 %v1662, %v1663
        %v1665 = vand.u32 %v1627, 4294901760
        %1666 = vmatpush.msra.mxu0 %v1665
        %v1667 = vand.u32 %v1626, 4294901760
        %1668 = vmatpush.msra.mxu0 %v1667
        %v1669 = vand.u32 %v1625, 4294901760
        %1670 = vmatpush.msra.mxu0 %v1669
        %v1671 = vand.u32 %v1624, 4294901760
        %1672 = vmatpush.msra.mxu0 %v1671
        %v1673 = vand.u32 %v1623, 4294901760
        %1674 = vmatpush.msra.mxu0 %v1673
        %v1675 = vand.u32 %v1622, 4294901760
        %1676 = vmatpush.msra.mxu0 %v1675
        %v1677 = vand.u32 %v1621, 4294901760
        %1678 = vmatpush.msra.mxu0 %v1677
        %v1679 = vand.u32 %v1620, 4294901760
        %1680 = vmatpush.msra.mxu0 %v1679
        %v1681 = vand.u32 %v1619, 4294901760
        %1682 = vmatpush.msra.mxu0 %v1681
        %v1683 = vand.u32 %v1618, 4294901760
        %1684 = vmatpush.msra.mxu0 %v1683
        %v1685 = vand.u32 %v1617, 4294901760
        %1686 = vmatpush.msra.mxu0 %v1685
        %v1687 = vand.u32 %v1616, 4294901760
        %1688 = vmatpush.msra.mxu0 %v1687
        %v1689 = vand.u32 %v1615, 4294901760
        %1690 = vmatpush.msra.mxu0 %v1689
        %v1691 = vand.u32 %v1614, 4294901760
        %1692 = vmatpush.msra.mxu0 %v1691
        %v1693 = vand.u32 %v1613, 4294901760
        %1694 = vmatpush.msra.mxu0 %v1693
        %v1695 = vand.u32 %v1612, 4294901760
        %1696 = vmatpush.msra.mxu0 %v1695
        %v1697 = vand.u32 %v1664, 4294901760
        %v1698 = vsub.f32 %v1664, %v1697
        %v1699 = vand.u32 %v1698, 4294901760
        %v1700 = vsub.f32 %v1698, %v1699
        %v1701 = vand.u32 %v1700, 4294901760
        %1702 = vmatmul.f32.gmra.mxu0 %v1701
        %v1703 = vpop.f32.mrf.mxu0
        %v1704 = vadd.f32 0.0, %v1703
        %1705 = vdwg.mxu0
        %v1706 = vand.u32 %v1627, 4294901760
        %v1707 = vsub.f32 %v1627, %v1706
        %v1708 = vand.u32 %v1707, 4294901760
        %v1709 = vsub.f32 %v1707, %v1708
        %v1710 = vand.u32 %v1709, 4294901760
        %1711 = vmatpush.msra.mxu0 %v1710
        %v1712 = vand.u32 %v1626, 4294901760
        %v1713 = vsub.f32 %v1626, %v1712
        %v1714 = vand.u32 %v1713, 4294901760
        %v1715 = vsub.f32 %v1713, %v1714
        %v1716 = vand.u32 %v1715, 4294901760
        %1717 = vmatpush.msra.mxu0 %v1716
        %v1718 = vand.u32 %v1625, 4294901760
        %v1719 = vsub.f32 %v1625, %v1718
        %v1720 = vand.u32 %v1719, 4294901760
        %v1721 = vsub.f32 %v1719, %v1720
        %v1722 = vand.u32 %v1721, 4294901760
        %1723 = vmatpush.msra.mxu0 %v1722
        %v1724 = vand.u32 %v1624, 4294901760
        %v1725 = vsub.f32 %v1624, %v1724
        %v1726 = vand.u32 %v1725, 4294901760
        %v1727 = vsub.f32 %v1725, %v1726
        %v1728 = vand.u32 %v1727, 4294901760
        %1729 = vmatpush.msra.mxu0 %v1728
        %v1730 = vand.u32 %v1623, 4294901760
        %v1731 = vsub.f32 %v1623, %v1730
        %v1732 = vand.u32 %v1731, 4294901760
        %v1733 = vsub.f32 %v1731, %v1732
        %v1734 = vand.u32 %v1733, 4294901760
        %1735 = vmatpush.msra.mxu0 %v1734
        %v1736 = vand.u32 %v1622, 4294901760
        %v1737 = vsub.f32 %v1622, %v1736
        %v1738 = vand.u32 %v1737, 4294901760
        %v1739 = vsub.f32 %v1737, %v1738
        %v1740 = vand.u32 %v1739, 4294901760
        %1741 = vmatpush.msra.mxu0 %v1740
        %v1742 = vand.u32 %v1621, 4294901760
        %v1743 = vsub.f32 %v1621, %v1742
        %v1744 = vand.u32 %v1743, 4294901760
        %v1745 = vsub.f32 %v1743, %v1744
        %v1746 = vand.u32 %v1745, 4294901760
        %1747 = vmatpush.msra.mxu0 %v1746
        %v1748 = vand.u32 %v1620, 4294901760
        %v1749 = vsub.f32 %v1620, %v1748
        %v1750 = vand.u32 %v1749, 4294901760
        %v1751 = vsub.f32 %v1749, %v1750
        %v1752 = vand.u32 %v1751, 4294901760
        %1753 = vmatpush.msra.mxu0 %v1752
        %v1754 = vand.u32 %v1619, 4294901760
        %v1755 = vsub.f32 %v1619, %v1754
        %v1756 = vand.u32 %v1755, 4294901760
        %v1757 = vsub.f32 %v1755, %v1756
        %v1758 = vand.u32 %v1757, 4294901760
        %1759 = vmatpush.msra.mxu0 %v1758
        %v1760 = vand.u32 %v1618, 4294901760
        %v1761 = vsub.f32 %v1618, %v1760
        %v1762 = vand.u32 %v1761, 4294901760
        %v1763 = vsub.f32 %v1761, %v1762
        %v1764 = vand.u32 %v1763, 4294901760
        %1765 = vmatpush.msra.mxu0 %v1764
        %v1766 = vand.u32 %v1617, 4294901760
        %v1767 = vsub.f32 %v1617, %v1766
        %v1768 = vand.u32 %v1767, 4294901760
        %v1769 = vsub.f32 %v1767, %v1768
        %v1770 = vand.u32 %v1769, 4294901760
        %1771 = vmatpush.msra.mxu0 %v1770
        %v1772 = vand.u32 %v1616, 4294901760
        %v1773 = vsub.f32 %v1616, %v1772
        %v1774 = vand.u32 %v1773, 4294901760
        %v1775 = vsub.f32 %v1773, %v1774
        %v1776 = vand.u32 %v1775, 4294901760
        %1777 = vmatpush.msra.mxu0 %v1776
        %v1778 = vand.u32 %v1615, 4294901760
        %v1779 = vsub.f32 %v1615, %v1778
        %v1780 = vand.u32 %v1779, 4294901760
        %v1781 = vsub.f32 %v1779, %v1780
        %v1782 = vand.u32 %v1781, 4294901760
        %1783 = vmatpush.msra.mxu0 %v1782
        %v1784 = vand.u32 %v1614, 4294901760
        %v1785 = vsub.f32 %v1614, %v1784
        %v1786 = vand.u32 %v1785, 4294901760
        %v1787 = vsub.f32 %v1785, %v1786
        %v1788 = vand.u32 %v1787, 4294901760
        %1789 = vmatpush.msra.mxu0 %v1788
        %v1790 = vand.u32 %v1613, 4294901760
        %v1791 = vsub.f32 %v1613, %v1790
        %v1792 = vand.u32 %v1791, 4294901760
        %v1793 = vsub.f32 %v1791, %v1792
        %v1794 = vand.u32 %v1793, 4294901760
        %1795 = vmatpush.msra.mxu0 %v1794
        %v1796 = vand.u32 %v1612, 4294901760
        %v1797 = vsub.f32 %v1612, %v1796
        %v1798 = vand.u32 %v1797, 4294901760
        %v1799 = vsub.f32 %v1797, %v1798
        %v1800 = vand.u32 %v1799, 4294901760
        %1801 = vmatpush.msra.mxu0 %v1800
        %v1802 = vand.u32 %v1664, 4294901760
        %1803 = vmatmul.f32.gmra.mxu0 %v1802
        %v1804 = vpop.f32.mrf.mxu0
        %v1805 = vadd.f32 %v1704, %v1804
        %1806 = vdwg.mxu0
        %v1807 = vand.u32 %v1627, 4294901760
        %v1808 = vsub.f32 %v1627, %v1807
        %1809 = vmatpush.msra.mxu0 %v1808
        %v1810 = vand.u32 %v1626, 4294901760
        %v1811 = vsub.f32 %v1626, %v1810
        %1812 = vmatpush.msra.mxu0 %v1811
        %v1813 = vand.u32 %v1625, 4294901760
        %v1814 = vsub.f32 %v1625, %v1813
        %1815 = vmatpush.msra.mxu0 %v1814
        %v1816 = vand.u32 %v1624, 4294901760
        %v1817 = vsub.f32 %v1624, %v1816
        %1818 = vmatpush.msra.mxu0 %v1817
        %v1819 = vand.u32 %v1623, 4294901760
        %v1820 = vsub.f32 %v1623, %v1819
        %1821 = vmatpush.msra.mxu0 %v1820
        %v1822 = vand.u32 %v1622, 4294901760
        %v1823 = vsub.f32 %v1622, %v1822
        %1824 = vmatpush.msra.mxu0 %v1823
        %v1825 = vand.u32 %v1621, 4294901760
        %v1826 = vsub.f32 %v1621, %v1825
        %1827 = vmatpush.msra.mxu0 %v1826
        %v1828 = vand.u32 %v1620, 4294901760
        %v1829 = vsub.f32 %v1620, %v1828
        %1830 = vmatpush.msra.mxu0 %v1829
        %v1831 = vand.u32 %v1619, 4294901760
        %v1832 = vsub.f32 %v1619, %v1831
        %1833 = vmatpush.msra.mxu0 %v1832
        %v1834 = vand.u32 %v1618, 4294901760
        %v1835 = vsub.f32 %v1618, %v1834
        %1836 = vmatpush.msra.mxu0 %v1835
        %v1837 = vand.u32 %v1617, 4294901760
        %v1838 = vsub.f32 %v1617, %v1837
        %1839 = vmatpush.msra.mxu0 %v1838
        %v1840 = vand.u32 %v1616, 4294901760
        %v1841 = vsub.f32 %v1616, %v1840
        %1842 = vmatpush.msra.mxu0 %v1841
        %v1843 = vand.u32 %v1615, 4294901760
        %v1844 = vsub.f32 %v1615, %v1843
        %1845 = vmatpush.msra.mxu0 %v1844
        %v1846 = vand.u32 %v1614, 4294901760
        %v1847 = vsub.f32 %v1614, %v1846
        %1848 = vmatpush.msra.mxu0 %v1847
        %v1849 = vand.u32 %v1613, 4294901760
        %v1850 = vsub.f32 %v1613, %v1849
        %1851 = vmatpush.msra.mxu0 %v1850
        %v1852 = vand.u32 %v1612, 4294901760
        %v1853 = vsub.f32 %v1612, %v1852
        %1854 = vmatpush.msra.mxu0 %v1853
        %v1855 = vand.u32 %v1664, 4294901760
        %v1856 = vsub.f32 %v1664, %v1855
        %1857 = vmatmul.f32.gmra.mxu0 %v1856
        %v1858 = vpop.f32.mrf.mxu0
        %v1859 = vadd.f32 %v1805, %v1858
        %1860 = vdwg.mxu0
        %v1861 = vand.u32 %v1627, 4294901760
        %1862 = vmatpush.msra.mxu0 %v1861
        %v1863 = vand.u32 %v1626, 4294901760
        %1864 = vmatpush.msra.mxu0 %v1863
        %v1865 = vand.u32 %v1625, 4294901760
        %1866 = vmatpush.msra.mxu0 %v1865
        %v1867 = vand.u32 %v1624, 4294901760
        %1868 = vmatpush.msra.mxu0 %v1867
        %v1869 = vand.u32 %v1623, 4294901760
        %1870 = vmatpush.msra.mxu0 %v1869
        %v1871 = vand.u32 %v1622, 4294901760
        %1872 = vmatpush.msra.mxu0 %v1871
        %v1873 = vand.u32 %v1621, 4294901760
        %1874 = vmatpush.msra.mxu0 %v1873
        %v1875 = vand.u32 %v1620, 4294901760
        %1876 = vmatpush.msra.mxu0 %v1875
        %v1877 = vand.u32 %v1619, 4294901760
        %1878 = vmatpush.msra.mxu0 %v1877
        %v1879 = vand.u32 %v1618, 4294901760
        %1880 = vmatpush.msra.mxu0 %v1879
        %v1881 = vand.u32 %v1617, 4294901760
        %1882 = vmatpush.msra.mxu0 %v1881
        %v1883 = vand.u32 %v1616, 4294901760
        %1884 = vmatpush.msra.mxu0 %v1883
        %v1885 = vand.u32 %v1615, 4294901760
        %1886 = vmatpush.msra.mxu0 %v1885
        %v1887 = vand.u32 %v1614, 4294901760
        %1888 = vmatpush.msra.mxu0 %v1887
        %v1889 = vand.u32 %v1613, 4294901760
        %1890 = vmatpush.msra.mxu0 %v1889
        %v1891 = vand.u32 %v1612, 4294901760
        %1892 = vmatpush.msra.mxu0 %v1891
        %v1893 = vand.u32 %v1664, 4294901760
        %v1894 = vsub.f32 %v1664, %v1893
        %v1895 = vand.u32 %v1894, 4294901760
        %1896 = vmatmul.f32.gmra.mxu0 %v1895
        %v1897 = vpop.f32.mrf.mxu0
        %v1898 = vadd.f32 %v1859, %v1897
        %1899 = vdwg.mxu0
        %v1900 = vand.u32 %v1627, 4294901760
        %v1901 = vsub.f32 %v1627, %v1900
        %v1902 = vand.u32 %v1901, 4294901760
        %1903 = vmatpush.msra.mxu0 %v1902
        %v1904 = vand.u32 %v1626, 4294901760
        %v1905 = vsub.f32 %v1626, %v1904
        %v1906 = vand.u32 %v1905, 4294901760
        %1907 = vmatpush.msra.mxu0 %v1906
        %v1908 = vand.u32 %v1625, 4294901760
        %v1909 = vsub.f32 %v1625, %v1908
        %v1910 = vand.u32 %v1909, 4294901760
        %1911 = vmatpush.msra.mxu0 %v1910
        %v1912 = vand.u32 %v1624, 4294901760
        %v1913 = vsub.f32 %v1624, %v1912
        %v1914 = vand.u32 %v1913, 4294901760
        %1915 = vmatpush.msra.mxu0 %v1914
        %v1916 = vand.u32 %v1623, 4294901760
        %v1917 = vsub.f32 %v1623, %v1916
        %v1918 = vand.u32 %v1917, 4294901760
        %1919 = vmatpush.msra.mxu0 %v1918
        %v1920 = vand.u32 %v1622, 4294901760
        %v1921 = vsub.f32 %v1622, %v1920
        %v1922 = vand.u32 %v1921, 4294901760
        %1923 = vmatpush.msra.mxu0 %v1922
        %v1924 = vand.u32 %v1621, 4294901760
        %v1925 = vsub.f32 %v1621, %v1924
        %v1926 = vand.u32 %v1925, 4294901760
        %1927 = vmatpush.msra.mxu0 %v1926
        %v1928 = vand.u32 %v1620, 4294901760
        %v1929 = vsub.f32 %v1620, %v1928
        %v1930 = vand.u32 %v1929, 4294901760
        %1931 = vmatpush.msra.mxu0 %v1930
        %v1932 = vand.u32 %v1619, 4294901760
        %v1933 = vsub.f32 %v1619, %v1932
        %v1934 = vand.u32 %v1933, 4294901760
        %1935 = vmatpush.msra.mxu0 %v1934
        %v1936 = vand.u32 %v1618, 4294901760
        %v1937 = vsub.f32 %v1618, %v1936
        %v1938 = vand.u32 %v1937, 4294901760
        %1939 = vmatpush.msra.mxu0 %v1938
        %v1940 = vand.u32 %v1617, 4294901760
        %v1941 = vsub.f32 %v1617, %v1940
        %v1942 = vand.u32 %v1941, 4294901760
        %1943 = vmatpush.msra.mxu0 %v1942
        %v1944 = vand.u32 %v1616, 4294901760
        %v1945 = vsub.f32 %v1616, %v1944
        %v1946 = vand.u32 %v1945, 4294901760
        %1947 = vmatpush.msra.mxu0 %v1946
        %v1948 = vand.u32 %v1615, 4294901760
        %v1949 = vsub.f32 %v1615, %v1948
        %v1950 = vand.u32 %v1949, 4294901760
        %1951 = vmatpush.msra.mxu0 %v1950
        %v1952 = vand.u32 %v1614, 4294901760
        %v1953 = vsub.f32 %v1614, %v1952
        %v1954 = vand.u32 %v1953, 4294901760
        %1955 = vmatpush.msra.mxu0 %v1954
        %v1956 = vand.u32 %v1613, 4294901760
        %v1957 = vsub.f32 %v1613, %v1956
        %v1958 = vand.u32 %v1957, 4294901760
        %1959 = vmatpush.msra.mxu0 %v1958
        %v1960 = vand.u32 %v1612, 4294901760
        %v1961 = vsub.f32 %v1612, %v1960
        %v1962 = vand.u32 %v1961, 4294901760
        %1963 = vmatpush.msra.mxu0 %v1962
        %v1964 = vand.u32 %v1664, 4294901760
        %1965 = vmatmul.f32.gmra.mxu0 %v1964
        %v1966 = vpop.f32.mrf.mxu0
        %v1967 = vadd.f32 %v1898, %v1966
        %1968 = vdwg.mxu0
        %v1969 = vand.u32 %v1627, 4294901760
        %1970 = vmatpush.msra.mxu0 %v1969
        %v1971 = vand.u32 %v1626, 4294901760
        %1972 = vmatpush.msra.mxu0 %v1971
        %v1973 = vand.u32 %v1625, 4294901760
        %1974 = vmatpush.msra.mxu0 %v1973
        %v1975 = vand.u32 %v1624, 4294901760
        %1976 = vmatpush.msra.mxu0 %v1975
        %v1977 = vand.u32 %v1623, 4294901760
        %1978 = vmatpush.msra.mxu0 %v1977
        %v1979 = vand.u32 %v1622, 4294901760
        %1980 = vmatpush.msra.mxu0 %v1979
        %v1981 = vand.u32 %v1621, 4294901760
        %1982 = vmatpush.msra.mxu0 %v1981
        %v1983 = vand.u32 %v1620, 4294901760
        %1984 = vmatpush.msra.mxu0 %v1983
        %v1985 = vand.u32 %v1619, 4294901760
        %1986 = vmatpush.msra.mxu0 %v1985
        %v1987 = vand.u32 %v1618, 4294901760
        %1988 = vmatpush.msra.mxu0 %v1987
        %v1989 = vand.u32 %v1617, 4294901760
        %1990 = vmatpush.msra.mxu0 %v1989
        %v1991 = vand.u32 %v1616, 4294901760
        %1992 = vmatpush.msra.mxu0 %v1991
        %v1993 = vand.u32 %v1615, 4294901760
        %1994 = vmatpush.msra.mxu0 %v1993
        %v1995 = vand.u32 %v1614, 4294901760
        %1996 = vmatpush.msra.mxu0 %v1995
        %v1997 = vand.u32 %v1613, 4294901760
        %1998 = vmatpush.msra.mxu0 %v1997
        %v1999 = vand.u32 %v1612, 4294901760
        %2000 = vmatpush.msra.mxu0 %v1999
        %v2001 = vand.u32 %v1664, 4294901760
        %2002 = vmatmul.f32.gmra.mxu0 %v2001
        %v2003 = vpop.f32.mrf.mxu0
        %v2004 = vadd.f32 %v1967, %v2003
        %2005 = vdwg.mxu0
        %v2006 = vperm.slane %v2004, 0
        %v2007 = vsub.f32 %v1484, %v2006
        %v2008 = vsub.f32 %v1488, %v2006
        %v2009 = vsub.f32 %v1492, %v2006
        %v2010 = vsub.f32 %v1496, %v2006
        %v2011 = vsub.f32 %v1500, %v2006
        %v2012 = vsub.f32 %v1504, %v2006
        %v2013 = vsub.f32 %v1508, %v2006
        %v2014 = vsub.f32 %v1512, %v2006
        %v2015 = vsub.f32 %v1516, %v2006
        %v2016 = vsub.f32 %v1520, %v2006
        %v2017 = vsub.f32 %v1524, %v2006
        %v2018 = vsub.f32 %v1528, %v2006
        %v2019 = vsub.f32 %v1532, %v2006
        %v2020 = vsub.f32 %v1536, %v2006
        %v2021 = vsub.f32 %v1540, %v2006
        %v2022 = vsub.f32 %v1544, %v2006
        %v2023 = vsub.f32 %v1548, %v2006
        %v2024 = vsub.f32 %v1552, %v2006
        %v2025 = vsub.f32 %v1556, %v2006
        %v2026 = vsub.f32 %v1560, %v2006
        %v2027 = vsub.f32 %v1564, %v2006
        %v2028 = vsub.f32 %v1568, %v2006
        %v2029 = vsub.f32 %v1572, %v2006
        %v2030 = vsub.f32 %v1576, %v2006
        %v2031 = vsub.f32 %v1580, %v2006
        %v2032 = vsub.f32 %v1584, %v2006
        %v2033 = vsub.f32 %v1588, %v2006
        %v2034 = vsub.f32 %v1592, %v2006
        %v2035 = vsub.f32 %v1596, %v2006
        %v2036 = vsub.f32 %v1600, %v2006
        %v2037 = vsub.f32 %v1604, %v2006
        %v2038 = vsub.f32 %v1608, %v2006
        %v2039 = vmul.f32 %v2007, %v2007
        %v2040 = vmul.f32 %v2008, %v2008
        %v2041 = vmul.f32 %v2009, %v2009
        %v2042 = vmul.f32 %v2010, %v2010
        %v2043 = vmul.f32 %v2011, %v2011
        %v2044 = vmul.f32 %v2012, %v2012
        %v2045 = vmul.f32 %v2013, %v2013
        %v2046 = vmul.f32 %v2014, %v2014
        %v2047 = vmul.f32 %v2015, %v2015
        %v2048 = vmul.f32 %v2016, %v2016
        %v2049 = vmul.f32 %v2017, %v2017
        %v2050 = vmul.f32 %v2018, %v2018
        %v2051 = vmul.f32 %v2019, %v2019
        %v2052 = vmul.f32 %v2020, %v2020
        %v2053 = vmul.f32 %v2021, %v2021
        %v2054 = vmul.f32 %v2022, %v2022
        %v2055 = vmul.f32 %v2023, %v2023
        %v2056 = vmul.f32 %v2024, %v2024
        %v2057 = vmul.f32 %v2025, %v2025
        %v2058 = vmul.f32 %v2026, %v2026
        %v2059 = vmul.f32 %v2027, %v2027
        %v2060 = vmul.f32 %v2028, %v2028
        %v2061 = vmul.f32 %v2029, %v2029
        %v2062 = vmul.f32 %v2030, %v2030
        %v2063 = vmul.f32 %v2031, %v2031
        %v2064 = vmul.f32 %v2032, %v2032
        %v2065 = vmul.f32 %v2033, %v2033
        %v2066 = vmul.f32 %v2034, %v2034
        %v2067 = vmul.f32 %v2035, %v2035
        %v2068 = vmul.f32 %v2036, %v2036
        %v2069 = vmul.f32 %v2037, %v2037
        %v2070 = vmul.f32 %v2038, %v2038
        %v2071 = vadd.f32 %v2039, %v2040
        %v2072 = vadd.f32 %v2071, %v2041
        %v2073 = vadd.f32 %v2072, %v2042
        %v2074 = vadd.f32 %v2073, %v2043
        %v2075 = vadd.f32 %v2074, %v2044
        %v2076 = vadd.f32 %v2075, %v2045
        %v2077 = vadd.f32 %v2076, %v2046
        %v2078 = vadd.f32 %v2077, %v2047
        %v2079 = vadd.f32 %v2078, %v2048
        %v2080 = vadd.f32 %v2079, %v2049
        %v2081 = vadd.f32 %v2080, %v2050
        %v2082 = vadd.f32 %v2081, %v2051
        %v2083 = vadd.f32 %v2082, %v2052
        %v2084 = vadd.f32 %v2083, %v2053
        %v2085 = vadd.f32 %v2084, %v2054
        %v2086 = vadd.f32 %v2085, %v2055
        %v2087 = vadd.f32 %v2086, %v2056
        %v2088 = vadd.f32 %v2087, %v2057
        %v2089 = vadd.f32 %v2088, %v2058
        %v2090 = vadd.f32 %v2089, %v2059
        %v2091 = vadd.f32 %v2090, %v2060
        %v2092 = vadd.f32 %v2091, %v2061
        %v2093 = vadd.f32 %v2092, %v2062
        %v2094 = vadd.f32 %v2093, %v2063
        %v2095 = vadd.f32 %v2094, %v2064
        %v2096 = vadd.f32 %v2095, %v2065
        %v2097 = vadd.f32 %v2096, %v2066
        %v2098 = vadd.f32 %v2097, %v2067
        %v2099 = vadd.f32 %v2098, %v2068
        %v2100 = vadd.f32 %v2099, %v2069
        %v2101 = vadd.f32 %v2100, %v2070
        %v2102 = vrot.slane %v2101, 4
        %v2103 = vadd.f32 %v2101, %v2102
        %v2104 = vrot.slane %v2103, 2
        %v2105 = vadd.f32 %v2103, %v2104
        %v2106 = vrot.slane %v2105, 1
        %v2107 = vadd.f32 %v2105, %v2106
        %v2108 = vand.u32 %v1627, 4294901760
        %2109 = vmatpush.msra.mxu0 %v2108
        %v2110 = vand.u32 %v1626, 4294901760
        %2111 = vmatpush.msra.mxu0 %v2110
        %v2112 = vand.u32 %v1625, 4294901760
        %2113 = vmatpush.msra.mxu0 %v2112
        %v2114 = vand.u32 %v1624, 4294901760
        %2115 = vmatpush.msra.mxu0 %v2114
        %v2116 = vand.u32 %v1623, 4294901760
        %2117 = vmatpush.msra.mxu0 %v2116
        %v2118 = vand.u32 %v1622, 4294901760
        %2119 = vmatpush.msra.mxu0 %v2118
        %v2120 = vand.u32 %v1621, 4294901760
        %2121 = vmatpush.msra.mxu0 %v2120
        %v2122 = vand.u32 %v1620, 4294901760
        %2123 = vmatpush.msra.mxu0 %v2122
        %v2124 = vand.u32 %v1619, 4294901760
        %2125 = vmatpush.msra.mxu0 %v2124
        %v2126 = vand.u32 %v1618, 4294901760
        %2127 = vmatpush.msra.mxu0 %v2126
        %v2128 = vand.u32 %v1617, 4294901760
        %2129 = vmatpush.msra.mxu0 %v2128
        %v2130 = vand.u32 %v1616, 4294901760
        %2131 = vmatpush.msra.mxu0 %v2130
        %v2132 = vand.u32 %v1615, 4294901760
        %2133 = vmatpush.msra.mxu0 %v2132
        %v2134 = vand.u32 %v1614, 4294901760
        %2135 = vmatpush.msra.mxu0 %v2134
        %v2136 = vand.u32 %v1613, 4294901760
        %2137 = vmatpush.msra.mxu0 %v2136
        %v2138 = vand.u32 %v1612, 4294901760
        %2139 = vmatpush.msra.mxu0 %v2138
        %v2140 = vand.u32 %v2107, 4294901760
        %v2141 = vsub.f32 %v2107, %v2140
        %v2142 = vand.u32 %v2141, 4294901760
        %v2143 = vsub.f32 %v2141, %v2142
        %v2144 = vand.u32 %v2143, 4294901760
        %2145 = vmatmul.f32.gmra.mxu0 %v2144
        %v2146 = vpop.f32.mrf.mxu0
        %v2147 = vadd.f32 1e-05, %v2146
        %2148 = vdwg.mxu0
        %v2149 = vand.u32 %v1627, 4294901760
        %v2150 = vsub.f32 %v1627, %v2149
        %v2151 = vand.u32 %v2150, 4294901760
        %v2152 = vsub.f32 %v2150, %v2151
        %v2153 = vand.u32 %v2152, 4294901760
        %2154 = vmatpush.msra.mxu0 %v2153
        %v2155 = vand.u32 %v1626, 4294901760
        %v2156 = vsub.f32 %v1626, %v2155
        %v2157 = vand.u32 %v2156, 4294901760
        %v2158 = vsub.f32 %v2156, %v2157
        %v2159 = vand.u32 %v2158, 4294901760
        %2160 = vmatpush.msra.mxu0 %v2159
        %v2161 = vand.u32 %v1625, 4294901760
        %v2162 = vsub.f32 %v1625, %v2161
        %v2163 = vand.u32 %v2162, 4294901760
        %v2164 = vsub.f32 %v2162, %v2163
        %v2165 = vand.u32 %v2164, 4294901760
        %2166 = vmatpush.msra.mxu0 %v2165
        %v2167 = vand.u32 %v1624, 4294901760
        %v2168 = vsub.f32 %v1624, %v2167
        %v2169 = vand.u32 %v2168, 4294901760
        %v2170 = vsub.f32 %v2168, %v2169
        %v2171 = vand.u32 %v2170, 4294901760
        %2172 = vmatpush.msra.mxu0 %v2171
        %v2173 = vand.u32 %v1623, 4294901760
        %v2174 = vsub.f32 %v1623, %v2173
        %v2175 = vand.u32 %v2174, 4294901760
        %v2176 = vsub.f32 %v2174, %v2175
        %v2177 = vand.u32 %v2176, 4294901760
        %2178 = vmatpush.msra.mxu0 %v2177
        %v2179 = vand.u32 %v1622, 4294901760
        %v2180 = vsub.f32 %v1622, %v2179
        %v2181 = vand.u32 %v2180, 4294901760
        %v2182 = vsub.f32 %v2180, %v2181
        %v2183 = vand.u32 %v2182, 4294901760
        %2184 = vmatpush.msra.mxu0 %v2183
        %v2185 = vand.u32 %v1621, 4294901760
        %v2186 = vsub.f32 %v1621, %v2185
        %v2187 = vand.u32 %v2186, 4294901760
        %v2188 = vsub.f32 %v2186, %v2187
        %v2189 = vand.u32 %v2188, 4294901760
        %2190 = vmatpush.msra.mxu0 %v2189
        %v2191 = vand.u32 %v1620, 4294901760
        %v2192 = vsub.f32 %v1620, %v2191
        %v2193 = vand.u32 %v2192, 4294901760
        %v2194 = vsub.f32 %v2192, %v2193
        %v2195 = vand.u32 %v2194, 4294901760
        %2196 = vmatpush.msra.mxu0 %v2195
        %v2197 = vand.u32 %v1619, 4294901760
        %v2198 = vsub.f32 %v1619, %v2197
        %v2199 = vand.u32 %v2198, 4294901760
        %v2200 = vsub.f32 %v2198, %v2199
        %v2201 = vand.u32 %v2200, 4294901760
        %2202 = vmatpush.msra.mxu0 %v2201
        %v2203 = vand.u32 %v1618, 4294901760
        %v2204 = vsub.f32 %v1618, %v2203
        %v2205 = vand.u32 %v2204, 4294901760
        %v2206 = vsub.f32 %v2204, %v2205
        %v2207 = vand.u32 %v2206, 4294901760
        %2208 = vmatpush.msra.mxu0 %v2207
        %v2209 = vand.u32 %v1617, 4294901760
        %v2210 = vsub.f32 %v1617, %v2209
        %v2211 = vand.u32 %v2210, 4294901760
        %v2212 = vsub.f32 %v2210, %v2211
        %v2213 = vand.u32 %v2212, 4294901760
        %2214 = vmatpush.msra.mxu0 %v2213
        %v2215 = vand.u32 %v1616, 4294901760
        %v2216 = vsub.f32 %v1616, %v2215
        %v2217 = vand.u32 %v2216, 4294901760
        %v2218 = vsub.f32 %v2216, %v2217
        %v2219 = vand.u32 %v2218, 4294901760
        %2220 = vmatpush.msra.mxu0 %v2219
        %v2221 = vand.u32 %v1615, 4294901760
        %v2222 = vsub.f32 %v1615, %v2221
        %v2223 = vand.u32 %v2222, 4294901760
        %v2224 = vsub.f32 %v2222, %v2223
        %v2225 = vand.u32 %v2224, 4294901760
        %2226 = vmatpush.msra.mxu0 %v2225
        %v2227 = vand.u32 %v1614, 4294901760
        %v2228 = vsub.f32 %v1614, %v2227
        %v2229 = vand.u32 %v2228, 4294901760
        %v2230 = vsub.f32 %v2228, %v2229
        %v2231 = vand.u32 %v2230, 4294901760
        %2232 = vmatpush.msra.mxu0 %v2231
        %v2233 = vand.u32 %v1613, 4294901760
        %v2234 = vsub.f32 %v1613, %v2233
        %v2235 = vand.u32 %v2234, 4294901760
        %v2236 = vsub.f32 %v2234, %v2235
        %v2237 = vand.u32 %v2236, 4294901760
        %2238 = vmatpush.msra.mxu0 %v2237
        %v2239 = vand.u32 %v1612, 4294901760
        %v2240 = vsub.f32 %v1612, %v2239
        %v2241 = vand.u32 %v2240, 4294901760
        %v2242 = vsub.f32 %v2240, %v2241
        %v2243 = vand.u32 %v2242, 4294901760
        %2244 = vmatpush.msra.mxu0 %v2243
        %v2245 = vand.u32 %v2107, 4294901760
        %2246 = vmatmul.f32.gmra.mxu0 %v2245
        %v2247 = vpop.f32.mrf.mxu0
        %v2248 = vadd.f32 %v2147, %v2247
        %2249 = vdwg.mxu0
        %v2250 = vand.u32 %v1627, 4294901760
        %v2251 = vsub.f32 %v1627, %v2250
        %2252 = vmatpush.msra.mxu0 %v2251
        %v2253 = vand.u32 %v1626, 4294901760
        %v2254 = vsub.f32 %v1626, %v2253
        %2255 = vmatpush.msra.mxu0 %v2254
        %v2256 = vand.u32 %v1625, 4294901760
        %v2257 = vsub.f32 %v1625, %v2256
        %2258 = vmatpush.msra.mxu0 %v2257
        %v2259 = vand.u32 %v1624, 4294901760
        %v2260 = vsub.f32 %v1624, %v2259
        %2261 = vmatpush.msra.mxu0 %v2260
        %v2262 = vand.u32 %v1623, 4294901760
        %v2263 = vsub.f32 %v1623, %v2262
        %2264 = vmatpush.msra.mxu0 %v2263
        %v2265 = vand.u32 %v1622, 4294901760
        %v2266 = vsub.f32 %v1622, %v2265
        %2267 = vmatpush.msra.mxu0 %v2266
        %v2268 = vand.u32 %v1621, 4294901760
        %v2269 = vsub.f32 %v1621, %v2268
        %2270 = vmatpush.msra.mxu0 %v2269
        %v2271 = vand.u32 %v1620, 4294901760
        %v2272 = vsub.f32 %v1620, %v2271
        %2273 = vmatpush.msra.mxu0 %v2272
        %v2274 = vand.u32 %v1619, 4294901760
        %v2275 = vsub.f32 %v1619, %v2274
        %2276 = vmatpush.msra.mxu0 %v2275
        %v2277 = vand.u32 %v1618, 4294901760
        %v2278 = vsub.f32 %v1618, %v2277
        %2279 = vmatpush.msra.mxu0 %v2278
        %v2280 = vand.u32 %v1617, 4294901760
        %v2281 = vsub.f32 %v1617, %v2280
        %2282 = vmatpush.msra.mxu0 %v2281
        %v2283 = vand.u32 %v1616, 4294901760
        %v2284 = vsub.f32 %v1616, %v2283
        %2285 = vmatpush.msra.mxu0 %v2284
        %v2286 = vand.u32 %v1615, 4294901760
        %v2287 = vsub.f32 %v1615, %v2286
        %2288 = vmatpush.msra.mxu0 %v2287
        %v2289 = vand.u32 %v1614, 4294901760
        %v2290 = vsub.f32 %v1614, %v2289
        %2291 = vmatpush.msra.mxu0 %v2290
        %v2292 = vand.u32 %v1613, 4294901760
        %v2293 = vsub.f32 %v1613, %v2292
        %2294 = vmatpush.msra.mxu0 %v2293
        %v2295 = vand.u32 %v1612, 4294901760
        %v2296 = vsub.f32 %v1612, %v2295
        %2297 = vmatpush.msra.mxu0 %v2296
        %v2298 = vand.u32 %v2107, 4294901760
        %v2299 = vsub.f32 %v2107, %v2298
        %2300 = vmatmul.f32.gmra.mxu0 %v2299
        %v2301 = vpop.f32.mrf.mxu0
        %v2302 = vadd.f32 %v2248, %v2301
        %2303 = vdwg.mxu0
        %v2304 = vand.u32 %v1627, 4294901760
        %2305 = vmatpush.msra.mxu0 %v2304
        %v2306 = vand.u32 %v1626, 4294901760
        %2307 = vmatpush.msra.mxu0 %v2306
        %v2308 = vand.u32 %v1625, 4294901760
        %2309 = vmatpush.msra.mxu0 %v2308
        %v2310 = vand.u32 %v1624, 4294901760
        %2311 = vmatpush.msra.mxu0 %v2310
        %v2312 = vand.u32 %v1623, 4294901760
        %2313 = vmatpush.msra.mxu0 %v2312
        %v2314 = vand.u32 %v1622, 4294901760
        %2315 = vmatpush.msra.mxu0 %v2314
        %v2316 = vand.u32 %v1621, 4294901760
        %2317 = vmatpush.msra.mxu0 %v2316
        %v2318 = vand.u32 %v1620, 4294901760
        %2319 = vmatpush.msra.mxu0 %v2318
        %v2320 = vand.u32 %v1619, 4294901760
        %2321 = vmatpush.msra.mxu0 %v2320
        %v2322 = vand.u32 %v1618, 4294901760
        %2323 = vmatpush.msra.mxu0 %v2322
        %v2324 = vand.u32 %v1617, 4294901760
        %2325 = vmatpush.msra.mxu0 %v2324
        %v2326 = vand.u32 %v1616, 4294901760
        %2327 = vmatpush.msra.mxu0 %v2326
        %v2328 = vand.u32 %v1615, 4294901760
        %2329 = vmatpush.msra.mxu0 %v2328
        %v2330 = vand.u32 %v1614, 4294901760
        %2331 = vmatpush.msra.mxu0 %v2330
        %v2332 = vand.u32 %v1613, 4294901760
        %2333 = vmatpush.msra.mxu0 %v2332
        %v2334 = vand.u32 %v1612, 4294901760
        %2335 = vmatpush.msra.mxu0 %v2334
        %v2336 = vand.u32 %v2107, 4294901760
        %v2337 = vsub.f32 %v2107, %v2336
        %v2338 = vand.u32 %v2337, 4294901760
        %2339 = vmatmul.f32.gmra.mxu0 %v2338
        %v2340 = vpop.f32.mrf.mxu0
        %v2341 = vadd.f32 %v2302, %v2340
        %2342 = vdwg.mxu0
        %v2343 = vand.u32 %v1627, 4294901760
        %v2344 = vsub.f32 %v1627, %v2343
        %v2345 = vand.u32 %v2344, 4294901760
        %2346 = vmatpush.msra.mxu0 %v2345
        %v2347 = vand.u32 %v1626, 4294901760
        %v2348 = vsub.f32 %v1626, %v2347
        %v2349 = vand.u32 %v2348, 4294901760
        %2350 = vmatpush.msra.mxu0 %v2349
        %v2351 = vand.u32 %v1625, 4294901760
        %v2352 = vsub.f32 %v1625, %v2351
        %v2353 = vand.u32 %v2352, 4294901760
        %2354 = vmatpush.msra.mxu0 %v2353
        %v2355 = vand.u32 %v1624, 4294901760
        %v2356 = vsub.f32 %v1624, %v2355
        %v2357 = vand.u32 %v2356, 4294901760
        %2358 = vmatpush.msra.mxu0 %v2357
        %v2359 = vand.u32 %v1623, 4294901760
        %v2360 = vsub.f32 %v1623, %v2359
        %v2361 = vand.u32 %v2360, 4294901760
        %2362 = vmatpush.msra.mxu0 %v2361
        %v2363 = vand.u32 %v1622, 4294901760
        %v2364 = vsub.f32 %v1622, %v2363
        %v2365 = vand.u32 %v2364, 4294901760
        %2366 = vmatpush.msra.mxu0 %v2365
        %v2367 = vand.u32 %v1621, 4294901760
        %v2368 = vsub.f32 %v1621, %v2367
        %v2369 = vand.u32 %v2368, 4294901760
        %2370 = vmatpush.msra.mxu0 %v2369
        %v2371 = vand.u32 %v1620, 4294901760
        %v2372 = vsub.f32 %v1620, %v2371
        %v2373 = vand.u32 %v2372, 4294901760
        %2374 = vmatpush.msra.mxu0 %v2373
        %v2375 = vand.u32 %v1619, 4294901760
        %v2376 = vsub.f32 %v1619, %v2375
        %v2377 = vand.u32 %v2376, 4294901760
        %2378 = vmatpush.msra.mxu0 %v2377
        %v2379 = vand.u32 %v1618, 4294901760
        %v2380 = vsub.f32 %v1618, %v2379
        %v2381 = vand.u32 %v2380, 4294901760
        %2382 = vmatpush.msra.mxu0 %v2381
        %v2383 = vand.u32 %v1617, 4294901760
        %v2384 = vsub.f32 %v1617, %v2383
        %v2385 = vand.u32 %v2384, 4294901760
        %2386 = vmatpush.msra.mxu0 %v2385
        %v2387 = vand.u32 %v1616, 4294901760
        %v2388 = vsub.f32 %v1616, %v2387
        %v2389 = vand.u32 %v2388, 4294901760
        %2390 = vmatpush.msra.mxu0 %v2389
        %v2391 = vand.u32 %v1615, 4294901760
        %v2392 = vsub.f32 %v1615, %v2391
        %v2393 = vand.u32 %v2392, 4294901760
        %2394 = vmatpush.msra.mxu0 %v2393
        %v2395 = vand.u32 %v1614, 4294901760
        %v2396 = vsub.f32 %v1614, %v2395
        %v2397 = vand.u32 %v2396, 4294901760
        %2398 = vmatpush.msra.mxu0 %v2397
        %v2399 = vand.u32 %v1613, 4294901760
        %v2400 = vsub.f32 %v1613, %v2399
        %v2401 = vand.u32 %v2400, 4294901760
        %2402 = vmatpush.msra.mxu0 %v2401
        %v2403 = vand.u32 %v1612, 4294901760
        %v2404 = vsub.f32 %v1612, %v2403
        %v2405 = vand.u32 %v2404, 4294901760
        %2406 = vmatpush.msra.mxu0 %v2405
        %v2407 = vand.u32 %v2107, 4294901760
        %2408 = vmatmul.f32.gmra.mxu0 %v2407
        %v2409 = vpop.f32.mrf.mxu0
        %v2410 = vadd.f32 %v2341, %v2409
        %2411 = vdwg.mxu0
        %v2412 = vand.u32 %v1627, 4294901760
        %2413 = vmatpush.msra.mxu0 %v2412
        %v2414 = vand.u32 %v1626, 4294901760
        %2415 = vmatpush.msra.mxu0 %v2414
        %v2416 = vand.u32 %v1625, 4294901760
        %2417 = vmatpush.msra.mxu0 %v2416
        %v2418 = vand.u32 %v1624, 4294901760
        %2419 = vmatpush.msra.mxu0 %v2418
        %v2420 = vand.u32 %v1623, 4294901760
        %2421 = vmatpush.msra.mxu0 %v2420
        %v2422 = vand.u32 %v1622, 4294901760
        %2423 = vmatpush.msra.mxu0 %v2422
        %v2424 = vand.u32 %v1621, 4294901760
        %2425 = vmatpush.msra.mxu0 %v2424
        %v2426 = vand.u32 %v1620, 4294901760
        %2427 = vmatpush.msra.mxu0 %v2426
        %v2428 = vand.u32 %v1619, 4294901760
        %2429 = vmatpush.msra.mxu0 %v2428
        %v2430 = vand.u32 %v1618, 4294901760
        %2431 = vmatpush.msra.mxu0 %v2430
        %v2432 = vand.u32 %v1617, 4294901760
        %2433 = vmatpush.msra.mxu0 %v2432
        %v2434 = vand.u32 %v1616, 4294901760
        %2435 = vmatpush.msra.mxu0 %v2434
        %v2436 = vand.u32 %v1615, 4294901760
        %2437 = vmatpush.msra.mxu0 %v2436
        %v2438 = vand.u32 %v1614, 4294901760
        %2439 = vmatpush.msra.mxu0 %v2438
        %v2440 = vand.u32 %v1613, 4294901760
        %2441 = vmatpush.msra.mxu0 %v2440
        %v2442 = vand.u32 %v1612, 4294901760
        %2443 = vmatpush.msra.mxu0 %v2442
        %v2444 = vand.u32 %v2107, 4294901760
        %2445 = vmatmul.f32.gmra.mxu0 %v2444
        %v2446 = vpop.f32.mrf.mxu0
        %v2447 = vadd.f32 %v2410, %v2446
        %2448 = vdwg.mxu0
        %v2449 = vrsqrt.pop %v2447
        %v2450 = vmul.f32 %v2449, %v2447
        %v2451 = vmul.f32 %v2450, %v2449
        %v2452 = vmul.f32 0.5, %v2451
        %v2453 = vsub.f32 1.5, %v2452
        %v2454 = vmul.f32 %v2449, %v2453
        %vm2455 = vweird.f32 %v2447
        %vm2456 = vweird.f32 %v2449
        %vm2457 = vmor %vm2455, %vm2456
        %v2458 = vsel %vm2457, %v2449, %v2454
        %v2459 = vmul.f32 %v2458, %v1610
        %v2460 = vperm.slane %v2459, 0
        %v2461 = vmul.f32 %v2007, %v2460
        %v2462 = vmul.f32 %v2008, %v2460
        %v2463 = vmul.f32 %v2009, %v2460
        %v2464 = vmul.f32 %v2010, %v2460
        %v2465 = vmul.f32 %v2011, %v2460
        %v2466 = vmul.f32 %v2012, %v2460
        %v2467 = vmul.f32 %v2013, %v2460
        %v2468 = vmul.f32 %v2014, %v2460
        %v2469 = vmul.f32 %v2015, %v2460
        %v2470 = vmul.f32 %v2016, %v2460
        %v2471 = vmul.f32 %v2017, %v2460
        %v2472 = vmul.f32 %v2018, %v2460
        %v2473 = vmul.f32 %v2019, %v2460
        %v2474 = vmul.f32 %v2020, %v2460
        %v2475 = vmul.f32 %v2021, %v2460
        %v2476 = vmul.f32 %v2022, %v2460
        %v2477 = vmul.f32 %v2023, %v2460
        %v2478 = vmul.f32 %v2024, %v2460
        %v2479 = vmul.f32 %v2025, %v2460
        %v2480 = vmul.f32 %v2026, %v2460
        %v2481 = vmul.f32 %v2027, %v2460
        %v2482 = vmul.f32 %v2028, %v2460
        %v2483 = vmul.f32 %v2029, %v2460
        %v2484 = vmul.f32 %v2030, %v2460
        %v2485 = vmul.f32 %v2031, %v2460
        %v2486 = vmul.f32 %v2032, %v2460
        %v2487 = vmul.f32 %v2033, %v2460
        %v2488 = vmul.f32 %v2034, %v2460
        %v2489 = vmul.f32 %v2035, %v2460
        %v2490 = vmul.f32 %v2036, %v2460
        %v2491 = vmul.f32 %v2037, %v2460
        %v2492 = vmul.f32 %v2038, %v2460
        %v2494 = vperm.slane %v1611, 0
        %v2496 = vadd.f32 %v2461, %v2494
        %v2497 = vadd.f32 %v2462, %v2494
        %v2498 = vadd.f32 %v2463, %v2494
        %v2499 = vadd.f32 %v2464, %v2494
        %v2500 = vadd.f32 %v2465, %v2494
        %v2501 = vadd.f32 %v2466, %v2494
        %v2502 = vadd.f32 %v2467, %v2494
        %v2503 = vadd.f32 %v2468, %v2494
        %v2504 = vadd.f32 %v2469, %v2494
        %v2505 = vadd.f32 %v2470, %v2494
        %v2506 = vadd.f32 %v2471, %v2494
        %v2507 = vadd.f32 %v2472, %v2494
        %v2508 = vadd.f32 %v2473, %v2494
        %v2509 = vadd.f32 %v2474, %v2494
        %v2510 = vadd.f32 %v2475, %v2494
        %v2511 = vadd.f32 %v2476, %v2494
        %v2512 = vadd.f32 %v2477, %v2494
        %v2513 = vadd.f32 %v2478, %v2494
        %v2514 = vadd.f32 %v2479, %v2494
        %v2515 = vadd.f32 %v2480, %v2494
        %v2516 = vadd.f32 %v2481, %v2494
        %v2517 = vadd.f32 %v2482, %v2494
        %v2518 = vadd.f32 %v2483, %v2494
        %v2519 = vadd.f32 %v2484, %v2494
        %v2520 = vadd.f32 %v2485, %v2494
        %v2521 = vadd.f32 %v2486, %v2494
        %v2522 = vadd.f32 %v2487, %v2494
        %v2523 = vadd.f32 %v2488, %v2494
        %v2524 = vadd.f32 %v2489, %v2494
        %v2525 = vadd.f32 %v2490, %v2494
        %v2526 = vadd.f32 %v2491, %v2494
        %v2527 = vadd.f32 %v2492, %v2494
        %v2528 = vld [vmem:[%s4] sm:$0xff]
        %v2529 = vld [vmem:[%s4 + $0x8] sm:$0x1]
        %v2530 = vld [vmem:[%s5] sm:$0x1]
        %v2531 = vld [vmem:[%s6] sm:$0x1]
        %v2532 = vrot.slane %v2496, 7
        %v2533 = vrot.slane %v2497, 7
        %v2534 = vrot.slane %v2498, 7
        %v2535 = vrot.slane %v2499, 7
        %v2536 = vrot.slane %v2500, 7
        %v2537 = vrot.slane %v2501, 7
        %v2538 = vrot.slane %v2502, 7
        %v2539 = vrot.slane %v2503, 7
        %v2540 = vrot.slane %v2504, 7
        %v2541 = vrot.slane %v2505, 7
        %v2542 = vrot.slane %v2506, 7
        %v2543 = vrot.slane %v2507, 7
        %v2544 = vrot.slane %v2508, 7
        %v2545 = vrot.slane %v2509, 7
        %v2546 = vrot.slane %v2510, 7
        %v2547 = vrot.slane %v2511, 7
        %v2548 = vrot.slane %v2512, 7
        %v2549 = vrot.slane %v2513, 7
        %v2550 = vrot.slane %v2514, 7
        %v2551 = vrot.slane %v2515, 7
        %v2552 = vrot.slane %v2516, 7
        %v2553 = vrot.slane %v2517, 7
        %v2554 = vrot.slane %v2518, 7
        %v2555 = vrot.slane %v2519, 7
        %v2556 = vrot.slane %v2520, 7
        %v2557 = vrot.slane %v2521, 7
        %v2558 = vrot.slane %v2522, 7
        %v2559 = vrot.slane %v2523, 7
        %v2560 = vrot.slane %v2524, 7
        %v2561 = vrot.slane %v2525, 7
        %v2562 = vrot.slane %v2526, 7
        %v2563 = vrot.slane %v2527, 7
        %v2564 = vlaneseq
        %v2565 = vshrl.u32 %v2564, 7
        %vm2566 = vcmp.lt.s32.totalorder %v2565, 1
        %v2567 = vsel %vm2566, %v2562, %v2563
        %v2568 = vsel %vm2566, %v2561, %v2562
        %v2569 = vsel %vm2566, %v2560, %v2561
        %v2570 = vsel %vm2566, %v2559, %v2560
        %v2571 = vsel %vm2566, %v2558, %v2559
        %v2572 = vsel %vm2566, %v2557, %v2558
        %v2573 = vsel %vm2566, %v2556, %v2557
        %v2574 = vsel %vm2566, %v2555, %v2556
        %v2575 = vsel %vm2566, %v2554, %v2555
        %v2576 = vsel %vm2566, %v2553, %v2554
        %v2577 = vsel %vm2566, %v2552, %v2553
        %v2578 = vsel %vm2566, %v2551, %v2552
        %v2579 = vsel %vm2566, %v2550, %v2551
        %v2580 = vsel %vm2566, %v2549, %v2550
        %v2581 = vsel %vm2566, %v2548, %v2549
        %v2582 = vsel %vm2566, %v2547, %v2548
        %v2583 = vsel %vm2566, %v2546, %v2547
        %v2584 = vsel %vm2566, %v2545, %v2546
        %v2585 = vsel %vm2566, %v2544, %v2545
        %v2586 = vsel %vm2566, %v2543, %v2544
        %v2587 = vsel %vm2566, %v2542, %v2543
        %v2588 = vsel %vm2566, %v2541, %v2542
        %v2589 = vsel %vm2566, %v2540, %v2541
        %v2590 = vsel %vm2566, %v2539, %v2540
        %v2591 = vsel %vm2566, %v2538, %v2539
        %v2592 = vsel %vm2566, %v2537, %v2538
        %v2593 = vsel %vm2566, %v2536, %v2537
        %v2594 = vsel %vm2566, %v2535, %v2536
        %v2595 = vsel %vm2566, %v2534, %v2535
        %v2596 = vsel %vm2566, %v2533, %v2534
        %v2597 = vsel %vm2566, %v2532, %v2533
        %v2598 = vsel %vm2566, %v2563, %v2532
        %v2599 = vperm.slane %v2528, 0
        %v2600 = vmul.f32 %v2568, %v2599
        %v2601 = vmul.f32 %v2567, %v2599
        %v2602 = vmul.f32 %v2598, %v2599
        %v2603 = vmul.f32 %v2597, %v2599
        %v2604 = vmul.f32 %v2596, %v2599
        %v2605 = vmul.f32 %v2595, %v2599
        %v2606 = vmul.f32 %v2594, %v2599
        %v2607 = vmul.f32 %v2593, %v2599
        %v2608 = vmul.f32 %v2592, %v2599
        %v2609 = vmul.f32 %v2591, %v2599
        %v2610 = vmul.f32 %v2590, %v2599
        %v2611 = vmul.f32 %v2589, %v2599
        %v2612 = vmul.f32 %v2588, %v2599
        %v2613 = vmul.f32 %v2587, %v2599
        %v2614 = vmul.f32 %v2586, %v2599
        %v2615 = vmul.f32 %v2585, %v2599
        %v2616 = vmul.f32 %v2584, %v2599
        %v2617 = vmul.f32 %v2583, %v2599
        %v2618 = vmul.f32 %v2582, %v2599
        %v2619 = vmul.f32 %v2581, %v2599
        %v2620 = vmul.f32 %v2580, %v2599
        %v2621 = vmul.f32 %v2579, %v2599
        %v2622 = vmul.f32 %v2578, %v2599
        %v2623 = vmul.f32 %v2577, %v2599
        %v2624 = vmul.f32 %v2576, %v2599
        %v2625 = vmul.f32 %v2575, %v2599
        %v2626 = vmul.f32 %v2574, %v2599
        %v2627 = vmul.f32 %v2573, %v2599
        %v2628 = vmul.f32 %v2572, %v2599
        %v2629 = vmul.f32 %v2571, %v2599
        %v2630 = vmul.f32 %v2570, %v2599
        %v2631 = vmul.f32 %v2569, %v2599
        %v2632 = vld [vmem:[%s8] sm:$0xff]
        %v2633 = vld [vmem:[%s8 + $0x8] sm:$0xff]
        %v2634 = vld [vmem:[%s8 + $0x10] sm:$0xff]
        %v2635 = vld [vmem:[%s8 + $0x18] sm:$0xff]
        %v2636 = vld [vmem:[%s8 + $0x20] sm:$0xff]
        %v2637 = vld [vmem:[%s8 + $0x28] sm:$0xff]
        %v2638 = vld [vmem:[%s8 + $0x30] sm:$0xff]
        %v2639 = vld [vmem:[%s8 + $0x38] sm:$0xff]
        %v2640 = vld [vmem:[%s8 + $0x40] sm:$0xff]
        %v2641 = vld [vmem:[%s8 + $0x48] sm:$0xff]
        %v2642 = vld [vmem:[%s8 + $0x50] sm:$0xff]
        %v2643 = vld [vmem:[%s8 + $0x58] sm:$0xff]
        %v2644 = vld [vmem:[%s8 + $0x60] sm:$0xff]
        %v2645 = vld [vmem:[%s8 + $0x68] sm:$0xff]
        %v2646 = vld [vmem:[%s8 + $0x70] sm:$0xff]
        %v2647 = vld [vmem:[%s8 + $0x78] sm:$0xff]
        %v2648 = vld [vmem:[%s8 + $0x80] sm:$0xff]
        %v2649 = vld [vmem:[%s8 + $0x88] sm:$0xff]
        %v2650 = vld [vmem:[%s8 + $0x90] sm:$0xff]
        %v2651 = vld [vmem:[%s8 + $0x98] sm:$0xff]
        %v2652 = vld [vmem:[%s8 + $0xa0] sm:$0xff]
        %v2653 = vld [vmem:[%s8 + $0xa8] sm:$0xff]
        %v2654 = vld [vmem:[%s8 + $0xb0] sm:$0xff]
        %v2655 = vld [vmem:[%s8 + $0xb8] sm:$0xff]
        %v2656 = vld [vmem:[%s8 + $0xc0] sm:$0xff]
        %v2657 = vld [vmem:[%s8 + $0xc8] sm:$0xff]
        %v2658 = vld [vmem:[%s8 + $0xd0] sm:$0xff]
        %v2659 = vld [vmem:[%s8 + $0xd8] sm:$0xff]
        %v2660 = vld [vmem:[%s8 + $0xe0] sm:$0xff]
        %v2661 = vld [vmem:[%s8 + $0xe8] sm:$0xff]
        %v2662 = vld [vmem:[%s8 + $0xf0] sm:$0xff]
        %v2663 = vld [vmem:[%s8 + $0xf8] sm:$0xff]
        %2665 = vset.pattern.permute.xlu0 0
        %2666 = vperm.xlu0 %2665, %v2632
        %v2667 = vpop.permute.xlu0 %2666
        %2670 = vset.pattern.permute.xlu0 0
        %2671 = vperm.xlu0 %2670, %v2633
        %v2672 = vpop.permute.xlu0 %2671
        %2675 = vset.pattern.permute.xlu0 0
        %2676 = vperm.xlu0 %2675, %v2634
        %v2677 = vpop.permute.xlu0 %2676
        %2680 = vset.pattern.permute.xlu0 0
        %2681 = vperm.xlu0 %2680, %v2635
        %v2682 = vpop.permute.xlu0 %2681
        %2685 = vset.pattern.permute.xlu0 0
        %2686 = vperm.xlu0 %2685, %v2636
        %v2687 = vpop.permute.xlu0 %2686
        %2690 = vset.pattern.permute.xlu0 0
        %2691 = vperm.xlu0 %2690, %v2637
        %v2692 = vpop.permute.xlu0 %2691
        %2695 = vset.pattern.permute.xlu0 0
        %2696 = vperm.xlu0 %2695, %v2638
        %v2697 = vpop.permute.xlu0 %2696
        %2700 = vset.pattern.permute.xlu0 0
        %2701 = vperm.xlu0 %2700, %v2639
        %v2702 = vpop.permute.xlu0 %2701
        %2705 = vset.pattern.permute.xlu0 0
        %2706 = vperm.xlu0 %2705, %v2640
        %v2707 = vpop.permute.xlu0 %2706
        %2710 = vset.pattern.permute.xlu0 0
        %2711 = vperm.xlu0 %2710, %v2641
        %v2712 = vpop.permute.xlu0 %2711
        %2715 = vset.pattern.permute.xlu0 0
        %2716 = vperm.xlu0 %2715, %v2642
        %v2717 = vpop.permute.xlu0 %2716
        %2720 = vset.pattern.permute.xlu0 0
        %2721 = vperm.xlu0 %2720, %v2643
        %v2722 = vpop.permute.xlu0 %2721
        %2725 = vset.pattern.permute.xlu0 0
        %2726 = vperm.xlu0 %2725, %v2644
        %v2727 = vpop.permute.xlu0 %2726
        %2730 = vset.pattern.permute.xlu0 0
        %2731 = vperm.xlu0 %2730, %v2645
        %v2732 = vpop.permute.xlu0 %2731
        %2735 = vset.pattern.permute.xlu0 0
        %2736 = vperm.xlu0 %2735, %v2646
        %v2737 = vpop.permute.xlu0 %2736
        %2740 = vset.pattern.permute.xlu0 0
        %2741 = vperm.xlu0 %2740, %v2647
        %v2742 = vpop.permute.xlu0 %2741
        %2745 = vset.pattern.permute.xlu0 0
        %2746 = vperm.xlu0 %2745, %v2648
        %v2747 = vpop.permute.xlu0 %2746
        %2750 = vset.pattern.permute.xlu0 0
        %2751 = vperm.xlu0 %2750, %v2649
        %v2752 = vpop.permute.xlu0 %2751
        %2755 = vset.pattern.permute.xlu0 0
        %2756 = vperm.xlu0 %2755, %v2650
        %v2757 = vpop.permute.xlu0 %2756
        %2760 = vset.pattern.permute.xlu0 0
        %2761 = vperm.xlu0 %2760, %v2651
        %v2762 = vpop.permute.xlu0 %2761
        %2765 = vset.pattern.permute.xlu0 0
        %2766 = vperm.xlu0 %2765, %v2652
        %v2767 = vpop.permute.xlu0 %2766
        %2770 = vset.pattern.permute.xlu0 0
        %2771 = vperm.xlu0 %2770, %v2653
        %v2772 = vpop.permute.xlu0 %2771
        %2775 = vset.pattern.permute.xlu0 0
        %2776 = vperm.xlu0 %2775, %v2654
        %v2777 = vpop.permute.xlu0 %2776
        %2780 = vset.pattern.permute.xlu0 0
        %2781 = vperm.xlu0 %2780, %v2655
        %v2782 = vpop.permute.xlu0 %2781
        %2785 = vset.pattern.permute.xlu0 0
        %2786 = vperm.xlu0 %2785, %v2656
        %v2787 = vpop.permute.xlu0 %2786
        %2790 = vset.pattern.permute.xlu0 0
        %2791 = vperm.xlu0 %2790, %v2657
        %v2792 = vpop.permute.xlu0 %2791
        %2795 = vset.pattern.permute.xlu0 0
        %2796 = vperm.xlu0 %2795, %v2658
        %v2797 = vpop.permute.xlu0 %2796
        %2800 = vset.pattern.permute.xlu0 0
        %2801 = vperm.xlu0 %2800, %v2659
        %v2802 = vpop.permute.xlu0 %2801
        %2805 = vset.pattern.permute.xlu0 0
        %2806 = vperm.xlu0 %2805, %v2660
        %v2807 = vpop.permute.xlu0 %2806
        %2810 = vset.pattern.permute.xlu0 0
        %2811 = vperm.xlu0 %2810, %v2661
        %v2812 = vpop.permute.xlu0 %2811
        %2815 = vset.pattern.permute.xlu0 0
        %2816 = vperm.xlu0 %2815, %v2662
        %v2817 = vpop.permute.xlu0 %2816
        %2820 = vset.pattern.permute.xlu0 0
        %2821 = vperm.xlu0 %2820, %v2663
        %v2822 = vpop.permute.xlu0 %2821
        %v2824 = vmul.f32 %v2600, %v2667
        %v2825 = vmul.f32 %v2601, %v2672
        %v2826 = vmul.f32 %v2602, %v2677
        %v2827 = vmul.f32 %v2603, %v2682
        %v2828 = vmul.f32 %v2604, %v2687
        %v2829 = vmul.f32 %v2605, %v2692
        %v2830 = vmul.f32 %v2606, %v2697
        %v2831 = vmul.f32 %v2607, %v2702
        %v2832 = vmul.f32 %v2608, %v2707
        %v2833 = vmul.f32 %v2609, %v2712
        %v2834 = vmul.f32 %v2610, %v2717
        %v2835 = vmul.f32 %v2611, %v2722
        %v2836 = vmul.f32 %v2612, %v2727
        %v2837 = vmul.f32 %v2613, %v2732
        %v2838 = vmul.f32 %v2614, %v2737
        %v2839 = vmul.f32 %v2615, %v2742
        %v2840 = vmul.f32 %v2616, %v2747
        %v2841 = vmul.f32 %v2617, %v2752
        %v2842 = vmul.f32 %v2618, %v2757
        %v2843 = vmul.f32 %v2619, %v2762
        %v2844 = vmul.f32 %v2620, %v2767
        %v2845 = vmul.f32 %v2621, %v2772
        %v2846 = vmul.f32 %v2622, %v2777
        %v2847 = vmul.f32 %v2623, %v2782
        %v2848 = vmul.f32 %v2624, %v2787
        %v2849 = vmul.f32 %v2625, %v2792
        %v2850 = vmul.f32 %v2626, %v2797
        %v2851 = vmul.f32 %v2627, %v2802
        %v2852 = vmul.f32 %v2628, %v2807
        %v2853 = vmul.f32 %v2629, %v2812
        %v2854 = vmul.f32 %v2630, %v2817
        %v2855 = vmul.f32 %v2631, %v2822
        %v2856 = vperm.slane %v2528, 1
        %v2857 = vmul.f32 %v2526, %v2856
        %v2858 = vmul.f32 %v2527, %v2856
        %v2859 = vmul.f32 %v2496, %v2856
        %v2860 = vmul.f32 %v2497, %v2856
        %v2861 = vmul.f32 %v2498, %v2856
        %v2862 = vmul.f32 %v2499, %v2856
        %v2863 = vmul.f32 %v2500, %v2856
        %v2864 = vmul.f32 %v2501, %v2856
        %v2865 = vmul.f32 %v2502, %v2856
        %v2866 = vmul.f32 %v2503, %v2856
        %v2867 = vmul.f32 %v2504, %v2856
        %v2868 = vmul.f32 %v2505, %v2856
        %v2869 = vmul.f32 %v2506, %v2856
        %v2870 = vmul.f32 %v2507, %v2856
        %v2871 = vmul.f32 %v2508, %v2856
        %v2872 = vmul.f32 %v2509, %v2856
        %v2873 = vmul.f32 %v2510, %v2856
        %v2874 = vmul.f32 %v2511, %v2856
        %v2875 = vmul.f32 %v2512, %v2856
        %v2876 = vmul.f32 %v2513, %v2856
        %v2877 = vmul.f32 %v2514, %v2856
        %v2878 = vmul.f32 %v2515, %v2856
        %v2879 = vmul.f32 %v2516, %v2856
        %v2880 = vmul.f32 %v2517, %v2856
        %v2881 = vmul.f32 %v2518, %v2856
        %v2882 = vmul.f32 %v2519, %v2856
        %v2883 = vmul.f32 %v2520, %v2856
        %v2884 = vmul.f32 %v2521, %v2856
        %v2885 = vmul.f32 %v2522, %v2856
        %v2886 = vmul.f32 %v2523, %v2856
        %v2887 = vmul.f32 %v2524, %v2856
        %v2888 = vmul.f32 %v2525, %v2856
        %s2889 = scalar_lea.vmem %s8, 256
        %v2890 = vld [vmem:[%s2889] sm:$0xff]
        %v2891 = vld [vmem:[%s2889 + $0x8] sm:$0xff]
        %v2892 = vld [vmem:[%s2889 + $0x10] sm:$0xff]
        %v2893 = vld [vmem:[%s2889 + $0x18] sm:$0xff]
        %v2894 = vld [vmem:[%s2889 + $0x20] sm:$0xff]
        %v2895 = vld [vmem:[%s2889 + $0x28] sm:$0xff]
        %v2896 = vld [vmem:[%s2889 + $0x30] sm:$0xff]
        %v2897 = vld [vmem:[%s2889 + $0x38] sm:$0xff]
        %v2898 = vld [vmem:[%s2889 + $0x40] sm:$0xff]
        %v2899 = vld [vmem:[%s2889 + $0x48] sm:$0xff]
        %v2900 = vld [vmem:[%s2889 + $0x50] sm:$0xff]
        %v2901 = vld [vmem:[%s2889 + $0x58] sm:$0xff]
        %v2902 = vld [vmem:[%s2889 + $0x60] sm:$0xff]
        %v2903 = vld [vmem:[%s2889 + $0x68] sm:$0xff]
        %v2904 = vld [vmem:[%s2889 + $0x70] sm:$0xff]
        %v2905 = vld [vmem:[%s2889 + $0x78] sm:$0xff]
        %v2906 = vld [vmem:[%s2889 + $0x80] sm:$0xff]
        %v2907 = vld [vmem:[%s2889 + $0x88] sm:$0xff]
        %v2908 = vld [vmem:[%s2889 + $0x90] sm:$0xff]
        %v2909 = vld [vmem:[%s2889 + $0x98] sm:$0xff]
        %v2910 = vld [vmem:[%s2889 + $0xa0] sm:$0xff]
        %v2911 = vld [vmem:[%s2889 + $0xa8] sm:$0xff]
        %v2912 = vld [vmem:[%s2889 + $0xb0] sm:$0xff]
        %v2913 = vld [vmem:[%s2889 + $0xb8] sm:$0xff]
        %v2914 = vld [vmem:[%s2889 + $0xc0] sm:$0xff]
        %v2915 = vld [vmem:[%s2889 + $0xc8] sm:$0xff]
        %v2916 = vld [vmem:[%s2889 + $0xd0] sm:$0xff]
        %v2917 = vld [vmem:[%s2889 + $0xd8] sm:$0xff]
        %v2918 = vld [vmem:[%s2889 + $0xe0] sm:$0xff]
        %v2919 = vld [vmem:[%s2889 + $0xe8] sm:$0xff]
        %v2920 = vld [vmem:[%s2889 + $0xf0] sm:$0xff]
        %v2921 = vld [vmem:[%s2889 + $0xf8] sm:$0xff]
        %2923 = vset.pattern.permute.xlu0 0
        %2924 = vperm.xlu0 %2923, %v2890
        %v2925 = vpop.permute.xlu0 %2924
        %2928 = vset.pattern.permute.xlu0 0
        %2929 = vperm.xlu0 %2928, %v2891
        %v2930 = vpop.permute.xlu0 %2929
        %2933 = vset.pattern.permute.xlu0 0
        %2934 = vperm.xlu0 %2933, %v2892
        %v2935 = vpop.permute.xlu0 %2934
        %2938 = vset.pattern.permute.xlu0 0
        %2939 = vperm.xlu0 %2938, %v2893
        %v2940 = vpop.permute.xlu0 %2939
        %2943 = vset.pattern.permute.xlu0 0
        %2944 = vperm.xlu0 %2943, %v2894
        %v2945 = vpop.permute.xlu0 %2944
        %2948 = vset.pattern.permute.xlu0 0
        %2949 = vperm.xlu0 %2948, %v2895
        %v2950 = vpop.permute.xlu0 %2949
        %2953 = vset.pattern.permute.xlu0 0
        %2954 = vperm.xlu0 %2953, %v2896
        %v2955 = vpop.permute.xlu0 %2954
        %2958 = vset.pattern.permute.xlu0 0
        %2959 = vperm.xlu0 %2958, %v2897
        %v2960 = vpop.permute.xlu0 %2959
        %2963 = vset.pattern.permute.xlu0 0
        %2964 = vperm.xlu0 %2963, %v2898
        %v2965 = vpop.permute.xlu0 %2964
        %2968 = vset.pattern.permute.xlu0 0
        %2969 = vperm.xlu0 %2968, %v2899
        %v2970 = vpop.permute.xlu0 %2969
        %2973 = vset.pattern.permute.xlu0 0
        %2974 = vperm.xlu0 %2973, %v2900
        %v2975 = vpop.permute.xlu0 %2974
        %2978 = vset.pattern.permute.xlu0 0
        %2979 = vperm.xlu0 %2978, %v2901
        %v2980 = vpop.permute.xlu0 %2979
        %2983 = vset.pattern.permute.xlu0 0
        %2984 = vperm.xlu0 %2983, %v2902
        %v2985 = vpop.permute.xlu0 %2984
        %2988 = vset.pattern.permute.xlu0 0
        %2989 = vperm.xlu0 %2988, %v2903
        %v2990 = vpop.permute.xlu0 %2989
        %2993 = vset.pattern.permute.xlu0 0
        %2994 = vperm.xlu0 %2993, %v2904
        %v2995 = vpop.permute.xlu0 %2994
        %2998 = vset.pattern.permute.xlu0 0
        %2999 = vperm.xlu0 %2998, %v2905
        %v3000 = vpop.permute.xlu0 %2999
        %3003 = vset.pattern.permute.xlu0 0
        %3004 = vperm.xlu0 %3003, %v2906
        %v3005 = vpop.permute.xlu0 %3004
        %3008 = vset.pattern.permute.xlu0 0
        %3009 = vperm.xlu0 %3008, %v2907
        %v3010 = vpop.permute.xlu0 %3009
        %3013 = vset.pattern.permute.xlu0 0
        %3014 = vperm.xlu0 %3013, %v2908
        %v3015 = vpop.permute.xlu0 %3014
        %3018 = vset.pattern.permute.xlu0 0
        %3019 = vperm.xlu0 %3018, %v2909
        %v3020 = vpop.permute.xlu0 %3019
        %3023 = vset.pattern.permute.xlu0 0
        %3024 = vperm.xlu0 %3023, %v2910
        %v3025 = vpop.permute.xlu0 %3024
        %3028 = vset.pattern.permute.xlu0 0
        %3029 = vperm.xlu0 %3028, %v2911
        %v3030 = vpop.permute.xlu0 %3029
        %3033 = vset.pattern.permute.xlu0 0
        %3034 = vperm.xlu0 %3033, %v2912
        %v3035 = vpop.permute.xlu0 %3034
        %3038 = vset.pattern.permute.xlu0 0
        %3039 = vperm.xlu0 %3038, %v2913
        %v3040 = vpop.permute.xlu0 %3039
        %3043 = vset.pattern.permute.xlu0 0
        %3044 = vperm.xlu0 %3043, %v2914
        %v3045 = vpop.permute.xlu0 %3044
        %3048 = vset.pattern.permute.xlu0 0
        %3049 = vperm.xlu0 %3048, %v2915
        %v3050 = vpop.permute.xlu0 %3049
        %3053 = vset.pattern.permute.xlu0 0
        %3054 = vperm.xlu0 %3053, %v2916
        %v3055 = vpop.permute.xlu0 %3054
        %3058 = vset.pattern.permute.xlu0 0
        %3059 = vperm.xlu0 %3058, %v2917
        %v3060 = vpop.permute.xlu0 %3059
        %3063 = vset.pattern.permute.xlu0 0
        %3064 = vperm.xlu0 %3063, %v2918
        %v3065 = vpop.permute.xlu0 %3064
        %3068 = vset.pattern.permute.xlu0 0
        %3069 = vperm.xlu0 %3068, %v2919
        %v3070 = vpop.permute.xlu0 %3069
        %3073 = vset.pattern.permute.xlu0 0
        %3074 = vperm.xlu0 %3073, %v2920
        %v3075 = vpop.permute.xlu0 %3074
        %3078 = vset.pattern.permute.xlu0 0
        %3079 = vperm.xlu0 %3078, %v2921
        %v3080 = vpop.permute.xlu0 %3079
        %v3082 = vmul.f32 %v2857, %v2925
        %v3083 = vmul.f32 %v2858, %v2930
        %v3084 = vmul.f32 %v2859, %v2935
        %v3085 = vmul.f32 %v2860, %v2940
        %v3086 = vmul.f32 %v2861, %v2945
        %v3087 = vmul.f32 %v2862, %v2950
        %v3088 = vmul.f32 %v2863, %v2955
        %v3089 = vmul.f32 %v2864, %v2960
        %v3090 = vmul.f32 %v2865, %v2965
        %v3091 = vmul.f32 %v2866, %v2970
        %v3092 = vmul.f32 %v2867, %v2975
        %v3093 = vmul.f32 %v2868, %v2980
        %v3094 = vmul.f32 %v2869, %v2985
        %v3095 = vmul.f32 %v2870, %v2990
        %v3096 = vmul.f32 %v2871, %v2995
        %v3097 = vmul.f32 %v2872, %v3000
        %v3098 = vmul.f32 %v2873, %v3005
        %v3099 = vmul.f32 %v2874, %v3010
        %v3100 = vmul.f32 %v2875, %v3015
        %v3101 = vmul.f32 %v2876, %v3020
        %v3102 = vmul.f32 %v2877, %v3025
        %v3103 = vmul.f32 %v2878, %v3030
        %v3104 = vmul.f32 %v2879, %v3035
        %v3105 = vmul.f32 %v2880, %v3040
        %v3106 = vmul.f32 %v2881, %v3045
        %v3107 = vmul.f32 %v2882, %v3050
        %v3108 = vmul.f32 %v2883, %v3055
        %v3109 = vmul.f32 %v2884, %v3060
        %v3110 = vmul.f32 %v2885, %v3065
        %v3111 = vmul.f32 %v2886, %v3070
        %v3112 = vmul.f32 %v2887, %v3075
        %v3113 = vmul.f32 %v2888, %v3080
        %v3114 = vadd.f32 %v2824, %v3082
        %v3115 = vadd.f32 %v2825, %v3083
        %v3116 = vadd.f32 %v2826, %v3084
        %v3117 = vadd.f32 %v2827, %v3085
        %v3118 = vadd.f32 %v2828, %v3086
        %v3119 = vadd.f32 %v2829, %v3087
        %v3120 = vadd.f32 %v2830, %v3088
        %v3121 = vadd.f32 %v2831, %v3089
        %v3122 = vadd.f32 %v2832, %v3090
        %v3123 = vadd.f32 %v2833, %v3091
        %v3124 = vadd.f32 %v2834, %v3092
        %v3125 = vadd.f32 %v2835, %v3093
        %v3126 = vadd.f32 %v2836, %v3094
        %v3127 = vadd.f32 %v2837, %v3095
        %v3128 = vadd.f32 %v2838, %v3096
        %v3129 = vadd.f32 %v2839, %v3097
        %v3130 = vadd.f32 %v2840, %v3098
        %v3131 = vadd.f32 %v2841, %v3099
        %v3132 = vadd.f32 %v2842, %v3100
        %v3133 = vadd.f32 %v2843, %v3101
        %v3134 = vadd.f32 %v2844, %v3102
        %v3135 = vadd.f32 %v2845, %v3103
        %v3136 = vadd.f32 %v2846, %v3104
        %v3137 = vadd.f32 %v2847, %v3105
        %v3138 = vadd.f32 %v2848, %v3106
        %v3139 = vadd.f32 %v2849, %v3107
        %v3140 = vadd.f32 %v2850, %v3108
        %v3141 = vadd.f32 %v2851, %v3109
        %v3142 = vadd.f32 %v2852, %v3110
        %v3143 = vadd.f32 %v2853, %v3111
        %v3144 = vadd.f32 %v2854, %v3112
        %v3145 = vadd.f32 %v2855, %v3113
        %v3146 = vrot.slane %v2496, 1
        %v3147 = vrot.slane %v2497, 1
        %v3148 = vrot.slane %v2498, 1
        %v3149 = vrot.slane %v2499, 1
        %v3150 = vrot.slane %v2500, 1
        %v3151 = vrot.slane %v2501, 1
        %v3152 = vrot.slane %v2502, 1
        %v3153 = vrot.slane %v2503, 1
        %v3154 = vrot.slane %v2504, 1
        %v3155 = vrot.slane %v2505, 1
        %v3156 = vrot.slane %v2506, 1
        %v3157 = vrot.slane %v2507, 1
        %v3158 = vrot.slane %v2508, 1
        %v3159 = vrot.slane %v2509, 1
        %v3160 = vrot.slane %v2510, 1
        %v3161 = vrot.slane %v2511, 1
        %v3162 = vrot.slane %v2512, 1
        %v3163 = vrot.slane %v2513, 1
        %v3164 = vrot.slane %v2514, 1
        %v3165 = vrot.slane %v2515, 1
        %v3166 = vrot.slane %v2516, 1
        %v3167 = vrot.slane %v2517, 1
        %v3168 = vrot.slane %v2518, 1
        %v3169 = vrot.slane %v2519, 1
        %v3170 = vrot.slane %v2520, 1
        %v3171 = vrot.slane %v2521, 1
        %v3172 = vrot.slane %v2522, 1
        %v3173 = vrot.slane %v2523, 1
        %v3174 = vrot.slane %v2524, 1
        %v3175 = vrot.slane %v2525, 1
        %v3176 = vrot.slane %v2526, 1
        %v3177 = vrot.slane %v2527, 1
        %vm3178 = vcmp.lt.s32.totalorder %v2565, 7
        %v3179 = vsel %vm3178, %v3176, %v3177
        %v3180 = vsel %vm3178, %v3175, %v3176
        %v3181 = vsel %vm3178, %v3174, %v3175
        %v3182 = vsel %vm3178, %v3173, %v3174
        %v3183 = vsel %vm3178, %v3172, %v3173
        %v3184 = vsel %vm3178, %v3171, %v3172
        %v3185 = vsel %vm3178, %v3170, %v3171
        %v3186 = vsel %vm3178, %v3169, %v3170
        %v3187 = vsel %vm3178, %v3168, %v3169
        %v3188 = vsel %vm3178, %v3167, %v3168
        %v3189 = vsel %vm3178, %v3166, %v3167
        %v3190 = vsel %vm3178, %v3165, %v3166
        %v3191 = vsel %vm3178, %v3164, %v3165
        %v3192 = vsel %vm3178, %v3163, %v3164
        %v3193 = vsel %vm3178, %v3162, %v3163
        %v3194 = vsel %vm3178, %v3161, %v3162
        %v3195 = vsel %vm3178, %v3160, %v3161
        %v3196 = vsel %vm3178, %v3159, %v3160
        %v3197 = vsel %vm3178, %v3158, %v3159
        %v3198 = vsel %vm3178, %v3157, %v3158
        %v3199 = vsel %vm3178, %v3156, %v3157
        %v3200 = vsel %vm3178, %v3155, %v3156
        %v3201 = vsel %vm3178, %v3154, %v3155
        %v3202 = vsel %vm3178, %v3153, %v3154
        %v3203 = vsel %vm3178, %v3152, %v3153
        %v3204 = vsel %vm3178, %v3151, %v3152
        %v3205 = vsel %vm3178, %v3150, %v3151
        %v3206 = vsel %vm3178, %v3149, %v3150
        %v3207 = vsel %vm3178, %v3148, %v3149
        %v3208 = vsel %vm3178, %v3147, %v3148
        %v3209 = vsel %vm3178, %v3146, %v3147
        %v3210 = vsel %vm3178, %v3177, %v3146
        %v3211 = vperm.slane %v2528, 2
        %v3212 = vmul.f32 %v3179, %v3211
        %v3213 = vmul.f32 %v3210, %v3211
        %v3214 = vmul.f32 %v3209, %v3211
        %v3215 = vmul.f32 %v3208, %v3211
        %v3216 = vmul.f32 %v3207, %v3211
        %v3217 = vmul.f32 %v3206, %v3211
        %v3218 = vmul.f32 %v3205, %v3211
        %v3219 = vmul.f32 %v3204, %v3211
        %v3220 = vmul.f32 %v3203, %v3211
        %v3221 = vmul.f32 %v3202, %v3211
        %v3222 = vmul.f32 %v3201, %v3211
        %v3223 = vmul.f32 %v3200, %v3211
        %v3224 = vmul.f32 %v3199, %v3211
        %v3225 = vmul.f32 %v3198, %v3211
        %v3226 = vmul.f32 %v3197, %v3211
        %v3227 = vmul.f32 %v3196, %v3211
        %v3228 = vmul.f32 %v3195, %v3211
        %v3229 = vmul.f32 %v3194, %v3211
        %v3230 = vmul.f32 %v3193, %v3211
        %v3231 = vmul.f32 %v3192, %v3211
        %v3232 = vmul.f32 %v3191, %v3211
        %v3233 = vmul.f32 %v3190, %v3211
        %v3234 = vmul.f32 %v3189, %v3211
        %v3235 = vmul.f32 %v3188, %v3211
        %v3236 = vmul.f32 %v3187, %v3211
        %v3237 = vmul.f32 %v3186, %v3211
        %v3238 = vmul.f32 %v3185, %v3211
        %v3239 = vmul.f32 %v3184, %v3211
        %v3240 = vmul.f32 %v3183, %v3211
        %v3241 = vmul.f32 %v3182, %v3211
        %v3242 = vmul.f32 %v3181, %v3211
        %v3243 = vmul.f32 %v3180, %v3211
        %s3244 = scalar_lea.vmem %s8, 512
        %v3245 = vld [vmem:[%s3244] sm:$0xff]
        %v3246 = vld [vmem:[%s3244 + $0x8] sm:$0xff]
        %v3247 = vld [vmem:[%s3244 + $0x10] sm:$0xff]
        %v3248 = vld [vmem:[%s3244 + $0x18] sm:$0xff]
        %v3249 = vld [vmem:[%s3244 + $0x20] sm:$0xff]
        %v3250 = vld [vmem:[%s3244 + $0x28] sm:$0xff]
        %v3251 = vld [vmem:[%s3244 + $0x30] sm:$0xff]
        %v3252 = vld [vmem:[%s3244 + $0x38] sm:$0xff]
        %v3253 = vld [vmem:[%s3244 + $0x40] sm:$0xff]
        %v3254 = vld [vmem:[%s3244 + $0x48] sm:$0xff]
        %v3255 = vld [vmem:[%s3244 + $0x50] sm:$0xff]
        %v3256 = vld [vmem:[%s3244 + $0x58] sm:$0xff]
        %v3257 = vld [vmem:[%s3244 + $0x60] sm:$0xff]
        %v3258 = vld [vmem:[%s3244 + $0x68] sm:$0xff]
        %v3259 = vld [vmem:[%s3244 + $0x70] sm:$0xff]
        %v3260 = vld [vmem:[%s3244 + $0x78] sm:$0xff]
        %v3261 = vld [vmem:[%s3244 + $0x80] sm:$0xff]
        %v3262 = vld [vmem:[%s3244 + $0x88] sm:$0xff]
        %v3263 = vld [vmem:[%s3244 + $0x90] sm:$0xff]
        %v3264 = vld [vmem:[%s3244 + $0x98] sm:$0xff]
        %v3265 = vld [vmem:[%s3244 + $0xa0] sm:$0xff]
        %v3266 = vld [vmem:[%s3244 + $0xa8] sm:$0xff]
        %v3267 = vld [vmem:[%s3244 + $0xb0] sm:$0xff]
        %v3268 = vld [vmem:[%s3244 + $0xb8] sm:$0xff]
        %v3269 = vld [vmem:[%s3244 + $0xc0] sm:$0xff]
        %v3270 = vld [vmem:[%s3244 + $0xc8] sm:$0xff]
        %v3271 = vld [vmem:[%s3244 + $0xd0] sm:$0xff]
        %v3272 = vld [vmem:[%s3244 + $0xd8] sm:$0xff]
        %v3273 = vld [vmem:[%s3244 + $0xe0] sm:$0xff]
        %v3274 = vld [vmem:[%s3244 + $0xe8] sm:$0xff]
        %v3275 = vld [vmem:[%s3244 + $0xf0] sm:$0xff]
        %v3276 = vld [vmem:[%s3244 + $0xf8] sm:$0xff]
        %3278 = vset.pattern.permute.xlu0 0
        %3279 = vperm.xlu0 %3278, %v3245
        %v3280 = vpop.permute.xlu0 %3279
        %3283 = vset.pattern.permute.xlu0 0
        %3284 = vperm.xlu0 %3283, %v3246
        %v3285 = vpop.permute.xlu0 %3284
        %3288 = vset.pattern.permute.xlu0 0
        %3289 = vperm.xlu0 %3288, %v3247
        %v3290 = vpop.permute.xlu0 %3289
        %3293 = vset.pattern.permute.xlu0 0
        %3294 = vperm.xlu0 %3293, %v3248
        %v3295 = vpop.permute.xlu0 %3294
        %3298 = vset.pattern.permute.xlu0 0
        %3299 = vperm.xlu0 %3298, %v3249
        %v3300 = vpop.permute.xlu0 %3299
        %3303 = vset.pattern.permute.xlu0 0
        %3304 = vperm.xlu0 %3303, %v3250
        %v3305 = vpop.permute.xlu0 %3304
        %3308 = vset.pattern.permute.xlu0 0
        %3309 = vperm.xlu0 %3308, %v3251
        %v3310 = vpop.permute.xlu0 %3309
        %3313 = vset.pattern.permute.xlu0 0
        %3314 = vperm.xlu0 %3313, %v3252
        %v3315 = vpop.permute.xlu0 %3314
        %3318 = vset.pattern.permute.xlu0 0
        %3319 = vperm.xlu0 %3318, %v3253
        %v3320 = vpop.permute.xlu0 %3319
        %3323 = vset.pattern.permute.xlu0 0
        %3324 = vperm.xlu0 %3323, %v3254
        %v3325 = vpop.permute.xlu0 %3324
        %3328 = vset.pattern.permute.xlu0 0
        %3329 = vperm.xlu0 %3328, %v3255
        %v3330 = vpop.permute.xlu0 %3329
        %3333 = vset.pattern.permute.xlu0 0
        %3334 = vperm.xlu0 %3333, %v3256
        %v3335 = vpop.permute.xlu0 %3334
        %3338 = vset.pattern.permute.xlu0 0
        %3339 = vperm.xlu0 %3338, %v3257
        %v3340 = vpop.permute.xlu0 %3339
        %3343 = vset.pattern.permute.xlu0 0
        %3344 = vperm.xlu0 %3343, %v3258
        %v3345 = vpop.permute.xlu0 %3344
        %3348 = vset.pattern.permute.xlu0 0
        %3349 = vperm.xlu0 %3348, %v3259
        %v3350 = vpop.permute.xlu0 %3349
        %3353 = vset.pattern.permute.xlu0 0
        %3354 = vperm.xlu0 %3353, %v3260
        %v3355 = vpop.permute.xlu0 %3354
        %3358 = vset.pattern.permute.xlu0 0
        %3359 = vperm.xlu0 %3358, %v3261
        %v3360 = vpop.permute.xlu0 %3359
        %3363 = vset.pattern.permute.xlu0 0
        %3364 = vperm.xlu0 %3363, %v3262
        %v3365 = vpop.permute.xlu0 %3364
        %3368 = vset.pattern.permute.xlu0 0
        %3369 = vperm.xlu0 %3368, %v3263
        %v3370 = vpop.permute.xlu0 %3369
        %3373 = vset.pattern.permute.xlu0 0
        %3374 = vperm.xlu0 %3373, %v3264
        %v3375 = vpop.permute.xlu0 %3374
        %3378 = vset.pattern.permute.xlu0 0
        %3379 = vperm.xlu0 %3378, %v3265
        %v3380 = vpop.permute.xlu0 %3379
        %3383 = vset.pattern.permute.xlu0 0
        %3384 = vperm.xlu0 %3383, %v3266
        %v3385 = vpop.permute.xlu0 %3384
        %3388 = vset.pattern.permute.xlu0 0
        %3389 = vperm.xlu0 %3388, %v3267
        %v3390 = vpop.permute.xlu0 %3389
        %3393 = vset.pattern.permute.xlu0 0
        %3394 = vperm.xlu0 %3393, %v3268
        %v3395 = vpop.permute.xlu0 %3394
        %3398 = vset.pattern.permute.xlu0 0
        %3399 = vperm.xlu0 %3398, %v3269
        %v3400 = vpop.permute.xlu0 %3399
        %3403 = vset.pattern.permute.xlu0 0
        %3404 = vperm.xlu0 %3403, %v3270
        %v3405 = vpop.permute.xlu0 %3404
        %3408 = vset.pattern.permute.xlu0 0
        %3409 = vperm.xlu0 %3408, %v3271
        %v3410 = vpop.permute.xlu0 %3409
        %3413 = vset.pattern.permute.xlu0 0
        %3414 = vperm.xlu0 %3413, %v3272
        %v3415 = vpop.permute.xlu0 %3414
        %3418 = vset.pattern.permute.xlu0 0
        %3419 = vperm.xlu0 %3418, %v3273
        %v3420 = vpop.permute.xlu0 %3419
        %3423 = vset.pattern.permute.xlu0 0
        %3424 = vperm.xlu0 %3423, %v3274
        %v3425 = vpop.permute.xlu0 %3424
        %3428 = vset.pattern.permute.xlu0 0
        %3429 = vperm.xlu0 %3428, %v3275
        %v3430 = vpop.permute.xlu0 %3429
        %3433 = vset.pattern.permute.xlu0 0
        %3434 = vperm.xlu0 %3433, %v3276
        %v3435 = vpop.permute.xlu0 %3434
        %v3437 = vmul.f32 %v3212, %v3280
        %v3438 = vmul.f32 %v3213, %v3285
        %v3439 = vmul.f32 %v3214, %v3290
        %v3440 = vmul.f32 %v3215, %v3295
        %v3441 = vmul.f32 %v3216, %v3300
        %v3442 = vmul.f32 %v3217, %v3305
        %v3443 = vmul.f32 %v3218, %v3310
        %v3444 = vmul.f32 %v3219, %v3315
        %v3445 = vmul.f32 %v3220, %v3320
        %v3446 = vmul.f32 %v3221, %v3325
        %v3447 = vmul.f32 %v3222, %v3330
        %v3448 = vmul.f32 %v3223, %v3335
        %v3449 = vmul.f32 %v3224, %v3340
        %v3450 = vmul.f32 %v3225, %v3345
        %v3451 = vmul.f32 %v3226, %v3350
        %v3452 = vmul.f32 %v3227, %v3355
        %v3453 = vmul.f32 %v3228, %v3360
        %v3454 = vmul.f32 %v3229, %v3365
        %v3455 = vmul.f32 %v3230, %v3370
        %v3456 = vmul.f32 %v3231, %v3375
        %v3457 = vmul.f32 %v3232, %v3380
        %v3458 = vmul.f32 %v3233, %v3385
        %v3459 = vmul.f32 %v3234, %v3390
        %v3460 = vmul.f32 %v3235, %v3395
        %v3461 = vmul.f32 %v3236, %v3400
        %v3462 = vmul.f32 %v3237, %v3405
        %v3463 = vmul.f32 %v3238, %v3410
        %v3464 = vmul.f32 %v3239, %v3415
        %v3465 = vmul.f32 %v3240, %v3420
        %v3466 = vmul.f32 %v3241, %v3425
        %v3467 = vmul.f32 %v3242, %v3430
        %v3468 = vmul.f32 %v3243, %v3435
        %v3469 = vadd.f32 %v3114, %v3437
        %v3470 = vadd.f32 %v3115, %v3438
        %v3471 = vadd.f32 %v3116, %v3439
        %v3472 = vadd.f32 %v3117, %v3440
        %v3473 = vadd.f32 %v3118, %v3441
        %v3474 = vadd.f32 %v3119, %v3442
        %v3475 = vadd.f32 %v3120, %v3443
        %v3476 = vadd.f32 %v3121, %v3444
        %v3477 = vadd.f32 %v3122, %v3445
        %v3478 = vadd.f32 %v3123, %v3446
        %v3479 = vadd.f32 %v3124, %v3447
        %v3480 = vadd.f32 %v3125, %v3448
        %v3481 = vadd.f32 %v3126, %v3449
        %v3482 = vadd.f32 %v3127, %v3450
        %v3483 = vadd.f32 %v3128, %v3451
        %v3484 = vadd.f32 %v3129, %v3452
        %v3485 = vadd.f32 %v3130, %v3453
        %v3486 = vadd.f32 %v3131, %v3454
        %v3487 = vadd.f32 %v3132, %v3455
        %v3488 = vadd.f32 %v3133, %v3456
        %v3489 = vadd.f32 %v3134, %v3457
        %v3490 = vadd.f32 %v3135, %v3458
        %v3491 = vadd.f32 %v3136, %v3459
        %v3492 = vadd.f32 %v3137, %v3460
        %v3493 = vadd.f32 %v3138, %v3461
        %v3494 = vadd.f32 %v3139, %v3462
        %v3495 = vadd.f32 %v3140, %v3463
        %v3496 = vadd.f32 %v3141, %v3464
        %v3497 = vadd.f32 %v3142, %v3465
        %v3498 = vadd.f32 %v3143, %v3466
        %v3499 = vadd.f32 %v3144, %v3467
        %v3500 = vadd.f32 %v3145, %v3468
        %v3501 = vperm.slane %v2528, 3
        %v3502 = vmul.f32 %v2598, %v3501
        %v3503 = vmul.f32 %v2597, %v3501
        %v3504 = vmul.f32 %v2596, %v3501
        %v3505 = vmul.f32 %v2595, %v3501
        %v3506 = vmul.f32 %v2594, %v3501
        %v3507 = vmul.f32 %v2593, %v3501
        %v3508 = vmul.f32 %v2592, %v3501
        %v3509 = vmul.f32 %v2591, %v3501
        %v3510 = vmul.f32 %v2590, %v3501
        %v3511 = vmul.f32 %v2589, %v3501
        %v3512 = vmul.f32 %v2588, %v3501
        %v3513 = vmul.f32 %v2587, %v3501
        %v3514 = vmul.f32 %v2586, %v3501
        %v3515 = vmul.f32 %v2585, %v3501
        %v3516 = vmul.f32 %v2584, %v3501
        %v3517 = vmul.f32 %v2583, %v3501
        %v3518 = vmul.f32 %v2582, %v3501
        %v3519 = vmul.f32 %v2581, %v3501
        %v3520 = vmul.f32 %v2580, %v3501
        %v3521 = vmul.f32 %v2579, %v3501
        %v3522 = vmul.f32 %v2578, %v3501
        %v3523 = vmul.f32 %v2577, %v3501
        %v3524 = vmul.f32 %v2576, %v3501
        %v3525 = vmul.f32 %v2575, %v3501
        %v3526 = vmul.f32 %v2574, %v3501
        %v3527 = vmul.f32 %v2573, %v3501
        %v3528 = vmul.f32 %v2572, %v3501
        %v3529 = vmul.f32 %v2571, %v3501
        %v3530 = vmul.f32 %v2570, %v3501
        %v3531 = vmul.f32 %v2569, %v3501
        %v3532 = vmul.f32 %v2568, %v3501
        %v3533 = vmul.f32 %v2567, %v3501
        %s3534 = scalar_lea.vmem %s8, 768
        %v3535 = vld [vmem:[%s3534] sm:$0xff]
        %v3536 = vld [vmem:[%s3534 + $0x8] sm:$0xff]
        %v3537 = vld [vmem:[%s3534 + $0x10] sm:$0xff]
        %v3538 = vld [vmem:[%s3534 + $0x18] sm:$0xff]
        %v3539 = vld [vmem:[%s3534 + $0x20] sm:$0xff]
        %v3540 = vld [vmem:[%s3534 + $0x28] sm:$0xff]
        %v3541 = vld [vmem:[%s3534 + $0x30] sm:$0xff]
        %v3542 = vld [vmem:[%s3534 + $0x38] sm:$0xff]
        %v3543 = vld [vmem:[%s3534 + $0x40] sm:$0xff]
        %v3544 = vld [vmem:[%s3534 + $0x48] sm:$0xff]
        %v3545 = vld [vmem:[%s3534 + $0x50] sm:$0xff]
        %v3546 = vld [vmem:[%s3534 + $0x58] sm:$0xff]
        %v3547 = vld [vmem:[%s3534 + $0x60] sm:$0xff]
        %v3548 = vld [vmem:[%s3534 + $0x68] sm:$0xff]
        %v3549 = vld [vmem:[%s3534 + $0x70] sm:$0xff]
        %v3550 = vld [vmem:[%s3534 + $0x78] sm:$0xff]
        %v3551 = vld [vmem:[%s3534 + $0x80] sm:$0xff]
        %v3552 = vld [vmem:[%s3534 + $0x88] sm:$0xff]
        %v3553 = vld [vmem:[%s3534 + $0x90] sm:$0xff]
        %v3554 = vld [vmem:[%s3534 + $0x98] sm:$0xff]
        %v3555 = vld [vmem:[%s3534 + $0xa0] sm:$0xff]
        %v3556 = vld [vmem:[%s3534 + $0xa8] sm:$0xff]
        %v3557 = vld [vmem:[%s3534 + $0xb0] sm:$0xff]
        %v3558 = vld [vmem:[%s3534 + $0xb8] sm:$0xff]
        %v3559 = vld [vmem:[%s3534 + $0xc0] sm:$0xff]
        %v3560 = vld [vmem:[%s3534 + $0xc8] sm:$0xff]
        %v3561 = vld [vmem:[%s3534 + $0xd0] sm:$0xff]
        %v3562 = vld [vmem:[%s3534 + $0xd8] sm:$0xff]
        %v3563 = vld [vmem:[%s3534 + $0xe0] sm:$0xff]
        %v3564 = vld [vmem:[%s3534 + $0xe8] sm:$0xff]
        %v3565 = vld [vmem:[%s3534 + $0xf0] sm:$0xff]
        %v3566 = vld [vmem:[%s3534 + $0xf8] sm:$0xff]
        %3568 = vset.pattern.permute.xlu0 0
        %3569 = vperm.xlu0 %3568, %v3535
        %v3570 = vpop.permute.xlu0 %3569
        %3573 = vset.pattern.permute.xlu0 0
        %3574 = vperm.xlu0 %3573, %v3536
        %v3575 = vpop.permute.xlu0 %3574
        %3578 = vset.pattern.permute.xlu0 0
        %3579 = vperm.xlu0 %3578, %v3537
        %v3580 = vpop.permute.xlu0 %3579
        %3583 = vset.pattern.permute.xlu0 0
        %3584 = vperm.xlu0 %3583, %v3538
        %v3585 = vpop.permute.xlu0 %3584
        %3588 = vset.pattern.permute.xlu0 0
        %3589 = vperm.xlu0 %3588, %v3539
        %v3590 = vpop.permute.xlu0 %3589
        %3593 = vset.pattern.permute.xlu0 0
        %3594 = vperm.xlu0 %3593, %v3540
        %v3595 = vpop.permute.xlu0 %3594
        %3598 = vset.pattern.permute.xlu0 0
        %3599 = vperm.xlu0 %3598, %v3541
        %v3600 = vpop.permute.xlu0 %3599
        %3603 = vset.pattern.permute.xlu0 0
        %3604 = vperm.xlu0 %3603, %v3542
        %v3605 = vpop.permute.xlu0 %3604
        %3608 = vset.pattern.permute.xlu0 0
        %3609 = vperm.xlu0 %3608, %v3543
        %v3610 = vpop.permute.xlu0 %3609
        %3613 = vset.pattern.permute.xlu0 0
        %3614 = vperm.xlu0 %3613, %v3544
        %v3615 = vpop.permute.xlu0 %3614
        %3618 = vset.pattern.permute.xlu0 0
        %3619 = vperm.xlu0 %3618, %v3545
        %v3620 = vpop.permute.xlu0 %3619
        %3623 = vset.pattern.permute.xlu0 0
        %3624 = vperm.xlu0 %3623, %v3546
        %v3625 = vpop.permute.xlu0 %3624
        %3628 = vset.pattern.permute.xlu0 0
        %3629 = vperm.xlu0 %3628, %v3547
        %v3630 = vpop.permute.xlu0 %3629
        %3633 = vset.pattern.permute.xlu0 0
        %3634 = vperm.xlu0 %3633, %v3548
        %v3635 = vpop.permute.xlu0 %3634
        %3638 = vset.pattern.permute.xlu0 0
        %3639 = vperm.xlu0 %3638, %v3549
        %v3640 = vpop.permute.xlu0 %3639
        %3643 = vset.pattern.permute.xlu0 0
        %3644 = vperm.xlu0 %3643, %v3550
        %v3645 = vpop.permute.xlu0 %3644
        %3648 = vset.pattern.permute.xlu0 0
        %3649 = vperm.xlu0 %3648, %v3551
        %v3650 = vpop.permute.xlu0 %3649
        %3653 = vset.pattern.permute.xlu0 0
        %3654 = vperm.xlu0 %3653, %v3552
        %v3655 = vpop.permute.xlu0 %3654
        %3658 = vset.pattern.permute.xlu0 0
        %3659 = vperm.xlu0 %3658, %v3553
        %v3660 = vpop.permute.xlu0 %3659
        %3663 = vset.pattern.permute.xlu0 0
        %3664 = vperm.xlu0 %3663, %v3554
        %v3665 = vpop.permute.xlu0 %3664
        %3668 = vset.pattern.permute.xlu0 0
        %3669 = vperm.xlu0 %3668, %v3555
        %v3670 = vpop.permute.xlu0 %3669
        %3673 = vset.pattern.permute.xlu0 0
        %3674 = vperm.xlu0 %3673, %v3556
        %v3675 = vpop.permute.xlu0 %3674
        %3678 = vset.pattern.permute.xlu0 0
        %3679 = vperm.xlu0 %3678, %v3557
        %v3680 = vpop.permute.xlu0 %3679
        %3683 = vset.pattern.permute.xlu0 0
        %3684 = vperm.xlu0 %3683, %v3558
        %v3685 = vpop.permute.xlu0 %3684
        %3688 = vset.pattern.permute.xlu0 0
        %3689 = vperm.xlu0 %3688, %v3559
        %v3690 = vpop.permute.xlu0 %3689
        %3693 = vset.pattern.permute.xlu0 0
        %3694 = vperm.xlu0 %3693, %v3560
        %v3695 = vpop.permute.xlu0 %3694
        %3698 = vset.pattern.permute.xlu0 0
        %3699 = vperm.xlu0 %3698, %v3561
        %v3700 = vpop.permute.xlu0 %3699
        %3703 = vset.pattern.permute.xlu0 0
        %3704 = vperm.xlu0 %3703, %v3562
        %v3705 = vpop.permute.xlu0 %3704
        %3708 = vset.pattern.permute.xlu0 0
        %3709 = vperm.xlu0 %3708, %v3563
        %v3710 = vpop.permute.xlu0 %3709
        %3713 = vset.pattern.permute.xlu0 0
        %3714 = vperm.xlu0 %3713, %v3564
        %v3715 = vpop.permute.xlu0 %3714
        %3718 = vset.pattern.permute.xlu0 0
        %3719 = vperm.xlu0 %3718, %v3565
        %v3720 = vpop.permute.xlu0 %3719
        %3723 = vset.pattern.permute.xlu0 0
        %3724 = vperm.xlu0 %3723, %v3566
        %v3725 = vpop.permute.xlu0 %3724
        %v3727 = vmul.f32 %v3502, %v3570
        %v3728 = vmul.f32 %v3503, %v3575
        %v3729 = vmul.f32 %v3504, %v3580
        %v3730 = vmul.f32 %v3505, %v3585
        %v3731 = vmul.f32 %v3506, %v3590
        %v3732 = vmul.f32 %v3507, %v3595
        %v3733 = vmul.f32 %v3508, %v3600
        %v3734 = vmul.f32 %v3509, %v3605
        %v3735 = vmul.f32 %v3510, %v3610
        %v3736 = vmul.f32 %v3511, %v3615
        %v3737 = vmul.f32 %v3512, %v3620
        %v3738 = vmul.f32 %v3513, %v3625
        %v3739 = vmul.f32 %v3514, %v3630
        %v3740 = vmul.f32 %v3515, %v3635
        %v3741 = vmul.f32 %v3516, %v3640
        %v3742 = vmul.f32 %v3517, %v3645
        %v3743 = vmul.f32 %v3518, %v3650
        %v3744 = vmul.f32 %v3519, %v3655
        %v3745 = vmul.f32 %v3520, %v3660
        %v3746 = vmul.f32 %v3521, %v3665
        %v3747 = vmul.f32 %v3522, %v3670
        %v3748 = vmul.f32 %v3523, %v3675
        %v3749 = vmul.f32 %v3524, %v3680
        %v3750 = vmul.f32 %v3525, %v3685
        %v3751 = vmul.f32 %v3526, %v3690
        %v3752 = vmul.f32 %v3527, %v3695
        %v3753 = vmul.f32 %v3528, %v3700
        %v3754 = vmul.f32 %v3529, %v3705
        %v3755 = vmul.f32 %v3530, %v3710
        %v3756 = vmul.f32 %v3531, %v3715
        %v3757 = vmul.f32 %v3532, %v3720
        %v3758 = vmul.f32 %v3533, %v3725
        %v3759 = vadd.f32 %v3469, %v3727
        %v3760 = vadd.f32 %v3470, %v3728
        %v3761 = vadd.f32 %v3471, %v3729
        %v3762 = vadd.f32 %v3472, %v3730
        %v3763 = vadd.f32 %v3473, %v3731
        %v3764 = vadd.f32 %v3474, %v3732
        %v3765 = vadd.f32 %v3475, %v3733
        %v3766 = vadd.f32 %v3476, %v3734
        %v3767 = vadd.f32 %v3477, %v3735
        %v3768 = vadd.f32 %v3478, %v3736
        %v3769 = vadd.f32 %v3479, %v3737
        %v3770 = vadd.f32 %v3480, %v3738
        %v3771 = vadd.f32 %v3481, %v3739
        %v3772 = vadd.f32 %v3482, %v3740
        %v3773 = vadd.f32 %v3483, %v3741
        %v3774 = vadd.f32 %v3484, %v3742
        %v3775 = vadd.f32 %v3485, %v3743
        %v3776 = vadd.f32 %v3486, %v3744
        %v3777 = vadd.f32 %v3487, %v3745
        %v3778 = vadd.f32 %v3488, %v3746
        %v3779 = vadd.f32 %v3489, %v3747
        %v3780 = vadd.f32 %v3490, %v3748
        %v3781 = vadd.f32 %v3491, %v3749
        %v3782 = vadd.f32 %v3492, %v3750
        %v3783 = vadd.f32 %v3493, %v3751
        %v3784 = vadd.f32 %v3494, %v3752
        %v3785 = vadd.f32 %v3495, %v3753
        %v3786 = vadd.f32 %v3496, %v3754
        %v3787 = vadd.f32 %v3497, %v3755
        %v3788 = vadd.f32 %v3498, %v3756
        %v3789 = vadd.f32 %v3499, %v3757
        %v3790 = vadd.f32 %v3500, %v3758
        %v3791 = vperm.slane %v2528, 4
        %v3792 = vmul.f32 %v2496, %v3791
        %v3793 = vmul.f32 %v2497, %v3791
        %v3794 = vmul.f32 %v2498, %v3791
        %v3795 = vmul.f32 %v2499, %v3791
        %v3796 = vmul.f32 %v2500, %v3791
        %v3797 = vmul.f32 %v2501, %v3791
        %v3798 = vmul.f32 %v2502, %v3791
        %v3799 = vmul.f32 %v2503, %v3791
        %v3800 = vmul.f32 %v2504, %v3791
        %v3801 = vmul.f32 %v2505, %v3791
        %v3802 = vmul.f32 %v2506, %v3791
        %v3803 = vmul.f32 %v2507, %v3791
        %v3804 = vmul.f32 %v2508, %v3791
        %v3805 = vmul.f32 %v2509, %v3791
        %v3806 = vmul.f32 %v2510, %v3791
        %v3807 = vmul.f32 %v2511, %v3791
        %v3808 = vmul.f32 %v2512, %v3791
        %v3809 = vmul.f32 %v2513, %v3791
        %v3810 = vmul.f32 %v2514, %v3791
        %v3811 = vmul.f32 %v2515, %v3791
        %v3812 = vmul.f32 %v2516, %v3791
        %v3813 = vmul.f32 %v2517, %v3791
        %v3814 = vmul.f32 %v2518, %v3791
        %v3815 = vmul.f32 %v2519, %v3791
        %v3816 = vmul.f32 %v2520, %v3791
        %v3817 = vmul.f32 %v2521, %v3791
        %v3818 = vmul.f32 %v2522, %v3791
        %v3819 = vmul.f32 %v2523, %v3791
        %v3820 = vmul.f32 %v2524, %v3791
        %v3821 = vmul.f32 %v2525, %v3791
        %v3822 = vmul.f32 %v2526, %v3791
        %v3823 = vmul.f32 %v2527, %v3791
        %v3824 = vadd.f32 %v3759, %v3792
        %v3825 = vadd.f32 %v3760, %v3793
        %v3826 = vadd.f32 %v3761, %v3794
        %v3827 = vadd.f32 %v3762, %v3795
        %v3828 = vadd.f32 %v3763, %v3796
        %v3829 = vadd.f32 %v3764, %v3797
        %v3830 = vadd.f32 %v3765, %v3798
        %v3831 = vadd.f32 %v3766, %v3799
        %v3832 = vadd.f32 %v3767, %v3800
        %v3833 = vadd.f32 %v3768, %v3801
        %v3834 = vadd.f32 %v3769, %v3802
        %v3835 = vadd.f32 %v3770, %v3803
        %v3836 = vadd.f32 %v3771, %v3804
        %v3837 = vadd.f32 %v3772, %v3805
        %v3838 = vadd.f32 %v3773, %v3806
        %v3839 = vadd.f32 %v3774, %v3807
        %v3840 = vadd.f32 %v3775, %v3808
        %v3841 = vadd.f32 %v3776, %v3809
        %v3842 = vadd.f32 %v3777, %v3810
        %v3843 = vadd.f32 %v3778, %v3811
        %v3844 = vadd.f32 %v3779, %v3812
        %v3845 = vadd.f32 %v3780, %v3813
        %v3846 = vadd.f32 %v3781, %v3814
        %v3847 = vadd.f32 %v3782, %v3815
        %v3848 = vadd.f32 %v3783, %v3816
        %v3849 = vadd.f32 %v3784, %v3817
        %v3850 = vadd.f32 %v3785, %v3818
        %v3851 = vadd.f32 %v3786, %v3819
        %v3852 = vadd.f32 %v3787, %v3820
        %v3853 = vadd.f32 %v3788, %v3821
        %v3854 = vadd.f32 %v3789, %v3822
        %v3855 = vadd.f32 %v3790, %v3823
        %v3856 = vperm.slane %v2528, 5
        %v3857 = vmul.f32 %v3209, %v3856
        %v3858 = vmul.f32 %v3208, %v3856
        %v3859 = vmul.f32 %v3207, %v3856
        %v3860 = vmul.f32 %v3206, %v3856
        %v3861 = vmul.f32 %v3205, %v3856
        %v3862 = vmul.f32 %v3204, %v3856
        %v3863 = vmul.f32 %v3203, %v3856
        %v3864 = vmul.f32 %v3202, %v3856
        %v3865 = vmul.f32 %v3201, %v3856
        %v3866 = vmul.f32 %v3200, %v3856
        %v3867 = vmul.f32 %v3199, %v3856
        %v3868 = vmul.f32 %v3198, %v3856
        %v3869 = vmul.f32 %v3197, %v3856
        %v3870 = vmul.f32 %v3196, %v3856
        %v3871 = vmul.f32 %v3195, %v3856
        %v3872 = vmul.f32 %v3194, %v3856
        %v3873 = vmul.f32 %v3193, %v3856
        %v3874 = vmul.f32 %v3192, %v3856
        %v3875 = vmul.f32 %v3191, %v3856
        %v3876 = vmul.f32 %v3190, %v3856
        %v3877 = vmul.f32 %v3189, %v3856
        %v3878 = vmul.f32 %v3188, %v3856
        %v3879 = vmul.f32 %v3187, %v3856
        %v3880 = vmul.f32 %v3186, %v3856
        %v3881 = vmul.f32 %v3185, %v3856
        %v3882 = vmul.f32 %v3184, %v3856
        %v3883 = vmul.f32 %v3183, %v3856
        %v3884 = vmul.f32 %v3182, %v3856
        %v3885 = vmul.f32 %v3181, %v3856
        %v3886 = vmul.f32 %v3180, %v3856
        %v3887 = vmul.f32 %v3179, %v3856
        %v3888 = vmul.f32 %v3210, %v3856
        %s3889 = scalar_lea.vmem %s8, 1280
        %v3890 = vld [vmem:[%s3889] sm:$0xff]
        %v3891 = vld [vmem:[%s3889 + $0x8] sm:$0xff]
        %v3892 = vld [vmem:[%s3889 + $0x10] sm:$0xff]
        %v3893 = vld [vmem:[%s3889 + $0x18] sm:$0xff]
        %v3894 = vld [vmem:[%s3889 + $0x20] sm:$0xff]
        %v3895 = vld [vmem:[%s3889 + $0x28] sm:$0xff]
        %v3896 = vld [vmem:[%s3889 + $0x30] sm:$0xff]
        %v3897 = vld [vmem:[%s3889 + $0x38] sm:$0xff]
        %v3898 = vld [vmem:[%s3889 + $0x40] sm:$0xff]
        %v3899 = vld [vmem:[%s3889 + $0x48] sm:$0xff]
        %v3900 = vld [vmem:[%s3889 + $0x50] sm:$0xff]
        %v3901 = vld [vmem:[%s3889 + $0x58] sm:$0xff]
        %v3902 = vld [vmem:[%s3889 + $0x60] sm:$0xff]
        %v3903 = vld [vmem:[%s3889 + $0x68] sm:$0xff]
        %v3904 = vld [vmem:[%s3889 + $0x70] sm:$0xff]
        %v3905 = vld [vmem:[%s3889 + $0x78] sm:$0xff]
        %v3906 = vld [vmem:[%s3889 + $0x80] sm:$0xff]
        %v3907 = vld [vmem:[%s3889 + $0x88] sm:$0xff]
        %v3908 = vld [vmem:[%s3889 + $0x90] sm:$0xff]
        %v3909 = vld [vmem:[%s3889 + $0x98] sm:$0xff]
        %v3910 = vld [vmem:[%s3889 + $0xa0] sm:$0xff]
        %v3911 = vld [vmem:[%s3889 + $0xa8] sm:$0xff]
        %v3912 = vld [vmem:[%s3889 + $0xb0] sm:$0xff]
        %v3913 = vld [vmem:[%s3889 + $0xb8] sm:$0xff]
        %v3914 = vld [vmem:[%s3889 + $0xc0] sm:$0xff]
        %v3915 = vld [vmem:[%s3889 + $0xc8] sm:$0xff]
        %v3916 = vld [vmem:[%s3889 + $0xd0] sm:$0xff]
        %v3917 = vld [vmem:[%s3889 + $0xd8] sm:$0xff]
        %v3918 = vld [vmem:[%s3889 + $0xe0] sm:$0xff]
        %v3919 = vld [vmem:[%s3889 + $0xe8] sm:$0xff]
        %v3920 = vld [vmem:[%s3889 + $0xf0] sm:$0xff]
        %v3921 = vld [vmem:[%s3889 + $0xf8] sm:$0xff]
        %3923 = vset.pattern.permute.xlu0 0
        %3924 = vperm.xlu0 %3923, %v3890
        %v3925 = vpop.permute.xlu0 %3924
        %3928 = vset.pattern.permute.xlu0 0
        %3929 = vperm.xlu0 %3928, %v3891
        %v3930 = vpop.permute.xlu0 %3929
        %3933 = vset.pattern.permute.xlu0 0
        %3934 = vperm.xlu0 %3933, %v3892
        %v3935 = vpop.permute.xlu0 %3934
        %3938 = vset.pattern.permute.xlu0 0
        %3939 = vperm.xlu0 %3938, %v3893
        %v3940 = vpop.permute.xlu0 %3939
        %3943 = vset.pattern.permute.xlu0 0
        %3944 = vperm.xlu0 %3943, %v3894
        %v3945 = vpop.permute.xlu0 %3944
        %3948 = vset.pattern.permute.xlu0 0
        %3949 = vperm.xlu0 %3948, %v3895
        %v3950 = vpop.permute.xlu0 %3949
        %3953 = vset.pattern.permute.xlu0 0
        %3954 = vperm.xlu0 %3953, %v3896
        %v3955 = vpop.permute.xlu0 %3954
        %3958 = vset.pattern.permute.xlu0 0
        %3959 = vperm.xlu0 %3958, %v3897
        %v3960 = vpop.permute.xlu0 %3959
        %3963 = vset.pattern.permute.xlu0 0
        %3964 = vperm.xlu0 %3963, %v3898
        %v3965 = vpop.permute.xlu0 %3964
        %3968 = vset.pattern.permute.xlu0 0
        %3969 = vperm.xlu0 %3968, %v3899
        %v3970 = vpop.permute.xlu0 %3969
        %3973 = vset.pattern.permute.xlu0 0
        %3974 = vperm.xlu0 %3973, %v3900
        %v3975 = vpop.permute.xlu0 %3974
        %3978 = vset.pattern.permute.xlu0 0
        %3979 = vperm.xlu0 %3978, %v3901
        %v3980 = vpop.permute.xlu0 %3979
        %3983 = vset.pattern.permute.xlu0 0
        %3984 = vperm.xlu0 %3983, %v3902
        %v3985 = vpop.permute.xlu0 %3984
        %3988 = vset.pattern.permute.xlu0 0
        %3989 = vperm.xlu0 %3988, %v3903
        %v3990 = vpop.permute.xlu0 %3989
        %3993 = vset.pattern.permute.xlu0 0
        %3994 = vperm.xlu0 %3993, %v3904
        %v3995 = vpop.permute.xlu0 %3994
        %3998 = vset.pattern.permute.xlu0 0
        %3999 = vperm.xlu0 %3998, %v3905
        %v4000 = vpop.permute.xlu0 %3999
        %4003 = vset.pattern.permute.xlu0 0
        %4004 = vperm.xlu0 %4003, %v3906
        %v4005 = vpop.permute.xlu0 %4004
        %4008 = vset.pattern.permute.xlu0 0
        %4009 = vperm.xlu0 %4008, %v3907
        %v4010 = vpop.permute.xlu0 %4009
        %4013 = vset.pattern.permute.xlu0 0
        %4014 = vperm.xlu0 %4013, %v3908
        %v4015 = vpop.permute.xlu0 %4014
        %4018 = vset.pattern.permute.xlu0 0
        %4019 = vperm.xlu0 %4018, %v3909
        %v4020 = vpop.permute.xlu0 %4019
        %4023 = vset.pattern.permute.xlu0 0
        %4024 = vperm.xlu0 %4023, %v3910
        %v4025 = vpop.permute.xlu0 %4024
        %4028 = vset.pattern.permute.xlu0 0
        %4029 = vperm.xlu0 %4028, %v3911
        %v4030 = vpop.permute.xlu0 %4029
        %4033 = vset.pattern.permute.xlu0 0
        %4034 = vperm.xlu0 %4033, %v3912
        %v4035 = vpop.permute.xlu0 %4034
        %4038 = vset.pattern.permute.xlu0 0
        %4039 = vperm.xlu0 %4038, %v3913
        %v4040 = vpop.permute.xlu0 %4039
        %4043 = vset.pattern.permute.xlu0 0
        %4044 = vperm.xlu0 %4043, %v3914
        %v4045 = vpop.permute.xlu0 %4044
        %4048 = vset.pattern.permute.xlu0 0
        %4049 = vperm.xlu0 %4048, %v3915
        %v4050 = vpop.permute.xlu0 %4049
        %4053 = vset.pattern.permute.xlu0 0
        %4054 = vperm.xlu0 %4053, %v3916
        %v4055 = vpop.permute.xlu0 %4054
        %4058 = vset.pattern.permute.xlu0 0
        %4059 = vperm.xlu0 %4058, %v3917
        %v4060 = vpop.permute.xlu0 %4059
        %4063 = vset.pattern.permute.xlu0 0
        %4064 = vperm.xlu0 %4063, %v3918
        %v4065 = vpop.permute.xlu0 %4064
        %4068 = vset.pattern.permute.xlu0 0
        %4069 = vperm.xlu0 %4068, %v3919
        %v4070 = vpop.permute.xlu0 %4069
        %4073 = vset.pattern.permute.xlu0 0
        %4074 = vperm.xlu0 %4073, %v3920
        %v4075 = vpop.permute.xlu0 %4074
        %4078 = vset.pattern.permute.xlu0 0
        %4079 = vperm.xlu0 %4078, %v3921
        %v4080 = vpop.permute.xlu0 %4079
        %v4082 = vmul.f32 %v3857, %v3925
        %v4083 = vmul.f32 %v3858, %v3930
        %v4084 = vmul.f32 %v3859, %v3935
        %v4085 = vmul.f32 %v3860, %v3940
        %v4086 = vmul.f32 %v3861, %v3945
        %v4087 = vmul.f32 %v3862, %v3950
        %v4088 = vmul.f32 %v3863, %v3955
        %v4089 = vmul.f32 %v3864, %v3960
        %v4090 = vmul.f32 %v3865, %v3965
        %v4091 = vmul.f32 %v3866, %v3970
        %v4092 = vmul.f32 %v3867, %v3975
        %v4093 = vmul.f32 %v3868, %v3980
        %v4094 = vmul.f32 %v3869, %v3985
        %v4095 = vmul.f32 %v3870, %v3990
        %v4096 = vmul.f32 %v3871, %v3995
        %v4097 = vmul.f32 %v3872, %v4000
        %v4098 = vmul.f32 %v3873, %v4005
        %v4099 = vmul.f32 %v3874, %v4010
        %v4100 = vmul.f32 %v3875, %v4015
        %v4101 = vmul.f32 %v3876, %v4020
        %v4102 = vmul.f32 %v3877, %v4025
        %v4103 = vmul.f32 %v3878, %v4030
        %v4104 = vmul.f32 %v3879, %v4035
        %v4105 = vmul.f32 %v3880, %v4040
        %v4106 = vmul.f32 %v3881, %v4045
        %v4107 = vmul.f32 %v3882, %v4050
        %v4108 = vmul.f32 %v3883, %v4055
        %v4109 = vmul.f32 %v3884, %v4060
        %v4110 = vmul.f32 %v3885, %v4065
        %v4111 = vmul.f32 %v3886, %v4070
        %v4112 = vmul.f32 %v3887, %v4075
        %v4113 = vmul.f32 %v3888, %v4080
        %v4114 = vadd.f32 %v3824, %v4082
        %v4115 = vadd.f32 %v3825, %v4083
        %v4116 = vadd.f32 %v3826, %v4084
        %v4117 = vadd.f32 %v3827, %v4085
        %v4118 = vadd.f32 %v3828, %v4086
        %v4119 = vadd.f32 %v3829, %v4087
        %v4120 = vadd.f32 %v3830, %v4088
        %v4121 = vadd.f32 %v3831, %v4089
        %v4122 = vadd.f32 %v3832, %v4090
        %v4123 = vadd.f32 %v3833, %v4091
        %v4124 = vadd.f32 %v3834, %v4092
        %v4125 = vadd.f32 %v3835, %v4093
        %v4126 = vadd.f32 %v3836, %v4094
        %v4127 = vadd.f32 %v3837, %v4095
        %v4128 = vadd.f32 %v3838, %v4096
        %v4129 = vadd.f32 %v3839, %v4097
        %v4130 = vadd.f32 %v3840, %v4098
        %v4131 = vadd.f32 %v3841, %v4099
        %v4132 = vadd.f32 %v3842, %v4100
        %v4133 = vadd.f32 %v3843, %v4101
        %v4134 = vadd.f32 %v3844, %v4102
        %v4135 = vadd.f32 %v3845, %v4103
        %v4136 = vadd.f32 %v3846, %v4104
        %v4137 = vadd.f32 %v3847, %v4105
        %v4138 = vadd.f32 %v3848, %v4106
        %v4139 = vadd.f32 %v3849, %v4107
        %v4140 = vadd.f32 %v3850, %v4108
        %v4141 = vadd.f32 %v3851, %v4109
        %v4142 = vadd.f32 %v3852, %v4110
        %v4143 = vadd.f32 %v3853, %v4111
        %v4144 = vadd.f32 %v3854, %v4112
        %v4145 = vadd.f32 %v3855, %v4113
        %v4146 = vperm.slane %v2528, 6
        %v4147 = vmul.f32 %v2596, %v4146
        %v4148 = vmul.f32 %v2595, %v4146
        %v4149 = vmul.f32 %v2594, %v4146
        %v4150 = vmul.f32 %v2593, %v4146
        %v4151 = vmul.f32 %v2592, %v4146
        %v4152 = vmul.f32 %v2591, %v4146
        %v4153 = vmul.f32 %v2590, %v4146
        %v4154 = vmul.f32 %v2589, %v4146
        %v4155 = vmul.f32 %v2588, %v4146
        %v4156 = vmul.f32 %v2587, %v4146
        %v4157 = vmul.f32 %v2586, %v4146
        %v4158 = vmul.f32 %v2585, %v4146
        %v4159 = vmul.f32 %v2584, %v4146
        %v4160 = vmul.f32 %v2583, %v4146
        %v4161 = vmul.f32 %v2582, %v4146
        %v4162 = vmul.f32 %v2581, %v4146
        %v4163 = vmul.f32 %v2580, %v4146
        %v4164 = vmul.f32 %v2579, %v4146
        %v4165 = vmul.f32 %v2578, %v4146
        %v4166 = vmul.f32 %v2577, %v4146
        %v4167 = vmul.f32 %v2576, %v4146
        %v4168 = vmul.f32 %v2575, %v4146
        %v4169 = vmul.f32 %v2574, %v4146
        %v4170 = vmul.f32 %v2573, %v4146
        %v4171 = vmul.f32 %v2572, %v4146
        %v4172 = vmul.f32 %v2571, %v4146
        %v4173 = vmul.f32 %v2570, %v4146
        %v4174 = vmul.f32 %v2569, %v4146
        %v4175 = vmul.f32 %v2568, %v4146
        %v4176 = vmul.f32 %v2567, %v4146
        %v4177 = vmul.f32 %v2598, %v4146
        %v4178 = vmul.f32 %v2597, %v4146
        %s4179 = scalar_lea.vmem %s8, 1536
        %v4180 = vld [vmem:[%s4179] sm:$0xff]
        %v4181 = vld [vmem:[%s4179 + $0x8] sm:$0xff]
        %v4182 = vld [vmem:[%s4179 + $0x10] sm:$0xff]
        %v4183 = vld [vmem:[%s4179 + $0x18] sm:$0xff]
        %v4184 = vld [vmem:[%s4179 + $0x20] sm:$0xff]
        %v4185 = vld [vmem:[%s4179 + $0x28] sm:$0xff]
        %v4186 = vld [vmem:[%s4179 + $0x30] sm:$0xff]
        %v4187 = vld [vmem:[%s4179 + $0x38] sm:$0xff]
        %v4188 = vld [vmem:[%s4179 + $0x40] sm:$0xff]
        %v4189 = vld [vmem:[%s4179 + $0x48] sm:$0xff]
        %v4190 = vld [vmem:[%s4179 + $0x50] sm:$0xff]
        %v4191 = vld [vmem:[%s4179 + $0x58] sm:$0xff]
        %v4192 = vld [vmem:[%s4179 + $0x60] sm:$0xff]
        %v4193 = vld [vmem:[%s4179 + $0x68] sm:$0xff]
        %v4194 = vld [vmem:[%s4179 + $0x70] sm:$0xff]
        %v4195 = vld [vmem:[%s4179 + $0x78] sm:$0xff]
        %v4196 = vld [vmem:[%s4179 + $0x80] sm:$0xff]
        %v4197 = vld [vmem:[%s4179 + $0x88] sm:$0xff]
        %v4198 = vld [vmem:[%s4179 + $0x90] sm:$0xff]
        %v4199 = vld [vmem:[%s4179 + $0x98] sm:$0xff]
        %v4200 = vld [vmem:[%s4179 + $0xa0] sm:$0xff]
        %v4201 = vld [vmem:[%s4179 + $0xa8] sm:$0xff]
        %v4202 = vld [vmem:[%s4179 + $0xb0] sm:$0xff]
        %v4203 = vld [vmem:[%s4179 + $0xb8] sm:$0xff]
        %v4204 = vld [vmem:[%s4179 + $0xc0] sm:$0xff]
        %v4205 = vld [vmem:[%s4179 + $0xc8] sm:$0xff]
        %v4206 = vld [vmem:[%s4179 + $0xd0] sm:$0xff]
        %v4207 = vld [vmem:[%s4179 + $0xd8] sm:$0xff]
        %v4208 = vld [vmem:[%s4179 + $0xe0] sm:$0xff]
        %v4209 = vld [vmem:[%s4179 + $0xe8] sm:$0xff]
        %v4210 = vld [vmem:[%s4179 + $0xf0] sm:$0xff]
        %v4211 = vld [vmem:[%s4179 + $0xf8] sm:$0xff]
        %4213 = vset.pattern.permute.xlu0 0
        %4214 = vperm.xlu0 %4213, %v4180
        %v4215 = vpop.permute.xlu0 %4214
        %4218 = vset.pattern.permute.xlu0 0
        %4219 = vperm.xlu0 %4218, %v4181
        %v4220 = vpop.permute.xlu0 %4219
        %4223 = vset.pattern.permute.xlu0 0
        %4224 = vperm.xlu0 %4223, %v4182
        %v4225 = vpop.permute.xlu0 %4224
        %4228 = vset.pattern.permute.xlu0 0
        %4229 = vperm.xlu0 %4228, %v4183
        %v4230 = vpop.permute.xlu0 %4229
        %4233 = vset.pattern.permute.xlu0 0
        %4234 = vperm.xlu0 %4233, %v4184
        %v4235 = vpop.permute.xlu0 %4234
        %4238 = vset.pattern.permute.xlu0 0
        %4239 = vperm.xlu0 %4238, %v4185
        %v4240 = vpop.permute.xlu0 %4239
        %4243 = vset.pattern.permute.xlu0 0
        %4244 = vperm.xlu0 %4243, %v4186
        %v4245 = vpop.permute.xlu0 %4244
        %4248 = vset.pattern.permute.xlu0 0
        %4249 = vperm.xlu0 %4248, %v4187
        %v4250 = vpop.permute.xlu0 %4249
        %4253 = vset.pattern.permute.xlu0 0
        %4254 = vperm.xlu0 %4253, %v4188
        %v4255 = vpop.permute.xlu0 %4254
        %4258 = vset.pattern.permute.xlu0 0
        %4259 = vperm.xlu0 %4258, %v4189
        %v4260 = vpop.permute.xlu0 %4259
        %4263 = vset.pattern.permute.xlu0 0
        %4264 = vperm.xlu0 %4263, %v4190
        %v4265 = vpop.permute.xlu0 %4264
        %4268 = vset.pattern.permute.xlu0 0
        %4269 = vperm.xlu0 %4268, %v4191
        %v4270 = vpop.permute.xlu0 %4269
        %4273 = vset.pattern.permute.xlu0 0
        %4274 = vperm.xlu0 %4273, %v4192
        %v4275 = vpop.permute.xlu0 %4274
        %4278 = vset.pattern.permute.xlu0 0
        %4279 = vperm.xlu0 %4278, %v4193
        %v4280 = vpop.permute.xlu0 %4279
        %4283 = vset.pattern.permute.xlu0 0
        %4284 = vperm.xlu0 %4283, %v4194
        %v4285 = vpop.permute.xlu0 %4284
        %4288 = vset.pattern.permute.xlu0 0
        %4289 = vperm.xlu0 %4288, %v4195
        %v4290 = vpop.permute.xlu0 %4289
        %4293 = vset.pattern.permute.xlu0 0
        %4294 = vperm.xlu0 %4293, %v4196
        %v4295 = vpop.permute.xlu0 %4294
        %4298 = vset.pattern.permute.xlu0 0
        %4299 = vperm.xlu0 %4298, %v4197
        %v4300 = vpop.permute.xlu0 %4299
        %4303 = vset.pattern.permute.xlu0 0
        %4304 = vperm.xlu0 %4303, %v4198
        %v4305 = vpop.permute.xlu0 %4304
        %4308 = vset.pattern.permute.xlu0 0
        %4309 = vperm.xlu0 %4308, %v4199
        %v4310 = vpop.permute.xlu0 %4309
        %4313 = vset.pattern.permute.xlu0 0
        %4314 = vperm.xlu0 %4313, %v4200
        %v4315 = vpop.permute.xlu0 %4314
        %4318 = vset.pattern.permute.xlu0 0
        %4319 = vperm.xlu0 %4318, %v4201
        %v4320 = vpop.permute.xlu0 %4319
        %4323 = vset.pattern.permute.xlu0 0
        %4324 = vperm.xlu0 %4323, %v4202
        %v4325 = vpop.permute.xlu0 %4324
        %4328 = vset.pattern.permute.xlu0 0
        %4329 = vperm.xlu0 %4328, %v4203
        %v4330 = vpop.permute.xlu0 %4329
        %4333 = vset.pattern.permute.xlu0 0
        %4334 = vperm.xlu0 %4333, %v4204
        %v4335 = vpop.permute.xlu0 %4334
        %4338 = vset.pattern.permute.xlu0 0
        %4339 = vperm.xlu0 %4338, %v4205
        %v4340 = vpop.permute.xlu0 %4339
        %4343 = vset.pattern.permute.xlu0 0
        %4344 = vperm.xlu0 %4343, %v4206
        %v4345 = vpop.permute.xlu0 %4344
        %4348 = vset.pattern.permute.xlu0 0
        %4349 = vperm.xlu0 %4348, %v4207
        %v4350 = vpop.permute.xlu0 %4349
        %4353 = vset.pattern.permute.xlu0 0
        %4354 = vperm.xlu0 %4353, %v4208
        %v4355 = vpop.permute.xlu0 %4354
        %4358 = vset.pattern.permute.xlu0 0
        %4359 = vperm.xlu0 %4358, %v4209
        %v4360 = vpop.permute.xlu0 %4359
        %4363 = vset.pattern.permute.xlu0 0
        %4364 = vperm.xlu0 %4363, %v4210
        %v4365 = vpop.permute.xlu0 %4364
        %4368 = vset.pattern.permute.xlu0 0
        %4369 = vperm.xlu0 %4368, %v4211
        %v4370 = vpop.permute.xlu0 %4369
        %v4372 = vmul.f32 %v4147, %v4215
        %v4373 = vmul.f32 %v4148, %v4220
        %v4374 = vmul.f32 %v4149, %v4225
        %v4375 = vmul.f32 %v4150, %v4230
        %v4376 = vmul.f32 %v4151, %v4235
        %v4377 = vmul.f32 %v4152, %v4240
        %v4378 = vmul.f32 %v4153, %v4245
        %v4379 = vmul.f32 %v4154, %v4250
        %v4380 = vmul.f32 %v4155, %v4255
        %v4381 = vmul.f32 %v4156, %v4260
        %v4382 = vmul.f32 %v4157, %v4265
        %v4383 = vmul.f32 %v4158, %v4270
        %v4384 = vmul.f32 %v4159, %v4275
        %v4385 = vmul.f32 %v4160, %v4280
        %v4386 = vmul.f32 %v4161, %v4285
        %v4387 = vmul.f32 %v4162, %v4290
        %v4388 = vmul.f32 %v4163, %v4295
        %v4389 = vmul.f32 %v4164, %v4300
        %v4390 = vmul.f32 %v4165, %v4305
        %v4391 = vmul.f32 %v4166, %v4310
        %v4392 = vmul.f32 %v4167, %v4315
        %v4393 = vmul.f32 %v4168, %v4320
        %v4394 = vmul.f32 %v4169, %v4325
        %v4395 = vmul.f32 %v4170, %v4330
        %v4396 = vmul.f32 %v4171, %v4335
        %v4397 = vmul.f32 %v4172, %v4340
        %v4398 = vmul.f32 %v4173, %v4345
        %v4399 = vmul.f32 %v4174, %v4350
        %v4400 = vmul.f32 %v4175, %v4355
        %v4401 = vmul.f32 %v4176, %v4360
        %v4402 = vmul.f32 %v4177, %v4365
        %v4403 = vmul.f32 %v4178, %v4370
        %v4404 = vadd.f32 %v4114, %v4372
        %v4405 = vadd.f32 %v4115, %v4373
        %v4406 = vadd.f32 %v4116, %v4374
        %v4407 = vadd.f32 %v4117, %v4375
        %v4408 = vadd.f32 %v4118, %v4376
        %v4409 = vadd.f32 %v4119, %v4377
        %v4410 = vadd.f32 %v4120, %v4378
        %v4411 = vadd.f32 %v4121, %v4379
        %v4412 = vadd.f32 %v4122, %v4380
        %v4413 = vadd.f32 %v4123, %v4381
        %v4414 = vadd.f32 %v4124, %v4382
        %v4415 = vadd.f32 %v4125, %v4383
        %v4416 = vadd.f32 %v4126, %v4384
        %v4417 = vadd.f32 %v4127, %v4385
        %v4418 = vadd.f32 %v4128, %v4386
        %v4419 = vadd.f32 %v4129, %v4387
        %v4420 = vadd.f32 %v4130, %v4388
        %v4421 = vadd.f32 %v4131, %v4389
        %v4422 = vadd.f32 %v4132, %v4390
        %v4423 = vadd.f32 %v4133, %v4391
        %v4424 = vadd.f32 %v4134, %v4392
        %v4425 = vadd.f32 %v4135, %v4393
        %v4426 = vadd.f32 %v4136, %v4394
        %v4427 = vadd.f32 %v4137, %v4395
        %v4428 = vadd.f32 %v4138, %v4396
        %v4429 = vadd.f32 %v4139, %v4397
        %v4430 = vadd.f32 %v4140, %v4398
        %v4431 = vadd.f32 %v4141, %v4399
        %v4432 = vadd.f32 %v4142, %v4400
        %v4433 = vadd.f32 %v4143, %v4401
        %v4434 = vadd.f32 %v4144, %v4402
        %v4435 = vadd.f32 %v4145, %v4403
        %v4436 = vperm.slane %v2528, 7
        %v4437 = vmul.f32 %v2498, %v4436
        %v4438 = vmul.f32 %v2499, %v4436
        %v4439 = vmul.f32 %v2500, %v4436
        %v4440 = vmul.f32 %v2501, %v4436
        %v4441 = vmul.f32 %v2502, %v4436
        %v4442 = vmul.f32 %v2503, %v4436
        %v4443 = vmul.f32 %v2504, %v4436
        %v4444 = vmul.f32 %v2505, %v4436
        %v4445 = vmul.f32 %v2506, %v4436
        %v4446 = vmul.f32 %v2507, %v4436
        %v4447 = vmul.f32 %v2508, %v4436
        %v4448 = vmul.f32 %v2509, %v4436
        %v4449 = vmul.f32 %v2510, %v4436
        %v4450 = vmul.f32 %v2511, %v4436
        %v4451 = vmul.f32 %v2512, %v4436
        %v4452 = vmul.f32 %v2513, %v4436
        %v4453 = vmul.f32 %v2514, %v4436
        %v4454 = vmul.f32 %v2515, %v4436
        %v4455 = vmul.f32 %v2516, %v4436
        %v4456 = vmul.f32 %v2517, %v4436
        %v4457 = vmul.f32 %v2518, %v4436
        %v4458 = vmul.f32 %v2519, %v4436
        %v4459 = vmul.f32 %v2520, %v4436
        %v4460 = vmul.f32 %v2521, %v4436
        %v4461 = vmul.f32 %v2522, %v4436
        %v4462 = vmul.f32 %v2523, %v4436
        %v4463 = vmul.f32 %v2524, %v4436
        %v4464 = vmul.f32 %v2525, %v4436
        %v4465 = vmul.f32 %v2526, %v4436
        %v4466 = vmul.f32 %v2527, %v4436
        %v4467 = vmul.f32 %v2496, %v4436
        %v4468 = vmul.f32 %v2497, %v4436
        %s4469 = scalar_lea.vmem %s8, 1792
        %v4470 = vld [vmem:[%s4469] sm:$0xff]
        %v4471 = vld [vmem:[%s4469 + $0x8] sm:$0xff]
        %v4472 = vld [vmem:[%s4469 + $0x10] sm:$0xff]
        %v4473 = vld [vmem:[%s4469 + $0x18] sm:$0xff]
        %v4474 = vld [vmem:[%s4469 + $0x20] sm:$0xff]
        %v4475 = vld [vmem:[%s4469 + $0x28] sm:$0xff]
        %v4476 = vld [vmem:[%s4469 + $0x30] sm:$0xff]
        %v4477 = vld [vmem:[%s4469 + $0x38] sm:$0xff]
        %v4478 = vld [vmem:[%s4469 + $0x40] sm:$0xff]
        %v4479 = vld [vmem:[%s4469 + $0x48] sm:$0xff]
        %v4480 = vld [vmem:[%s4469 + $0x50] sm:$0xff]
        %v4481 = vld [vmem:[%s4469 + $0x58] sm:$0xff]
        %v4482 = vld [vmem:[%s4469 + $0x60] sm:$0xff]
        %v4483 = vld [vmem:[%s4469 + $0x68] sm:$0xff]
        %v4484 = vld [vmem:[%s4469 + $0x70] sm:$0xff]
        %v4485 = vld [vmem:[%s4469 + $0x78] sm:$0xff]
        %v4486 = vld [vmem:[%s4469 + $0x80] sm:$0xff]
        %v4487 = vld [vmem:[%s4469 + $0x88] sm:$0xff]
        %v4488 = vld [vmem:[%s4469 + $0x90] sm:$0xff]
        %v4489 = vld [vmem:[%s4469 + $0x98] sm:$0xff]
        %v4490 = vld [vmem:[%s4469 + $0xa0] sm:$0xff]
        %v4491 = vld [vmem:[%s4469 + $0xa8] sm:$0xff]
        %v4492 = vld [vmem:[%s4469 + $0xb0] sm:$0xff]
        %v4493 = vld [vmem:[%s4469 + $0xb8] sm:$0xff]
        %v4494 = vld [vmem:[%s4469 + $0xc0] sm:$0xff]
        %v4495 = vld [vmem:[%s4469 + $0xc8] sm:$0xff]
        %v4496 = vld [vmem:[%s4469 + $0xd0] sm:$0xff]
        %v4497 = vld [vmem:[%s4469 + $0xd8] sm:$0xff]
        %v4498 = vld [vmem:[%s4469 + $0xe0] sm:$0xff]
        %v4499 = vld [vmem:[%s4469 + $0xe8] sm:$0xff]
        %v4500 = vld [vmem:[%s4469 + $0xf0] sm:$0xff]
        %v4501 = vld [vmem:[%s4469 + $0xf8] sm:$0xff]
        %4503 = vset.pattern.permute.xlu0 0
        %4504 = vperm.xlu0 %4503, %v4470
        %v4505 = vpop.permute.xlu0 %4504
        %4508 = vset.pattern.permute.xlu0 0
        %4509 = vperm.xlu0 %4508, %v4471
        %v4510 = vpop.permute.xlu0 %4509
        %4513 = vset.pattern.permute.xlu0 0
        %4514 = vperm.xlu0 %4513, %v4472
        %v4515 = vpop.permute.xlu0 %4514
        %4518 = vset.pattern.permute.xlu0 0
        %4519 = vperm.xlu0 %4518, %v4473
        %v4520 = vpop.permute.xlu0 %4519
        %4523 = vset.pattern.permute.xlu0 0
        %4524 = vperm.xlu0 %4523, %v4474
        %v4525 = vpop.permute.xlu0 %4524
        %4528 = vset.pattern.permute.xlu0 0
        %4529 = vperm.xlu0 %4528, %v4475
        %v4530 = vpop.permute.xlu0 %4529
        %4533 = vset.pattern.permute.xlu0 0
        %4534 = vperm.xlu0 %4533, %v4476
        %v4535 = vpop.permute.xlu0 %4534
        %4538 = vset.pattern.permute.xlu0 0
        %4539 = vperm.xlu0 %4538, %v4477
        %v4540 = vpop.permute.xlu0 %4539
        %4543 = vset.pattern.permute.xlu0 0
        %4544 = vperm.xlu0 %4543, %v4478
        %v4545 = vpop.permute.xlu0 %4544
        %4548 = vset.pattern.permute.xlu0 0
        %4549 = vperm.xlu0 %4548, %v4479
        %v4550 = vpop.permute.xlu0 %4549
        %4553 = vset.pattern.permute.xlu0 0
        %4554 = vperm.xlu0 %4553, %v4480
        %v4555 = vpop.permute.xlu0 %4554
        %4558 = vset.pattern.permute.xlu0 0
        %4559 = vperm.xlu0 %4558, %v4481
        %v4560 = vpop.permute.xlu0 %4559
        %4563 = vset.pattern.permute.xlu0 0
        %4564 = vperm.xlu0 %4563, %v4482
        %v4565 = vpop.permute.xlu0 %4564
        %4568 = vset.pattern.permute.xlu0 0
        %4569 = vperm.xlu0 %4568, %v4483
        %v4570 = vpop.permute.xlu0 %4569
        %4573 = vset.pattern.permute.xlu0 0
        %4574 = vperm.xlu0 %4573, %v4484
        %v4575 = vpop.permute.xlu0 %4574
        %4578 = vset.pattern.permute.xlu0 0
        %4579 = vperm.xlu0 %4578, %v4485
        %v4580 = vpop.permute.xlu0 %4579
        %4583 = vset.pattern.permute.xlu0 0
        %4584 = vperm.xlu0 %4583, %v4486
        %v4585 = vpop.permute.xlu0 %4584
        %4588 = vset.pattern.permute.xlu0 0
        %4589 = vperm.xlu0 %4588, %v4487
        %v4590 = vpop.permute.xlu0 %4589
        %4593 = vset.pattern.permute.xlu0 0
        %4594 = vperm.xlu0 %4593, %v4488
        %v4595 = vpop.permute.xlu0 %4594
        %4598 = vset.pattern.permute.xlu0 0
        %4599 = vperm.xlu0 %4598, %v4489
        %v4600 = vpop.permute.xlu0 %4599
        %4603 = vset.pattern.permute.xlu0 0
        %4604 = vperm.xlu0 %4603, %v4490
        %v4605 = vpop.permute.xlu0 %4604
        %4608 = vset.pattern.permute.xlu0 0
        %4609 = vperm.xlu0 %4608, %v4491
        %v4610 = vpop.permute.xlu0 %4609
        %4613 = vset.pattern.permute.xlu0 0
        %4614 = vperm.xlu0 %4613, %v4492
        %v4615 = vpop.permute.xlu0 %4614
        %4618 = vset.pattern.permute.xlu0 0
        %4619 = vperm.xlu0 %4618, %v4493
        %v4620 = vpop.permute.xlu0 %4619
        %4623 = vset.pattern.permute.xlu0 0
        %4624 = vperm.xlu0 %4623, %v4494
        %v4625 = vpop.permute.xlu0 %4624
        %4628 = vset.pattern.permute.xlu0 0
        %4629 = vperm.xlu0 %4628, %v4495
        %v4630 = vpop.permute.xlu0 %4629
        %4633 = vset.pattern.permute.xlu0 0
        %4634 = vperm.xlu0 %4633, %v4496
        %v4635 = vpop.permute.xlu0 %4634
        %4638 = vset.pattern.permute.xlu0 0
        %4639 = vperm.xlu0 %4638, %v4497
        %v4640 = vpop.permute.xlu0 %4639
        %4643 = vset.pattern.permute.xlu0 0
        %4644 = vperm.xlu0 %4643, %v4498
        %v4645 = vpop.permute.xlu0 %4644
        %4648 = vset.pattern.permute.xlu0 0
        %4649 = vperm.xlu0 %4648, %v4499
        %v4650 = vpop.permute.xlu0 %4649
        %4653 = vset.pattern.permute.xlu0 0
        %4654 = vperm.xlu0 %4653, %v4500
        %v4655 = vpop.permute.xlu0 %4654
        %4658 = vset.pattern.permute.xlu0 0
        %4659 = vperm.xlu0 %4658, %v4501
        %v4660 = vpop.permute.xlu0 %4659
        %v4662 = vmul.f32 %v4437, %v4505
        %v4663 = vmul.f32 %v4438, %v4510
        %v4664 = vmul.f32 %v4439, %v4515
        %v4665 = vmul.f32 %v4440, %v4520
        %v4666 = vmul.f32 %v4441, %v4525
        %v4667 = vmul.f32 %v4442, %v4530
        %v4668 = vmul.f32 %v4443, %v4535
        %v4669 = vmul.f32 %v4444, %v4540
        %v4670 = vmul.f32 %v4445, %v4545
        %v4671 = vmul.f32 %v4446, %v4550
        %v4672 = vmul.f32 %v4447, %v4555
        %v4673 = vmul.f32 %v4448, %v4560
        %v4674 = vmul.f32 %v4449, %v4565
        %v4675 = vmul.f32 %v4450, %v4570
        %v4676 = vmul.f32 %v4451, %v4575
        %v4677 = vmul.f32 %v4452, %v4580
        %v4678 = vmul.f32 %v4453, %v4585
        %v4679 = vmul.f32 %v4454, %v4590
        %v4680 = vmul.f32 %v4455, %v4595
        %v4681 = vmul.f32 %v4456, %v4600
        %v4682 = vmul.f32 %v4457, %v4605
        %v4683 = vmul.f32 %v4458, %v4610
        %v4684 = vmul.f32 %v4459, %v4615
        %v4685 = vmul.f32 %v4460, %v4620
        %v4686 = vmul.f32 %v4461, %v4625
        %v4687 = vmul.f32 %v4462, %v4630
        %v4688 = vmul.f32 %v4463, %v4635
        %v4689 = vmul.f32 %v4464, %v4640
        %v4690 = vmul.f32 %v4465, %v4645
        %v4691 = vmul.f32 %v4466, %v4650
        %v4692 = vmul.f32 %v4467, %v4655
        %v4693 = vmul.f32 %v4468, %v4660
        %v4694 = vadd.f32 %v4404, %v4662
        %v4695 = vadd.f32 %v4405, %v4663
        %v4696 = vadd.f32 %v4406, %v4664
        %v4697 = vadd.f32 %v4407, %v4665
        %v4698 = vadd.f32 %v4408, %v4666
        %v4699 = vadd.f32 %v4409, %v4667
        %v4700 = vadd.f32 %v4410, %v4668
        %v4701 = vadd.f32 %v4411, %v4669
        %v4702 = vadd.f32 %v4412, %v4670
        %v4703 = vadd.f32 %v4413, %v4671
        %v4704 = vadd.f32 %v4414, %v4672
        %v4705 = vadd.f32 %v4415, %v4673
        %v4706 = vadd.f32 %v4416, %v4674
        %v4707 = vadd.f32 %v4417, %v4675
        %v4708 = vadd.f32 %v4418, %v4676
        %v4709 = vadd.f32 %v4419, %v4677
        %v4710 = vadd.f32 %v4420, %v4678
        %v4711 = vadd.f32 %v4421, %v4679
        %v4712 = vadd.f32 %v4422, %v4680
        %v4713 = vadd.f32 %v4423, %v4681
        %v4714 = vadd.f32 %v4424, %v4682
        %v4715 = vadd.f32 %v4425, %v4683
        %v4716 = vadd.f32 %v4426, %v4684
        %v4717 = vadd.f32 %v4427, %v4685
        %v4718 = vadd.f32 %v4428, %v4686
        %v4719 = vadd.f32 %v4429, %v4687
        %v4720 = vadd.f32 %v4430, %v4688
        %v4721 = vadd.f32 %v4431, %v4689
        %v4722 = vadd.f32 %v4432, %v4690
        %v4723 = vadd.f32 %v4433, %v4691
        %v4724 = vadd.f32 %v4434, %v4692
        %v4725 = vadd.f32 %v4435, %v4693
        %v4726 = vperm.slane %v2529, 0
        %v4727 = vmul.f32 %v3207, %v4726
        %v4728 = vmul.f32 %v3206, %v4726
        %v4729 = vmul.f32 %v3205, %v4726
        %v4730 = vmul.f32 %v3204, %v4726
        %v4731 = vmul.f32 %v3203, %v4726
        %v4732 = vmul.f32 %v3202, %v4726
        %v4733 = vmul.f32 %v3201, %v4726
        %v4734 = vmul.f32 %v3200, %v4726
        %v4735 = vmul.f32 %v3199, %v4726
        %v4736 = vmul.f32 %v3198, %v4726
        %v4737 = vmul.f32 %v3197, %v4726
        %v4738 = vmul.f32 %v3196, %v4726
        %v4739 = vmul.f32 %v3195, %v4726
        %v4740 = vmul.f32 %v3194, %v4726
        %v4741 = vmul.f32 %v3193, %v4726
        %v4742 = vmul.f32 %v3192, %v4726
        %v4743 = vmul.f32 %v3191, %v4726
        %v4744 = vmul.f32 %v3190, %v4726
        %v4745 = vmul.f32 %v3189, %v4726
        %v4746 = vmul.f32 %v3188, %v4726
        %v4747 = vmul.f32 %v3187, %v4726
        %v4748 = vmul.f32 %v3186, %v4726
        %v4749 = vmul.f32 %v3185, %v4726
        %v4750 = vmul.f32 %v3184, %v4726
        %v4751 = vmul.f32 %v3183, %v4726
        %v4752 = vmul.f32 %v3182, %v4726
        %v4753 = vmul.f32 %v3181, %v4726
        %v4754 = vmul.f32 %v3180, %v4726
        %v4755 = vmul.f32 %v3179, %v4726
        %v4756 = vmul.f32 %v3210, %v4726
        %v4757 = vmul.f32 %v3209, %v4726
        %v4758 = vmul.f32 %v3208, %v4726
        %s4759 = scalar_lea.vmem %s8, 2048
        %v4760 = vld [vmem:[%s4759] sm:$0xff]
        %v4761 = vld [vmem:[%s4759 + $0x8] sm:$0xff]
        %v4762 = vld [vmem:[%s4759 + $0x10] sm:$0xff]
        %v4763 = vld [vmem:[%s4759 + $0x18] sm:$0xff]
        %v4764 = vld [vmem:[%s4759 + $0x20] sm:$0xff]
        %v4765 = vld [vmem:[%s4759 + $0x28] sm:$0xff]
        %v4766 = vld [vmem:[%s4759 + $0x30] sm:$0xff]
        %v4767 = vld [vmem:[%s4759 + $0x38] sm:$0xff]
        %v4768 = vld [vmem:[%s4759 + $0x40] sm:$0xff]
        %v4769 = vld [vmem:[%s4759 + $0x48] sm:$0xff]
        %v4770 = vld [vmem:[%s4759 + $0x50] sm:$0xff]
        %v4771 = vld [vmem:[%s4759 + $0x58] sm:$0xff]
        %v4772 = vld [vmem:[%s4759 + $0x60] sm:$0xff]
        %v4773 = vld [vmem:[%s4759 + $0x68] sm:$0xff]
        %v4774 = vld [vmem:[%s4759 + $0x70] sm:$0xff]
        %v4775 = vld [vmem:[%s4759 + $0x78] sm:$0xff]
        %v4776 = vld [vmem:[%s4759 + $0x80] sm:$0xff]
        %v4777 = vld [vmem:[%s4759 + $0x88] sm:$0xff]
        %v4778 = vld [vmem:[%s4759 + $0x90] sm:$0xff]
        %v4779 = vld [vmem:[%s4759 + $0x98] sm:$0xff]
        %v4780 = vld [vmem:[%s4759 + $0xa0] sm:$0xff]
        %v4781 = vld [vmem:[%s4759 + $0xa8] sm:$0xff]
        %v4782 = vld [vmem:[%s4759 + $0xb0] sm:$0xff]
        %v4783 = vld [vmem:[%s4759 + $0xb8] sm:$0xff]
        %v4784 = vld [vmem:[%s4759 + $0xc0] sm:$0xff]
        %v4785 = vld [vmem:[%s4759 + $0xc8] sm:$0xff]
        %v4786 = vld [vmem:[%s4759 + $0xd0] sm:$0xff]
        %v4787 = vld [vmem:[%s4759 + $0xd8] sm:$0xff]
        %v4788 = vld [vmem:[%s4759 + $0xe0] sm:$0xff]
        %v4789 = vld [vmem:[%s4759 + $0xe8] sm:$0xff]
        %v4790 = vld [vmem:[%s4759 + $0xf0] sm:$0xff]
        %v4791 = vld [vmem:[%s4759 + $0xf8] sm:$0xff]
        %4793 = vset.pattern.permute.xlu0 0
        %4794 = vperm.xlu0 %4793, %v4760
        %v4795 = vpop.permute.xlu0 %4794
        %4798 = vset.pattern.permute.xlu0 0
        %4799 = vperm.xlu0 %4798, %v4761
        %v4800 = vpop.permute.xlu0 %4799
        %4803 = vset.pattern.permute.xlu0 0
        %4804 = vperm.xlu0 %4803, %v4762
        %v4805 = vpop.permute.xlu0 %4804
        %4808 = vset.pattern.permute.xlu0 0
        %4809 = vperm.xlu0 %4808, %v4763
        %v4810 = vpop.permute.xlu0 %4809
        %4813 = vset.pattern.permute.xlu0 0
        %4814 = vperm.xlu0 %4813, %v4764
        %v4815 = vpop.permute.xlu0 %4814
        %4818 = vset.pattern.permute.xlu0 0
        %4819 = vperm.xlu0 %4818, %v4765
        %v4820 = vpop.permute.xlu0 %4819
        %4823 = vset.pattern.permute.xlu0 0
        %4824 = vperm.xlu0 %4823, %v4766
        %v4825 = vpop.permute.xlu0 %4824
        %4828 = vset.pattern.permute.xlu0 0
        %4829 = vperm.xlu0 %4828, %v4767
        %v4830 = vpop.permute.xlu0 %4829
        %4833 = vset.pattern.permute.xlu0 0
        %4834 = vperm.xlu0 %4833, %v4768
        %v4835 = vpop.permute.xlu0 %4834
        %4838 = vset.pattern.permute.xlu0 0
        %4839 = vperm.xlu0 %4838, %v4769
        %v4840 = vpop.permute.xlu0 %4839
        %4843 = vset.pattern.permute.xlu0 0
        %4844 = vperm.xlu0 %4843, %v4770
        %v4845 = vpop.permute.xlu0 %4844
        %4848 = vset.pattern.permute.xlu0 0
        %4849 = vperm.xlu0 %4848, %v4771
        %v4850 = vpop.permute.xlu0 %4849
        %4853 = vset.pattern.permute.xlu0 0
        %4854 = vperm.xlu0 %4853, %v4772
        %v4855 = vpop.permute.xlu0 %4854
        %4858 = vset.pattern.permute.xlu0 0
        %4859 = vperm.xlu0 %4858, %v4773
        %v4860 = vpop.permute.xlu0 %4859
        %4863 = vset.pattern.permute.xlu0 0
        %4864 = vperm.xlu0 %4863, %v4774
        %v4865 = vpop.permute.xlu0 %4864
        %4868 = vset.pattern.permute.xlu0 0
        %4869 = vperm.xlu0 %4868, %v4775
        %v4870 = vpop.permute.xlu0 %4869
        %4873 = vset.pattern.permute.xlu0 0
        %4874 = vperm.xlu0 %4873, %v4776
        %v4875 = vpop.permute.xlu0 %4874
        %4878 = vset.pattern.permute.xlu0 0
        %4879 = vperm.xlu0 %4878, %v4777
        %v4880 = vpop.permute.xlu0 %4879
        %4883 = vset.pattern.permute.xlu0 0
        %4884 = vperm.xlu0 %4883, %v4778
        %v4885 = vpop.permute.xlu0 %4884
        %4888 = vset.pattern.permute.xlu0 0
        %4889 = vperm.xlu0 %4888, %v4779
        %v4890 = vpop.permute.xlu0 %4889
        %4893 = vset.pattern.permute.xlu0 0
        %4894 = vperm.xlu0 %4893, %v4780
        %v4895 = vpop.permute.xlu0 %4894
        %4898 = vset.pattern.permute.xlu0 0
        %4899 = vperm.xlu0 %4898, %v4781
        %v4900 = vpop.permute.xlu0 %4899
        %4903 = vset.pattern.permute.xlu0 0
        %4904 = vperm.xlu0 %4903, %v4782
        %v4905 = vpop.permute.xlu0 %4904
        %4908 = vset.pattern.permute.xlu0 0
        %4909 = vperm.xlu0 %4908, %v4783
        %v4910 = vpop.permute.xlu0 %4909
        %4913 = vset.pattern.permute.xlu0 0
        %4914 = vperm.xlu0 %4913, %v4784
        %v4915 = vpop.permute.xlu0 %4914
        %4918 = vset.pattern.permute.xlu0 0
        %4919 = vperm.xlu0 %4918, %v4785
        %v4920 = vpop.permute.xlu0 %4919
        %4923 = vset.pattern.permute.xlu0 0
        %4924 = vperm.xlu0 %4923, %v4786
        %v4925 = vpop.permute.xlu0 %4924
        %4928 = vset.pattern.permute.xlu0 0
        %4929 = vperm.xlu0 %4928, %v4787
        %v4930 = vpop.permute.xlu0 %4929
        %4933 = vset.pattern.permute.xlu0 0
        %4934 = vperm.xlu0 %4933, %v4788
        %v4935 = vpop.permute.xlu0 %4934
        %4938 = vset.pattern.permute.xlu0 0
        %4939 = vperm.xlu0 %4938, %v4789
        %v4940 = vpop.permute.xlu0 %4939
        %4943 = vset.pattern.permute.xlu0 0
        %4944 = vperm.xlu0 %4943, %v4790
        %v4945 = vpop.permute.xlu0 %4944
        %4948 = vset.pattern.permute.xlu0 0
        %4949 = vperm.xlu0 %4948, %v4791
        %v4950 = vpop.permute.xlu0 %4949
        %v4952 = vmul.f32 %v4727, %v4795
        %v4953 = vmul.f32 %v4728, %v4800
        %v4954 = vmul.f32 %v4729, %v4805
        %v4955 = vmul.f32 %v4730, %v4810
        %v4956 = vmul.f32 %v4731, %v4815
        %v4957 = vmul.f32 %v4732, %v4820
        %v4958 = vmul.f32 %v4733, %v4825
        %v4959 = vmul.f32 %v4734, %v4830
        %v4960 = vmul.f32 %v4735, %v4835
        %v4961 = vmul.f32 %v4736, %v4840
        %v4962 = vmul.f32 %v4737, %v4845
        %v4963 = vmul.f32 %v4738, %v4850
        %v4964 = vmul.f32 %v4739, %v4855
        %v4965 = vmul.f32 %v4740, %v4860
        %v4966 = vmul.f32 %v4741, %v4865
        %v4967 = vmul.f32 %v4742, %v4870
        %v4968 = vmul.f32 %v4743, %v4875
        %v4969 = vmul.f32 %v4744, %v4880
        %v4970 = vmul.f32 %v4745, %v4885
        %v4971 = vmul.f32 %v4746, %v4890
        %v4972 = vmul.f32 %v4747, %v4895
        %v4973 = vmul.f32 %v4748, %v4900
        %v4974 = vmul.f32 %v4749, %v4905
        %v4975 = vmul.f32 %v4750, %v4910
        %v4976 = vmul.f32 %v4751, %v4915
        %v4977 = vmul.f32 %v4752, %v4920
        %v4978 = vmul.f32 %v4753, %v4925
        %v4979 = vmul.f32 %v4754, %v4930
        %v4980 = vmul.f32 %v4755, %v4935
        %v4981 = vmul.f32 %v4756, %v4940
        %v4982 = vmul.f32 %v4757, %v4945
        %v4983 = vmul.f32 %v4758, %v4950
        %v4984 = vadd.f32 %v4694, %v4952
        %v4985 = vadd.f32 %v4695, %v4953
        %v4986 = vadd.f32 %v4696, %v4954
        %v4987 = vadd.f32 %v4697, %v4955
        %v4988 = vadd.f32 %v4698, %v4956
        %v4989 = vadd.f32 %v4699, %v4957
        %v4990 = vadd.f32 %v4700, %v4958
        %v4991 = vadd.f32 %v4701, %v4959
        %v4992 = vadd.f32 %v4702, %v4960
        %v4993 = vadd.f32 %v4703, %v4961
        %v4994 = vadd.f32 %v4704, %v4962
        %v4995 = vadd.f32 %v4705, %v4963
        %v4996 = vadd.f32 %v4706, %v4964
        %v4997 = vadd.f32 %v4707, %v4965
        %v4998 = vadd.f32 %v4708, %v4966
        %v4999 = vadd.f32 %v4709, %v4967
        %v5000 = vadd.f32 %v4710, %v4968
        %v5001 = vadd.f32 %v4711, %v4969
        %v5002 = vadd.f32 %v4712, %v4970
        %v5003 = vadd.f32 %v4713, %v4971
        %v5004 = vadd.f32 %v4714, %v4972
        %v5005 = vadd.f32 %v4715, %v4973
        %v5006 = vadd.f32 %v4716, %v4974
        %v5007 = vadd.f32 %v4717, %v4975
        %v5008 = vadd.f32 %v4718, %v4976
        %v5009 = vadd.f32 %v4719, %v4977
        %v5010 = vadd.f32 %v4720, %v4978
        %v5011 = vadd.f32 %v4721, %v4979
        %v5012 = vadd.f32 %v4722, %v4980
        %v5013 = vadd.f32 %v4723, %v4981
        %v5014 = vadd.f32 %v4724, %v4982
        %v5015 = vadd.f32 %v4725, %v4983
        %v5016 = vadd.f32 %v4984, %v4985
        %v5017 = vadd.f32 %v5016, %v4986
        %v5018 = vadd.f32 %v5017, %v4987
        %v5019 = vadd.f32 %v5018, %v4988
        %v5020 = vadd.f32 %v5019, %v4989
        %v5021 = vadd.f32 %v5020, %v4990
        %v5022 = vadd.f32 %v5021, %v4991
        %v5023 = vadd.f32 %v5022, %v4992
        %v5024 = vadd.f32 %v5023, %v4993
        %v5025 = vadd.f32 %v5024, %v4994
        %v5026 = vadd.f32 %v5025, %v4995
        %v5027 = vadd.f32 %v5026, %v4996
        %v5028 = vadd.f32 %v5027, %v4997
        %v5029 = vadd.f32 %v5028, %v4998
        %v5030 = vadd.f32 %v5029, %v4999
        %v5031 = vadd.f32 %v5030, %v5000
        %v5032 = vadd.f32 %v5031, %v5001
        %v5033 = vadd.f32 %v5032, %v5002
        %v5034 = vadd.f32 %v5033, %v5003
        %v5035 = vadd.f32 %v5034, %v5004
        %v5036 = vadd.f32 %v5035, %v5005
        %v5037 = vadd.f32 %v5036, %v5006
        %v5038 = vadd.f32 %v5037, %v5007
        %v5039 = vadd.f32 %v5038, %v5008
        %v5040 = vadd.f32 %v5039, %v5009
        %v5041 = vadd.f32 %v5040, %v5010
        %v5042 = vadd.f32 %v5041, %v5011
        %v5043 = vadd.f32 %v5042, %v5012
        %v5044 = vadd.f32 %v5043, %v5013
        %v5045 = vadd.f32 %v5044, %v5014
        %v5046 = vadd.f32 %v5045, %v5015
        %v5047 = vrot.slane %v5046, 4
        %v5048 = vadd.f32 %v5046, %v5047
        %v5049 = vrot.slane %v5048, 2
        %v5050 = vadd.f32 %v5048, %v5049
        %v5051 = vrot.slane %v5050, 1
        %v5052 = vadd.f32 %v5050, %v5051
        %v5053 = vand.u32 %v1627, 4294901760
        %5054 = vmatpush.msra.mxu0 %v5053
        %v5055 = vand.u32 %v1626, 4294901760
        %5056 = vmatpush.msra.mxu0 %v5055
        %v5057 = vand.u32 %v1625, 4294901760
        %5058 = vmatpush.msra.mxu0 %v5057
        %v5059 = vand.u32 %v1624, 4294901760
        %5060 = vmatpush.msra.mxu0 %v5059
        %v5061 = vand.u32 %v1623, 4294901760
        %5062 = vmatpush.msra.mxu0 %v5061
        %v5063 = vand.u32 %v1622, 4294901760
        %5064 = vmatpush.msra.mxu0 %v5063
        %v5065 = vand.u32 %v1621, 4294901760
        %5066 = vmatpush.msra.mxu0 %v5065
        %v5067 = vand.u32 %v1620, 4294901760
        %5068 = vmatpush.msra.mxu0 %v5067
        %v5069 = vand.u32 %v1619, 4294901760
        %5070 = vmatpush.msra.mxu0 %v5069
        %v5071 = vand.u32 %v1618, 4294901760
        %5072 = vmatpush.msra.mxu0 %v5071
        %v5073 = vand.u32 %v1617, 4294901760
        %5074 = vmatpush.msra.mxu0 %v5073
        %v5075 = vand.u32 %v1616, 4294901760
        %5076 = vmatpush.msra.mxu0 %v5075
        %v5077 = vand.u32 %v1615, 4294901760
        %5078 = vmatpush.msra.mxu0 %v5077
        %v5079 = vand.u32 %v1614, 4294901760
        %5080 = vmatpush.msra.mxu0 %v5079
        %v5081 = vand.u32 %v1613, 4294901760
        %5082 = vmatpush.msra.mxu0 %v5081
        %v5083 = vand.u32 %v1612, 4294901760
        %5084 = vmatpush.msra.mxu0 %v5083
        %v5085 = vand.u32 %v5052, 4294901760
        %v5086 = vsub.f32 %v5052, %v5085
        %v5087 = vand.u32 %v5086, 4294901760
        %v5088 = vsub.f32 %v5086, %v5087
        %v5089 = vand.u32 %v5088, 4294901760
        %5090 = vmatmul.f32.gmra.mxu0 %v5089
        %v5091 = vpop.f32.mrf.mxu0
        %v5092 = vadd.f32 0.0, %v5091
        %5093 = vdwg.mxu0
        %v5094 = vand.u32 %v1627, 4294901760
        %v5095 = vsub.f32 %v1627, %v5094
        %v5096 = vand.u32 %v5095, 4294901760
        %v5097 = vsub.f32 %v5095, %v5096
        %v5098 = vand.u32 %v5097, 4294901760
        %5099 = vmatpush.msra.mxu0 %v5098
        %v5100 = vand.u32 %v1626, 4294901760
        %v5101 = vsub.f32 %v1626, %v5100
        %v5102 = vand.u32 %v5101, 4294901760
        %v5103 = vsub.f32 %v5101, %v5102
        %v5104 = vand.u32 %v5103, 4294901760
        %5105 = vmatpush.msra.mxu0 %v5104
        %v5106 = vand.u32 %v1625, 4294901760
        %v5107 = vsub.f32 %v1625, %v5106
        %v5108 = vand.u32 %v5107, 4294901760
        %v5109 = vsub.f32 %v5107, %v5108
        %v5110 = vand.u32 %v5109, 4294901760
        %5111 = vmatpush.msra.mxu0 %v5110
        %v5112 = vand.u32 %v1624, 4294901760
        %v5113 = vsub.f32 %v1624, %v5112
        %v5114 = vand.u32 %v5113, 4294901760
        %v5115 = vsub.f32 %v5113, %v5114
        %v5116 = vand.u32 %v5115, 4294901760
        %5117 = vmatpush.msra.mxu0 %v5116
        %v5118 = vand.u32 %v1623, 4294901760
        %v5119 = vsub.f32 %v1623, %v5118
        %v5120 = vand.u32 %v5119, 4294901760
        %v5121 = vsub.f32 %v5119, %v5120
        %v5122 = vand.u32 %v5121, 4294901760
        %5123 = vmatpush.msra.mxu0 %v5122
        %v5124 = vand.u32 %v1622, 4294901760
        %v5125 = vsub.f32 %v1622, %v5124
        %v5126 = vand.u32 %v5125, 4294901760
        %v5127 = vsub.f32 %v5125, %v5126
        %v5128 = vand.u32 %v5127, 4294901760
        %5129 = vmatpush.msra.mxu0 %v5128
        %v5130 = vand.u32 %v1621, 4294901760
        %v5131 = vsub.f32 %v1621, %v5130
        %v5132 = vand.u32 %v5131, 4294901760
        %v5133 = vsub.f32 %v5131, %v5132
        %v5134 = vand.u32 %v5133, 4294901760
        %5135 = vmatpush.msra.mxu0 %v5134
        %v5136 = vand.u32 %v1620, 4294901760
        %v5137 = vsub.f32 %v1620, %v5136
        %v5138 = vand.u32 %v5137, 4294901760
        %v5139 = vsub.f32 %v5137, %v5138
        %v5140 = vand.u32 %v5139, 4294901760
        %5141 = vmatpush.msra.mxu0 %v5140
        %v5142 = vand.u32 %v1619, 4294901760
        %v5143 = vsub.f32 %v1619, %v5142
        %v5144 = vand.u32 %v5143, 4294901760
        %v5145 = vsub.f32 %v5143, %v5144
        %v5146 = vand.u32 %v5145, 4294901760
        %5147 = vmatpush.msra.mxu0 %v5146
        %v5148 = vand.u32 %v1618, 4294901760
        %v5149 = vsub.f32 %v1618, %v5148
        %v5150 = vand.u32 %v5149, 4294901760
        %v5151 = vsub.f32 %v5149, %v5150
        %v5152 = vand.u32 %v5151, 4294901760
        %5153 = vmatpush.msra.mxu0 %v5152
        %v5154 = vand.u32 %v1617, 4294901760
        %v5155 = vsub.f32 %v1617, %v5154
        %v5156 = vand.u32 %v5155, 4294901760
        %v5157 = vsub.f32 %v5155, %v5156
        %v5158 = vand.u32 %v5157, 4294901760
        %5159 = vmatpush.msra.mxu0 %v5158
        %v5160 = vand.u32 %v1616, 4294901760
        %v5161 = vsub.f32 %v1616, %v5160
        %v5162 = vand.u32 %v5161, 4294901760
        %v5163 = vsub.f32 %v5161, %v5162
        %v5164 = vand.u32 %v5163, 4294901760
        %5165 = vmatpush.msra.mxu0 %v5164
        %v5166 = vand.u32 %v1615, 4294901760
        %v5167 = vsub.f32 %v1615, %v5166
        %v5168 = vand.u32 %v5167, 4294901760
        %v5169 = vsub.f32 %v5167, %v5168
        %v5170 = vand.u32 %v5169, 4294901760
        %5171 = vmatpush.msra.mxu0 %v5170
        %v5172 = vand.u32 %v1614, 4294901760
        %v5173 = vsub.f32 %v1614, %v5172
        %v5174 = vand.u32 %v5173, 4294901760
        %v5175 = vsub.f32 %v5173, %v5174
        %v5176 = vand.u32 %v5175, 4294901760
        %5177 = vmatpush.msra.mxu0 %v5176
        %v5178 = vand.u32 %v1613, 4294901760
        %v5179 = vsub.f32 %v1613, %v5178
        %v5180 = vand.u32 %v5179, 4294901760
        %v5181 = vsub.f32 %v5179, %v5180
        %v5182 = vand.u32 %v5181, 4294901760
        %5183 = vmatpush.msra.mxu0 %v5182
        %v5184 = vand.u32 %v1612, 4294901760
        %v5185 = vsub.f32 %v1612, %v5184
        %v5186 = vand.u32 %v5185, 4294901760
        %v5187 = vsub.f32 %v5185, %v5186
        %v5188 = vand.u32 %v5187, 4294901760
        %5189 = vmatpush.msra.mxu0 %v5188
        %v5190 = vand.u32 %v5052, 4294901760
        %5191 = vmatmul.f32.gmra.mxu0 %v5190
        %v5192 = vpop.f32.mrf.mxu0
        %v5193 = vadd.f32 %v5092, %v5192
        %5194 = vdwg.mxu0
        %v5195 = vand.u32 %v1627, 4294901760
        %v5196 = vsub.f32 %v1627, %v5195
        %5197 = vmatpush.msra.mxu0 %v5196
        %v5198 = vand.u32 %v1626, 4294901760
        %v5199 = vsub.f32 %v1626, %v5198
        %5200 = vmatpush.msra.mxu0 %v5199
        %v5201 = vand.u32 %v1625, 4294901760
        %v5202 = vsub.f32 %v1625, %v5201
        %5203 = vmatpush.msra.mxu0 %v5202
        %v5204 = vand.u32 %v1624, 4294901760
        %v5205 = vsub.f32 %v1624, %v5204
        %5206 = vmatpush.msra.mxu0 %v5205
        %v5207 = vand.u32 %v1623, 4294901760
        %v5208 = vsub.f32 %v1623, %v5207
        %5209 = vmatpush.msra.mxu0 %v5208
        %v5210 = vand.u32 %v1622, 4294901760
        %v5211 = vsub.f32 %v1622, %v5210
        %5212 = vmatpush.msra.mxu0 %v5211
        %v5213 = vand.u32 %v1621, 4294901760
        %v5214 = vsub.f32 %v1621, %v5213
        %5215 = vmatpush.msra.mxu0 %v5214
        %v5216 = vand.u32 %v1620, 4294901760
        %v5217 = vsub.f32 %v1620, %v5216
        %5218 = vmatpush.msra.mxu0 %v5217
        %v5219 = vand.u32 %v1619, 4294901760
        %v5220 = vsub.f32 %v1619, %v5219
        %5221 = vmatpush.msra.mxu0 %v5220
        %v5222 = vand.u32 %v1618, 4294901760
        %v5223 = vsub.f32 %v1618, %v5222
        %5224 = vmatpush.msra.mxu0 %v5223
        %v5225 = vand.u32 %v1617, 4294901760
        %v5226 = vsub.f32 %v1617, %v5225
        %5227 = vmatpush.msra.mxu0 %v5226
        %v5228 = vand.u32 %v1616, 4294901760
        %v5229 = vsub.f32 %v1616, %v5228
        %5230 = vmatpush.msra.mxu0 %v5229
        %v5231 = vand.u32 %v1615, 4294901760
        %v5232 = vsub.f32 %v1615, %v5231
        %5233 = vmatpush.msra.mxu0 %v5232
        %v5234 = vand.u32 %v1614, 4294901760
        %v5235 = vsub.f32 %v1614, %v5234
        %5236 = vmatpush.msra.mxu0 %v5235
        %v5237 = vand.u32 %v1613, 4294901760
        %v5238 = vsub.f32 %v1613, %v5237
        %5239 = vmatpush.msra.mxu0 %v5238
        %v5240 = vand.u32 %v1612, 4294901760
        %v5241 = vsub.f32 %v1612, %v5240
        %5242 = vmatpush.msra.mxu0 %v5241
        %v5243 = vand.u32 %v5052, 4294901760
        %v5244 = vsub.f32 %v5052, %v5243
        %5245 = vmatmul.f32.gmra.mxu0 %v5244
        %v5246 = vpop.f32.mrf.mxu0
        %v5247 = vadd.f32 %v5193, %v5246
        %5248 = vdwg.mxu0
        %v5249 = vand.u32 %v1627, 4294901760
        %5250 = vmatpush.msra.mxu0 %v5249
        %v5251 = vand.u32 %v1626, 4294901760
        %5252 = vmatpush.msra.mxu0 %v5251
        %v5253 = vand.u32 %v1625, 4294901760
        %5254 = vmatpush.msra.mxu0 %v5253
        %v5255 = vand.u32 %v1624, 4294901760
        %5256 = vmatpush.msra.mxu0 %v5255
        %v5257 = vand.u32 %v1623, 4294901760
        %5258 = vmatpush.msra.mxu0 %v5257
        %v5259 = vand.u32 %v1622, 4294901760
        %5260 = vmatpush.msra.mxu0 %v5259
        %v5261 = vand.u32 %v1621, 4294901760
        %5262 = vmatpush.msra.mxu0 %v5261
        %v5263 = vand.u32 %v1620, 4294901760
        %5264 = vmatpush.msra.mxu0 %v5263
        %v5265 = vand.u32 %v1619, 4294901760
        %5266 = vmatpush.msra.mxu0 %v5265
        %v5267 = vand.u32 %v1618, 4294901760
        %5268 = vmatpush.msra.mxu0 %v5267
        %v5269 = vand.u32 %v1617, 4294901760
        %5270 = vmatpush.msra.mxu0 %v5269
        %v5271 = vand.u32 %v1616, 4294901760
        %5272 = vmatpush.msra.mxu0 %v5271
        %v5273 = vand.u32 %v1615, 4294901760
        %5274 = vmatpush.msra.mxu0 %v5273
        %v5275 = vand.u32 %v1614, 4294901760
        %5276 = vmatpush.msra.mxu0 %v5275
        %v5277 = vand.u32 %v1613, 4294901760
        %5278 = vmatpush.msra.mxu0 %v5277
        %v5279 = vand.u32 %v1612, 4294901760
        %5280 = vmatpush.msra.mxu0 %v5279
        %v5281 = vand.u32 %v5052, 4294901760
        %v5282 = vsub.f32 %v5052, %v5281
        %v5283 = vand.u32 %v5282, 4294901760
        %5284 = vmatmul.f32.gmra.mxu0 %v5283
        %v5285 = vpop.f32.mrf.mxu0
        %v5286 = vadd.f32 %v5247, %v5285
        %5287 = vdwg.mxu0
        %v5288 = vand.u32 %v1627, 4294901760
        %v5289 = vsub.f32 %v1627, %v5288
        %v5290 = vand.u32 %v5289, 4294901760
        %5291 = vmatpush.msra.mxu0 %v5290
        %v5292 = vand.u32 %v1626, 4294901760
        %v5293 = vsub.f32 %v1626, %v5292
        %v5294 = vand.u32 %v5293, 4294901760
        %5295 = vmatpush.msra.mxu0 %v5294
        %v5296 = vand.u32 %v1625, 4294901760
        %v5297 = vsub.f32 %v1625, %v5296
        %v5298 = vand.u32 %v5297, 4294901760
        %5299 = vmatpush.msra.mxu0 %v5298
        %v5300 = vand.u32 %v1624, 4294901760
        %v5301 = vsub.f32 %v1624, %v5300
        %v5302 = vand.u32 %v5301, 4294901760
        %5303 = vmatpush.msra.mxu0 %v5302
        %v5304 = vand.u32 %v1623, 4294901760
        %v5305 = vsub.f32 %v1623, %v5304
        %v5306 = vand.u32 %v5305, 4294901760
        %5307 = vmatpush.msra.mxu0 %v5306
        %v5308 = vand.u32 %v1622, 4294901760
        %v5309 = vsub.f32 %v1622, %v5308
        %v5310 = vand.u32 %v5309, 4294901760
        %5311 = vmatpush.msra.mxu0 %v5310
        %v5312 = vand.u32 %v1621, 4294901760
        %v5313 = vsub.f32 %v1621, %v5312
        %v5314 = vand.u32 %v5313, 4294901760
        %5315 = vmatpush.msra.mxu0 %v5314
        %v5316 = vand.u32 %v1620, 4294901760
        %v5317 = vsub.f32 %v1620, %v5316
        %v5318 = vand.u32 %v5317, 4294901760
        %5319 = vmatpush.msra.mxu0 %v5318
        %v5320 = vand.u32 %v1619, 4294901760
        %v5321 = vsub.f32 %v1619, %v5320
        %v5322 = vand.u32 %v5321, 4294901760
        %5323 = vmatpush.msra.mxu0 %v5322
        %v5324 = vand.u32 %v1618, 4294901760
        %v5325 = vsub.f32 %v1618, %v5324
        %v5326 = vand.u32 %v5325, 4294901760
        %5327 = vmatpush.msra.mxu0 %v5326
        %v5328 = vand.u32 %v1617, 4294901760
        %v5329 = vsub.f32 %v1617, %v5328
        %v5330 = vand.u32 %v5329, 4294901760
        %5331 = vmatpush.msra.mxu0 %v5330
        %v5332 = vand.u32 %v1616, 4294901760
        %v5333 = vsub.f32 %v1616, %v5332
        %v5334 = vand.u32 %v5333, 4294901760
        %5335 = vmatpush.msra.mxu0 %v5334
        %v5336 = vand.u32 %v1615, 4294901760
        %v5337 = vsub.f32 %v1615, %v5336
        %v5338 = vand.u32 %v5337, 4294901760
        %5339 = vmatpush.msra.mxu0 %v5338
        %v5340 = vand.u32 %v1614, 4294901760
        %v5341 = vsub.f32 %v1614, %v5340
        %v5342 = vand.u32 %v5341, 4294901760
        %5343 = vmatpush.msra.mxu0 %v5342
        %v5344 = vand.u32 %v1613, 4294901760
        %v5345 = vsub.f32 %v1613, %v5344
        %v5346 = vand.u32 %v5345, 4294901760
        %5347 = vmatpush.msra.mxu0 %v5346
        %v5348 = vand.u32 %v1612, 4294901760
        %v5349 = vsub.f32 %v1612, %v5348
        %v5350 = vand.u32 %v5349, 4294901760
        %5351 = vmatpush.msra.mxu0 %v5350
        %v5352 = vand.u32 %v5052, 4294901760
        %5353 = vmatmul.f32.gmra.mxu0 %v5352
        %v5354 = vpop.f32.mrf.mxu0
        %v5355 = vadd.f32 %v5286, %v5354
        %5356 = vdwg.mxu0
        %v5357 = vand.u32 %v1627, 4294901760
        %5358 = vmatpush.msra.mxu0 %v5357
        %v5359 = vand.u32 %v1626, 4294901760
        %5360 = vmatpush.msra.mxu0 %v5359
        %v5361 = vand.u32 %v1625, 4294901760
        %5362 = vmatpush.msra.mxu0 %v5361
        %v5363 = vand.u32 %v1624, 4294901760
        %5364 = vmatpush.msra.mxu0 %v5363
        %v5365 = vand.u32 %v1623, 4294901760
        %5366 = vmatpush.msra.mxu0 %v5365
        %v5367 = vand.u32 %v1622, 4294901760
        %5368 = vmatpush.msra.mxu0 %v5367
        %v5369 = vand.u32 %v1621, 4294901760
        %5370 = vmatpush.msra.mxu0 %v5369
        %v5371 = vand.u32 %v1620, 4294901760
        %5372 = vmatpush.msra.mxu0 %v5371
        %v5373 = vand.u32 %v1619, 4294901760
        %5374 = vmatpush.msra.mxu0 %v5373
        %v5375 = vand.u32 %v1618, 4294901760
        %5376 = vmatpush.msra.mxu0 %v5375
        %v5377 = vand.u32 %v1617, 4294901760
        %5378 = vmatpush.msra.mxu0 %v5377
        %v5379 = vand.u32 %v1616, 4294901760
        %5380 = vmatpush.msra.mxu0 %v5379
        %v5381 = vand.u32 %v1615, 4294901760
        %5382 = vmatpush.msra.mxu0 %v5381
        %v5383 = vand.u32 %v1614, 4294901760
        %5384 = vmatpush.msra.mxu0 %v5383
        %v5385 = vand.u32 %v1613, 4294901760
        %5386 = vmatpush.msra.mxu0 %v5385
        %v5387 = vand.u32 %v1612, 4294901760
        %5388 = vmatpush.msra.mxu0 %v5387
        %v5389 = vand.u32 %v5052, 4294901760
        %5390 = vmatmul.f32.gmra.mxu0 %v5389
        %v5391 = vpop.f32.mrf.mxu0
        %v5392 = vadd.f32 %v5355, %v5391
        %5393 = vdwg.mxu0
        %v5394 = vperm.slane %v5392, 0
        %v5395 = vsub.f32 %v4984, %v5394
        %v5396 = vsub.f32 %v4985, %v5394
        %v5397 = vsub.f32 %v4986, %v5394
        %v5398 = vsub.f32 %v4987, %v5394
        %v5399 = vsub.f32 %v4988, %v5394
        %v5400 = vsub.f32 %v4989, %v5394
        %v5401 = vsub.f32 %v4990, %v5394
        %v5402 = vsub.f32 %v4991, %v5394
        %v5403 = vsub.f32 %v4992, %v5394
        %v5404 = vsub.f32 %v4993, %v5394
        %v5405 = vsub.f32 %v4994, %v5394
        %v5406 = vsub.f32 %v4995, %v5394
        %v5407 = vsub.f32 %v4996, %v5394
        %v5408 = vsub.f32 %v4997, %v5394
        %v5409 = vsub.f32 %v4998, %v5394
        %v5410 = vsub.f32 %v4999, %v5394
        %v5411 = vsub.f32 %v5000, %v5394
        %v5412 = vsub.f32 %v5001, %v5394
        %v5413 = vsub.f32 %v5002, %v5394
        %v5414 = vsub.f32 %v5003, %v5394
        %v5415 = vsub.f32 %v5004, %v5394
        %v5416 = vsub.f32 %v5005, %v5394
        %v5417 = vsub.f32 %v5006, %v5394
        %v5418 = vsub.f32 %v5007, %v5394
        %v5419 = vsub.f32 %v5008, %v5394
        %v5420 = vsub.f32 %v5009, %v5394
        %v5421 = vsub.f32 %v5010, %v5394
        %v5422 = vsub.f32 %v5011, %v5394
        %v5423 = vsub.f32 %v5012, %v5394
        %v5424 = vsub.f32 %v5013, %v5394
        %v5425 = vsub.f32 %v5014, %v5394
        %v5426 = vsub.f32 %v5015, %v5394
        %v5427 = vmul.f32 %v5395, %v5395
        %v5428 = vmul.f32 %v5396, %v5396
        %v5429 = vmul.f32 %v5397, %v5397
        %v5430 = vmul.f32 %v5398, %v5398
        %v5431 = vmul.f32 %v5399, %v5399
        %v5432 = vmul.f32 %v5400, %v5400
        %v5433 = vmul.f32 %v5401, %v5401
        %v5434 = vmul.f32 %v5402, %v5402
        %v5435 = vmul.f32 %v5403, %v5403
        %v5436 = vmul.f32 %v5404, %v5404
        %v5437 = vmul.f32 %v5405, %v5405
        %v5438 = vmul.f32 %v5406, %v5406
        %v5439 = vmul.f32 %v5407, %v5407
        %v5440 = vmul.f32 %v5408, %v5408
        %v5441 = vmul.f32 %v5409, %v5409
        %v5442 = vmul.f32 %v5410, %v5410
        %v5443 = vmul.f32 %v5411, %v5411
        %v5444 = vmul.f32 %v5412, %v5412
        %v5445 = vmul.f32 %v5413, %v5413
        %v5446 = vmul.f32 %v5414, %v5414
        %v5447 = vmul.f32 %v5415, %v5415
        %v5448 = vmul.f32 %v5416, %v5416
        %v5449 = vmul.f32 %v5417, %v5417
        %v5450 = vmul.f32 %v5418, %v5418
        %v5451 = vmul.f32 %v5419, %v5419
        %v5452 = vmul.f32 %v5420, %v5420
        %v5453 = vmul.f32 %v5421, %v5421
        %v5454 = vmul.f32 %v5422, %v5422
        %v5455 = vmul.f32 %v5423, %v5423
        %v5456 = vmul.f32 %v5424, %v5424
        %v5457 = vmul.f32 %v5425, %v5425
        %v5458 = vmul.f32 %v5426, %v5426
        %v5459 = vadd.f32 %v5427, %v5428
        %v5460 = vadd.f32 %v5459, %v5429
        %v5461 = vadd.f32 %v5460, %v5430
        %v5462 = vadd.f32 %v5461, %v5431
        %v5463 = vadd.f32 %v5462, %v5432
        %v5464 = vadd.f32 %v5463, %v5433
        %v5465 = vadd.f32 %v5464, %v5434
        %v5466 = vadd.f32 %v5465, %v5435
        %v5467 = vadd.f32 %v5466, %v5436
        %v5468 = vadd.f32 %v5467, %v5437
        %v5469 = vadd.f32 %v5468, %v5438
        %v5470 = vadd.f32 %v5469, %v5439
        %v5471 = vadd.f32 %v5470, %v5440
        %v5472 = vadd.f32 %v5471, %v5441
        %v5473 = vadd.f32 %v5472, %v5442
        %v5474 = vadd.f32 %v5473, %v5443
        %v5475 = vadd.f32 %v5474, %v5444
        %v5476 = vadd.f32 %v5475, %v5445
        %v5477 = vadd.f32 %v5476, %v5446
        %v5478 = vadd.f32 %v5477, %v5447
        %v5479 = vadd.f32 %v5478, %v5448
        %v5480 = vadd.f32 %v5479, %v5449
        %v5481 = vadd.f32 %v5480, %v5450
        %v5482 = vadd.f32 %v5481, %v5451
        %v5483 = vadd.f32 %v5482, %v5452
        %v5484 = vadd.f32 %v5483, %v5453
        %v5485 = vadd.f32 %v5484, %v5454
        %v5486 = vadd.f32 %v5485, %v5455
        %v5487 = vadd.f32 %v5486, %v5456
        %v5488 = vadd.f32 %v5487, %v5457
        %v5489 = vadd.f32 %v5488, %v5458
        %v5490 = vrot.slane %v5489, 4
        %v5491 = vadd.f32 %v5489, %v5490
        %v5492 = vrot.slane %v5491, 2
        %v5493 = vadd.f32 %v5491, %v5492
        %v5494 = vrot.slane %v5493, 1
        %v5495 = vadd.f32 %v5493, %v5494
        %v5496 = vand.u32 %v1627, 4294901760
        %5497 = vmatpush.msra.mxu0 %v5496
        %v5498 = vand.u32 %v1626, 4294901760
        %5499 = vmatpush.msra.mxu0 %v5498
        %v5500 = vand.u32 %v1625, 4294901760
        %5501 = vmatpush.msra.mxu0 %v5500
        %v5502 = vand.u32 %v1624, 4294901760
        %5503 = vmatpush.msra.mxu0 %v5502
        %v5504 = vand.u32 %v1623, 4294901760
        %5505 = vmatpush.msra.mxu0 %v5504
        %v5506 = vand.u32 %v1622, 4294901760
        %5507 = vmatpush.msra.mxu0 %v5506
        %v5508 = vand.u32 %v1621, 4294901760
        %5509 = vmatpush.msra.mxu0 %v5508
        %v5510 = vand.u32 %v1620, 4294901760
        %5511 = vmatpush.msra.mxu0 %v5510
        %v5512 = vand.u32 %v1619, 4294901760
        %5513 = vmatpush.msra.mxu0 %v5512
        %v5514 = vand.u32 %v1618, 4294901760
        %5515 = vmatpush.msra.mxu0 %v5514
        %v5516 = vand.u32 %v1617, 4294901760
        %5517 = vmatpush.msra.mxu0 %v5516
        %v5518 = vand.u32 %v1616, 4294901760
        %5519 = vmatpush.msra.mxu0 %v5518
        %v5520 = vand.u32 %v1615, 4294901760
        %5521 = vmatpush.msra.mxu0 %v5520
        %v5522 = vand.u32 %v1614, 4294901760
        %5523 = vmatpush.msra.mxu0 %v5522
        %v5524 = vand.u32 %v1613, 4294901760
        %5525 = vmatpush.msra.mxu0 %v5524
        %v5526 = vand.u32 %v1612, 4294901760
        %5527 = vmatpush.msra.mxu0 %v5526
        %v5528 = vand.u32 %v5495, 4294901760
        %v5529 = vsub.f32 %v5495, %v5528
        %v5530 = vand.u32 %v5529, 4294901760
        %v5531 = vsub.f32 %v5529, %v5530
        %v5532 = vand.u32 %v5531, 4294901760
        %5533 = vmatmul.f32.gmra.mxu0 %v5532
        %v5534 = vpop.f32.mrf.mxu0
        %v5535 = vadd.f32 1e-05, %v5534
        %5536 = vdwg.mxu0
        %v5537 = vand.u32 %v1627, 4294901760
        %v5538 = vsub.f32 %v1627, %v5537
        %v5539 = vand.u32 %v5538, 4294901760
        %v5540 = vsub.f32 %v5538, %v5539
        %v5541 = vand.u32 %v5540, 4294901760
        %5542 = vmatpush.msra.mxu0 %v5541
        %v5543 = vand.u32 %v1626, 4294901760
        %v5544 = vsub.f32 %v1626, %v5543
        %v5545 = vand.u32 %v5544, 4294901760
        %v5546 = vsub.f32 %v5544, %v5545
        %v5547 = vand.u32 %v5546, 4294901760
        %5548 = vmatpush.msra.mxu0 %v5547
        %v5549 = vand.u32 %v1625, 4294901760
        %v5550 = vsub.f32 %v1625, %v5549
        %v5551 = vand.u32 %v5550, 4294901760
        %v5552 = vsub.f32 %v5550, %v5551
        %v5553 = vand.u32 %v5552, 4294901760
        %5554 = vmatpush.msra.mxu0 %v5553
        %v5555 = vand.u32 %v1624, 4294901760
        %v5556 = vsub.f32 %v1624, %v5555
        %v5557 = vand.u32 %v5556, 4294901760
        %v5558 = vsub.f32 %v5556, %v5557
        %v5559 = vand.u32 %v5558, 4294901760
        %5560 = vmatpush.msra.mxu0 %v5559
        %v5561 = vand.u32 %v1623, 4294901760
        %v5562 = vsub.f32 %v1623, %v5561
        %v5563 = vand.u32 %v5562, 4294901760
        %v5564 = vsub.f32 %v5562, %v5563
        %v5565 = vand.u32 %v5564, 4294901760
        %5566 = vmatpush.msra.mxu0 %v5565
        %v5567 = vand.u32 %v1622, 4294901760
        %v5568 = vsub.f32 %v1622, %v5567
        %v5569 = vand.u32 %v5568, 4294901760
        %v5570 = vsub.f32 %v5568, %v5569
        %v5571 = vand.u32 %v5570, 4294901760
        %5572 = vmatpush.msra.mxu0 %v5571
        %v5573 = vand.u32 %v1621, 4294901760
        %v5574 = vsub.f32 %v1621, %v5573
        %v5575 = vand.u32 %v5574, 4294901760
        %v5576 = vsub.f32 %v5574, %v5575
        %v5577 = vand.u32 %v5576, 4294901760
        %5578 = vmatpush.msra.mxu0 %v5577
        %v5579 = vand.u32 %v1620, 4294901760
        %v5580 = vsub.f32 %v1620, %v5579
        %v5581 = vand.u32 %v5580, 4294901760
        %v5582 = vsub.f32 %v5580, %v5581
        %v5583 = vand.u32 %v5582, 4294901760
        %5584 = vmatpush.msra.mxu0 %v5583
        %v5585 = vand.u32 %v1619, 4294901760
        %v5586 = vsub.f32 %v1619, %v5585
        %v5587 = vand.u32 %v5586, 4294901760
        %v5588 = vsub.f32 %v5586, %v5587
        %v5589 = vand.u32 %v5588, 4294901760
        %5590 = vmatpush.msra.mxu0 %v5589
        %v5591 = vand.u32 %v1618, 4294901760
        %v5592 = vsub.f32 %v1618, %v5591
        %v5593 = vand.u32 %v5592, 4294901760
        %v5594 = vsub.f32 %v5592, %v5593
        %v5595 = vand.u32 %v5594, 4294901760
        %5596 = vmatpush.msra.mxu0 %v5595
        %v5597 = vand.u32 %v1617, 4294901760
        %v5598 = vsub.f32 %v1617, %v5597
        %v5599 = vand.u32 %v5598, 4294901760
        %v5600 = vsub.f32 %v5598, %v5599
        %v5601 = vand.u32 %v5600, 4294901760
        %5602 = vmatpush.msra.mxu0 %v5601
        %v5603 = vand.u32 %v1616, 4294901760
        %v5604 = vsub.f32 %v1616, %v5603
        %v5605 = vand.u32 %v5604, 4294901760
        %v5606 = vsub.f32 %v5604, %v5605
        %v5607 = vand.u32 %v5606, 4294901760
        %5608 = vmatpush.msra.mxu0 %v5607
        %v5609 = vand.u32 %v1615, 4294901760
        %v5610 = vsub.f32 %v1615, %v5609
        %v5611 = vand.u32 %v5610, 4294901760
        %v5612 = vsub.f32 %v5610, %v5611
        %v5613 = vand.u32 %v5612, 4294901760
        %5614 = vmatpush.msra.mxu0 %v5613
        %v5615 = vand.u32 %v1614, 4294901760
        %v5616 = vsub.f32 %v1614, %v5615
        %v5617 = vand.u32 %v5616, 4294901760
        %v5618 = vsub.f32 %v5616, %v5617
        %v5619 = vand.u32 %v5618, 4294901760
        %5620 = vmatpush.msra.mxu0 %v5619
        %v5621 = vand.u32 %v1613, 4294901760
        %v5622 = vsub.f32 %v1613, %v5621
        %v5623 = vand.u32 %v5622, 4294901760
        %v5624 = vsub.f32 %v5622, %v5623
        %v5625 = vand.u32 %v5624, 4294901760
        %5626 = vmatpush.msra.mxu0 %v5625
        %v5627 = vand.u32 %v1612, 4294901760
        %v5628 = vsub.f32 %v1612, %v5627
        %v5629 = vand.u32 %v5628, 4294901760
        %v5630 = vsub.f32 %v5628, %v5629
        %v5631 = vand.u32 %v5630, 4294901760
        %5632 = vmatpush.msra.mxu0 %v5631
        %v5633 = vand.u32 %v5495, 4294901760
        %5634 = vmatmul.f32.gmra.mxu0 %v5633
        %v5635 = vpop.f32.mrf.mxu0
        %v5636 = vadd.f32 %v5535, %v5635
        %5637 = vdwg.mxu0
        %v5638 = vand.u32 %v1627, 4294901760
        %v5639 = vsub.f32 %v1627, %v5638
        %5640 = vmatpush.msra.mxu0 %v5639
        %v5641 = vand.u32 %v1626, 4294901760
        %v5642 = vsub.f32 %v1626, %v5641
        %5643 = vmatpush.msra.mxu0 %v5642
        %v5644 = vand.u32 %v1625, 4294901760
        %v5645 = vsub.f32 %v1625, %v5644
        %5646 = vmatpush.msra.mxu0 %v5645
        %v5647 = vand.u32 %v1624, 4294901760
        %v5648 = vsub.f32 %v1624, %v5647
        %5649 = vmatpush.msra.mxu0 %v5648
        %v5650 = vand.u32 %v1623, 4294901760
        %v5651 = vsub.f32 %v1623, %v5650
        %5652 = vmatpush.msra.mxu0 %v5651
        %v5653 = vand.u32 %v1622, 4294901760
        %v5654 = vsub.f32 %v1622, %v5653
        %5655 = vmatpush.msra.mxu0 %v5654
        %v5656 = vand.u32 %v1621, 4294901760
        %v5657 = vsub.f32 %v1621, %v5656
        %5658 = vmatpush.msra.mxu0 %v5657
        %v5659 = vand.u32 %v1620, 4294901760
        %v5660 = vsub.f32 %v1620, %v5659
        %5661 = vmatpush.msra.mxu0 %v5660
        %v5662 = vand.u32 %v1619, 4294901760
        %v5663 = vsub.f32 %v1619, %v5662
        %5664 = vmatpush.msra.mxu0 %v5663
        %v5665 = vand.u32 %v1618, 4294901760
        %v5666 = vsub.f32 %v1618, %v5665
        %5667 = vmatpush.msra.mxu0 %v5666
        %v5668 = vand.u32 %v1617, 4294901760
        %v5669 = vsub.f32 %v1617, %v5668
        %5670 = vmatpush.msra.mxu0 %v5669
        %v5671 = vand.u32 %v1616, 4294901760
        %v5672 = vsub.f32 %v1616, %v5671
        %5673 = vmatpush.msra.mxu0 %v5672
        %v5674 = vand.u32 %v1615, 4294901760
        %v5675 = vsub.f32 %v1615, %v5674
        %5676 = vmatpush.msra.mxu0 %v5675
        %v5677 = vand.u32 %v1614, 4294901760
        %v5678 = vsub.f32 %v1614, %v5677
        %5679 = vmatpush.msra.mxu0 %v5678
        %v5680 = vand.u32 %v1613, 4294901760
        %v5681 = vsub.f32 %v1613, %v5680
        %5682 = vmatpush.msra.mxu0 %v5681
        %v5683 = vand.u32 %v1612, 4294901760
        %v5684 = vsub.f32 %v1612, %v5683
        %5685 = vmatpush.msra.mxu0 %v5684
        %v5686 = vand.u32 %v5495, 4294901760
        %v5687 = vsub.f32 %v5495, %v5686
        %5688 = vmatmul.f32.gmra.mxu0 %v5687
        %v5689 = vpop.f32.mrf.mxu0
        %v5690 = vadd.f32 %v5636, %v5689
        %5691 = vdwg.mxu0
        %v5692 = vand.u32 %v1627, 4294901760
        %5693 = vmatpush.msra.mxu0 %v5692
        %v5694 = vand.u32 %v1626, 4294901760
        %5695 = vmatpush.msra.mxu0 %v5694
        %v5696 = vand.u32 %v1625, 4294901760
        %5697 = vmatpush.msra.mxu0 %v5696
        %v5698 = vand.u32 %v1624, 4294901760
        %5699 = vmatpush.msra.mxu0 %v5698
        %v5700 = vand.u32 %v1623, 4294901760
        %5701 = vmatpush.msra.mxu0 %v5700
        %v5702 = vand.u32 %v1622, 4294901760
        %5703 = vmatpush.msra.mxu0 %v5702
        %v5704 = vand.u32 %v1621, 4294901760
        %5705 = vmatpush.msra.mxu0 %v5704
        %v5706 = vand.u32 %v1620, 4294901760
        %5707 = vmatpush.msra.mxu0 %v5706
        %v5708 = vand.u32 %v1619, 4294901760
        %5709 = vmatpush.msra.mxu0 %v5708
        %v5710 = vand.u32 %v1618, 4294901760
        %5711 = vmatpush.msra.mxu0 %v5710
        %v5712 = vand.u32 %v1617, 4294901760
        %5713 = vmatpush.msra.mxu0 %v5712
        %v5714 = vand.u32 %v1616, 4294901760
        %5715 = vmatpush.msra.mxu0 %v5714
        %v5716 = vand.u32 %v1615, 4294901760
        %5717 = vmatpush.msra.mxu0 %v5716
        %v5718 = vand.u32 %v1614, 4294901760
        %5719 = vmatpush.msra.mxu0 %v5718
        %v5720 = vand.u32 %v1613, 4294901760
        %5721 = vmatpush.msra.mxu0 %v5720
        %v5722 = vand.u32 %v1612, 4294901760
        %5723 = vmatpush.msra.mxu0 %v5722
        %v5724 = vand.u32 %v5495, 4294901760
        %v5725 = vsub.f32 %v5495, %v5724
        %v5726 = vand.u32 %v5725, 4294901760
        %5727 = vmatmul.f32.gmra.mxu0 %v5726
        %v5728 = vpop.f32.mrf.mxu0
        %v5729 = vadd.f32 %v5690, %v5728
        %5730 = vdwg.mxu0
        %v5731 = vand.u32 %v1627, 4294901760
        %v5732 = vsub.f32 %v1627, %v5731
        %v5733 = vand.u32 %v5732, 4294901760
        %5734 = vmatpush.msra.mxu0 %v5733
        %v5735 = vand.u32 %v1626, 4294901760
        %v5736 = vsub.f32 %v1626, %v5735
        %v5737 = vand.u32 %v5736, 4294901760
        %5738 = vmatpush.msra.mxu0 %v5737
        %v5739 = vand.u32 %v1625, 4294901760
        %v5740 = vsub.f32 %v1625, %v5739
        %v5741 = vand.u32 %v5740, 4294901760
        %5742 = vmatpush.msra.mxu0 %v5741
        %v5743 = vand.u32 %v1624, 4294901760
        %v5744 = vsub.f32 %v1624, %v5743
        %v5745 = vand.u32 %v5744, 4294901760
        %5746 = vmatpush.msra.mxu0 %v5745
        %v5747 = vand.u32 %v1623, 4294901760
        %v5748 = vsub.f32 %v1623, %v5747
        %v5749 = vand.u32 %v5748, 4294901760
        %5750 = vmatpush.msra.mxu0 %v5749
        %v5751 = vand.u32 %v1622, 4294901760
        %v5752 = vsub.f32 %v1622, %v5751
        %v5753 = vand.u32 %v5752, 4294901760
        %5754 = vmatpush.msra.mxu0 %v5753
        %v5755 = vand.u32 %v1621, 4294901760
        %v5756 = vsub.f32 %v1621, %v5755
        %v5757 = vand.u32 %v5756, 4294901760
        %5758 = vmatpush.msra.mxu0 %v5757
        %v5759 = vand.u32 %v1620, 4294901760
        %v5760 = vsub.f32 %v1620, %v5759
        %v5761 = vand.u32 %v5760, 4294901760
        %5762 = vmatpush.msra.mxu0 %v5761
        %v5763 = vand.u32 %v1619, 4294901760
        %v5764 = vsub.f32 %v1619, %v5763
        %v5765 = vand.u32 %v5764, 4294901760
        %5766 = vmatpush.msra.mxu0 %v5765
        %v5767 = vand.u32 %v1618, 4294901760
        %v5768 = vsub.f32 %v1618, %v5767
        %v5769 = vand.u32 %v5768, 4294901760
        %5770 = vmatpush.msra.mxu0 %v5769
        %v5771 = vand.u32 %v1617, 4294901760
        %v5772 = vsub.f32 %v1617, %v5771
        %v5773 = vand.u32 %v5772, 4294901760
        %5774 = vmatpush.msra.mxu0 %v5773
        %v5775 = vand.u32 %v1616, 4294901760
        %v5776 = vsub.f32 %v1616, %v5775
        %v5777 = vand.u32 %v5776, 4294901760
        %5778 = vmatpush.msra.mxu0 %v5777
        %v5779 = vand.u32 %v1615, 4294901760
        %v5780 = vsub.f32 %v1615, %v5779
        %v5781 = vand.u32 %v5780, 4294901760
        %5782 = vmatpush.msra.mxu0 %v5781
        %v5783 = vand.u32 %v1614, 4294901760
        %v5784 = vsub.f32 %v1614, %v5783
        %v5785 = vand.u32 %v5784, 4294901760
        %5786 = vmatpush.msra.mxu0 %v5785
        %v5787 = vand.u32 %v1613, 4294901760
        %v5788 = vsub.f32 %v1613, %v5787
        %v5789 = vand.u32 %v5788, 4294901760
        %5790 = vmatpush.msra.mxu0 %v5789
        %v5791 = vand.u32 %v1612, 4294901760
        %v5792 = vsub.f32 %v1612, %v5791
        %v5793 = vand.u32 %v5792, 4294901760
        %5794 = vmatpush.msra.mxu0 %v5793
        %v5795 = vand.u32 %v5495, 4294901760
        %5796 = vmatmul.f32.gmra.mxu0 %v5795
        %v5797 = vpop.f32.mrf.mxu0
        %v5798 = vadd.f32 %v5729, %v5797
        %5799 = vdwg.mxu0
        %v5800 = vand.u32 %v1627, 4294901760
        %5801 = vmatpush.msra.mxu0 %v5800
        %v5802 = vand.u32 %v1626, 4294901760
        %5803 = vmatpush.msra.mxu0 %v5802
        %v5804 = vand.u32 %v1625, 4294901760
        %5805 = vmatpush.msra.mxu0 %v5804
        %v5806 = vand.u32 %v1624, 4294901760
        %5807 = vmatpush.msra.mxu0 %v5806
        %v5808 = vand.u32 %v1623, 4294901760
        %5809 = vmatpush.msra.mxu0 %v5808
        %v5810 = vand.u32 %v1622, 4294901760
        %5811 = vmatpush.msra.mxu0 %v5810
        %v5812 = vand.u32 %v1621, 4294901760
        %5813 = vmatpush.msra.mxu0 %v5812
        %v5814 = vand.u32 %v1620, 4294901760
        %5815 = vmatpush.msra.mxu0 %v5814
        %v5816 = vand.u32 %v1619, 4294901760
        %5817 = vmatpush.msra.mxu0 %v5816
        %v5818 = vand.u32 %v1618, 4294901760
        %5819 = vmatpush.msra.mxu0 %v5818
        %v5820 = vand.u32 %v1617, 4294901760
        %5821 = vmatpush.msra.mxu0 %v5820
        %v5822 = vand.u32 %v1616, 4294901760
        %5823 = vmatpush.msra.mxu0 %v5822
        %v5824 = vand.u32 %v1615, 4294901760
        %5825 = vmatpush.msra.mxu0 %v5824
        %v5826 = vand.u32 %v1614, 4294901760
        %5827 = vmatpush.msra.mxu0 %v5826
        %v5828 = vand.u32 %v1613, 4294901760
        %5829 = vmatpush.msra.mxu0 %v5828
        %v5830 = vand.u32 %v1612, 4294901760
        %5831 = vmatpush.msra.mxu0 %v5830
        %v5832 = vand.u32 %v5495, 4294901760
        %5833 = vmatmul.f32.gmra.mxu0 %v5832
        %v5834 = vpop.f32.mrf.mxu0
        %v5835 = vadd.f32 %v5798, %v5834
        %5836 = vdwg.mxu0
        %v5837 = vrsqrt.pop %v5835
        %v5838 = vmul.f32 %v5837, %v5835
        %v5839 = vmul.f32 %v5838, %v5837
        %v5840 = vmul.f32 0.5, %v5839
        %v5841 = vsub.f32 1.5, %v5840
        %v5842 = vmul.f32 %v5837, %v5841
        %vm5843 = vweird.f32 %v5835
        %vm5844 = vweird.f32 %v5837
        %vm5845 = vmor %vm5843, %vm5844
        %v5846 = vsel %vm5845, %v5837, %v5842
        %v5847 = vmul.f32 %v5846, %v2530
        %v5848 = vperm.slane %v5847, 0
        %v5849 = vmul.f32 %v5395, %v5848
        %v5850 = vmul.f32 %v5396, %v5848
        %v5851 = vmul.f32 %v5397, %v5848
        %v5852 = vmul.f32 %v5398, %v5848
        %v5853 = vmul.f32 %v5399, %v5848
        %v5854 = vmul.f32 %v5400, %v5848
        %v5855 = vmul.f32 %v5401, %v5848
        %v5856 = vmul.f32 %v5402, %v5848
        %v5857 = vmul.f32 %v5403, %v5848
        %v5858 = vmul.f32 %v5404, %v5848
        %v5859 = vmul.f32 %v5405, %v5848
        %v5860 = vmul.f32 %v5406, %v5848
        %v5861 = vmul.f32 %v5407, %v5848
        %v5862 = vmul.f32 %v5408, %v5848
        %v5863 = vmul.f32 %v5409, %v5848
        %v5864 = vmul.f32 %v5410, %v5848
        %v5865 = vmul.f32 %v5411, %v5848
        %v5866 = vmul.f32 %v5412, %v5848
        %v5867 = vmul.f32 %v5413, %v5848
        %v5868 = vmul.f32 %v5414, %v5848
        %v5869 = vmul.f32 %v5415, %v5848
        %v5870 = vmul.f32 %v5416, %v5848
        %v5871 = vmul.f32 %v5417, %v5848
        %v5872 = vmul.f32 %v5418, %v5848
        %v5873 = vmul.f32 %v5419, %v5848
        %v5874 = vmul.f32 %v5420, %v5848
        %v5875 = vmul.f32 %v5421, %v5848
        %v5876 = vmul.f32 %v5422, %v5848
        %v5877 = vmul.f32 %v5423, %v5848
        %v5878 = vmul.f32 %v5424, %v5848
        %v5879 = vmul.f32 %v5425, %v5848
        %v5880 = vmul.f32 %v5426, %v5848
        %v5882 = vperm.slane %v2531, 0
        %v5884 = vadd.f32 %v5849, %v5882
        %v5885 = vadd.f32 %v5850, %v5882
        %v5886 = vadd.f32 %v5851, %v5882
        %v5887 = vadd.f32 %v5852, %v5882
        %v5888 = vadd.f32 %v5853, %v5882
        %v5889 = vadd.f32 %v5854, %v5882
        %v5890 = vadd.f32 %v5855, %v5882
        %v5891 = vadd.f32 %v5856, %v5882
        %v5892 = vadd.f32 %v5857, %v5882
        %v5893 = vadd.f32 %v5858, %v5882
        %v5894 = vadd.f32 %v5859, %v5882
        %v5895 = vadd.f32 %v5860, %v5882
        %v5896 = vadd.f32 %v5861, %v5882
        %v5897 = vadd.f32 %v5862, %v5882
        %v5898 = vadd.f32 %v5863, %v5882
        %v5899 = vadd.f32 %v5864, %v5882
        %v5900 = vadd.f32 %v5865, %v5882
        %v5901 = vadd.f32 %v5866, %v5882
        %v5902 = vadd.f32 %v5867, %v5882
        %v5903 = vadd.f32 %v5868, %v5882
        %v5904 = vadd.f32 %v5869, %v5882
        %v5905 = vadd.f32 %v5870, %v5882
        %v5906 = vadd.f32 %v5871, %v5882
        %v5907 = vadd.f32 %v5872, %v5882
        %v5908 = vadd.f32 %v5873, %v5882
        %v5909 = vadd.f32 %v5874, %v5882
        %v5910 = vadd.f32 %v5875, %v5882
        %v5911 = vadd.f32 %v5876, %v5882
        %v5912 = vadd.f32 %v5877, %v5882
        %v5913 = vadd.f32 %v5878, %v5882
        %v5914 = vadd.f32 %v5879, %v5882
        %v5915 = vadd.f32 %v5880, %v5882
        %s5916 = scalar_lea.vmem %s4, 16
        %v5917 = vld [vmem:[%s5916] sm:$0xff]
        %v5918 = vld [vmem:[%s5916 + $0x8] sm:$0x1]
        %s5919 = scalar_lea.vmem %s5, 1
        %v5920 = vld [vmem:[%s5919] sm:$0x1]
        %s5921 = scalar_lea.vmem %s6, 1
        %v5922 = vld [vmem:[%s5921] sm:$0x1]
        %5955 = vrot.lane.b32.xlu0 %v5884, 64
        %v5956 = vpop.permute.xlu0 %5955
        %5957 = vrot.lane.b32.xlu0 %v5885, 64
        %v5958 = vpop.permute.xlu0 %5957
        %5959 = vrot.lane.b32.xlu0 %v5886, 64
        %v5960 = vpop.permute.xlu0 %5959
        %5961 = vrot.lane.b32.xlu0 %v5887, 64
        %v5962 = vpop.permute.xlu0 %5961
        %5963 = vrot.lane.b32.xlu0 %v5888, 64
        %v5964 = vpop.permute.xlu0 %5963
        %5965 = vrot.lane.b32.xlu0 %v5889, 64
        %v5966 = vpop.permute.xlu0 %5965
        %5967 = vrot.lane.b32.xlu0 %v5890, 64
        %v5968 = vpop.permute.xlu0 %5967
        %5969 = vrot.lane.b32.xlu0 %v5891, 64
        %v5970 = vpop.permute.xlu0 %5969
        %5971 = vrot.lane.b32.xlu0 %v5892, 64
        %v5972 = vpop.permute.xlu0 %5971
        %5973 = vrot.lane.b32.xlu0 %v5893, 64
        %v5974 = vpop.permute.xlu0 %5973
        %5975 = vrot.lane.b32.xlu0 %v5894, 64
        %v5976 = vpop.permute.xlu0 %5975
        %5977 = vrot.lane.b32.xlu0 %v5895, 64
        %v5978 = vpop.permute.xlu0 %5977
        %5979 = vrot.lane.b32.xlu0 %v5896, 64
        %v5980 = vpop.permute.xlu0 %5979
        %5981 = vrot.lane.b32.xlu0 %v5897, 64
        %v5982 = vpop.permute.xlu0 %5981
        %5983 = vrot.lane.b32.xlu0 %v5898, 64
        %v5984 = vpop.permute.xlu0 %5983
        %5985 = vrot.lane.b32.xlu0 %v5899, 64
        %v5986 = vpop.permute.xlu0 %5985
        %5987 = vrot.lane.b32.xlu0 %v5900, 64
        %v5988 = vpop.permute.xlu0 %5987
        %5989 = vrot.lane.b32.xlu0 %v5901, 64
        %v5990 = vpop.permute.xlu0 %5989
        %5991 = vrot.lane.b32.xlu0 %v5902, 64
        %v5992 = vpop.permute.xlu0 %5991
        %5993 = vrot.lane.b32.xlu0 %v5903, 64
        %v5994 = vpop.permute.xlu0 %5993
        %5995 = vrot.lane.b32.xlu0 %v5904, 64
        %v5996 = vpop.permute.xlu0 %5995
        %5997 = vrot.lane.b32.xlu0 %v5905, 64
        %v5998 = vpop.permute.xlu0 %5997
        %5999 = vrot.lane.b32.xlu0 %v5906, 64
        %v6000 = vpop.permute.xlu0 %5999
        %6001 = vrot.lane.b32.xlu0 %v5907, 64
        %v6002 = vpop.permute.xlu0 %6001
        %6003 = vrot.lane.b32.xlu0 %v5908, 64
        %v6004 = vpop.permute.xlu0 %6003
        %6005 = vrot.lane.b32.xlu0 %v5909, 64
        %v6006 = vpop.permute.xlu0 %6005
        %6007 = vrot.lane.b32.xlu0 %v5910, 64
        %v6008 = vpop.permute.xlu0 %6007
        %6009 = vrot.lane.b32.xlu0 %v5911, 64
        %v6010 = vpop.permute.xlu0 %6009
        %6011 = vrot.lane.b32.xlu0 %v5912, 64
        %v6012 = vpop.permute.xlu0 %6011
        %6013 = vrot.lane.b32.xlu0 %v5913, 64
        %v6014 = vpop.permute.xlu0 %6013
        %6015 = vrot.lane.b32.xlu0 %v5914, 64
        %v6016 = vpop.permute.xlu0 %6015
        %6017 = vrot.lane.b32.xlu0 %v5915, 64
        %v6018 = vpop.permute.xlu0 %6017
        %v6051 = vrot.slane %v5956, 7
        %v6052 = vrot.slane %v5958, 7
        %v6053 = vrot.slane %v5960, 7
        %v6054 = vrot.slane %v5962, 7
        %v6055 = vrot.slane %v5964, 7
        %v6056 = vrot.slane %v5966, 7
        %v6057 = vrot.slane %v5968, 7
        %v6058 = vrot.slane %v5970, 7
        %v6059 = vrot.slane %v5972, 7
        %v6060 = vrot.slane %v5974, 7
        %v6061 = vrot.slane %v5976, 7
        %v6062 = vrot.slane %v5978, 7
        %v6063 = vrot.slane %v5980, 7
        %v6064 = vrot.slane %v5982, 7
        %v6065 = vrot.slane %v5984, 7
        %v6066 = vrot.slane %v5986, 7
        %v6067 = vrot.slane %v5988, 7
        %v6068 = vrot.slane %v5990, 7
        %v6069 = vrot.slane %v5992, 7
        %v6070 = vrot.slane %v5994, 7
        %v6071 = vrot.slane %v5996, 7
        %v6072 = vrot.slane %v5998, 7
        %v6073 = vrot.slane %v6000, 7
        %v6074 = vrot.slane %v6002, 7
        %v6075 = vrot.slane %v6004, 7
        %v6076 = vrot.slane %v6006, 7
        %v6077 = vrot.slane %v6008, 7
        %v6078 = vrot.slane %v6010, 7
        %v6079 = vrot.slane %v6012, 7
        %v6080 = vrot.slane %v6014, 7
        %v6081 = vrot.slane %v6016, 7
        %v6082 = vrot.slane %v6018, 7
        %v6083 = vsel %vm2566, %v6081, %v6082
        %v6084 = vsel %vm2566, %v6080, %v6081
        %v6085 = vsel %vm2566, %v6079, %v6080
        %v6086 = vsel %vm2566, %v6078, %v6079
        %v6087 = vsel %vm2566, %v6077, %v6078
        %v6088 = vsel %vm2566, %v6076, %v6077
        %v6089 = vsel %vm2566, %v6075, %v6076
        %v6090 = vsel %vm2566, %v6074, %v6075
        %v6091 = vsel %vm2566, %v6073, %v6074
        %v6092 = vsel %vm2566, %v6072, %v6073
        %v6093 = vsel %vm2566, %v6071, %v6072
        %v6094 = vsel %vm2566, %v6070, %v6071
        %v6095 = vsel %vm2566, %v6069, %v6070
        %v6096 = vsel %vm2566, %v6068, %v6069
        %v6097 = vsel %vm2566, %v6067, %v6068
        %v6098 = vsel %vm2566, %v6066, %v6067
        %v6099 = vsel %vm2566, %v6065, %v6066
        %v6100 = vsel %vm2566, %v6064, %v6065
        %v6101 = vsel %vm2566, %v6063, %v6064
        %v6102 = vsel %vm2566, %v6062, %v6063
        %v6103 = vsel %vm2566, %v6061, %v6062
        %v6104 = vsel %vm2566, %v6060, %v6061
        %v6105 = vsel %vm2566, %v6059, %v6060
        %v6106 = vsel %vm2566, %v6058, %v6059
        %v6107 = vsel %vm2566, %v6057, %v6058
        %v6108 = vsel %vm2566, %v6056, %v6057
        %v6109 = vsel %vm2566, %v6055, %v6056
        %v6110 = vsel %vm2566, %v6054, %v6055
        %v6111 = vsel %vm2566, %v6053, %v6054
        %v6112 = vsel %vm2566, %v6052, %v6053
        %v6113 = vsel %vm2566, %v6051, %v6052
        %v6114 = vsel %vm2566, %v6082, %v6051
        %v6115 = vperm.slane %v5917, 0
        %v6116 = vmul.f32 %v6084, %v6115
        %v6117 = vmul.f32 %v6083, %v6115
        %v6118 = vmul.f32 %v6114, %v6115
        %v6119 = vmul.f32 %v6113, %v6115
        %v6120 = vmul.f32 %v6112, %v6115
        %v6121 = vmul.f32 %v6111, %v6115
        %v6122 = vmul.f32 %v6110, %v6115
        %v6123 = vmul.f32 %v6109, %v6115
        %v6124 = vmul.f32 %v6108, %v6115
        %v6125 = vmul.f32 %v6107, %v6115
        %v6126 = vmul.f32 %v6106, %v6115
        %v6127 = vmul.f32 %v6105, %v6115
        %v6128 = vmul.f32 %v6104, %v6115
        %v6129 = vmul.f32 %v6103, %v6115
        %v6130 = vmul.f32 %v6102, %v6115
        %v6131 = vmul.f32 %v6101, %v6115
        %v6132 = vmul.f32 %v6100, %v6115
        %v6133 = vmul.f32 %v6099, %v6115
        %v6134 = vmul.f32 %v6098, %v6115
        %v6135 = vmul.f32 %v6097, %v6115
        %v6136 = vmul.f32 %v6096, %v6115
        %v6137 = vmul.f32 %v6095, %v6115
        %v6138 = vmul.f32 %v6094, %v6115
        %v6139 = vmul.f32 %v6093, %v6115
        %v6140 = vmul.f32 %v6092, %v6115
        %v6141 = vmul.f32 %v6091, %v6115
        %v6142 = vmul.f32 %v6090, %v6115
        %v6143 = vmul.f32 %v6089, %v6115
        %v6144 = vmul.f32 %v6088, %v6115
        %v6145 = vmul.f32 %v6087, %v6115
        %v6146 = vmul.f32 %v6086, %v6115
        %v6147 = vmul.f32 %v6085, %v6115
        %v6148 = vmul.f32 %v6116, %v2667
        %v6149 = vmul.f32 %v6117, %v2672
        %v6150 = vmul.f32 %v6118, %v2677
        %v6151 = vmul.f32 %v6119, %v2682
        %v6152 = vmul.f32 %v6120, %v2687
        %v6153 = vmul.f32 %v6121, %v2692
        %v6154 = vmul.f32 %v6122, %v2697
        %v6155 = vmul.f32 %v6123, %v2702
        %v6156 = vmul.f32 %v6124, %v2707
        %v6157 = vmul.f32 %v6125, %v2712
        %v6158 = vmul.f32 %v6126, %v2717
        %v6159 = vmul.f32 %v6127, %v2722
        %v6160 = vmul.f32 %v6128, %v2727
        %v6161 = vmul.f32 %v6129, %v2732
        %v6162 = vmul.f32 %v6130, %v2737
        %v6163 = vmul.f32 %v6131, %v2742
        %v6164 = vmul.f32 %v6132, %v2747
        %v6165 = vmul.f32 %v6133, %v2752
        %v6166 = vmul.f32 %v6134, %v2757
        %v6167 = vmul.f32 %v6135, %v2762
        %v6168 = vmul.f32 %v6136, %v2767
        %v6169 = vmul.f32 %v6137, %v2772
        %v6170 = vmul.f32 %v6138, %v2777
        %v6171 = vmul.f32 %v6139, %v2782
        %v6172 = vmul.f32 %v6140, %v2787
        %v6173 = vmul.f32 %v6141, %v2792
        %v6174 = vmul.f32 %v6142, %v2797
        %v6175 = vmul.f32 %v6143, %v2802
        %v6176 = vmul.f32 %v6144, %v2807
        %v6177 = vmul.f32 %v6145, %v2812
        %v6178 = vmul.f32 %v6146, %v2817
        %v6179 = vmul.f32 %v6147, %v2822
        %v6180 = vperm.slane %v5917, 1
        %v6181 = vmul.f32 %v6016, %v6180
        %v6182 = vmul.f32 %v6018, %v6180
        %v6183 = vmul.f32 %v5956, %v6180
        %v6184 = vmul.f32 %v5958, %v6180
        %v6185 = vmul.f32 %v5960, %v6180
        %v6186 = vmul.f32 %v5962, %v6180
        %v6187 = vmul.f32 %v5964, %v6180
        %v6188 = vmul.f32 %v5966, %v6180
        %v6189 = vmul.f32 %v5968, %v6180
        %v6190 = vmul.f32 %v5970, %v6180
        %v6191 = vmul.f32 %v5972, %v6180
        %v6192 = vmul.f32 %v5974, %v6180
        %v6193 = vmul.f32 %v5976, %v6180
        %v6194 = vmul.f32 %v5978, %v6180
        %v6195 = vmul.f32 %v5980, %v6180
        %v6196 = vmul.f32 %v5982, %v6180
        %v6197 = vmul.f32 %v5984, %v6180
        %v6198 = vmul.f32 %v5986, %v6180
        %v6199 = vmul.f32 %v5988, %v6180
        %v6200 = vmul.f32 %v5990, %v6180
        %v6201 = vmul.f32 %v5992, %v6180
        %v6202 = vmul.f32 %v5994, %v6180
        %v6203 = vmul.f32 %v5996, %v6180
        %v6204 = vmul.f32 %v5998, %v6180
        %v6205 = vmul.f32 %v6000, %v6180
        %v6206 = vmul.f32 %v6002, %v6180
        %v6207 = vmul.f32 %v6004, %v6180
        %v6208 = vmul.f32 %v6006, %v6180
        %v6209 = vmul.f32 %v6008, %v6180
        %v6210 = vmul.f32 %v6010, %v6180
        %v6211 = vmul.f32 %v6012, %v6180
        %v6212 = vmul.f32 %v6014, %v6180
        %v6213 = vmul.f32 %v6181, %v2925
        %v6214 = vmul.f32 %v6182, %v2930
        %v6215 = vmul.f32 %v6183, %v2935
        %v6216 = vmul.f32 %v6184, %v2940
        %v6217 = vmul.f32 %v6185, %v2945
        %v6218 = vmul.f32 %v6186, %v2950
        %v6219 = vmul.f32 %v6187, %v2955
        %v6220 = vmul.f32 %v6188, %v2960
        %v6221 = vmul.f32 %v6189, %v2965
        %v6222 = vmul.f32 %v6190, %v2970
        %v6223 = vmul.f32 %v6191, %v2975
        %v6224 = vmul.f32 %v6192, %v2980
        %v6225 = vmul.f32 %v6193, %v2985
        %v6226 = vmul.f32 %v6194, %v2990
        %v6227 = vmul.f32 %v6195, %v2995
        %v6228 = vmul.f32 %v6196, %v3000
        %v6229 = vmul.f32 %v6197, %v3005
        %v6230 = vmul.f32 %v6198, %v3010
        %v6231 = vmul.f32 %v6199, %v3015
        %v6232 = vmul.f32 %v6200, %v3020
        %v6233 = vmul.f32 %v6201, %v3025
        %v6234 = vmul.f32 %v6202, %v3030
        %v6235 = vmul.f32 %v6203, %v3035
        %v6236 = vmul.f32 %v6204, %v3040
        %v6237 = vmul.f32 %v6205, %v3045
        %v6238 = vmul.f32 %v6206, %v3050
        %v6239 = vmul.f32 %v6207, %v3055
        %v6240 = vmul.f32 %v6208, %v3060
        %v6241 = vmul.f32 %v6209, %v3065
        %v6242 = vmul.f32 %v6210, %v3070
        %v6243 = vmul.f32 %v6211, %v3075
        %v6244 = vmul.f32 %v6212, %v3080
        %v6245 = vadd.f32 %v6148, %v6213
        %v6246 = vadd.f32 %v6149, %v6214
        %v6247 = vadd.f32 %v6150, %v6215
        %v6248 = vadd.f32 %v6151, %v6216
        %v6249 = vadd.f32 %v6152, %v6217
        %v6250 = vadd.f32 %v6153, %v6218
        %v6251 = vadd.f32 %v6154, %v6219
        %v6252 = vadd.f32 %v6155, %v6220
        %v6253 = vadd.f32 %v6156, %v6221
        %v6254 = vadd.f32 %v6157, %v6222
        %v6255 = vadd.f32 %v6158, %v6223
        %v6256 = vadd.f32 %v6159, %v6224
        %v6257 = vadd.f32 %v6160, %v6225
        %v6258 = vadd.f32 %v6161, %v6226
        %v6259 = vadd.f32 %v6162, %v6227
        %v6260 = vadd.f32 %v6163, %v6228
        %v6261 = vadd.f32 %v6164, %v6229
        %v6262 = vadd.f32 %v6165, %v6230
        %v6263 = vadd.f32 %v6166, %v6231
        %v6264 = vadd.f32 %v6167, %v6232
        %v6265 = vadd.f32 %v6168, %v6233
        %v6266 = vadd.f32 %v6169, %v6234
        %v6267 = vadd.f32 %v6170, %v6235
        %v6268 = vadd.f32 %v6171, %v6236
        %v6269 = vadd.f32 %v6172, %v6237
        %v6270 = vadd.f32 %v6173, %v6238
        %v6271 = vadd.f32 %v6174, %v6239
        %v6272 = vadd.f32 %v6175, %v6240
        %v6273 = vadd.f32 %v6176, %v6241
        %v6274 = vadd.f32 %v6177, %v6242
        %v6275 = vadd.f32 %v6178, %v6243
        %v6276 = vadd.f32 %v6179, %v6244
        %v6277 = vrot.slane %v5956, 1
        %v6278 = vrot.slane %v5958, 1
        %v6279 = vrot.slane %v5960, 1
        %v6280 = vrot.slane %v5962, 1
        %v6281 = vrot.slane %v5964, 1
        %v6282 = vrot.slane %v5966, 1
        %v6283 = vrot.slane %v5968, 1
        %v6284 = vrot.slane %v5970, 1
        %v6285 = vrot.slane %v5972, 1
        %v6286 = vrot.slane %v5974, 1
        %v6287 = vrot.slane %v5976, 1
        %v6288 = vrot.slane %v5978, 1
        %v6289 = vrot.slane %v5980, 1
        %v6290 = vrot.slane %v5982, 1
        %v6291 = vrot.slane %v5984, 1
        %v6292 = vrot.slane %v5986, 1
        %v6293 = vrot.slane %v5988, 1
        %v6294 = vrot.slane %v5990, 1
        %v6295 = vrot.slane %v5992, 1
        %v6296 = vrot.slane %v5994, 1
        %v6297 = vrot.slane %v5996, 1
        %v6298 = vrot.slane %v5998, 1
        %v6299 = vrot.slane %v6000, 1
        %v6300 = vrot.slane %v6002, 1
        %v6301 = vrot.slane %v6004, 1
        %v6302 = vrot.slane %v6006, 1
        %v6303 = vrot.slane %v6008, 1
        %v6304 = vrot.slane %v6010, 1
        %v6305 = vrot.slane %v6012, 1
        %v6306 = vrot.slane %v6014, 1
        %v6307 = vrot.slane %v6016, 1
        %v6308 = vrot.slane %v6018, 1
        %v6309 = vsel %vm3178, %v6307, %v6308
        %v6310 = vsel %vm3178, %v6306, %v6307
        %v6311 = vsel %vm3178, %v6305, %v6306
        %v6312 = vsel %vm3178, %v6304, %v6305
        %v6313 = vsel %vm3178, %v6303, %v6304
        %v6314 = vsel %vm3178, %v6302, %v6303
        %v6315 = vsel %vm3178, %v6301, %v6302
        %v6316 = vsel %vm3178, %v6300, %v6301
        %v6317 = vsel %vm3178, %v6299, %v6300
        %v6318 = vsel %vm3178, %v6298, %v6299
        %v6319 = vsel %vm3178, %v6297, %v6298
        %v6320 = vsel %vm3178, %v6296, %v6297
        %v6321 = vsel %vm3178, %v6295, %v6296
        %v6322 = vsel %vm3178, %v6294, %v6295
        %v6323 = vsel %vm3178, %v6293, %v6294
        %v6324 = vsel %vm3178, %v6292, %v6293
        %v6325 = vsel %vm3178, %v6291, %v6292
        %v6326 = vsel %vm3178, %v6290, %v6291
        %v6327 = vsel %vm3178, %v6289, %v6290
        %v6328 = vsel %vm3178, %v6288, %v6289
        %v6329 = vsel %vm3178, %v6287, %v6288
        %v6330 = vsel %vm3178, %v6286, %v6287
        %v6331 = vsel %vm3178, %v6285, %v6286
        %v6332 = vsel %vm3178, %v6284, %v6285
        %v6333 = vsel %vm3178, %v6283, %v6284
        %v6334 = vsel %vm3178, %v6282, %v6283
        %v6335 = vsel %vm3178, %v6281, %v6282
        %v6336 = vsel %vm3178, %v6280, %v6281
        %v6337 = vsel %vm3178, %v6279, %v6280
        %v6338 = vsel %vm3178, %v6278, %v6279
        %v6339 = vsel %vm3178, %v6277, %v6278
        %v6340 = vsel %vm3178, %v6308, %v6277
        %v6341 = vperm.slane %v5917, 2
        %v6342 = vmul.f32 %v6309, %v6341
        %v6343 = vmul.f32 %v6340, %v6341
        %v6344 = vmul.f32 %v6339, %v6341
        %v6345 = vmul.f32 %v6338, %v6341
        %v6346 = vmul.f32 %v6337, %v6341
        %v6347 = vmul.f32 %v6336, %v6341
        %v6348 = vmul.f32 %v6335, %v6341
        %v6349 = vmul.f32 %v6334, %v6341
        %v6350 = vmul.f32 %v6333, %v6341
        %v6351 = vmul.f32 %v6332, %v6341
        %v6352 = vmul.f32 %v6331, %v6341
        %v6353 = vmul.f32 %v6330, %v6341
        %v6354 = vmul.f32 %v6329, %v6341
        %v6355 = vmul.f32 %v6328, %v6341
        %v6356 = vmul.f32 %v6327, %v6341
        %v6357 = vmul.f32 %v6326, %v6341
        %v6358 = vmul.f32 %v6325, %v6341
        %v6359 = vmul.f32 %v6324, %v6341
        %v6360 = vmul.f32 %v6323, %v6341
        %v6361 = vmul.f32 %v6322, %v6341
        %v6362 = vmul.f32 %v6321, %v6341
        %v6363 = vmul.f32 %v6320, %v6341
        %v6364 = vmul.f32 %v6319, %v6341
        %v6365 = vmul.f32 %v6318, %v6341
        %v6366 = vmul.f32 %v6317, %v6341
        %v6367 = vmul.f32 %v6316, %v6341
        %v6368 = vmul.f32 %v6315, %v6341
        %v6369 = vmul.f32 %v6314, %v6341
        %v6370 = vmul.f32 %v6313, %v6341
        %v6371 = vmul.f32 %v6312, %v6341
        %v6372 = vmul.f32 %v6311, %v6341
        %v6373 = vmul.f32 %v6310, %v6341
        %v6374 = vmul.f32 %v6342, %v3280
        %v6375 = vmul.f32 %v6343, %v3285
        %v6376 = vmul.f32 %v6344, %v3290
        %v6377 = vmul.f32 %v6345, %v3295
        %v6378 = vmul.f32 %v6346, %v3300
        %v6379 = vmul.f32 %v6347, %v3305
        %v6380 = vmul.f32 %v6348, %v3310
        %v6381 = vmul.f32 %v6349, %v3315
        %v6382 = vmul.f32 %v6350, %v3320
        %v6383 = vmul.f32 %v6351, %v3325
        %v6384 = vmul.f32 %v6352, %v3330
        %v6385 = vmul.f32 %v6353, %v3335
        %v6386 = vmul.f32 %v6354, %v3340
        %v6387 = vmul.f32 %v6355, %v3345
        %v6388 = vmul.f32 %v6356, %v3350
        %v6389 = vmul.f32 %v6357, %v3355
        %v6390 = vmul.f32 %v6358, %v3360
        %v6391 = vmul.f32 %v6359, %v3365
        %v6392 = vmul.f32 %v6360, %v3370
        %v6393 = vmul.f32 %v6361, %v3375
        %v6394 = vmul.f32 %v6362, %v3380
        %v6395 = vmul.f32 %v6363, %v3385
        %v6396 = vmul.f32 %v6364, %v3390
        %v6397 = vmul.f32 %v6365, %v3395
        %v6398 = vmul.f32 %v6366, %v3400
        %v6399 = vmul.f32 %v6367, %v3405
        %v6400 = vmul.f32 %v6368, %v3410
        %v6401 = vmul.f32 %v6369, %v3415
        %v6402 = vmul.f32 %v6370, %v3420
        %v6403 = vmul.f32 %v6371, %v3425
        %v6404 = vmul.f32 %v6372, %v3430
        %v6405 = vmul.f32 %v6373, %v3435
        %v6406 = vadd.f32 %v6245, %v6374
        %v6407 = vadd.f32 %v6246, %v6375
        %v6408 = vadd.f32 %v6247, %v6376
        %v6409 = vadd.f32 %v6248, %v6377
        %v6410 = vadd.f32 %v6249, %v6378
        %v6411 = vadd.f32 %v6250, %v6379
        %v6412 = vadd.f32 %v6251, %v6380
        %v6413 = vadd.f32 %v6252, %v6381
        %v6414 = vadd.f32 %v6253, %v6382
        %v6415 = vadd.f32 %v6254, %v6383
        %v6416 = vadd.f32 %v6255, %v6384
        %v6417 = vadd.f32 %v6256, %v6385
        %v6418 = vadd.f32 %v6257, %v6386
        %v6419 = vadd.f32 %v6258, %v6387
        %v6420 = vadd.f32 %v6259, %v6388
        %v6421 = vadd.f32 %v6260, %v6389
        %v6422 = vadd.f32 %v6261, %v6390
        %v6423 = vadd.f32 %v6262, %v6391
        %v6424 = vadd.f32 %v6263, %v6392
        %v6425 = vadd.f32 %v6264, %v6393
        %v6426 = vadd.f32 %v6265, %v6394
        %v6427 = vadd.f32 %v6266, %v6395
        %v6428 = vadd.f32 %v6267, %v6396
        %v6429 = vadd.f32 %v6268, %v6397
        %v6430 = vadd.f32 %v6269, %v6398
        %v6431 = vadd.f32 %v6270, %v6399
        %v6432 = vadd.f32 %v6271, %v6400
        %v6433 = vadd.f32 %v6272, %v6401
        %v6434 = vadd.f32 %v6273, %v6402
        %v6435 = vadd.f32 %v6274, %v6403
        %v6436 = vadd.f32 %v6275, %v6404
        %v6437 = vadd.f32 %v6276, %v6405
        %v6438 = vperm.slane %v5917, 3
        %v6439 = vmul.f32 %v6114, %v6438
        %v6440 = vmul.f32 %v6113, %v6438
        %v6441 = vmul.f32 %v6112, %v6438
        %v6442 = vmul.f32 %v6111, %v6438
        %v6443 = vmul.f32 %v6110, %v6438
        %v6444 = vmul.f32 %v6109, %v6438
        %v6445 = vmul.f32 %v6108, %v6438
        %v6446 = vmul.f32 %v6107, %v6438
        %v6447 = vmul.f32 %v6106, %v6438
        %v6448 = vmul.f32 %v6105, %v6438
        %v6449 = vmul.f32 %v6104, %v6438
        %v6450 = vmul.f32 %v6103, %v6438
        %v6451 = vmul.f32 %v6102, %v6438
        %v6452 = vmul.f32 %v6101, %v6438
        %v6453 = vmul.f32 %v6100, %v6438
        %v6454 = vmul.f32 %v6099, %v6438
        %v6455 = vmul.f32 %v6098, %v6438
        %v6456 = vmul.f32 %v6097, %v6438
        %v6457 = vmul.f32 %v6096, %v6438
        %v6458 = vmul.f32 %v6095, %v6438
        %v6459 = vmul.f32 %v6094, %v6438
        %v6460 = vmul.f32 %v6093, %v6438
        %v6461 = vmul.f32 %v6092, %v6438
        %v6462 = vmul.f32 %v6091, %v6438
        %v6463 = vmul.f32 %v6090, %v6438
        %v6464 = vmul.f32 %v6089, %v6438
        %v6465 = vmul.f32 %v6088, %v6438
        %v6466 = vmul.f32 %v6087, %v6438
        %v6467 = vmul.f32 %v6086, %v6438
        %v6468 = vmul.f32 %v6085, %v6438
        %v6469 = vmul.f32 %v6084, %v6438
        %v6470 = vmul.f32 %v6083, %v6438
        %v6471 = vmul.f32 %v6439, %v3570
        %v6472 = vmul.f32 %v6440, %v3575
        %v6473 = vmul.f32 %v6441, %v3580
        %v6474 = vmul.f32 %v6442, %v3585
        %v6475 = vmul.f32 %v6443, %v3590
        %v6476 = vmul.f32 %v6444, %v3595
        %v6477 = vmul.f32 %v6445, %v3600
        %v6478 = vmul.f32 %v6446, %v3605
        %v6479 = vmul.f32 %v6447, %v3610
        %v6480 = vmul.f32 %v6448, %v3615
        %v6481 = vmul.f32 %v6449, %v3620
        %v6482 = vmul.f32 %v6450, %v3625
        %v6483 = vmul.f32 %v6451, %v3630
        %v6484 = vmul.f32 %v6452, %v3635
        %v6485 = vmul.f32 %v6453, %v3640
        %v6486 = vmul.f32 %v6454, %v3645
        %v6487 = vmul.f32 %v6455, %v3650
        %v6488 = vmul.f32 %v6456, %v3655
        %v6489 = vmul.f32 %v6457, %v3660
        %v6490 = vmul.f32 %v6458, %v3665
        %v6491 = vmul.f32 %v6459, %v3670
        %v6492 = vmul.f32 %v6460, %v3675
        %v6493 = vmul.f32 %v6461, %v3680
        %v6494 = vmul.f32 %v6462, %v3685
        %v6495 = vmul.f32 %v6463, %v3690
        %v6496 = vmul.f32 %v6464, %v3695
        %v6497 = vmul.f32 %v6465, %v3700
        %v6498 = vmul.f32 %v6466, %v3705
        %v6499 = vmul.f32 %v6467, %v3710
        %v6500 = vmul.f32 %v6468, %v3715
        %v6501 = vmul.f32 %v6469, %v3720
        %v6502 = vmul.f32 %v6470, %v3725
        %v6503 = vadd.f32 %v6406, %v6471
        %v6504 = vadd.f32 %v6407, %v6472
        %v6505 = vadd.f32 %v6408, %v6473
        %v6506 = vadd.f32 %v6409, %v6474
        %v6507 = vadd.f32 %v6410, %v6475
        %v6508 = vadd.f32 %v6411, %v6476
        %v6509 = vadd.f32 %v6412, %v6477
        %v6510 = vadd.f32 %v6413, %v6478
        %v6511 = vadd.f32 %v6414, %v6479
        %v6512 = vadd.f32 %v6415, %v6480
        %v6513 = vadd.f32 %v6416, %v6481
        %v6514 = vadd.f32 %v6417, %v6482
        %v6515 = vadd.f32 %v6418, %v6483
        %v6516 = vadd.f32 %v6419, %v6484
        %v6517 = vadd.f32 %v6420, %v6485
        %v6518 = vadd.f32 %v6421, %v6486
        %v6519 = vadd.f32 %v6422, %v6487
        %v6520 = vadd.f32 %v6423, %v6488
        %v6521 = vadd.f32 %v6424, %v6489
        %v6522 = vadd.f32 %v6425, %v6490
        %v6523 = vadd.f32 %v6426, %v6491
        %v6524 = vadd.f32 %v6427, %v6492
        %v6525 = vadd.f32 %v6428, %v6493
        %v6526 = vadd.f32 %v6429, %v6494
        %v6527 = vadd.f32 %v6430, %v6495
        %v6528 = vadd.f32 %v6431, %v6496
        %v6529 = vadd.f32 %v6432, %v6497
        %v6530 = vadd.f32 %v6433, %v6498
        %v6531 = vadd.f32 %v6434, %v6499
        %v6532 = vadd.f32 %v6435, %v6500
        %v6533 = vadd.f32 %v6436, %v6501
        %v6534 = vadd.f32 %v6437, %v6502
        %v6535 = vperm.slane %v5917, 4
        %6537 = vrot.lane.b32.xlu0 %v6535, 64
        %v6538 = vpop.permute.xlu0 %6537
        %v6540 = vmul.f32 %v5884, %v6538
        %v6541 = vmul.f32 %v5885, %v6538
        %v6542 = vmul.f32 %v5886, %v6538
        %v6543 = vmul.f32 %v5887, %v6538
        %v6544 = vmul.f32 %v5888, %v6538
        %v6545 = vmul.f32 %v5889, %v6538
        %v6546 = vmul.f32 %v5890, %v6538
        %v6547 = vmul.f32 %v5891, %v6538
        %v6548 = vmul.f32 %v5892, %v6538
        %v6549 = vmul.f32 %v5893, %v6538
        %v6550 = vmul.f32 %v5894, %v6538
        %v6551 = vmul.f32 %v5895, %v6538
        %v6552 = vmul.f32 %v5896, %v6538
        %v6553 = vmul.f32 %v5897, %v6538
        %v6554 = vmul.f32 %v5898, %v6538
        %v6555 = vmul.f32 %v5899, %v6538
        %v6556 = vmul.f32 %v5900, %v6538
        %v6557 = vmul.f32 %v5901, %v6538
        %v6558 = vmul.f32 %v5902, %v6538
        %v6559 = vmul.f32 %v5903, %v6538
        %v6560 = vmul.f32 %v5904, %v6538
        %v6561 = vmul.f32 %v5905, %v6538
        %v6562 = vmul.f32 %v5906, %v6538
        %v6563 = vmul.f32 %v5907, %v6538
        %v6564 = vmul.f32 %v5908, %v6538
        %v6565 = vmul.f32 %v5909, %v6538
        %v6566 = vmul.f32 %v5910, %v6538
        %v6567 = vmul.f32 %v5911, %v6538
        %v6568 = vmul.f32 %v5912, %v6538
        %v6569 = vmul.f32 %v5913, %v6538
        %v6570 = vmul.f32 %v5914, %v6538
        %v6571 = vmul.f32 %v5915, %v6538
        %6604 = vrot.lane.b32.xlu0 %v6540, 64
        %v6605 = vpop.permute.xlu0 %6604
        %6606 = vrot.lane.b32.xlu0 %v6541, 64
        %v6607 = vpop.permute.xlu0 %6606
        %6608 = vrot.lane.b32.xlu0 %v6542, 64
        %v6609 = vpop.permute.xlu0 %6608
        %6610 = vrot.lane.b32.xlu0 %v6543, 64
        %v6611 = vpop.permute.xlu0 %6610
        %6612 = vrot.lane.b32.xlu0 %v6544, 64
        %v6613 = vpop.permute.xlu0 %6612
        %6614 = vrot.lane.b32.xlu0 %v6545, 64
        %v6615 = vpop.permute.xlu0 %6614
        %6616 = vrot.lane.b32.xlu0 %v6546, 64
        %v6617 = vpop.permute.xlu0 %6616
        %6618 = vrot.lane.b32.xlu0 %v6547, 64
        %v6619 = vpop.permute.xlu0 %6618
        %6620 = vrot.lane.b32.xlu0 %v6548, 64
        %v6621 = vpop.permute.xlu0 %6620
        %6622 = vrot.lane.b32.xlu0 %v6549, 64
        %v6623 = vpop.permute.xlu0 %6622
        %6624 = vrot.lane.b32.xlu0 %v6550, 64
        %v6625 = vpop.permute.xlu0 %6624
        %6626 = vrot.lane.b32.xlu0 %v6551, 64
        %v6627 = vpop.permute.xlu0 %6626
        %6628 = vrot.lane.b32.xlu0 %v6552, 64
        %v6629 = vpop.permute.xlu0 %6628
        %6630 = vrot.lane.b32.xlu0 %v6553, 64
        %v6631 = vpop.permute.xlu0 %6630
        %6632 = vrot.lane.b32.xlu0 %v6554, 64
        %v6633 = vpop.permute.xlu0 %6632
        %6634 = vrot.lane.b32.xlu0 %v6555, 64
        %v6635 = vpop.permute.xlu0 %6634
        %6636 = vrot.lane.b32.xlu0 %v6556, 64
        %v6637 = vpop.permute.xlu0 %6636
        %6638 = vrot.lane.b32.xlu0 %v6557, 64
        %v6639 = vpop.permute.xlu0 %6638
        %6640 = vrot.lane.b32.xlu0 %v6558, 64
        %v6641 = vpop.permute.xlu0 %6640
        %6642 = vrot.lane.b32.xlu0 %v6559, 64
        %v6643 = vpop.permute.xlu0 %6642
        %6644 = vrot.lane.b32.xlu0 %v6560, 64
        %v6645 = vpop.permute.xlu0 %6644
        %6646 = vrot.lane.b32.xlu0 %v6561, 64
        %v6647 = vpop.permute.xlu0 %6646
        %6648 = vrot.lane.b32.xlu0 %v6562, 64
        %v6649 = vpop.permute.xlu0 %6648
        %6650 = vrot.lane.b32.xlu0 %v6563, 64
        %v6651 = vpop.permute.xlu0 %6650
        %6652 = vrot.lane.b32.xlu0 %v6564, 64
        %v6653 = vpop.permute.xlu0 %6652
        %6654 = vrot.lane.b32.xlu0 %v6565, 64
        %v6655 = vpop.permute.xlu0 %6654
        %6656 = vrot.lane.b32.xlu0 %v6566, 64
        %v6657 = vpop.permute.xlu0 %6656
        %6658 = vrot.lane.b32.xlu0 %v6567, 64
        %v6659 = vpop.permute.xlu0 %6658
        %6660 = vrot.lane.b32.xlu0 %v6568, 64
        %v6661 = vpop.permute.xlu0 %6660
        %6662 = vrot.lane.b32.xlu0 %v6569, 64
        %v6663 = vpop.permute.xlu0 %6662
        %6664 = vrot.lane.b32.xlu0 %v6570, 64
        %v6665 = vpop.permute.xlu0 %6664
        %6666 = vrot.lane.b32.xlu0 %v6571, 64
        %v6667 = vpop.permute.xlu0 %6666
        %v6700 = vadd.f32 %v6503, %v6605
        %v6701 = vadd.f32 %v6504, %v6607
        %v6702 = vadd.f32 %v6505, %v6609
        %v6703 = vadd.f32 %v6506, %v6611
        %v6704 = vadd.f32 %v6507, %v6613
        %v6705 = vadd.f32 %v6508, %v6615
        %v6706 = vadd.f32 %v6509, %v6617
        %v6707 = vadd.f32 %v6510, %v6619
        %v6708 = vadd.f32 %v6511, %v6621
        %v6709 = vadd.f32 %v6512, %v6623
        %v6710 = vadd.f32 %v6513, %v6625
        %v6711 = vadd.f32 %v6514, %v6627
        %v6712 = vadd.f32 %v6515, %v6629
        %v6713 = vadd.f32 %v6516, %v6631
        %v6714 = vadd.f32 %v6517, %v6633
        %v6715 = vadd.f32 %v6518, %v6635
        %v6716 = vadd.f32 %v6519, %v6637
        %v6717 = vadd.f32 %v6520, %v6639
        %v6718 = vadd.f32 %v6521, %v6641
        %v6719 = vadd.f32 %v6522, %v6643
        %v6720 = vadd.f32 %v6523, %v6645
        %v6721 = vadd.f32 %v6524, %v6647
        %v6722 = vadd.f32 %v6525, %v6649
        %v6723 = vadd.f32 %v6526, %v6651
        %v6724 = vadd.f32 %v6527, %v6653
        %v6725 = vadd.f32 %v6528, %v6655
        %v6726 = vadd.f32 %v6529, %v6657
        %v6727 = vadd.f32 %v6530, %v6659
        %v6728 = vadd.f32 %v6531, %v6661
        %v6729 = vadd.f32 %v6532, %v6663
        %v6730 = vadd.f32 %v6533, %v6665
        %v6731 = vadd.f32 %v6534, %v6667
        %v6732 = vperm.slane %v5917, 5
        %v6733 = vmul.f32 %v6339, %v6732
        %v6734 = vmul.f32 %v6338, %v6732
        %v6735 = vmul.f32 %v6337, %v6732
        %v6736 = vmul.f32 %v6336, %v6732
        %v6737 = vmul.f32 %v6335, %v6732
        %v6738 = vmul.f32 %v6334, %v6732
        %v6739 = vmul.f32 %v6333, %v6732
        %v6740 = vmul.f32 %v6332, %v6732
        %v6741 = vmul.f32 %v6331, %v6732
        %v6742 = vmul.f32 %v6330, %v6732
        %v6743 = vmul.f32 %v6329, %v6732
        %v6744 = vmul.f32 %v6328, %v6732
        %v6745 = vmul.f32 %v6327, %v6732
        %v6746 = vmul.f32 %v6326, %v6732
        %v6747 = vmul.f32 %v6325, %v6732
        %v6748 = vmul.f32 %v6324, %v6732
        %v6749 = vmul.f32 %v6323, %v6732
        %v6750 = vmul.f32 %v6322, %v6732
        %v6751 = vmul.f32 %v6321, %v6732
        %v6752 = vmul.f32 %v6320, %v6732
        %v6753 = vmul.f32 %v6319, %v6732
        %v6754 = vmul.f32 %v6318, %v6732
        %v6755 = vmul.f32 %v6317, %v6732
        %v6756 = vmul.f32 %v6316, %v6732
        %v6757 = vmul.f32 %v6315, %v6732
        %v6758 = vmul.f32 %v6314, %v6732
        %v6759 = vmul.f32 %v6313, %v6732
        %v6760 = vmul.f32 %v6312, %v6732
        %v6761 = vmul.f32 %v6311, %v6732
        %v6762 = vmul.f32 %v6310, %v6732
        %v6763 = vmul.f32 %v6309, %v6732
        %v6764 = vmul.f32 %v6340, %v6732
        %v6765 = vmul.f32 %v6733, %v3925
        %v6766 = vmul.f32 %v6734, %v3930
        %v6767 = vmul.f32 %v6735, %v3935
        %v6768 = vmul.f32 %v6736, %v3940
        %v6769 = vmul.f32 %v6737, %v3945
        %v6770 = vmul.f32 %v6738, %v3950
        %v6771 = vmul.f32 %v6739, %v3955
        %v6772 = vmul.f32 %v6740, %v3960
        %v6773 = vmul.f32 %v6741, %v3965
        %v6774 = vmul.f32 %v6742, %v3970
        %v6775 = vmul.f32 %v6743, %v3975
        %v6776 = vmul.f32 %v6744, %v3980
        %v6777 = vmul.f32 %v6745, %v3985
        %v6778 = vmul.f32 %v6746, %v3990
        %v6779 = vmul.f32 %v6747, %v3995
        %v6780 = vmul.f32 %v6748, %v4000
        %v6781 = vmul.f32 %v6749, %v4005
        %v6782 = vmul.f32 %v6750, %v4010
        %v6783 = vmul.f32 %v6751, %v4015
        %v6784 = vmul.f32 %v6752, %v4020
        %v6785 = vmul.f32 %v6753, %v4025
        %v6786 = vmul.f32 %v6754, %v4030
        %v6787 = vmul.f32 %v6755, %v4035
        %v6788 = vmul.f32 %v6756, %v4040
        %v6789 = vmul.f32 %v6757, %v4045
        %v6790 = vmul.f32 %v6758, %v4050
        %v6791 = vmul.f32 %v6759, %v4055
        %v6792 = vmul.f32 %v6760, %v4060
        %v6793 = vmul.f32 %v6761, %v4065
        %v6794 = vmul.f32 %v6762, %v4070
        %v6795 = vmul.f32 %v6763, %v4075
        %v6796 = vmul.f32 %v6764, %v4080
        %v6797 = vadd.f32 %v6700, %v6765
        %v6798 = vadd.f32 %v6701, %v6766
        %v6799 = vadd.f32 %v6702, %v6767
        %v6800 = vadd.f32 %v6703, %v6768
        %v6801 = vadd.f32 %v6704, %v6769
        %v6802 = vadd.f32 %v6705, %v6770
        %v6803 = vadd.f32 %v6706, %v6771
        %v6804 = vadd.f32 %v6707, %v6772
        %v6805 = vadd.f32 %v6708, %v6773
        %v6806 = vadd.f32 %v6709, %v6774
        %v6807 = vadd.f32 %v6710, %v6775
        %v6808 = vadd.f32 %v6711, %v6776
        %v6809 = vadd.f32 %v6712, %v6777
        %v6810 = vadd.f32 %v6713, %v6778
        %v6811 = vadd.f32 %v6714, %v6779
        %v6812 = vadd.f32 %v6715, %v6780
        %v6813 = vadd.f32 %v6716, %v6781
        %v6814 = vadd.f32 %v6717, %v6782
        %v6815 = vadd.f32 %v6718, %v6783
        %v6816 = vadd.f32 %v6719, %v6784
        %v6817 = vadd.f32 %v6720, %v6785
        %v6818 = vadd.f32 %v6721, %v6786
        %v6819 = vadd.f32 %v6722, %v6787
        %v6820 = vadd.f32 %v6723, %v6788
        %v6821 = vadd.f32 %v6724, %v6789
        %v6822 = vadd.f32 %v6725, %v6790
        %v6823 = vadd.f32 %v6726, %v6791
        %v6824 = vadd.f32 %v6727, %v6792
        %v6825 = vadd.f32 %v6728, %v6793
        %v6826 = vadd.f32 %v6729, %v6794
        %v6827 = vadd.f32 %v6730, %v6795
        %v6828 = vadd.f32 %v6731, %v6796
        %v6829 = vperm.slane %v5917, 6
        %v6830 = vmul.f32 %v6112, %v6829
        %v6831 = vmul.f32 %v6111, %v6829
        %v6832 = vmul.f32 %v6110, %v6829
        %v6833 = vmul.f32 %v6109, %v6829
        %v6834 = vmul.f32 %v6108, %v6829
        %v6835 = vmul.f32 %v6107, %v6829
        %v6836 = vmul.f32 %v6106, %v6829
        %v6837 = vmul.f32 %v6105, %v6829
        %v6838 = vmul.f32 %v6104, %v6829
        %v6839 = vmul.f32 %v6103, %v6829
        %v6840 = vmul.f32 %v6102, %v6829
        %v6841 = vmul.f32 %v6101, %v6829
        %v6842 = vmul.f32 %v6100, %v6829
        %v6843 = vmul.f32 %v6099, %v6829
        %v6844 = vmul.f32 %v6098, %v6829
        %v6845 = vmul.f32 %v6097, %v6829
        %v6846 = vmul.f32 %v6096, %v6829
        %v6847 = vmul.f32 %v6095, %v6829
        %v6848 = vmul.f32 %v6094, %v6829
        %v6849 = vmul.f32 %v6093, %v6829
        %v6850 = vmul.f32 %v6092, %v6829
        %v6851 = vmul.f32 %v6091, %v6829
        %v6852 = vmul.f32 %v6090, %v6829
        %v6853 = vmul.f32 %v6089, %v6829
        %v6854 = vmul.f32 %v6088, %v6829
        %v6855 = vmul.f32 %v6087, %v6829
        %v6856 = vmul.f32 %v6086, %v6829
        %v6857 = vmul.f32 %v6085, %v6829
        %v6858 = vmul.f32 %v6084, %v6829
        %v6859 = vmul.f32 %v6083, %v6829
        %v6860 = vmul.f32 %v6114, %v6829
        %v6861 = vmul.f32 %v6113, %v6829
        %v6862 = vmul.f32 %v6830, %v4215
        %v6863 = vmul.f32 %v6831, %v4220
        %v6864 = vmul.f32 %v6832, %v4225
        %v6865 = vmul.f32 %v6833, %v4230
        %v6866 = vmul.f32 %v6834, %v4235
        %v6867 = vmul.f32 %v6835, %v4240
        %v6868 = vmul.f32 %v6836, %v4245
        %v6869 = vmul.f32 %v6837, %v4250
        %v6870 = vmul.f32 %v6838, %v4255
        %v6871 = vmul.f32 %v6839, %v4260
        %v6872 = vmul.f32 %v6840, %v4265
        %v6873 = vmul.f32 %v6841, %v4270
        %v6874 = vmul.f32 %v6842, %v4275
        %v6875 = vmul.f32 %v6843, %v4280
        %v6876 = vmul.f32 %v6844, %v4285
        %v6877 = vmul.f32 %v6845, %v4290
        %v6878 = vmul.f32 %v6846, %v4295
        %v6879 = vmul.f32 %v6847, %v4300
        %v6880 = vmul.f32 %v6848, %v4305
        %v6881 = vmul.f32 %v6849, %v4310
        %v6882 = vmul.f32 %v6850, %v4315
        %v6883 = vmul.f32 %v6851, %v4320
        %v6884 = vmul.f32 %v6852, %v4325
        %v6885 = vmul.f32 %v6853, %v4330
        %v6886 = vmul.f32 %v6854, %v4335
        %v6887 = vmul.f32 %v6855, %v4340
        %v6888 = vmul.f32 %v6856, %v4345
        %v6889 = vmul.f32 %v6857, %v4350
        %v6890 = vmul.f32 %v6858, %v4355
        %v6891 = vmul.f32 %v6859, %v4360
        %v6892 = vmul.f32 %v6860, %v4365
        %v6893 = vmul.f32 %v6861, %v4370
        %v6894 = vadd.f32 %v6797, %v6862
        %v6895 = vadd.f32 %v6798, %v6863
        %v6896 = vadd.f32 %v6799, %v6864
        %v6897 = vadd.f32 %v6800, %v6865
        %v6898 = vadd.f32 %v6801, %v6866
        %v6899 = vadd.f32 %v6802, %v6867
        %v6900 = vadd.f32 %v6803, %v6868
        %v6901 = vadd.f32 %v6804, %v6869
        %v6902 = vadd.f32 %v6805, %v6870
        %v6903 = vadd.f32 %v6806, %v6871
        %v6904 = vadd.f32 %v6807, %v6872
        %v6905 = vadd.f32 %v6808, %v6873
        %v6906 = vadd.f32 %v6809, %v6874
        %v6907 = vadd.f32 %v6810, %v6875
        %v6908 = vadd.f32 %v6811, %v6876
        %v6909 = vadd.f32 %v6812, %v6877
        %v6910 = vadd.f32 %v6813, %v6878
        %v6911 = vadd.f32 %v6814, %v6879
        %v6912 = vadd.f32 %v6815, %v6880
        %v6913 = vadd.f32 %v6816, %v6881
        %v6914 = vadd.f32 %v6817, %v6882
        %v6915 = vadd.f32 %v6818, %v6883
        %v6916 = vadd.f32 %v6819, %v6884
        %v6917 = vadd.f32 %v6820, %v6885
        %v6918 = vadd.f32 %v6821, %v6886
        %v6919 = vadd.f32 %v6822, %v6887
        %v6920 = vadd.f32 %v6823, %v6888
        %v6921 = vadd.f32 %v6824, %v6889
        %v6922 = vadd.f32 %v6825, %v6890
        %v6923 = vadd.f32 %v6826, %v6891
        %v6924 = vadd.f32 %v6827, %v6892
        %v6925 = vadd.f32 %v6828, %v6893
        %v6926 = vperm.slane %v5917, 7
        %v6927 = vmul.f32 %v5960, %v6926
        %v6928 = vmul.f32 %v5962, %v6926
        %v6929 = vmul.f32 %v5964, %v6926
        %v6930 = vmul.f32 %v5966, %v6926
        %v6931 = vmul.f32 %v5968, %v6926
        %v6932 = vmul.f32 %v5970, %v6926
        %v6933 = vmul.f32 %v5972, %v6926
        %v6934 = vmul.f32 %v5974, %v6926
        %v6935 = vmul.f32 %v5976, %v6926
        %v6936 = vmul.f32 %v5978, %v6926
        %v6937 = vmul.f32 %v5980, %v6926
        %v6938 = vmul.f32 %v5982, %v6926
        %v6939 = vmul.f32 %v5984, %v6926
        %v6940 = vmul.f32 %v5986, %v6926
        %v6941 = vmul.f32 %v5988, %v6926
        %v6942 = vmul.f32 %v5990, %v6926
        %v6943 = vmul.f32 %v5992, %v6926
        %v6944 = vmul.f32 %v5994, %v6926
        %v6945 = vmul.f32 %v5996, %v6926
        %v6946 = vmul.f32 %v5998, %v6926
        %v6947 = vmul.f32 %v6000, %v6926
        %v6948 = vmul.f32 %v6002, %v6926
        %v6949 = vmul.f32 %v6004, %v6926
        %v6950 = vmul.f32 %v6006, %v6926
        %v6951 = vmul.f32 %v6008, %v6926
        %v6952 = vmul.f32 %v6010, %v6926
        %v6953 = vmul.f32 %v6012, %v6926
        %v6954 = vmul.f32 %v6014, %v6926
        %v6955 = vmul.f32 %v6016, %v6926
        %v6956 = vmul.f32 %v6018, %v6926
        %v6957 = vmul.f32 %v5956, %v6926
        %v6958 = vmul.f32 %v5958, %v6926
        %v6959 = vmul.f32 %v6927, %v4505
        %v6960 = vmul.f32 %v6928, %v4510
        %v6961 = vmul.f32 %v6929, %v4515
        %v6962 = vmul.f32 %v6930, %v4520
        %v6963 = vmul.f32 %v6931, %v4525
        %v6964 = vmul.f32 %v6932, %v4530
        %v6965 = vmul.f32 %v6933, %v4535
        %v6966 = vmul.f32 %v6934, %v4540
        %v6967 = vmul.f32 %v6935, %v4545
        %v6968 = vmul.f32 %v6936, %v4550
        %v6969 = vmul.f32 %v6937, %v4555
        %v6970 = vmul.f32 %v6938, %v4560
        %v6971 = vmul.f32 %v6939, %v4565
        %v6972 = vmul.f32 %v6940, %v4570
        %v6973 = vmul.f32 %v6941, %v4575
        %v6974 = vmul.f32 %v6942, %v4580
        %v6975 = vmul.f32 %v6943, %v4585
        %v6976 = vmul.f32 %v6944, %v4590
        %v6977 = vmul.f32 %v6945, %v4595
        %v6978 = vmul.f32 %v6946, %v4600
        %v6979 = vmul.f32 %v6947, %v4605
        %v6980 = vmul.f32 %v6948, %v4610
        %v6981 = vmul.f32 %v6949, %v4615
        %v6982 = vmul.f32 %v6950, %v4620
        %v6983 = vmul.f32 %v6951, %v4625
        %v6984 = vmul.f32 %v6952, %v4630
        %v6985 = vmul.f32 %v6953, %v4635
        %v6986 = vmul.f32 %v6954, %v4640
        %v6987 = vmul.f32 %v6955, %v4645
        %v6988 = vmul.f32 %v6956, %v4650
        %v6989 = vmul.f32 %v6957, %v4655
        %v6990 = vmul.f32 %v6958, %v4660
        %v6991 = vadd.f32 %v6894, %v6959
        %v6992 = vadd.f32 %v6895, %v6960
        %v6993 = vadd.f32 %v6896, %v6961
        %v6994 = vadd.f32 %v6897, %v6962
        %v6995 = vadd.f32 %v6898, %v6963
        %v6996 = vadd.f32 %v6899, %v6964
        %v6997 = vadd.f32 %v6900, %v6965
        %v6998 = vadd.f32 %v6901, %v6966
        %v6999 = vadd.f32 %v6902, %v6967
        %v7000 = vadd.f32 %v6903, %v6968
        %v7001 = vadd.f32 %v6904, %v6969
        %v7002 = vadd.f32 %v6905, %v6970
        %v7003 = vadd.f32 %v6906, %v6971
        %v7004 = vadd.f32 %v6907, %v6972
        %v7005 = vadd.f32 %v6908, %v6973
        %v7006 = vadd.f32 %v6909, %v6974
        %v7007 = vadd.f32 %v6910, %v6975
        %v7008 = vadd.f32 %v6911, %v6976
        %v7009 = vadd.f32 %v6912, %v6977
        %v7010 = vadd.f32 %v6913, %v6978
        %v7011 = vadd.f32 %v6914, %v6979
        %v7012 = vadd.f32 %v6915, %v6980
        %v7013 = vadd.f32 %v6916, %v6981
        %v7014 = vadd.f32 %v6917, %v6982
        %v7015 = vadd.f32 %v6918, %v6983
        %v7016 = vadd.f32 %v6919, %v6984
        %v7017 = vadd.f32 %v6920, %v6985
        %v7018 = vadd.f32 %v6921, %v6986
        %v7019 = vadd.f32 %v6922, %v6987
        %v7020 = vadd.f32 %v6923, %v6988
        %v7021 = vadd.f32 %v6924, %v6989
        %v7022 = vadd.f32 %v6925, %v6990
        %v7023 = vperm.slane %v5918, 0
        %v7024 = vmul.f32 %v6337, %v7023
        %v7025 = vmul.f32 %v6336, %v7023
        %v7026 = vmul.f32 %v6335, %v7023
        %v7027 = vmul.f32 %v6334, %v7023
        %v7028 = vmul.f32 %v6333, %v7023
        %v7029 = vmul.f32 %v6332, %v7023
        %v7030 = vmul.f32 %v6331, %v7023
        %v7031 = vmul.f32 %v6330, %v7023
        %v7032 = vmul.f32 %v6329, %v7023
        %v7033 = vmul.f32 %v6328, %v7023
        %v7034 = vmul.f32 %v6327, %v7023
        %v7035 = vmul.f32 %v6326, %v7023
        %v7036 = vmul.f32 %v6325, %v7023
        %v7037 = vmul.f32 %v6324, %v7023
        %v7038 = vmul.f32 %v6323, %v7023
        %v7039 = vmul.f32 %v6322, %v7023
        %v7040 = vmul.f32 %v6321, %v7023
        %v7041 = vmul.f32 %v6320, %v7023
        %v7042 = vmul.f32 %v6319, %v7023
        %v7043 = vmul.f32 %v6318, %v7023
        %v7044 = vmul.f32 %v6317, %v7023
        %v7045 = vmul.f32 %v6316, %v7023
        %v7046 = vmul.f32 %v6315, %v7023
        %v7047 = vmul.f32 %v6314, %v7023
        %v7048 = vmul.f32 %v6313, %v7023
        %v7049 = vmul.f32 %v6312, %v7023
        %v7050 = vmul.f32 %v6311, %v7023
        %v7051 = vmul.f32 %v6310, %v7023
        %v7052 = vmul.f32 %v6309, %v7023
        %v7053 = vmul.f32 %v6340, %v7023
        %v7054 = vmul.f32 %v6339, %v7023
        %v7055 = vmul.f32 %v6338, %v7023
        %v7056 = vmul.f32 %v7024, %v4795
        %v7057 = vmul.f32 %v7025, %v4800
        %v7058 = vmul.f32 %v7026, %v4805
        %v7059 = vmul.f32 %v7027, %v4810
        %v7060 = vmul.f32 %v7028, %v4815
        %v7061 = vmul.f32 %v7029, %v4820
        %v7062 = vmul.f32 %v7030, %v4825
        %v7063 = vmul.f32 %v7031, %v4830
        %v7064 = vmul.f32 %v7032, %v4835
        %v7065 = vmul.f32 %v7033, %v4840
        %v7066 = vmul.f32 %v7034, %v4845
        %v7067 = vmul.f32 %v7035, %v4850
        %v7068 = vmul.f32 %v7036, %v4855
        %v7069 = vmul.f32 %v7037, %v4860
        %v7070 = vmul.f32 %v7038, %v4865
        %v7071 = vmul.f32 %v7039, %v4870
        %v7072 = vmul.f32 %v7040, %v4875
        %v7073 = vmul.f32 %v7041, %v4880
        %v7074 = vmul.f32 %v7042, %v4885
        %v7075 = vmul.f32 %v7043, %v4890
        %v7076 = vmul.f32 %v7044, %v4895
        %v7077 = vmul.f32 %v7045, %v4900
        %v7078 = vmul.f32 %v7046, %v4905
        %v7079 = vmul.f32 %v7047, %v4910
        %v7080 = vmul.f32 %v7048, %v4915
        %v7081 = vmul.f32 %v7049, %v4920
        %v7082 = vmul.f32 %v7050, %v4925
        %v7083 = vmul.f32 %v7051, %v4930
        %v7084 = vmul.f32 %v7052, %v4935
        %v7085 = vmul.f32 %v7053, %v4940
        %v7086 = vmul.f32 %v7054, %v4945
        %v7087 = vmul.f32 %v7055, %v4950
        %v7088 = vadd.f32 %v6991, %v7056
        %v7089 = vadd.f32 %v6992, %v7057
        %v7090 = vadd.f32 %v6993, %v7058
        %v7091 = vadd.f32 %v6994, %v7059
        %v7092 = vadd.f32 %v6995, %v7060
        %v7093 = vadd.f32 %v6996, %v7061
        %v7094 = vadd.f32 %v6997, %v7062
        %v7095 = vadd.f32 %v6998, %v7063
        %v7096 = vadd.f32 %v6999, %v7064
        %v7097 = vadd.f32 %v7000, %v7065
        %v7098 = vadd.f32 %v7001, %v7066
        %v7099 = vadd.f32 %v7002, %v7067
        %v7100 = vadd.f32 %v7003, %v7068
        %v7101 = vadd.f32 %v7004, %v7069
        %v7102 = vadd.f32 %v7005, %v7070
        %v7103 = vadd.f32 %v7006, %v7071
        %v7104 = vadd.f32 %v7007, %v7072
        %v7105 = vadd.f32 %v7008, %v7073
        %v7106 = vadd.f32 %v7009, %v7074
        %v7107 = vadd.f32 %v7010, %v7075
        %v7108 = vadd.f32 %v7011, %v7076
        %v7109 = vadd.f32 %v7012, %v7077
        %v7110 = vadd.f32 %v7013, %v7078
        %v7111 = vadd.f32 %v7014, %v7079
        %v7112 = vadd.f32 %v7015, %v7080
        %v7113 = vadd.f32 %v7016, %v7081
        %v7114 = vadd.f32 %v7017, %v7082
        %v7115 = vadd.f32 %v7018, %v7083
        %v7116 = vadd.f32 %v7019, %v7084
        %v7117 = vadd.f32 %v7020, %v7085
        %v7118 = vadd.f32 %v7021, %v7086
        %v7119 = vadd.f32 %v7022, %v7087
        %vm7120 = vcmask 523264
        %v7121 = vsel %vm7120, %v7088, 0.0
        %v7122 = vsel %vm7120, %v7089, 0.0
        %v7123 = vadd.f32 %v7121, %v7122
        %v7124 = vsel %vm7120, %v7090, 0.0
        %v7125 = vadd.f32 %v7123, %v7124
        %v7126 = vsel %vm7120, %v7091, 0.0
        %v7127 = vadd.f32 %v7125, %v7126
        %v7128 = vsel %vm7120, %v7092, 0.0
        %v7129 = vadd.f32 %v7127, %v7128
        %v7130 = vsel %vm7120, %v7093, 0.0
        %v7131 = vadd.f32 %v7129, %v7130
        %v7132 = vsel %vm7120, %v7094, 0.0
        %v7133 = vadd.f32 %v7131, %v7132
        %v7134 = vsel %vm7120, %v7095, 0.0
        %v7135 = vadd.f32 %v7133, %v7134
        %v7136 = vsel %vm7120, %v7096, 0.0
        %v7137 = vadd.f32 %v7135, %v7136
        %v7138 = vsel %vm7120, %v7097, 0.0
        %v7139 = vadd.f32 %v7137, %v7138
        %v7140 = vsel %vm7120, %v7098, 0.0
        %v7141 = vadd.f32 %v7139, %v7140
        %v7142 = vsel %vm7120, %v7099, 0.0
        %v7143 = vadd.f32 %v7141, %v7142
        %v7144 = vsel %vm7120, %v7100, 0.0
        %v7145 = vadd.f32 %v7143, %v7144
        %v7146 = vsel %vm7120, %v7101, 0.0
        %v7147 = vadd.f32 %v7145, %v7146
        %v7148 = vsel %vm7120, %v7102, 0.0
        %v7149 = vadd.f32 %v7147, %v7148
        %v7150 = vsel %vm7120, %v7103, 0.0
        %v7151 = vadd.f32 %v7149, %v7150
        %v7152 = vsel %vm7120, %v7104, 0.0
        %v7153 = vadd.f32 %v7151, %v7152
        %v7154 = vsel %vm7120, %v7105, 0.0
        %v7155 = vadd.f32 %v7153, %v7154
        %v7156 = vsel %vm7120, %v7106, 0.0
        %v7157 = vadd.f32 %v7155, %v7156
        %v7158 = vsel %vm7120, %v7107, 0.0
        %v7159 = vadd.f32 %v7157, %v7158
        %v7160 = vsel %vm7120, %v7108, 0.0
        %v7161 = vadd.f32 %v7159, %v7160
        %v7162 = vsel %vm7120, %v7109, 0.0
        %v7163 = vadd.f32 %v7161, %v7162
        %v7164 = vsel %vm7120, %v7110, 0.0
        %v7165 = vadd.f32 %v7163, %v7164
        %v7166 = vsel %vm7120, %v7111, 0.0
        %v7167 = vadd.f32 %v7165, %v7166
        %v7168 = vsel %vm7120, %v7112, 0.0
        %v7169 = vadd.f32 %v7167, %v7168
        %v7170 = vsel %vm7120, %v7113, 0.0
        %v7171 = vadd.f32 %v7169, %v7170
        %v7172 = vsel %vm7120, %v7114, 0.0
        %v7173 = vadd.f32 %v7171, %v7172
        %v7174 = vsel %vm7120, %v7115, 0.0
        %v7175 = vadd.f32 %v7173, %v7174
        %v7176 = vsel %vm7120, %v7116, 0.0
        %v7177 = vadd.f32 %v7175, %v7176
        %v7178 = vsel %vm7120, %v7117, 0.0
        %v7179 = vadd.f32 %v7177, %v7178
        %v7180 = vsel %vm7120, %v7118, 0.0
        %v7181 = vadd.f32 %v7179, %v7180
        %v7182 = vsel %vm7120, %v7119, 0.0
        %v7183 = vadd.f32 %v7181, %v7182
        %v7184 = vrot.slane %v7183, 4
        %v7185 = vadd.f32 %v7183, %v7184
        %v7186 = vrot.slane %v7185, 2
        %v7187 = vadd.f32 %v7185, %v7186
        %v7188 = vrot.slane %v7187, 1
        %v7189 = vadd.f32 %v7187, %v7188
        %v7191 = vsel %vm7120, %v7189, 0
        %7193 = vmatpush.msra.mxu0 0.0
        %7194 = vmatpush.msra.mxu0 0.0
        %7195 = vmatpush.msra.mxu0 0.0
        %7196 = vmatpush.msra.mxu0 0.0
        %7197 = vmatpush.msra.mxu0 0.0
        %7198 = vmatpush.msra.mxu0 0.0
        %7199 = vmatpush.msra.mxu0 0.0
        %7200 = vmatpush.msra.mxu0 0.0
        %v7201 = vand.u32 %v1619, 4294901760
        %7202 = vmatpush.msra.mxu0 %v7201
        %v7203 = vand.u32 %v1618, 4294901760
        %7204 = vmatpush.msra.mxu0 %v7203
        %v7205 = vand.u32 %v1617, 4294901760
        %7206 = vmatpush.msra.mxu0 %v7205
        %v7207 = vand.u32 %v1616, 4294901760
        %7208 = vmatpush.msra.mxu0 %v7207
        %v7209 = vand.u32 %v1615, 4294901760
        %7210 = vmatpush.msra.mxu0 %v7209
        %v7211 = vand.u32 %v1614, 4294901760
        %7212 = vmatpush.msra.mxu0 %v7211
        %v7213 = vand.u32 %v1613, 4294901760
        %7214 = vmatpush.msra.mxu0 %v7213
        %v7215 = vand.u32 %v1612, 4294901760
        %7216 = vmatpush.msra.mxu0 %v7215
        %v7217 = vand.u32 %v7191, 4294901760
        %v7218 = vsub.f32 %v7191, %v7217
        %v7219 = vand.u32 %v7218, 4294901760
        %v7220 = vsub.f32 %v7218, %v7219
        %v7221 = vand.u32 %v7220, 4294901760
        %7222 = vmatmul.f32.gmra.mxu0 %v7221
        %v7223 = vpop.f32.mrf.mxu0
        %v7224 = vadd.f32 0.0, %v7223
        %7225 = vdwg.mxu0
        %7226 = vmatpush.msra.mxu0 0.0
        %7227 = vmatpush.msra.mxu0 0.0
        %7228 = vmatpush.msra.mxu0 0.0
        %7229 = vmatpush.msra.mxu0 0.0
        %7230 = vmatpush.msra.mxu0 0.0
        %7231 = vmatpush.msra.mxu0 0.0
        %7232 = vmatpush.msra.mxu0 0.0
        %7233 = vmatpush.msra.mxu0 0.0
        %v7234 = vand.u32 %v1619, 4294901760
        %v7235 = vsub.f32 %v1619, %v7234
        %v7236 = vand.u32 %v7235, 4294901760
        %v7237 = vsub.f32 %v7235, %v7236
        %v7238 = vand.u32 %v7237, 4294901760
        %7239 = vmatpush.msra.mxu0 %v7238
        %v7240 = vand.u32 %v1618, 4294901760
        %v7241 = vsub.f32 %v1618, %v7240
        %v7242 = vand.u32 %v7241, 4294901760
        %v7243 = vsub.f32 %v7241, %v7242
        %v7244 = vand.u32 %v7243, 4294901760
        %7245 = vmatpush.msra.mxu0 %v7244
        %v7246 = vand.u32 %v1617, 4294901760
        %v7247 = vsub.f32 %v1617, %v7246
        %v7248 = vand.u32 %v7247, 4294901760
        %v7249 = vsub.f32 %v7247, %v7248
        %v7250 = vand.u32 %v7249, 4294901760
        %7251 = vmatpush.msra.mxu0 %v7250
        %v7252 = vand.u32 %v1616, 4294901760
        %v7253 = vsub.f32 %v1616, %v7252
        %v7254 = vand.u32 %v7253, 4294901760
        %v7255 = vsub.f32 %v7253, %v7254
        %v7256 = vand.u32 %v7255, 4294901760
        %7257 = vmatpush.msra.mxu0 %v7256
        %v7258 = vand.u32 %v1615, 4294901760
        %v7259 = vsub.f32 %v1615, %v7258
        %v7260 = vand.u32 %v7259, 4294901760
        %v7261 = vsub.f32 %v7259, %v7260
        %v7262 = vand.u32 %v7261, 4294901760
        %7263 = vmatpush.msra.mxu0 %v7262
        %v7264 = vand.u32 %v1614, 4294901760
        %v7265 = vsub.f32 %v1614, %v7264
        %v7266 = vand.u32 %v7265, 4294901760
        %v7267 = vsub.f32 %v7265, %v7266
        %v7268 = vand.u32 %v7267, 4294901760
        %7269 = vmatpush.msra.mxu0 %v7268
        %v7270 = vand.u32 %v1613, 4294901760
        %v7271 = vsub.f32 %v1613, %v7270
        %v7272 = vand.u32 %v7271, 4294901760
        %v7273 = vsub.f32 %v7271, %v7272
        %v7274 = vand.u32 %v7273, 4294901760
        %7275 = vmatpush.msra.mxu0 %v7274
        %v7276 = vand.u32 %v1612, 4294901760
        %v7277 = vsub.f32 %v1612, %v7276
        %v7278 = vand.u32 %v7277, 4294901760
        %v7279 = vsub.f32 %v7277, %v7278
        %v7280 = vand.u32 %v7279, 4294901760
        %7281 = vmatpush.msra.mxu0 %v7280
        %v7282 = vand.u32 %v7191, 4294901760
        %7283 = vmatmul.f32.gmra.mxu0 %v7282
        %v7284 = vpop.f32.mrf.mxu0
        %v7285 = vadd.f32 %v7224, %v7284
        %7286 = vdwg.mxu0
        %7287 = vmatpush.msra.mxu0 0.0
        %7288 = vmatpush.msra.mxu0 0.0
        %7289 = vmatpush.msra.mxu0 0.0
        %7290 = vmatpush.msra.mxu0 0.0
        %7291 = vmatpush.msra.mxu0 0.0
        %7292 = vmatpush.msra.mxu0 0.0
        %7293 = vmatpush.msra.mxu0 0.0
        %7294 = vmatpush.msra.mxu0 0.0
        %v7295 = vand.u32 %v1619, 4294901760
        %v7296 = vsub.f32 %v1619, %v7295
        %7297 = vmatpush.msra.mxu0 %v7296
        %v7298 = vand.u32 %v1618, 4294901760
        %v7299 = vsub.f32 %v1618, %v7298
        %7300 = vmatpush.msra.mxu0 %v7299
        %v7301 = vand.u32 %v1617, 4294901760
        %v7302 = vsub.f32 %v1617, %v7301
        %7303 = vmatpush.msra.mxu0 %v7302
        %v7304 = vand.u32 %v1616, 4294901760
        %v7305 = vsub.f32 %v1616, %v7304
        %7306 = vmatpush.msra.mxu0 %v7305
        %v7307 = vand.u32 %v1615, 4294901760
        %v7308 = vsub.f32 %v1615, %v7307
        %7309 = vmatpush.msra.mxu0 %v7308
        %v7310 = vand.u32 %v1614, 4294901760
        %v7311 = vsub.f32 %v1614, %v7310
        %7312 = vmatpush.msra.mxu0 %v7311
        %v7313 = vand.u32 %v1613, 4294901760
        %v7314 = vsub.f32 %v1613, %v7313
        %7315 = vmatpush.msra.mxu0 %v7314
        %v7316 = vand.u32 %v1612, 4294901760
        %v7317 = vsub.f32 %v1612, %v7316
        %7318 = vmatpush.msra.mxu0 %v7317
        %v7319 = vand.u32 %v7191, 4294901760
        %v7320 = vsub.f32 %v7191, %v7319
        %7321 = vmatmul.f32.gmra.mxu0 %v7320
        %v7322 = vpop.f32.mrf.mxu0
        %v7323 = vadd.f32 %v7285, %v7322
        %7324 = vdwg.mxu0
        %7325 = vmatpush.msra.mxu0 0.0
        %7326 = vmatpush.msra.mxu0 0.0
        %7327 = vmatpush.msra.mxu0 0.0
        %7328 = vmatpush.msra.mxu0 0.0
        %7329 = vmatpush.msra.mxu0 0.0
        %7330 = vmatpush.msra.mxu0 0.0
        %7331 = vmatpush.msra.mxu0 0.0
        %7332 = vmatpush.msra.mxu0 0.0
        %v7333 = vand.u32 %v1619, 4294901760
        %7334 = vmatpush.msra.mxu0 %v7333
        %v7335 = vand.u32 %v1618, 4294901760
        %7336 = vmatpush.msra.mxu0 %v7335
        %v7337 = vand.u32 %v1617, 4294901760
        %7338 = vmatpush.msra.mxu0 %v7337
        %v7339 = vand.u32 %v1616, 4294901760
        %7340 = vmatpush.msra.mxu0 %v7339
        %v7341 = vand.u32 %v1615, 4294901760
        %7342 = vmatpush.msra.mxu0 %v7341
        %v7343 = vand.u32 %v1614, 4294901760
        %7344 = vmatpush.msra.mxu0 %v7343
        %v7345 = vand.u32 %v1613, 4294901760
        %7346 = vmatpush.msra.mxu0 %v7345
        %v7347 = vand.u32 %v1612, 4294901760
        %7348 = vmatpush.msra.mxu0 %v7347
        %v7349 = vand.u32 %v7191, 4294901760
        %v7350 = vsub.f32 %v7191, %v7349
        %v7351 = vand.u32 %v7350, 4294901760
        %7352 = vmatmul.f32.gmra.mxu0 %v7351
        %v7353 = vpop.f32.mrf.mxu0
        %v7354 = vadd.f32 %v7323, %v7353
        %7355 = vdwg.mxu0
        %7356 = vmatpush.msra.mxu0 0.0
        %7357 = vmatpush.msra.mxu0 0.0
        %7358 = vmatpush.msra.mxu0 0.0
        %7359 = vmatpush.msra.mxu0 0.0
        %7360 = vmatpush.msra.mxu0 0.0
        %7361 = vmatpush.msra.mxu0 0.0
        %7362 = vmatpush.msra.mxu0 0.0
        %7363 = vmatpush.msra.mxu0 0.0
        %v7364 = vand.u32 %v1619, 4294901760
        %v7365 = vsub.f32 %v1619, %v7364
        %v7366 = vand.u32 %v7365, 4294901760
        %7367 = vmatpush.msra.mxu0 %v7366
        %v7368 = vand.u32 %v1618, 4294901760
        %v7369 = vsub.f32 %v1618, %v7368
        %v7370 = vand.u32 %v7369, 4294901760
        %7371 = vmatpush.msra.mxu0 %v7370
        %v7372 = vand.u32 %v1617, 4294901760
        %v7373 = vsub.f32 %v1617, %v7372
        %v7374 = vand.u32 %v7373, 4294901760
        %7375 = vmatpush.msra.mxu0 %v7374
        %v7376 = vand.u32 %v1616, 4294901760
        %v7377 = vsub.f32 %v1616, %v7376
        %v7378 = vand.u32 %v7377, 4294901760
        %7379 = vmatpush.msra.mxu0 %v7378
        %v7380 = vand.u32 %v1615, 4294901760
        %v7381 = vsub.f32 %v1615, %v7380
        %v7382 = vand.u32 %v7381, 4294901760
        %7383 = vmatpush.msra.mxu0 %v7382
        %v7384 = vand.u32 %v1614, 4294901760
        %v7385 = vsub.f32 %v1614, %v7384
        %v7386 = vand.u32 %v7385, 4294901760
        %7387 = vmatpush.msra.mxu0 %v7386
        %v7388 = vand.u32 %v1613, 4294901760
        %v7389 = vsub.f32 %v1613, %v7388
        %v7390 = vand.u32 %v7389, 4294901760
        %7391 = vmatpush.msra.mxu0 %v7390
        %v7392 = vand.u32 %v1612, 4294901760
        %v7393 = vsub.f32 %v1612, %v7392
        %v7394 = vand.u32 %v7393, 4294901760
        %7395 = vmatpush.msra.mxu0 %v7394
        %v7396 = vand.u32 %v7191, 4294901760
        %7397 = vmatmul.f32.gmra.mxu0 %v7396
        %v7398 = vpop.f32.mrf.mxu0
        %v7399 = vadd.f32 %v7354, %v7398
        %7400 = vdwg.mxu0
        %7401 = vmatpush.msra.mxu0 0.0
        %7402 = vmatpush.msra.mxu0 0.0
        %7403 = vmatpush.msra.mxu0 0.0
        %7404 = vmatpush.msra.mxu0 0.0
        %7405 = vmatpush.msra.mxu0 0.0
        %7406 = vmatpush.msra.mxu0 0.0
        %7407 = vmatpush.msra.mxu0 0.0
        %7408 = vmatpush.msra.mxu0 0.0
        %v7409 = vand.u32 %v1619, 4294901760
        %7410 = vmatpush.msra.mxu0 %v7409
        %v7411 = vand.u32 %v1618, 4294901760
        %7412 = vmatpush.msra.mxu0 %v7411
        %v7413 = vand.u32 %v1617, 4294901760
        %7414 = vmatpush.msra.mxu0 %v7413
        %v7415 = vand.u32 %v1616, 4294901760
        %7416 = vmatpush.msra.mxu0 %v7415
        %v7417 = vand.u32 %v1615, 4294901760
        %7418 = vmatpush.msra.mxu0 %v7417
        %v7419 = vand.u32 %v1614, 4294901760
        %7420 = vmatpush.msra.mxu0 %v7419
        %v7421 = vand.u32 %v1613, 4294901760
        %7422 = vmatpush.msra.mxu0 %v7421
        %v7423 = vand.u32 %v1612, 4294901760
        %7424 = vmatpush.msra.mxu0 %v7423
        %v7425 = vand.u32 %v7191, 4294901760
        %7426 = vmatmul.f32.gmra.mxu0 %v7425
        %v7427 = vpop.f32.mrf.mxu0
        %v7428 = vadd.f32 %v7399, %v7427
        %7429 = vdwg.mxu0
        %v7430 = vperm.slane %v7428, 0
        %v7431 = vsub.f32 %v7088, %v7430
        %v7432 = vsub.f32 %v7089, %v7430
        %v7433 = vsub.f32 %v7090, %v7430
        %v7434 = vsub.f32 %v7091, %v7430
        %v7435 = vsub.f32 %v7092, %v7430
        %v7436 = vsub.f32 %v7093, %v7430
        %v7437 = vsub.f32 %v7094, %v7430
        %v7438 = vsub.f32 %v7095, %v7430
        %v7439 = vsub.f32 %v7096, %v7430
        %v7440 = vsub.f32 %v7097, %v7430
        %v7441 = vsub.f32 %v7098, %v7430
        %v7442 = vsub.f32 %v7099, %v7430
        %v7443 = vsub.f32 %v7100, %v7430
        %v7444 = vsub.f32 %v7101, %v7430
        %v7445 = vsub.f32 %v7102, %v7430
        %v7446 = vsub.f32 %v7103, %v7430
        %v7447 = vsub.f32 %v7104, %v7430
        %v7448 = vsub.f32 %v7105, %v7430
        %v7449 = vsub.f32 %v7106, %v7430
        %v7450 = vsub.f32 %v7107, %v7430
        %v7451 = vsub.f32 %v7108, %v7430
        %v7452 = vsub.f32 %v7109, %v7430
        %v7453 = vsub.f32 %v7110, %v7430
        %v7454 = vsub.f32 %v7111, %v7430
        %v7455 = vsub.f32 %v7112, %v7430
        %v7456 = vsub.f32 %v7113, %v7430
        %v7457 = vsub.f32 %v7114, %v7430
        %v7458 = vsub.f32 %v7115, %v7430
        %v7459 = vsub.f32 %v7116, %v7430
        %v7460 = vsub.f32 %v7117, %v7430
        %v7461 = vsub.f32 %v7118, %v7430
        %v7462 = vsub.f32 %v7119, %v7430
        %v7463 = vmul.f32 %v7431, %v7431
        %v7464 = vmul.f32 %v7432, %v7432
        %v7465 = vmul.f32 %v7433, %v7433
        %v7466 = vmul.f32 %v7434, %v7434
        %v7467 = vmul.f32 %v7435, %v7435
        %v7468 = vmul.f32 %v7436, %v7436
        %v7469 = vmul.f32 %v7437, %v7437
        %v7470 = vmul.f32 %v7438, %v7438
        %v7471 = vmul.f32 %v7439, %v7439
        %v7472 = vmul.f32 %v7440, %v7440
        %v7473 = vmul.f32 %v7441, %v7441
        %v7474 = vmul.f32 %v7442, %v7442
        %v7475 = vmul.f32 %v7443, %v7443
        %v7476 = vmul.f32 %v7444, %v7444
        %v7477 = vmul.f32 %v7445, %v7445
        %v7478 = vmul.f32 %v7446, %v7446
        %v7479 = vmul.f32 %v7447, %v7447
        %v7480 = vmul.f32 %v7448, %v7448
        %v7481 = vmul.f32 %v7449, %v7449
        %v7482 = vmul.f32 %v7450, %v7450
        %v7483 = vmul.f32 %v7451, %v7451
        %v7484 = vmul.f32 %v7452, %v7452
        %v7485 = vmul.f32 %v7453, %v7453
        %v7486 = vmul.f32 %v7454, %v7454
        %v7487 = vmul.f32 %v7455, %v7455
        %v7488 = vmul.f32 %v7456, %v7456
        %v7489 = vmul.f32 %v7457, %v7457
        %v7490 = vmul.f32 %v7458, %v7458
        %v7491 = vmul.f32 %v7459, %v7459
        %v7492 = vmul.f32 %v7460, %v7460
        %v7493 = vmul.f32 %v7461, %v7461
        %v7494 = vmul.f32 %v7462, %v7462
        %v7495 = vsel %vm7120, %v7463, 0.0
        %v7496 = vsel %vm7120, %v7464, 0.0
        %v7497 = vadd.f32 %v7495, %v7496
        %v7498 = vsel %vm7120, %v7465, 0.0
        %v7499 = vadd.f32 %v7497, %v7498
        %v7500 = vsel %vm7120, %v7466, 0.0
        %v7501 = vadd.f32 %v7499, %v7500
        %v7502 = vsel %vm7120, %v7467, 0.0
        %v7503 = vadd.f32 %v7501, %v7502
        %v7504 = vsel %vm7120, %v7468, 0.0
        %v7505 = vadd.f32 %v7503, %v7504
        %v7506 = vsel %vm7120, %v7469, 0.0
        %v7507 = vadd.f32 %v7505, %v7506
        %v7508 = vsel %vm7120, %v7470, 0.0
        %v7509 = vadd.f32 %v7507, %v7508
        %v7510 = vsel %vm7120, %v7471, 0.0
        %v7511 = vadd.f32 %v7509, %v7510
        %v7512 = vsel %vm7120, %v7472, 0.0
        %v7513 = vadd.f32 %v7511, %v7512
        %v7514 = vsel %vm7120, %v7473, 0.0
        %v7515 = vadd.f32 %v7513, %v7514
        %v7516 = vsel %vm7120, %v7474, 0.0
        %v7517 = vadd.f32 %v7515, %v7516
        %v7518 = vsel %vm7120, %v7475, 0.0
        %v7519 = vadd.f32 %v7517, %v7518
        %v7520 = vsel %vm7120, %v7476, 0.0
        %v7521 = vadd.f32 %v7519, %v7520
        %v7522 = vsel %vm7120, %v7477, 0.0
        %v7523 = vadd.f32 %v7521, %v7522
        %v7524 = vsel %vm7120, %v7478, 0.0
        %v7525 = vadd.f32 %v7523, %v7524
        %v7526 = vsel %vm7120, %v7479, 0.0
        %v7527 = vadd.f32 %v7525, %v7526
        %v7528 = vsel %vm7120, %v7480, 0.0
        %v7529 = vadd.f32 %v7527, %v7528
        %v7530 = vsel %vm7120, %v7481, 0.0
        %v7531 = vadd.f32 %v7529, %v7530
        %v7532 = vsel %vm7120, %v7482, 0.0
        %v7533 = vadd.f32 %v7531, %v7532
        %v7534 = vsel %vm7120, %v7483, 0.0
        %v7535 = vadd.f32 %v7533, %v7534
        %v7536 = vsel %vm7120, %v7484, 0.0
        %v7537 = vadd.f32 %v7535, %v7536
        %v7538 = vsel %vm7120, %v7485, 0.0
        %v7539 = vadd.f32 %v7537, %v7538
        %v7540 = vsel %vm7120, %v7486, 0.0
        %v7541 = vadd.f32 %v7539, %v7540
        %v7542 = vsel %vm7120, %v7487, 0.0
        %v7543 = vadd.f32 %v7541, %v7542
        %v7544 = vsel %vm7120, %v7488, 0.0
        %v7545 = vadd.f32 %v7543, %v7544
        %v7546 = vsel %vm7120, %v7489, 0.0
        %v7547 = vadd.f32 %v7545, %v7546
        %v7548 = vsel %vm7120, %v7490, 0.0
        %v7549 = vadd.f32 %v7547, %v7548
        %v7550 = vsel %vm7120, %v7491, 0.0
        %v7551 = vadd.f32 %v7549, %v7550
        %v7552 = vsel %vm7120, %v7492, 0.0
        %v7553 = vadd.f32 %v7551, %v7552
        %v7554 = vsel %vm7120, %v7493, 0.0
        %v7555 = vadd.f32 %v7553, %v7554
        %v7556 = vsel %vm7120, %v7494, 0.0
        %v7557 = vadd.f32 %v7555, %v7556
        %v7558 = vrot.slane %v7557, 4
        %v7559 = vadd.f32 %v7557, %v7558
        %v7560 = vrot.slane %v7559, 2
        %v7561 = vadd.f32 %v7559, %v7560
        %v7562 = vrot.slane %v7561, 1
        %v7563 = vadd.f32 %v7561, %v7562
        %v7565 = vsel %vm7120, %v7563, 0
        %7567 = vmatpush.msra.mxu0 0.0
        %7568 = vmatpush.msra.mxu0 0.0
        %7569 = vmatpush.msra.mxu0 0.0
        %7570 = vmatpush.msra.mxu0 0.0
        %7571 = vmatpush.msra.mxu0 0.0
        %7572 = vmatpush.msra.mxu0 0.0
        %7573 = vmatpush.msra.mxu0 0.0
        %7574 = vmatpush.msra.mxu0 0.0
        %v7575 = vand.u32 %v1619, 4294901760
        %7576 = vmatpush.msra.mxu0 %v7575
        %v7577 = vand.u32 %v1618, 4294901760
        %7578 = vmatpush.msra.mxu0 %v7577
        %v7579 = vand.u32 %v1617, 4294901760
        %7580 = vmatpush.msra.mxu0 %v7579
        %v7581 = vand.u32 %v1616, 4294901760
        %7582 = vmatpush.msra.mxu0 %v7581
        %v7583 = vand.u32 %v1615, 4294901760
        %7584 = vmatpush.msra.mxu0 %v7583
        %v7585 = vand.u32 %v1614, 4294901760
        %7586 = vmatpush.msra.mxu0 %v7585
        %v7587 = vand.u32 %v1613, 4294901760
        %7588 = vmatpush.msra.mxu0 %v7587
        %v7589 = vand.u32 %v1612, 4294901760
        %7590 = vmatpush.msra.mxu0 %v7589
        %v7591 = vand.u32 %v7565, 4294901760
        %v7592 = vsub.f32 %v7565, %v7591
        %v7593 = vand.u32 %v7592, 4294901760
        %v7594 = vsub.f32 %v7592, %v7593
        %v7595 = vand.u32 %v7594, 4294901760
        %7596 = vmatmul.f32.gmra.mxu0 %v7595
        %v7597 = vpop.f32.mrf.mxu0
        %v7598 = vadd.f32 1e-05, %v7597
        %7599 = vdwg.mxu0
        %7600 = vmatpush.msra.mxu0 0.0
        %7601 = vmatpush.msra.mxu0 0.0
        %7602 = vmatpush.msra.mxu0 0.0
        %7603 = vmatpush.msra.mxu0 0.0
        %7604 = vmatpush.msra.mxu0 0.0
        %7605 = vmatpush.msra.mxu0 0.0
        %7606 = vmatpush.msra.mxu0 0.0
        %7607 = vmatpush.msra.mxu0 0.0
        %v7608 = vand.u32 %v1619, 4294901760
        %v7609 = vsub.f32 %v1619, %v7608
        %v7610 = vand.u32 %v7609, 4294901760
        %v7611 = vsub.f32 %v7609, %v7610
        %v7612 = vand.u32 %v7611, 4294901760
        %7613 = vmatpush.msra.mxu0 %v7612
        %v7614 = vand.u32 %v1618, 4294901760
        %v7615 = vsub.f32 %v1618, %v7614
        %v7616 = vand.u32 %v7615, 4294901760
        %v7617 = vsub.f32 %v7615, %v7616
        %v7618 = vand.u32 %v7617, 4294901760
        %7619 = vmatpush.msra.mxu0 %v7618
        %v7620 = vand.u32 %v1617, 4294901760
        %v7621 = vsub.f32 %v1617, %v7620
        %v7622 = vand.u32 %v7621, 4294901760
        %v7623 = vsub.f32 %v7621, %v7622
        %v7624 = vand.u32 %v7623, 4294901760
        %7625 = vmatpush.msra.mxu0 %v7624
        %v7626 = vand.u32 %v1616, 4294901760
        %v7627 = vsub.f32 %v1616, %v7626
        %v7628 = vand.u32 %v7627, 4294901760
        %v7629 = vsub.f32 %v7627, %v7628
        %v7630 = vand.u32 %v7629, 4294901760
        %7631 = vmatpush.msra.mxu0 %v7630
        %v7632 = vand.u32 %v1615, 4294901760
        %v7633 = vsub.f32 %v1615, %v7632
        %v7634 = vand.u32 %v7633, 4294901760
        %v7635 = vsub.f32 %v7633, %v7634
        %v7636 = vand.u32 %v7635, 4294901760
        %7637 = vmatpush.msra.mxu0 %v7636
        %v7638 = vand.u32 %v1614, 4294901760
        %v7639 = vsub.f32 %v1614, %v7638
        %v7640 = vand.u32 %v7639, 4294901760
        %v7641 = vsub.f32 %v7639, %v7640
        %v7642 = vand.u32 %v7641, 4294901760
        %7643 = vmatpush.msra.mxu0 %v7642
        %v7644 = vand.u32 %v1613, 4294901760
        %v7645 = vsub.f32 %v1613, %v7644
        %v7646 = vand.u32 %v7645, 4294901760
        %v7647 = vsub.f32 %v7645, %v7646
        %v7648 = vand.u32 %v7647, 4294901760
        %7649 = vmatpush.msra.mxu0 %v7648
        %v7650 = vand.u32 %v1612, 4294901760
        %v7651 = vsub.f32 %v1612, %v7650
        %v7652 = vand.u32 %v7651, 4294901760
        %v7653 = vsub.f32 %v7651, %v7652
        %v7654 = vand.u32 %v7653, 4294901760
        %7655 = vmatpush.msra.mxu0 %v7654
        %v7656 = vand.u32 %v7565, 4294901760
        %7657 = vmatmul.f32.gmra.mxu0 %v7656
        %v7658 = vpop.f32.mrf.mxu0
        %v7659 = vadd.f32 %v7598, %v7658
        %7660 = vdwg.mxu0
        %7661 = vmatpush.msra.mxu0 0.0
        %7662 = vmatpush.msra.mxu0 0.0
        %7663 = vmatpush.msra.mxu0 0.0
        %7664 = vmatpush.msra.mxu0 0.0
        %7665 = vmatpush.msra.mxu0 0.0
        %7666 = vmatpush.msra.mxu0 0.0
        %7667 = vmatpush.msra.mxu0 0.0
        %7668 = vmatpush.msra.mxu0 0.0
        %v7669 = vand.u32 %v1619, 4294901760
        %v7670 = vsub.f32 %v1619, %v7669
        %7671 = vmatpush.msra.mxu0 %v7670
        %v7672 = vand.u32 %v1618, 4294901760
        %v7673 = vsub.f32 %v1618, %v7672
        %7674 = vmatpush.msra.mxu0 %v7673
        %v7675 = vand.u32 %v1617, 4294901760
        %v7676 = vsub.f32 %v1617, %v7675
        %7677 = vmatpush.msra.mxu0 %v7676
        %v7678 = vand.u32 %v1616, 4294901760
        %v7679 = vsub.f32 %v1616, %v7678
        %7680 = vmatpush.msra.mxu0 %v7679
        %v7681 = vand.u32 %v1615, 4294901760
        %v7682 = vsub.f32 %v1615, %v7681
        %7683 = vmatpush.msra.mxu0 %v7682
        %v7684 = vand.u32 %v1614, 4294901760
        %v7685 = vsub.f32 %v1614, %v7684
        %7686 = vmatpush.msra.mxu0 %v7685
        %v7687 = vand.u32 %v1613, 4294901760
        %v7688 = vsub.f32 %v1613, %v7687
        %7689 = vmatpush.msra.mxu0 %v7688
        %v7690 = vand.u32 %v1612, 4294901760
        %v7691 = vsub.f32 %v1612, %v7690
        %7692 = vmatpush.msra.mxu0 %v7691
        %v7693 = vand.u32 %v7565, 4294901760
        %v7694 = vsub.f32 %v7565, %v7693
        %7695 = vmatmul.f32.gmra.mxu0 %v7694
        %v7696 = vpop.f32.mrf.mxu0
        %v7697 = vadd.f32 %v7659, %v7696
        %7698 = vdwg.mxu0
        %7699 = vmatpush.msra.mxu0 0.0
        %7700 = vmatpush.msra.mxu0 0.0
        %7701 = vmatpush.msra.mxu0 0.0
        %7702 = vmatpush.msra.mxu0 0.0
        %7703 = vmatpush.msra.mxu0 0.0
        %7704 = vmatpush.msra.mxu0 0.0
        %7705 = vmatpush.msra.mxu0 0.0
        %7706 = vmatpush.msra.mxu0 0.0
        %v7707 = vand.u32 %v1619, 4294901760
        %7708 = vmatpush.msra.mxu0 %v7707
        %v7709 = vand.u32 %v1618, 4294901760
        %7710 = vmatpush.msra.mxu0 %v7709
        %v7711 = vand.u32 %v1617, 4294901760
        %7712 = vmatpush.msra.mxu0 %v7711
        %v7713 = vand.u32 %v1616, 4294901760
        %7714 = vmatpush.msra.mxu0 %v7713
        %v7715 = vand.u32 %v1615, 4294901760
        %7716 = vmatpush.msra.mxu0 %v7715
        %v7717 = vand.u32 %v1614, 4294901760
        %7718 = vmatpush.msra.mxu0 %v7717
        %v7719 = vand.u32 %v1613, 4294901760
        %7720 = vmatpush.msra.mxu0 %v7719
        %v7721 = vand.u32 %v1612, 4294901760
        %7722 = vmatpush.msra.mxu0 %v7721
        %v7723 = vand.u32 %v7565, 4294901760
        %v7724 = vsub.f32 %v7565, %v7723
        %v7725 = vand.u32 %v7724, 4294901760
        %7726 = vmatmul.f32.gmra.mxu0 %v7725
        %v7727 = vpop.f32.mrf.mxu0
        %v7728 = vadd.f32 %v7697, %v7727
        %7729 = vdwg.mxu0
        %7730 = vmatpush.msra.mxu0 0.0
        %7731 = vmatpush.msra.mxu0 0.0
        %7732 = vmatpush.msra.mxu0 0.0
        %7733 = vmatpush.msra.mxu0 0.0
        %7734 = vmatpush.msra.mxu0 0.0
        %7735 = vmatpush.msra.mxu0 0.0
        %7736 = vmatpush.msra.mxu0 0.0
        %7737 = vmatpush.msra.mxu0 0.0
        %v7738 = vand.u32 %v1619, 4294901760
        %v7739 = vsub.f32 %v1619, %v7738
        %v7740 = vand.u32 %v7739, 4294901760
        %7741 = vmatpush.msra.mxu0 %v7740
        %v7742 = vand.u32 %v1618, 4294901760
        %v7743 = vsub.f32 %v1618, %v7742
        %v7744 = vand.u32 %v7743, 4294901760
        %7745 = vmatpush.msra.mxu0 %v7744
        %v7746 = vand.u32 %v1617, 4294901760
        %v7747 = vsub.f32 %v1617, %v7746
        %v7748 = vand.u32 %v7747, 4294901760
        %7749 = vmatpush.msra.mxu0 %v7748
        %v7750 = vand.u32 %v1616, 4294901760
        %v7751 = vsub.f32 %v1616, %v7750
        %v7752 = vand.u32 %v7751, 4294901760
        %7753 = vmatpush.msra.mxu0 %v7752
        %v7754 = vand.u32 %v1615, 4294901760
        %v7755 = vsub.f32 %v1615, %v7754
        %v7756 = vand.u32 %v7755, 4294901760
        %7757 = vmatpush.msra.mxu0 %v7756
        %v7758 = vand.u32 %v1614, 4294901760
        %v7759 = vsub.f32 %v1614, %v7758
        %v7760 = vand.u32 %v7759, 4294901760
        %7761 = vmatpush.msra.mxu0 %v7760
        %v7762 = vand.u32 %v1613, 4294901760
        %v7763 = vsub.f32 %v1613, %v7762
        %v7764 = vand.u32 %v7763, 4294901760
        %7765 = vmatpush.msra.mxu0 %v7764
        %v7766 = vand.u32 %v1612, 4294901760
        %v7767 = vsub.f32 %v1612, %v7766
        %v7768 = vand.u32 %v7767, 4294901760
        %7769 = vmatpush.msra.mxu0 %v7768
        %v7770 = vand.u32 %v7565, 4294901760
        %7771 = vmatmul.f32.gmra.mxu0 %v7770
        %v7772 = vpop.f32.mrf.mxu0
        %v7773 = vadd.f32 %v7728, %v7772
        %7774 = vdwg.mxu0
        %7775 = vmatpush.msra.mxu0 0.0
        %7776 = vmatpush.msra.mxu0 0.0
        %7777 = vmatpush.msra.mxu0 0.0
        %7778 = vmatpush.msra.mxu0 0.0
        %7779 = vmatpush.msra.mxu0 0.0
        %7780 = vmatpush.msra.mxu0 0.0
        %7781 = vmatpush.msra.mxu0 0.0
        %7782 = vmatpush.msra.mxu0 0.0
        %v7783 = vand.u32 %v1619, 4294901760
        %7784 = vmatpush.msra.mxu0 %v7783
        %v7785 = vand.u32 %v1618, 4294901760
        %7786 = vmatpush.msra.mxu0 %v7785
        %v7787 = vand.u32 %v1617, 4294901760
        %7788 = vmatpush.msra.mxu0 %v7787
        %v7789 = vand.u32 %v1616, 4294901760
        %7790 = vmatpush.msra.mxu0 %v7789
        %v7791 = vand.u32 %v1615, 4294901760
        %7792 = vmatpush.msra.mxu0 %v7791
        %v7793 = vand.u32 %v1614, 4294901760
        %7794 = vmatpush.msra.mxu0 %v7793
        %v7795 = vand.u32 %v1613, 4294901760
        %7796 = vmatpush.msra.mxu0 %v7795
        %v7797 = vand.u32 %v1612, 4294901760
        %7798 = vmatpush.msra.mxu0 %v7797
        %v7799 = vand.u32 %v7565, 4294901760
        %7800 = vmatmul.f32.gmra.mxu0 %v7799
        %v7801 = vpop.f32.mrf.mxu0
        %v7802 = vadd.f32 %v7773, %v7801
        %7803 = vdwg.mxu0
        %v7804 = vrsqrt.pop %v7802
        %v7805 = vmul.f32 %v7804, %v7802
        %v7806 = vmul.f32 %v7805, %v7804
        %v7807 = vmul.f32 0.5, %v7806
        %v7808 = vsub.f32 1.5, %v7807
        %v7809 = vmul.f32 %v7804, %v7808
        %vm7810 = vweird.f32 %v7802
        %vm7811 = vweird.f32 %v7804
        %vm7812 = vmor %vm7810, %vm7811
        %v7813 = vsel %vm7812, %v7804, %v7809
        %v7814 = vmul.f32 %v7813, %v5920
        %v7815 = vperm.slane %v7814, 0
        %v7816 = vmul.f32 %v7431, %v7815
        %v7817 = vmul.f32 %v7432, %v7815
        %v7818 = vmul.f32 %v7433, %v7815
        %v7819 = vmul.f32 %v7434, %v7815
        %v7820 = vmul.f32 %v7435, %v7815
        %v7821 = vmul.f32 %v7436, %v7815
        %v7822 = vmul.f32 %v7437, %v7815
        %v7823 = vmul.f32 %v7438, %v7815
        %v7824 = vmul.f32 %v7439, %v7815
        %v7825 = vmul.f32 %v7440, %v7815
        %v7826 = vmul.f32 %v7441, %v7815
        %v7827 = vmul.f32 %v7442, %v7815
        %v7828 = vmul.f32 %v7443, %v7815
        %v7829 = vmul.f32 %v7444, %v7815
        %v7830 = vmul.f32 %v7445, %v7815
        %v7831 = vmul.f32 %v7446, %v7815
        %v7832 = vmul.f32 %v7447, %v7815
        %v7833 = vmul.f32 %v7448, %v7815
        %v7834 = vmul.f32 %v7449, %v7815
        %v7835 = vmul.f32 %v7450, %v7815
        %v7836 = vmul.f32 %v7451, %v7815
        %v7837 = vmul.f32 %v7452, %v7815
        %v7838 = vmul.f32 %v7453, %v7815
        %v7839 = vmul.f32 %v7454, %v7815
        %v7840 = vmul.f32 %v7455, %v7815
        %v7841 = vmul.f32 %v7456, %v7815
        %v7842 = vmul.f32 %v7457, %v7815
        %v7843 = vmul.f32 %v7458, %v7815
        %v7844 = vmul.f32 %v7459, %v7815
        %v7845 = vmul.f32 %v7460, %v7815
        %v7846 = vmul.f32 %v7461, %v7815
        %v7847 = vmul.f32 %v7462, %v7815
        %v7849 = vperm.slane %v5922, 0
        %v7851 = vadd.f32 %v7816, %v7849
        %v7852 = vadd.f32 %v7817, %v7849
        %v7853 = vadd.f32 %v7818, %v7849
        %v7854 = vadd.f32 %v7819, %v7849
        %v7855 = vadd.f32 %v7820, %v7849
        %v7856 = vadd.f32 %v7821, %v7849
        %v7857 = vadd.f32 %v7822, %v7849
        %v7858 = vadd.f32 %v7823, %v7849
        %v7859 = vadd.f32 %v7824, %v7849
        %v7860 = vadd.f32 %v7825, %v7849
        %v7861 = vadd.f32 %v7826, %v7849
        %v7862 = vadd.f32 %v7827, %v7849
        %v7863 = vadd.f32 %v7828, %v7849
        %v7864 = vadd.f32 %v7829, %v7849
        %v7865 = vadd.f32 %v7830, %v7849
        %v7866 = vadd.f32 %v7831, %v7849
        %v7867 = vadd.f32 %v7832, %v7849
        %v7868 = vadd.f32 %v7833, %v7849
        %v7869 = vadd.f32 %v7834, %v7849
        %v7870 = vadd.f32 %v7835, %v7849
        %v7871 = vadd.f32 %v7836, %v7849
        %v7872 = vadd.f32 %v7837, %v7849
        %v7873 = vadd.f32 %v7838, %v7849
        %v7874 = vadd.f32 %v7839, %v7849
        %v7875 = vadd.f32 %v7840, %v7849
        %v7876 = vadd.f32 %v7841, %v7849
        %v7877 = vadd.f32 %v7842, %v7849
        %v7878 = vadd.f32 %v7843, %v7849
        %v7879 = vadd.f32 %v7844, %v7849
        %v7880 = vadd.f32 %v7845, %v7849
        %v7881 = vadd.f32 %v7846, %v7849
        %v7882 = vadd.f32 %v7847, %v7849
        %7915 = vrot.lane.b32.xlu0 %v7851, 64
        %v7916 = vpop.permute.xlu0 %7915
        %7917 = vrot.lane.b32.xlu0 %v7852, 64
        %v7918 = vpop.permute.xlu0 %7917
        %7919 = vrot.lane.b32.xlu0 %v7853, 64
        %v7920 = vpop.permute.xlu0 %7919
        %7921 = vrot.lane.b32.xlu0 %v7854, 64
        %v7922 = vpop.permute.xlu0 %7921
        %7923 = vrot.lane.b32.xlu0 %v7855, 64
        %v7924 = vpop.permute.xlu0 %7923
        %7925 = vrot.lane.b32.xlu0 %v7856, 64
        %v7926 = vpop.permute.xlu0 %7925
        %7927 = vrot.lane.b32.xlu0 %v7857, 64
        %v7928 = vpop.permute.xlu0 %7927
        %7929 = vrot.lane.b32.xlu0 %v7858, 64
        %v7930 = vpop.permute.xlu0 %7929
        %7931 = vrot.lane.b32.xlu0 %v7859, 64
        %v7932 = vpop.permute.xlu0 %7931
        %7933 = vrot.lane.b32.xlu0 %v7860, 64
        %v7934 = vpop.permute.xlu0 %7933
        %7935 = vrot.lane.b32.xlu0 %v7861, 64
        %v7936 = vpop.permute.xlu0 %7935
        %7937 = vrot.lane.b32.xlu0 %v7862, 64
        %v7938 = vpop.permute.xlu0 %7937
        %7939 = vrot.lane.b32.xlu0 %v7863, 64
        %v7940 = vpop.permute.xlu0 %7939
        %7941 = vrot.lane.b32.xlu0 %v7864, 64
        %v7942 = vpop.permute.xlu0 %7941
        %7943 = vrot.lane.b32.xlu0 %v7865, 64
        %v7944 = vpop.permute.xlu0 %7943
        %7945 = vrot.lane.b32.xlu0 %v7866, 64
        %v7946 = vpop.permute.xlu0 %7945
        %7947 = vrot.lane.b32.xlu0 %v7867, 64
        %v7948 = vpop.permute.xlu0 %7947
        %7949 = vrot.lane.b32.xlu0 %v7868, 64
        %v7950 = vpop.permute.xlu0 %7949
        %7951 = vrot.lane.b32.xlu0 %v7869, 64
        %v7952 = vpop.permute.xlu0 %7951
        %7953 = vrot.lane.b32.xlu0 %v7870, 64
        %v7954 = vpop.permute.xlu0 %7953
        %7955 = vrot.lane.b32.xlu0 %v7871, 64
        %v7956 = vpop.permute.xlu0 %7955
        %7957 = vrot.lane.b32.xlu0 %v7872, 64
        %v7958 = vpop.permute.xlu0 %7957
        %7959 = vrot.lane.b32.xlu0 %v7873, 64
        %v7960 = vpop.permute.xlu0 %7959
        %7961 = vrot.lane.b32.xlu0 %v7874, 64
        %v7962 = vpop.permute.xlu0 %7961
        %7963 = vrot.lane.b32.xlu0 %v7875, 64
        %v7964 = vpop.permute.xlu0 %7963
        %7965 = vrot.lane.b32.xlu0 %v7876, 64
        %v7966 = vpop.permute.xlu0 %7965
        %7967 = vrot.lane.b32.xlu0 %v7877, 64
        %v7968 = vpop.permute.xlu0 %7967
        %7969 = vrot.lane.b32.xlu0 %v7878, 64
        %v7970 = vpop.permute.xlu0 %7969
        %7971 = vrot.lane.b32.xlu0 %v7879, 64
        %v7972 = vpop.permute.xlu0 %7971
        %7973 = vrot.lane.b32.xlu0 %v7880, 64
        %v7974 = vpop.permute.xlu0 %7973
        %7975 = vrot.lane.b32.xlu0 %v7881, 64
        %v7976 = vpop.permute.xlu0 %7975
        %7977 = vrot.lane.b32.xlu0 %v7882, 64
        %v7978 = vpop.permute.xlu0 %7977
        %v8011 = vsel %vm7120, %v5884, %v7916
        %v8012 = vsel %vm7120, %v5885, %v7918
        %v8013 = vsel %vm7120, %v5886, %v7920
        %v8014 = vsel %vm7120, %v5887, %v7922
        %v8015 = vsel %vm7120, %v5888, %v7924
        %v8016 = vsel %vm7120, %v5889, %v7926
        %v8017 = vsel %vm7120, %v5890, %v7928
        %v8018 = vsel %vm7120, %v5891, %v7930
        %v8019 = vsel %vm7120, %v5892, %v7932
        %v8020 = vsel %vm7120, %v5893, %v7934
        %v8021 = vsel %vm7120, %v5894, %v7936
        %v8022 = vsel %vm7120, %v5895, %v7938
        %v8023 = vsel %vm7120, %v5896, %v7940
        %v8024 = vsel %vm7120, %v5897, %v7942
        %v8025 = vsel %vm7120, %v5898, %v7944
        %v8026 = vsel %vm7120, %v5899, %v7946
        %v8027 = vsel %vm7120, %v5900, %v7948
        %v8028 = vsel %vm7120, %v5901, %v7950
        %v8029 = vsel %vm7120, %v5902, %v7952
        %v8030 = vsel %vm7120, %v5903, %v7954
        %v8031 = vsel %vm7120, %v5904, %v7956
        %v8032 = vsel %vm7120, %v5905, %v7958
        %v8033 = vsel %vm7120, %v5906, %v7960
        %v8034 = vsel %vm7120, %v5907, %v7962
        %v8035 = vsel %vm7120, %v5908, %v7964
        %v8036 = vsel %vm7120, %v5909, %v7966
        %v8037 = vsel %vm7120, %v5910, %v7968
        %v8038 = vsel %vm7120, %v5911, %v7970
        %v8039 = vsel %vm7120, %v5912, %v7972
        %v8040 = vsel %vm7120, %v5913, %v7974
        %v8041 = vsel %vm7120, %v5914, %v7976
        %v8042 = vsel %vm7120, %v5915, %v7978
        %v8043 = vadd.f32 %v8011, 3.0
        %v8044 = vadd.f32 %v8012, 3.0
        %v8045 = vadd.f32 %v8013, 3.0
        %v8046 = vadd.f32 %v8014, 3.0
        %v8047 = vadd.f32 %v8015, 3.0
        %v8048 = vadd.f32 %v8016, 3.0
        %v8049 = vadd.f32 %v8017, 3.0
        %v8050 = vadd.f32 %v8018, 3.0
        %v8051 = vadd.f32 %v8019, 3.0
        %v8052 = vadd.f32 %v8020, 3.0
        %v8053 = vadd.f32 %v8021, 3.0
        %v8054 = vadd.f32 %v8022, 3.0
        %v8055 = vadd.f32 %v8023, 3.0
        %v8056 = vadd.f32 %v8024, 3.0
        %v8057 = vadd.f32 %v8025, 3.0
        %v8058 = vadd.f32 %v8026, 3.0
        %v8059 = vadd.f32 %v8027, 3.0
        %v8060 = vadd.f32 %v8028, 3.0
        %v8061 = vadd.f32 %v8029, 3.0
        %v8062 = vadd.f32 %v8030, 3.0
        %v8063 = vadd.f32 %v8031, 3.0
        %v8064 = vadd.f32 %v8032, 3.0
        %v8065 = vadd.f32 %v8033, 3.0
        %v8066 = vadd.f32 %v8034, 3.0
        %v8067 = vadd.f32 %v8035, 3.0
        %v8068 = vadd.f32 %v8036, 3.0
        %v8069 = vadd.f32 %v8037, 3.0
        %v8070 = vadd.f32 %v8038, 3.0
        %v8071 = vadd.f32 %v8039, 3.0
        %v8072 = vadd.f32 %v8040, 3.0
        %v8073 = vadd.f32 %v8041, 3.0
        %v8074 = vadd.f32 %v8042, 3.0
        %v8075 = vmax.f32 %v8043, 0.0
        %v8076 = vmax.f32 %v8044, 0.0
        %v8077 = vmax.f32 %v8045, 0.0
        %v8078 = vmax.f32 %v8046, 0.0
        %v8079 = vmax.f32 %v8047, 0.0
        %v8080 = vmax.f32 %v8048, 0.0
        %v8081 = vmax.f32 %v8049, 0.0
        %v8082 = vmax.f32 %v8050, 0.0
        %v8083 = vmax.f32 %v8051, 0.0
        %v8084 = vmax.f32 %v8052, 0.0
        %v8085 = vmax.f32 %v8053, 0.0
        %v8086 = vmax.f32 %v8054, 0.0
        %v8087 = vmax.f32 %v8055, 0.0
        %v8088 = vmax.f32 %v8056, 0.0
        %v8089 = vmax.f32 %v8057, 0.0
        %v8090 = vmax.f32 %v8058, 0.0
        %v8091 = vmax.f32 %v8059, 0.0
        %v8092 = vmax.f32 %v8060, 0.0
        %v8093 = vmax.f32 %v8061, 0.0
        %v8094 = vmax.f32 %v8062, 0.0
        %v8095 = vmax.f32 %v8063, 0.0
        %v8096 = vmax.f32 %v8064, 0.0
        %v8097 = vmax.f32 %v8065, 0.0
        %v8098 = vmax.f32 %v8066, 0.0
        %v8099 = vmax.f32 %v8067, 0.0
        %v8100 = vmax.f32 %v8068, 0.0
        %v8101 = vmax.f32 %v8069, 0.0
        %v8102 = vmax.f32 %v8070, 0.0
        %v8103 = vmax.f32 %v8071, 0.0
        %v8104 = vmax.f32 %v8072, 0.0
        %v8105 = vmax.f32 %v8073, 0.0
        %v8106 = vmax.f32 %v8074, 0.0
        %v8107 = vmin.f32 %v8075, 6.0
        %v8108 = vmin.f32 %v8076, 6.0
        %v8109 = vmin.f32 %v8077, 6.0
        %v8110 = vmin.f32 %v8078, 6.0
        %v8111 = vmin.f32 %v8079, 6.0
        %v8112 = vmin.f32 %v8080, 6.0
        %v8113 = vmin.f32 %v8081, 6.0
        %v8114 = vmin.f32 %v8082, 6.0
        %v8115 = vmin.f32 %v8083, 6.0
        %v8116 = vmin.f32 %v8084, 6.0
        %v8117 = vmin.f32 %v8085, 6.0
        %v8118 = vmin.f32 %v8086, 6.0
        %v8119 = vmin.f32 %v8087, 6.0
        %v8120 = vmin.f32 %v8088, 6.0
        %v8121 = vmin.f32 %v8089, 6.0
        %v8122 = vmin.f32 %v8090, 6.0
        %v8123 = vmin.f32 %v8091, 6.0
        %v8124 = vmin.f32 %v8092, 6.0
        %v8125 = vmin.f32 %v8093, 6.0
        %v8126 = vmin.f32 %v8094, 6.0
        %v8127 = vmin.f32 %v8095, 6.0
        %v8128 = vmin.f32 %v8096, 6.0
        %v8129 = vmin.f32 %v8097, 6.0
        %v8130 = vmin.f32 %v8098, 6.0
        %v8131 = vmin.f32 %v8099, 6.0
        %v8132 = vmin.f32 %v8100, 6.0
        %v8133 = vmin.f32 %v8101, 6.0
        %v8134 = vmin.f32 %v8102, 6.0
        %v8135 = vmin.f32 %v8103, 6.0
        %v8136 = vmin.f32 %v8104, 6.0
        %v8137 = vmin.f32 %v8105, 6.0
        %v8138 = vmin.f32 %v8106, 6.0
        %v8139 = vmul.f32 %v8011, %v8107
        %v8140 = vmul.f32 %v8012, %v8108
        %v8141 = vmul.f32 %v8013, %v8109
        %v8142 = vmul.f32 %v8014, %v8110
        %v8143 = vmul.f32 %v8015, %v8111
        %v8144 = vmul.f32 %v8016, %v8112
        %v8145 = vmul.f32 %v8017, %v8113
        %v8146 = vmul.f32 %v8018, %v8114
        %v8147 = vmul.f32 %v8019, %v8115
        %v8148 = vmul.f32 %v8020, %v8116
        %v8149 = vmul.f32 %v8021, %v8117
        %v8150 = vmul.f32 %v8022, %v8118
        %v8151 = vmul.f32 %v8023, %v8119
        %v8152 = vmul.f32 %v8024, %v8120
        %v8153 = vmul.f32 %v8025, %v8121
        %v8154 = vmul.f32 %v8026, %v8122
        %v8155 = vmul.f32 %v8027, %v8123
        %v8156 = vmul.f32 %v8028, %v8124
        %v8157 = vmul.f32 %v8029, %v8125
        %v8158 = vmul.f32 %v8030, %v8126
        %v8159 = vmul.f32 %v8031, %v8127
        %v8160 = vmul.f32 %v8032, %v8128
        %v8161 = vmul.f32 %v8033, %v8129
        %v8162 = vmul.f32 %v8034, %v8130
        %v8163 = vmul.f32 %v8035, %v8131
        %v8164 = vmul.f32 %v8036, %v8132
        %v8165 = vmul.f32 %v8037, %v8133
        %v8166 = vmul.f32 %v8038, %v8134
        %v8167 = vmul.f32 %v8039, %v8135
        %v8168 = vmul.f32 %v8040, %v8136
        %v8169 = vmul.f32 %v8041, %v8137
        %v8170 = vmul.f32 %v8042, %v8138
        %v8171 = vmul.f32 %v8139, 0.16666667
        %v8172 = vmul.f32 %v8140, 0.16666667
        %v8173 = vmul.f32 %v8141, 0.16666667
        %v8174 = vmul.f32 %v8142, 0.16666667
        %v8175 = vmul.f32 %v8143, 0.16666667
        %v8176 = vmul.f32 %v8144, 0.16666667
        %v8177 = vmul.f32 %v8145, 0.16666667
        %v8178 = vmul.f32 %v8146, 0.16666667
        %v8179 = vmul.f32 %v8147, 0.16666667
        %v8180 = vmul.f32 %v8148, 0.16666667
        %v8181 = vmul.f32 %v8149, 0.16666667
        %v8182 = vmul.f32 %v8150, 0.16666667
        %v8183 = vmul.f32 %v8151, 0.16666667
        %v8184 = vmul.f32 %v8152, 0.16666667
        %v8185 = vmul.f32 %v8153, 0.16666667
        %v8186 = vmul.f32 %v8154, 0.16666667
        %v8187 = vmul.f32 %v8155, 0.16666667
        %v8188 = vmul.f32 %v8156, 0.16666667
        %v8189 = vmul.f32 %v8157, 0.16666667
        %v8190 = vmul.f32 %v8158, 0.16666667
        %v8191 = vmul.f32 %v8159, 0.16666667
        %v8192 = vmul.f32 %v8160, 0.16666667
        %v8193 = vmul.f32 %v8161, 0.16666667
        %v8194 = vmul.f32 %v8162, 0.16666667
        %v8195 = vmul.f32 %v8163, 0.16666667
        %v8196 = vmul.f32 %v8164, 0.16666667
        %v8197 = vmul.f32 %v8165, 0.16666667
        %v8198 = vmul.f32 %v8166, 0.16666667
        %v8199 = vmul.f32 %v8167, 0.16666667
        %v8200 = vmul.f32 %v8168, 0.16666667
        %v8201 = vmul.f32 %v8169, 0.16666667
        %v8202 = vmul.f32 %v8170, 0.16666667
        %8203 = vst [vmem:[%s325] sm:$0xff] %v8171
        %8204 = vst [vmem:[%s325 + $0x8] sm:$0xff] %v8172
        %8205 = vst [vmem:[%s325 + $0x10] sm:$0xff] %v8173
        %8206 = vst [vmem:[%s325 + $0x18] sm:$0xff] %v8174
        %8207 = vst [vmem:[%s325 + $0x20] sm:$0xff] %v8175
        %8208 = vst [vmem:[%s325 + $0x28] sm:$0xff] %v8176
        %8209 = vst [vmem:[%s325 + $0x30] sm:$0xff] %v8177
        %8210 = vst [vmem:[%s325 + $0x38] sm:$0xff] %v8178
        %8211 = vst [vmem:[%s325 + $0x40] sm:$0xff] %v8179
        %8212 = vst [vmem:[%s325 + $0x48] sm:$0xff] %v8180
        %8213 = vst [vmem:[%s325 + $0x50] sm:$0xff] %v8181
        %8214 = vst [vmem:[%s325 + $0x58] sm:$0xff] %v8182
        %8215 = vst [vmem:[%s325 + $0x60] sm:$0xff] %v8183
        %8216 = vst [vmem:[%s325 + $0x68] sm:$0xff] %v8184
        %8217 = vst [vmem:[%s325 + $0x70] sm:$0xff] %v8185
        %8218 = vst [vmem:[%s325 + $0x78] sm:$0xff] %v8186
        %8219 = vst [vmem:[%s325 + $0x80] sm:$0xff] %v8187
        %8220 = vst [vmem:[%s325 + $0x88] sm:$0xff] %v8188
        %8221 = vst [vmem:[%s325 + $0x90] sm:$0xff] %v8189
        %8222 = vst [vmem:[%s325 + $0x98] sm:$0xff] %v8190
        %8223 = vst [vmem:[%s325 + $0xa0] sm:$0xff] %v8191
        %8224 = vst [vmem:[%s325 + $0xa8] sm:$0xff] %v8192
        %8225 = vst [vmem:[%s325 + $0xb0] sm:$0xff] %v8193
        %8226 = vst [vmem:[%s325 + $0xb8] sm:$0xff] %v8194
        %8227 = vst [vmem:[%s325 + $0xc0] sm:$0xff] %v8195
        %8228 = vst [vmem:[%s325 + $0xc8] sm:$0xff] %v8196
        %8229 = vst [vmem:[%s325 + $0xd0] sm:$0xff] %v8197
        %8230 = vst [vmem:[%s325 + $0xd8] sm:$0xff] %v8198
        %8231 = vst [vmem:[%s325 + $0xe0] sm:$0xff] %v8199
        %8232 = vst [vmem:[%s325 + $0xe8] sm:$0xff] %v8200
        %8233 = vst [vmem:[%s325 + $0xf0] sm:$0xff] %v8201
        %8234 = vst [vmem:[%s325 + $0xf8] sm:$0xff] %v8202
        %s8235 = sand.u32 %s225, 1
        %s8236 = scalar_lea.sflag [#allocation3], %s8235
        %s8237 = sand.u32 %s225, 1
        %s8238 = smul.addr %s8237, 256
        %s8239 = scalar_lea.vmem [#allocation2], %s8238
        // Predicated region
        $region57: #{tpu_custom_call.1} parent=55 // pred_check
          %p8240 = pneg %p235
        $region58: #{tpu_custom_call.1} parent=55 // pred_check_branch
          %8242 = sbr.rel (%p8240) target = $region60
        $region59: #{tpu_custom_call.1} parent=55 // pred_region
          %8244 = vsyncadd %s8236, 0
          %s8245 = smul.addr %s23, 32
          %s8246 = smul.addr %s8245, 8
          %s8247 = scalar_lea.hbm %s9, %s8246
          %s8248 = sshll.u32 %s8239, 4
          %s8249 = int_to_ptr.vmem [resolvable:$true] %s8248
          %s8250 = sshll.u32 %s8247, 4
          %s8251 = int_to_ptr.hbm [resolvable:$true] %s8250
          %8256 = dma.vmem_to_hbm [thread:$0]  %s8249, 4096, %s8251, %s8236, 128, 128, 8
        $region60: #{tpu_custom_call.1} parent=55 // pred_fallthru
          _
      $region56: #{tpu_custom_call.1} parent=5 // pred_fallthru
        _
      %p8257 = scmp.le.s32.totalorder 2, %s18
      // Predicated region
      $region61: #{tpu_custom_call.1} parent=5 // pred_check
        %p8258 = pneg %p8257
      $region62: #{tpu_custom_call.1} parent=5 // pred_check_branch
        %8260 = sbr.rel (%p8258) target = $region64
      $region63: #{tpu_custom_call.1} parent=5 // pred_region
        %s8261 = ssub.s32 %s18, 2
        // Predicated region
        $region65: #{tpu_custom_call.1} parent=63 // pred_check
          %p8262 = pneg %p241
        $region66: #{tpu_custom_call.1} parent=63 // pred_check_branch
          %8264 = sbr.rel (%p8262) target = $region68
        $region67: #{tpu_custom_call.1} parent=63 // pred_region
          %s8265 = sand.u32 %s226, 1
          %s8266 = scalar_lea.sflag [#allocation3], %s8265
          %s8267 = sand.u32 %s226, 1
          %s8268 = smul.addr %s8267, 256
          %s8269 = scalar_lea.vmem [#allocation2], %s8268
          %8271 = dma.done %s8266, 4096
        $region68: #{tpu_custom_call.1} parent=63 // pred_fallthru
          _
      $region64: #{tpu_custom_call.1} parent=5 // pred_fallthru
        _
    $region6: #{tpu_custom_call.1} parent=1 // loop_footer
      %s22 = sadd.s32 1, %s18
    $region7: #{tpu_custom_call.1} parent=1 // loop_footer_branch
      %17 = sbr.rel target = $region3
    $region8: #{tpu_custom_call.1} parent=1 // loop_exit
      _
    %8272 = vsyncpa [#allocation3], 1
    %s8273 = scalar_lea.sflag [#allocation3], 1
    %8274 = vsyncpa %s8273, 1

</llo_original>
